<compile_context>
chip_gen: v5e
topology: v5e:2x2
jax: 0.10.0
libtpu: 0.0.40
codegen_flags: <defaults>
</compile_context>

<pallas_src>
import functools
import math

import jax
import jax.numpy as jnp
from jax.experimental import pallas as pl
from jax.experimental.pallas import tpu as pltpu


def _round_up(x, m):
    return ((x + m - 1) // m) * m


def _pad2d(a, rows, cols):
    r, c = a.shape
    return jnp.pad(a, ((0, rows - r), (0, cols - c)))


# --------------------------------------------------------------------------
# Fully fused GraphSAGE forward kernel (grid=(1,), everything VMEM-resident).
# --------------------------------------------------------------------------
def _graphsage_fused_kernel(adj_ref, x_ref, wn_ref, wr_ref, b_ref, w1_ref, w2_ref,
                            o_ref, *, n_layers, valid_out, compute_dtype):
    cd = compute_dtype
    adj = adj_ref[...]                                     # (Np, Np) bf16, loaded once
    h = x_ref[...]                                         # (Np, Fp) f32

    for li in range(n_layers):
        hc = h.astype(cd)
        wn = wn_ref[li].astype(cd)                         # (Fp, Fp)
        wr = wr_ref[li].astype(cd)                         # (Fp, Fp)
        # support = x @ W_neigh ; selfpart = x @ W_root + bias   (f32 accumulation)
        support = jnp.dot(hc, wn, preferred_element_type=jnp.float32).astype(cd)
        selfpart = jnp.dot(hc, wr, preferred_element_type=jnp.float32) + b_ref[li]
        # mean aggregation: A_mean @ support  (dominant matmul, bf16 in / f32 acc)
        y = jnp.dot(adj, support, preferred_element_type=jnp.float32) + selfpart
        if li < n_layers - 1:
            y = jax.nn.gelu(y, approximate=True)
        h = y

    # log_softmax over the (padded) feature lanes; padded lanes masked out.
    lane = jax.lax.broadcasted_iota(jnp.int32, h.shape, 1)
    valid = lane < valid_out
    hm = jnp.where(valid, h, jnp.float32(-1e30))
    m = jnp.max(hm, axis=1, keepdims=True)
    lse = jnp.log(jnp.sum(jnp.exp(hm - m), axis=1, keepdims=True)) + m
    logp = jnp.where(valid, hm - lse, 0.0)                 # 0 on padded lanes

    # readout = weight1 @ logp @ weight2  (padded rows/cols of w1/w2 are zero)
    r = jnp.dot(w1_ref[...], logp, preferred_element_type=jnp.float32)      # (8, Fp)
    o_ref[...] = jnp.dot(r, w2_ref[...],
                         preferred_element_type=jnp.float32).astype(o_ref.dtype)


def graphsage_forward(features, adj_mean, params, *, compute_dtype=jnp.bfloat16):
    """features: (N, F_in) f32. adj_mean: (N, N) row-normalized dense adjacency.

    params: {"layers": [{"w_neigh": (Fi,Fo), "w_root": (Fi,Fo), "bias": (Fo,)}] * 3,
             "weight1": (1, N), "weight2": (F_out, 64)}
    Returns the (1, 64) readout, matching the PyTorch module in eval mode.
    """
    n = features.shape[0]
    n_layers = len(params["layers"])
    dims = [features.shape[1]] + [l["w_neigh"].shape[1] for l in params["layers"]]
    out_dim = dims[-1]

    n_pad = _round_up(max(n, 256), 256)
    f_pad = _round_up(max(dims), 128)
    k_out = params["weight2"].shape[1]
    k_out_pad = _round_up(max(k_out, 128), 128)

    # VMEM residency budget (double-buffered bf16 adjacency + f32 working tensors).
    adj_bytes = 2 * n_pad * n_pad * 2
    work_bytes = 12 * n_pad * f_pad * 4
    assert adj_bytes + work_bytes < 24 * 1024 * 1024, "graph too large for fused kernel"
    # TODO(synk): for graphs whose dense adjacency does not fit in VMEM, a row/reduction
    # tiled pipeline (per-layer pallas_call with an f32 accumulator) would be needed.

    x = _pad2d(features.astype(jnp.float32), n_pad, f_pad)
    adj = _pad2d(adj_mean.astype(jnp.float32), n_pad, n_pad).astype(compute_dtype)

    wn_all = jnp.stack([_pad2d(l["w_neigh"].astype(jnp.float32), f_pad, f_pad)
                        for l in params["layers"]])                     # (L, Fp, Fp)
    wr_all = jnp.stack([_pad2d(l["w_root"].astype(jnp.float32), f_pad, f_pad)
                        for l in params["layers"]])                     # (L, Fp, Fp)
    b_all = jnp.stack([jnp.pad(l["bias"].astype(jnp.float32),
                               (0, f_pad - l["bias"].shape[0])).reshape(1, f_pad)
                       for l in params["layers"]])                      # (L, 1, Fp)

    # weight1 padded to 8 sublane rows (rows 1..7 and cols n..n_pad are zero).
    w1 = _pad2d(params["weight1"].astype(jnp.float32), 8, n_pad)
    w2 = _pad2d(params["weight2"].astype(jnp.float32), f_pad, k_out_pad)

    flops = (n_layers * (2 * n_pad * n_pad * f_pad + 2 * 2 * n_pad * f_pad * f_pad)
             + 2 * 8 * n_pad * f_pad + 2 * 8 * f_pad * k_out_pad)
    transcendentals = n_layers * n_pad * f_pad
    bytes_accessed = (int(adj.size) * adj.dtype.itemsize
                      + int(x.size) * 4 + int(wn_all.size) * 4 + int(wr_all.size) * 4
                      + int(b_all.size) * 4 + int(w1.size) * 4 + int(w2.size) * 4
                      + 8 * k_out_pad * 4)

    out = pl.pallas_call(
        functools.partial(_graphsage_fused_kernel,
                          n_layers=n_layers, valid_out=out_dim,
                          compute_dtype=compute_dtype),
        out_shape=jax.ShapeDtypeStruct((8, k_out_pad), jnp.float32),
        grid_spec=pltpu.PrefetchScalarGridSpec(
            num_scalar_prefetch=0,
            grid=(1,),
            in_specs=[
                pl.BlockSpec((n_pad, n_pad), lambda i: (0, 0)),          # adjacency (bf16)
                pl.BlockSpec((n_pad, f_pad), lambda i: (0, 0)),          # features (f32)
                pl.BlockSpec((n_layers, f_pad, f_pad), lambda i: (0, 0, 0)),  # W_neigh stack
                pl.BlockSpec((n_layers, f_pad, f_pad), lambda i: (0, 0, 0)),  # W_root stack
                pl.BlockSpec((n_layers, 1, f_pad), lambda i: (0, 0, 0)),      # bias stack
                pl.BlockSpec((8, n_pad), lambda i: (0, 0)),              # weight1 (padded)
                pl.BlockSpec((f_pad, k_out_pad), lambda i: (0, 0)),      # weight2 (padded)
            ],
            out_specs=pl.BlockSpec((8, k_out_pad), lambda i: (0, 0)),
        ),
        compiler_params=pltpu.CompilerParams(dimension_semantics=("arbitrary",)),
        cost_estimate=pl.CostEstimate(flops=flops,
                                      transcendentals=transcendentals,
                                      bytes_accessed=bytes_accessed),
    )(adj, x, wn_all, wr_all, b_all, w1, w2)

    return out[0:1, :k_out]


# --------------------------------------------------------------------------
# Pure-JAX reference (same bf16-input / f32-accumulate casting as the kernel).
# --------------------------------------------------------------------------
def graphsage_reference(features, adj_mean, params, *, compute_dtype=jnp.bfloat16):
    cd = compute_dtype
    x = features.astype(jnp.float32)
    a = adj_mean.astype(cd)
    n_layers = len(params["layers"])
    for i, layer in enumerate(params["layers"]):
        sup = jnp.dot(x.astype(cd), layer["w_neigh"].astype(cd),
                      preferred_element_type=jnp.float32).astype(cd)
        selfp = jnp.dot(x.astype(cd), layer["w_root"].astype(cd),
                        preferred_element_type=jnp.float32) + layer["bias"]
        y = jnp.dot(a, sup, preferred_element_type=jnp.float32) + selfp
        if i < n_layers - 1:
            y = jax.nn.gelu(y, approximate=True)
        x = y
    p = jax.nn.log_softmax(x, axis=1)
    r = jnp.dot(params["weight1"], p, preferred_element_type=jnp.float32)
    return jnp.dot(r, params["weight2"], preferred_element_type=jnp.float32)


if __name__ == "__main__":
    # Small shapes consistent with the module: node_num nodes, feature->h1->h2->out, 64-d readout.
    N_NODES, F_IN, H1, H2, F_OUT = 300, 16, 32, 32, 10

    key = jax.random.PRNGKey(0)
    ks = jax.random.split(key, 13)

    def xavier(k, shape):
        limit = math.sqrt(6.0 / (shape[0] + shape[1]))
        return jax.random.uniform(k, shape, jnp.float32, -limit, limit)

    dims = [F_IN, H1, H2, F_OUT]
    layers = []
    for li in range(3):
        layers.append({
            "w_neigh": xavier(ks[3 * li + 0], (dims[li], dims[li + 1])),
            "w_root": xavier(ks[3 * li + 1], (dims[li], dims[li + 1])),
            "bias": 0.1 * jax.random.normal(ks[3 * li + 2], (dims[li + 1],), jnp.float32),
        })
    params = {
        "layers": layers,
        "weight1": xavier(ks[9], (1, N_NODES)),
        "weight2": xavier(ks[10], (F_OUT, 64)),
    }

    features = jax.random.normal(ks[11], (N_NODES, F_IN), jnp.float32)

    # TODO(synk): sparse edge_index (COO) -> dense mean-aggregation adjacency is built on
    # the host; a sparse gather/scatter aggregation kernel is out of scope here.
    adj_raw = (jax.random.uniform(ks[12], (N_NODES, N_NODES)) < 0.05).astype(jnp.float32)
    deg = jnp.maximum(jnp.sum(adj_raw, axis=1, keepdims=True), 1.0)
    adj_mean = adj_raw / deg

    # TODO(synk): F.dropout is identity at inference (training=False); training-mode
    # dropout (pltpu.prng_*) is not implemented here.
    out = graphsage_forward(features, adj_mean, params)
    out = jax.block_until_ready(out)

    ref = graphsage_reference(features, adj_mean, params)
    assert out.shape == (1, 64), out.shape
    assert bool(jnp.all(jnp.isfinite(out)))
    assert jnp.allclose(out, ref, atol=2e-2, rtol=2e-2), float(jnp.max(jnp.abs(out - ref)))

    print("KERNEL_OK")
</pallas_src>

<mosaic_0001>
module attributes {stable_mosaic.version = 11 : i64} {
  func.func @_graphsage_fused_kernel(%arg0: i32, %arg1: memref<512x512xbf16, #tpu.memory_space<vmem>>, %arg2: memref<512x128xf32, #tpu.memory_space<vmem>>, %arg3: memref<3x128x128xf32, #tpu.memory_space<vmem>>, %arg4: memref<3x128x128xf32, #tpu.memory_space<vmem>>, %arg5: memref<3x1x128xf32, #tpu.memory_space<vmem>>, %arg6: memref<8x512xf32, #tpu.memory_space<vmem>>, %arg7: memref<128x128xf32, #tpu.memory_space<vmem>>, %arg8: memref<8x128xf32, #tpu.memory_space<vmem>>) attributes {dimension_semantics = [#tpu.dimension_semantics<arbitrary>], iteration_bounds = array<i64: 1>, scalar_prefetch = 0 : i64, scratch_operands = 0 : i64, tpu.core_type = #tpu.core_type<tc>, window_params = [{pipeline_mode = #tpu.pipeline_mode<synchronous>, transform_indices = @transform_0, window_bounds = array<i64: 512, 512>}, {pipeline_mode = #tpu.pipeline_mode<synchronous>, transform_indices = @transform_1, window_bounds = array<i64: 512, 128>}, {pipeline_mode = #tpu.pipeline_mode<synchronous>, transform_indices = @transform_2, window_bounds = array<i64: 3, 128, 128>}, {pipeline_mode = #tpu.pipeline_mode<synchronous>, transform_indices = @transform_3, window_bounds = array<i64: 3, 128, 128>}, {pipeline_mode = #tpu.pipeline_mode<synchronous>, transform_indices = @transform_4, window_bounds = array<i64: 3, 1, 128>}, {pipeline_mode = #tpu.pipeline_mode<synchronous>, transform_indices = @transform_5, window_bounds = array<i64: 8, 512>}, {pipeline_mode = #tpu.pipeline_mode<synchronous>, transform_indices = @transform_6, window_bounds = array<i64: 128, 128>}, {pipeline_mode = #tpu.pipeline_mode<synchronous>, transform_indices = @transform_7, window_bounds = array<i64: 8, 128>}]} {
    %c0 = arith.constant 0 : index
    %c0_0 = arith.constant 0 : index
    %0 = vector.load %arg1[%c0, %c0_0] : memref<512x512xbf16, #tpu.memory_space<vmem>>, vector<512x512xbf16>
    %c0_1 = arith.constant 0 : index
    %c0_2 = arith.constant 0 : index
    %1 = vector.load %arg2[%c0_1, %c0_2] : memref<512x128xf32, #tpu.memory_space<vmem>>, vector<512x128xf32>
    %2 = arith.truncf %1 : vector<512x128xf32> to vector<512x128xbf16>
    %c0_3 = arith.constant 0 : index
    %c0_4 = arith.constant 0 : index
    %c0_5 = arith.constant 0 : index
    %3 = vector.load %arg3[%c0_3, %c0_4, %c0_5] : memref<3x128x128xf32, #tpu.memory_space<vmem>>, vector<1x128x128xf32>
    %4 = vector.shape_cast %3 : vector<1x128x128xf32> to vector<128x128xf32>
    %5 = arith.truncf %4 : vector<128x128xf32> to vector<128x128xbf16>
    %c0_6 = arith.constant 0 : index
    %c0_7 = arith.constant 0 : index
    %c0_8 = arith.constant 0 : index
    %6 = vector.load %arg4[%c0_6, %c0_7, %c0_8] : memref<3x128x128xf32, #tpu.memory_space<vmem>>, vector<1x128x128xf32>
    %7 = vector.shape_cast %6 : vector<1x128x128xf32> to vector<128x128xf32>
    %8 = arith.truncf %7 : vector<128x128xf32> to vector<128x128xbf16>
    %cst = arith.constant dense<0.000000e+00> : vector<512x128xf32>
    %9 = tpu.matmul %2, %5, %cst {dimension_numbers = #tpu.dot_dimension_numbers<[1], [0], [0], [1], [0, 0, 1, 1], [], []>} : vector<512x128xbf16>, vector<128x128xbf16>, vector<512x128xf32> -> vector<512x128xf32>
    %10 = arith.truncf %9 : vector<512x128xf32> to vector<512x128xbf16>
    %cst_9 = arith.constant dense<0.000000e+00> : vector<512x128xf32>
    %11 = tpu.matmul %2, %8, %cst_9 {dimension_numbers = #tpu.dot_dimension_numbers<[1], [0], [0], [1], [0, 0, 1, 1], [], []>} : vector<512x128xbf16>, vector<128x128xbf16>, vector<512x128xf32> -> vector<512x128xf32>
    %c0_10 = arith.constant 0 : index
    %c0_11 = arith.constant 0 : index
    %c0_12 = arith.constant 0 : index
    %12 = vector.load %arg5[%c0_10, %c0_11, %c0_12] : memref<3x1x128xf32, #tpu.memory_space<vmem>>, vector<1x1x128xf32>
    %13 = vector.shape_cast %12 : vector<1x1x128xf32> to vector<1x128xf32>
    %14 = vector.broadcast %13 : vector<1x128xf32> to vector<512x128xf32>
    %15 = arith.addf %11, %14 : vector<512x128xf32>
    %cst_13 = arith.constant dense<0.000000e+00> : vector<512x128xf32>
    %16 = tpu.matmul %0, %10, %cst_13 {dimension_numbers = #tpu.dot_dimension_numbers<[1], [0], [0], [1], [0, 0, 1, 1], [], []>} : vector<512x512xbf16>, vector<512x128xbf16>, vector<512x128xf32> -> vector<512x128xf32>
    %17 = arith.addf %16, %15 : vector<512x128xf32>
    %18 = arith.mulf %17, %17 : vector<512x128xf32>
    %19 = arith.mulf %17, %18 : vector<512x128xf32>
    %cst_14 = arith.constant 4.471500e-02 : f32
    %20 = vector.broadcast %cst_14 : f32 to vector<512x128xf32>
    %21 = arith.mulf %20, %19 : vector<512x128xf32>
    %22 = arith.addf %17, %21 : vector<512x128xf32>
    %cst_15 = arith.constant 0.797884583 : f32
    %23 = vector.broadcast %cst_15 : f32 to vector<512x128xf32>
    %24 = arith.mulf %23, %22 : vector<512x128xf32>
    %25 = math.tanh %24 : vector<512x128xf32>
    %cst_16 = arith.constant 1.000000e+00 : f32
    %26 = vector.broadcast %cst_16 : f32 to vector<512x128xf32>
    %27 = arith.addf %26, %25 : vector<512x128xf32>
    %cst_17 = arith.constant 5.000000e-01 : f32
    %28 = vector.broadcast %cst_17 : f32 to vector<512x128xf32>
    %29 = arith.mulf %28, %27 : vector<512x128xf32>
    %30 = arith.mulf %17, %29 : vector<512x128xf32>
    %31 = arith.truncf %30 : vector<512x128xf32> to vector<512x128xbf16>
    %c1 = arith.constant 1 : index
    %c0_18 = arith.constant 0 : index
    %c0_19 = arith.constant 0 : index
    %32 = vector.load %arg3[%c1, %c0_18, %c0_19] : memref<3x128x128xf32, #tpu.memory_space<vmem>>, vector<1x128x128xf32>
    %33 = vector.shape_cast %32 : vector<1x128x128xf32> to vector<128x128xf32>
    %34 = arith.truncf %33 : vector<128x128xf32> to vector<128x128xbf16>
    %c1_20 = arith.constant 1 : index
    %c0_21 = arith.constant 0 : index
    %c0_22 = arith.constant 0 : index
    %35 = vector.load %arg4[%c1_20, %c0_21, %c0_22] : memref<3x128x128xf32, #tpu.memory_space<vmem>>, vector<1x128x128xf32>
    %36 = vector.shape_cast %35 : vector<1x128x128xf32> to vector<128x128xf32>
    %37 = arith.truncf %36 : vector<128x128xf32> to vector<128x128xbf16>
    %cst_23 = arith.constant dense<0.000000e+00> : vector<512x128xf32>
    %38 = tpu.matmul %31, %34, %cst_23 {dimension_numbers = #tpu.dot_dimension_numbers<[1], [0], [0], [1], [0, 0, 1, 1], [], []>} : vector<512x128xbf16>, vector<128x128xbf16>, vector<512x128xf32> -> vector<512x128xf32>
    %39 = arith.truncf %38 : vector<512x128xf32> to vector<512x128xbf16>
    %cst_24 = arith.constant dense<0.000000e+00> : vector<512x128xf32>
    %40 = tpu.matmul %31, %37, %cst_24 {dimension_numbers = #tpu.dot_dimension_numbers<[1], [0], [0], [1], [0, 0, 1, 1], [], []>} : vector<512x128xbf16>, vector<128x128xbf16>, vector<512x128xf32> -> vector<512x128xf32>
    %c1_25 = arith.constant 1 : index
    %c0_26 = arith.constant 0 : index
    %c0_27 = arith.constant 0 : index
    %41 = vector.load %arg5[%c1_25, %c0_26, %c0_27] : memref<3x1x128xf32, #tpu.memory_space<vmem>>, vector<1x1x128xf32>
    %42 = vector.shape_cast %41 : vector<1x1x128xf32> to vector<1x128xf32>
    %43 = vector.broadcast %42 : vector<1x128xf32> to vector<512x128xf32>
    %44 = arith.addf %40, %43 : vector<512x128xf32>
    %cst_28 = arith.constant dense<0.000000e+00> : vector<512x128xf32>
    %45 = tpu.matmul %0, %39, %cst_28 {dimension_numbers = #tpu.dot_dimension_numbers<[1], [0], [0], [1], [0, 0, 1, 1], [], []>} : vector<512x512xbf16>, vector<512x128xbf16>, vector<512x128xf32> -> vector<512x128xf32>
    %46 = arith.addf %45, %44 : vector<512x128xf32>
    %47 = arith.mulf %46, %46 : vector<512x128xf32>
    %48 = arith.mulf %46, %47 : vector<512x128xf32>
    %cst_29 = arith.constant 4.471500e-02 : f32
    %49 = vector.broadcast %cst_29 : f32 to vector<512x128xf32>
    %50 = arith.mulf %49, %48 : vector<512x128xf32>
    %51 = arith.addf %46, %50 : vector<512x128xf32>
    %cst_30 = arith.constant 0.797884583 : f32
    %52 = vector.broadcast %cst_30 : f32 to vector<512x128xf32>
    %53 = arith.mulf %52, %51 : vector<512x128xf32>
    %54 = math.tanh %53 : vector<512x128xf32>
    %cst_31 = arith.constant 1.000000e+00 : f32
    %55 = vector.broadcast %cst_31 : f32 to vector<512x128xf32>
    %56 = arith.addf %55, %54 : vector<512x128xf32>
    %cst_32 = arith.constant 5.000000e-01 : f32
    %57 = vector.broadcast %cst_32 : f32 to vector<512x128xf32>
    %58 = arith.mulf %57, %56 : vector<512x128xf32>
    %59 = arith.mulf %46, %58 : vector<512x128xf32>
    %60 = arith.truncf %59 : vector<512x128xf32> to vector<512x128xbf16>
    %c2 = arith.constant 2 : index
    %c0_33 = arith.constant 0 : index
    %c0_34 = arith.constant 0 : index
    %61 = vector.load %arg3[%c2, %c0_33, %c0_34] : memref<3x128x128xf32, #tpu.memory_space<vmem>>, vector<1x128x128xf32>
    %62 = vector.shape_cast %61 : vector<1x128x128xf32> to vector<128x128xf32>
    %63 = arith.truncf %62 : vector<128x128xf32> to vector<128x128xbf16>
    %c2_35 = arith.constant 2 : index
    %c0_36 = arith.constant 0 : index
    %c0_37 = arith.constant 0 : index
    %64 = vector.load %arg4[%c2_35, %c0_36, %c0_37] : memref<3x128x128xf32, #tpu.memory_space<vmem>>, vector<1x128x128xf32>
    %65 = vector.shape_cast %64 : vector<1x128x128xf32> to vector<128x128xf32>
    %66 = arith.truncf %65 : vector<128x128xf32> to vector<128x128xbf16>
    %cst_38 = arith.constant dense<0.000000e+00> : vector<512x128xf32>
    %67 = tpu.matmul %60, %63, %cst_38 {dimension_numbers = #tpu.dot_dimension_numbers<[1], [0], [0], [1], [0, 0, 1, 1], [], []>} : vector<512x128xbf16>, vector<128x128xbf16>, vector<512x128xf32> -> vector<512x128xf32>
    %68 = arith.truncf %67 : vector<512x128xf32> to vector<512x128xbf16>
    %cst_39 = arith.constant dense<0.000000e+00> : vector<512x128xf32>
    %69 = tpu.matmul %60, %66, %cst_39 {dimension_numbers = #tpu.dot_dimension_numbers<[1], [0], [0], [1], [0, 0, 1, 1], [], []>} : vector<512x128xbf16>, vector<128x128xbf16>, vector<512x128xf32> -> vector<512x128xf32>
    %c2_40 = arith.constant 2 : index
    %c0_41 = arith.constant 0 : index
    %c0_42 = arith.constant 0 : index
    %70 = vector.load %arg5[%c2_40, %c0_41, %c0_42] : memref<3x1x128xf32, #tpu.memory_space<vmem>>, vector<1x1x128xf32>
    %71 = vector.shape_cast %70 : vector<1x1x128xf32> to vector<1x128xf32>
    %72 = vector.broadcast %71 : vector<1x128xf32> to vector<512x128xf32>
    %73 = arith.addf %69, %72 : vector<512x128xf32>
    %cst_43 = arith.constant dense<0.000000e+00> : vector<512x128xf32>
    %74 = tpu.matmul %0, %68, %cst_43 {dimension_numbers = #tpu.dot_dimension_numbers<[1], [0], [0], [1], [0, 0, 1, 1], [], []>} : vector<512x512xbf16>, vector<512x128xbf16>, vector<512x128xf32> -> vector<512x128xf32>
    %75 = arith.addf %74, %73 : vector<512x128xf32>
    %76 = tpu.iota {dimensions = array<i32: 1>} : vector<512x128xi32>
    %c10_i32 = arith.constant 10 : i32
    %77 = vector.broadcast %c10_i32 : i32 to vector<512x128xi32>
    %78 = arith.cmpi slt, %76, %77 : vector<512x128xi32>
    %cst_44 = arith.constant -1.000000e+30 : f32
    %79 = vector.broadcast %cst_44 : f32 to vector<512x128xf32>
    %80 = arith.select %78, %75, %79 : vector<512x128xi1>, vector<512x128xf32>
    %cst_45 = arith.constant dense<0xFF800000> : vector<512xf32>
    %81 = vector.multi_reduction <maximumf>, %80, %cst_45 [1] : vector<512x128xf32> to vector<512xf32>
    %82 = vector.shape_cast %81 : vector<512xf32> to vector<512x1xf32>
    %83 = vector.broadcast %82 : vector<512x1xf32> to vector<512x128xf32>
    %84 = arith.subf %80, %83 : vector<512x128xf32>
    %85 = math.exp %84 : vector<512x128xf32>
    %cst_46 = arith.constant dense<0.000000e+00> : vector<512xf32>
    %86 = vector.multi_reduction <add>, %85, %cst_46 [1] : vector<512x128xf32> to vector<512xf32>
    %87 = vector.shape_cast %86 : vector<512xf32> to vector<512x1xf32>
    %88 = math.log %87 : vector<512x1xf32>
    %89 = arith.addf %88, %82 : vector<512x1xf32>
    %90 = vector.broadcast %89 : vector<512x1xf32> to vector<512x128xf32>
    %91 = arith.subf %80, %90 : vector<512x128xf32>
    %cst_47 = arith.constant 0.000000e+00 : f32
    %92 = vector.broadcast %cst_47 : f32 to vector<512x128xf32>
    %93 = arith.select %78, %91, %92 : vector<512x128xi1>, vector<512x128xf32>
    %c0_48 = arith.constant 0 : index
    %c0_49 = arith.constant 0 : index
    %94 = vector.load %arg6[%c0_48, %c0_49] : memref<8x512xf32, #tpu.memory_space<vmem>>, vector<8x512xf32>
    %cst_50 = arith.constant dense<0.000000e+00> : vector<8x128xf32>
    %95 = tpu.matmul %94, %93, %cst_50 {dimension_numbers = #tpu.dot_dimension_numbers<[1], [0], [0], [1], [0, 0, 1, 1], [], []>} : vector<8x512xf32>, vector<512x128xf32>, vector<8x128xf32> -> vector<8x128xf32>
    %c0_51 = arith.constant 0 : index
    %c0_52 = arith.constant 0 : index
    %96 = vector.load %arg7[%c0_51, %c0_52] : memref<128x128xf32, #tpu.memory_space<vmem>>, vector<128x128xf32>
    %cst_53 = arith.constant dense<0.000000e+00> : vector<8x128xf32>
    %97 = tpu.matmul %95, %96, %cst_53 {dimension_numbers = #tpu.dot_dimension_numbers<[1], [0], [0], [1], [0, 0, 1, 1], [], []>} : vector<8x128xf32>, vector<128x128xf32>, vector<8x128xf32> -> vector<8x128xf32>
    %c0_54 = arith.constant 0 : index
    %c0_55 = arith.constant 0 : index
    %98 = vector.load %arg8[%c0_54, %c0_55] : memref<8x128xf32, #tpu.memory_space<vmem>>, vector<8x128xf32>
    tpu.vector_store %arg8[%c0_54, %c0_55], %97 {strides = array<i32>} : memref<8x128xf32, #tpu.memory_space<vmem>>, vector<8x128xf32>,
    return
  }
  func.func @transform_0(%arg0: i32) -> (i32, i32) {
    %c0_i32 = arith.constant 0 : i32
    %c0_i32_0 = arith.constant 0 : i32
    %c0_i32_1 = arith.constant 0 : i32
    return %c0_i32, %c0_i32_0 : i32, i32
  }
  func.func @transform_1(%arg0: i32) -> (i32, i32) {
    %c0_i32 = arith.constant 0 : i32
    %c0_i32_0 = arith.constant 0 : i32
    %c0_i32_1 = arith.constant 0 : i32
    return %c0_i32, %c0_i32_0 : i32, i32
  }
  func.func @transform_2(%arg0: i32) -> (i32, i32, i32) {
    %c0_i32 = arith.constant 0 : i32
    %c0_i32_0 = arith.constant 0 : i32
    %c0_i32_1 = arith.constant 0 : i32
    %c0_i32_2 = arith.constant 0 : i32
    return %c0_i32, %c0_i32_0, %c0_i32_1 : i32, i32, i32
  }
  func.func @transform_3(%arg0: i32) -> (i32, i32, i32) {
    %c0_i32 = arith.constant 0 : i32
    %c0_i32_0 = arith.constant 0 : i32
    %c0_i32_1 = arith.constant 0 : i32
    %c0_i32_2 = arith.constant 0 : i32
    return %c0_i32, %c0_i32_0, %c0_i32_1 : i32, i32, i32
  }
  func.func @transform_4(%arg0: i32) -> (i32, i32, i32) {
    %c0_i32 = arith.constant 0 : i32
    %c0_i32_0 = arith.constant 0 : i32
    %c0_i32_1 = arith.constant 0 : i32
    %c0_i32_2 = arith.constant 0 : i32
    return %c0_i32, %c0_i32_0, %c0_i32_1 : i32, i32, i32
  }
  func.func @transform_5(%arg0: i32) -> (i32, i32) {
    %c0_i32 = arith.constant 0 : i32
    %c0_i32_0 = arith.constant 0 : i32
    %c0_i32_1 = arith.constant 0 : i32
    return %c0_i32, %c0_i32_0 : i32, i32
  }
  func.func @transform_6(%arg0: i32) -> (i32, i32) {
    %c0_i32 = arith.constant 0 : i32
    %c0_i32_0 = arith.constant 0 : i32
    %c0_i32_1 = arith.constant 0 : i32
    return %c0_i32, %c0_i32_0 : i32, i32
  }
  func.func @transform_7(%arg0: i32) -> (i32, i32) {
    %c0_i32 = arith.constant 0 : i32
    %c0_i32_0 = arith.constant 0 : i32
    %c0_i32_1 = arith.constant 0 : i32
    return %c0_i32, %c0_i32_0 : i32, i32
  }
}

</mosaic_0001>

<llo_original>
// kernel: tpu_custom_call.1
$region0: #{tpu_custom_call.1}
  #allocation0 [shape = 'u32[]', space=smem, size = 0x4, offset = 0x4, fixed_abs, tag = 'smem constant byte address 0x4 - core index']
  #allocation1 [shape = 'u32[72,128]{1,0:T(1,128)}', space=vmem, size = 0x9000, scoped, tag = 'internal scratch']
  %s0 = inlined_call_operand.hbm [shape: bf16[512,512], index: 0, kind: input, shape index: {}]
  %s1 = inlined_call_operand.hbm [shape: f32[512,128], index: 1, kind: input, shape index: {}]
  %s2 = inlined_call_operand.hbm [shape: f32[3,128,128], index: 2, kind: input, shape index: {}]
  %s3 = inlined_call_operand.hbm [shape: f32[3,128,128], index: 3, kind: input, shape index: {}]
  %s4 = inlined_call_operand.vmem [shape: f32[3,1,128], index: 4, kind: input, shape index: {}]
  %s5 = inlined_call_operand.hbm [shape: f32[8,512], index: 5, kind: input, shape index: {}]
  %s6 = inlined_call_operand.hbm [shape: f32[128,128], index: 6, kind: input, shape index: {}]
  %s7 = inlined_call_operand.hbm [shape: f32[8,128], index: 7, kind: output, shape index: {}]
  %s8 = sld [smem:[#allocation0]]
  $region62: #{tpu_custom_call.1} parent=0
    _
  %s10 = ssub.s32 1, %s8
  %s11 = scalar_select 0, %s10, %s8
  $region1: #{tpu_custom_call.1} parent=0
    #allocation2 [shape = 'u8[524288]{0}', space=vmem, size = 0x80000, scoped, tag = 'input window, operand 0, single buffered']
    #allocation3 [shape = 's32[1]{0}', space=sflag, size = 0x4, scoped, tag = 'scoped memory for tpu_custom_call.1']
    #allocation4 [shape = 's32[1]{0}', space=sflag, size = 0x4, scoped, tag = 'scoped memory for tpu_custom_call.1']
    #allocation5 [shape = 'u8[262144]{0}', space=vmem, size = 0x40000, scoped, tag = 'input window, operand 1, single buffered']
    #allocation6 [shape = 's32[1]{0}', space=sflag, size = 0x4, scoped, tag = 'scoped memory for tpu_custom_call.1']
    #allocation7 [shape = 'u8[196608]{0}', space=vmem, size = 0x30000, scoped, tag = 'input window, operand 2, single buffered']
    #allocation8 [shape = 'u8[196608]{0}', space=vmem, size = 0x30000, scoped, tag = 'input window, operand 3, single buffered']
    #allocation9 [shape = 's32[1]{0}', space=sflag, size = 0x4, scoped, tag = 'scoped memory for tpu_custom_call.1']
    #allocation10 [shape = 'u8[16384]{0}', space=vmem, size = 0x4000, scoped, tag = 'input window, operand 5, single buffered']
    #allocation11 [shape = 'u8[65536]{0}', space=vmem, size = 0x10000, scoped, tag = 'input window, operand 6, single buffered']
    #allocation12 [shape = 's32[1]{0}', space=sflag, size = 0x4, scoped, tag = 'scoped memory for tpu_custom_call.1']
    #allocation13 [shape = 'u8[4096]{0}', space=vmem, size = 0x1000, scoped, tag = 'output window, operand 0, single buffered']
    %12 = vsyncpa [#allocation3], 0
    %13 = vsyncpa [#allocation6], 0
    %14 = vsyncpa [#allocation9], 0
    %15 = vsyncpa [#allocation12], 0
    %16 = vsyncpa [#allocation4], 0
    // Predicated region
    $region2: #{tpu_custom_call.1} parent=1 // pred_check
      _
    $region3: #{tpu_custom_call.1} parent=1 // pred_check_branch
      %18 = sbr.rel (0) target = $region5
    $region4: #{tpu_custom_call.1} parent=1 // pred_region
      %20 = vsyncadd [#allocation3], 0
      %s21 = sshll.u32 %s0, 4
      %s22 = int_to_ptr.hbm [resolvable:$true] %s21
      %s23 = sshll.u32 [#allocation2], 4
      %s24 = int_to_ptr.vmem [resolvable:$true] %s23
      %29 = dma.hbm_to_vmem [thread:$0]  %s22, 16384, %s24, [#allocation3], 256, 256, 16
    $region5: #{tpu_custom_call.1} parent=1 // pred_fallthru
      _
    // Predicated region
    $region6: #{tpu_custom_call.1} parent=1 // pred_check
      _
    $region7: #{tpu_custom_call.1} parent=1 // pred_check_branch
      %31 = sbr.rel (0) target = $region9
    $region8: #{tpu_custom_call.1} parent=1 // pred_region
      %33 = vsyncadd [#allocation6], 0
      %s34 = sshll.u32 %s1, 4
      %s35 = int_to_ptr.hbm [resolvable:$true] %s34
      %s36 = sshll.u32 [#allocation5], 4
      %s37 = int_to_ptr.vmem [resolvable:$true] %s36
      %42 = dma.hbm_to_vmem [thread:$0]  %s35, 8192, %s37, [#allocation6], 128, 128, 8
    $region9: #{tpu_custom_call.1} parent=1 // pred_fallthru
      _
    // Predicated region
    $region10: #{tpu_custom_call.1} parent=1 // pred_check
      _
    $region11: #{tpu_custom_call.1} parent=1 // pred_check_branch
      %44 = sbr.rel (0) target = $region13
    $region12: #{tpu_custom_call.1} parent=1 // pred_region
      %46 = vsyncadd [#allocation6], 0
      %s47 = sshll.u32 %s2, 4
      %s48 = int_to_ptr.hbm [resolvable:$true] %s47
      %s49 = sshll.u32 [#allocation7], 4
      %s50 = int_to_ptr.vmem [resolvable:$true] %s49
      %55 = dma.hbm_to_vmem [thread:$0]  %s48, 6144, %s50, [#allocation6], 128, 128, 8
    $region13: #{tpu_custom_call.1} parent=1 // pred_fallthru
      _
    // Predicated region
    $region14: #{tpu_custom_call.1} parent=1 // pred_check
      _
    $region15: #{tpu_custom_call.1} parent=1 // pred_check_branch
      %57 = sbr.rel (0) target = $region17
    $region16: #{tpu_custom_call.1} parent=1 // pred_region
      %59 = vsyncadd [#allocation9], 0
      %s60 = sshll.u32 %s3, 4
      %s61 = int_to_ptr.hbm [resolvable:$true] %s60
      %s62 = sshll.u32 [#allocation8], 4
      %s63 = int_to_ptr.vmem [resolvable:$true] %s62
      %68 = dma.hbm_to_vmem [thread:$0]  %s61, 6144, %s63, [#allocation9], 128, 128, 8
    $region17: #{tpu_custom_call.1} parent=1 // pred_fallthru
      _
    // Predicated region
    $region18: #{tpu_custom_call.1} parent=1 // pred_check
      _
    $region19: #{tpu_custom_call.1} parent=1 // pred_check_branch
      %70 = sbr.rel (0) target = $region21
    $region20: #{tpu_custom_call.1} parent=1 // pred_region
      _
    $region21: #{tpu_custom_call.1} parent=1 // pred_fallthru
      _
    // Predicated region
    $region22: #{tpu_custom_call.1} parent=1 // pred_check
      _
    $region23: #{tpu_custom_call.1} parent=1 // pred_check_branch
      %72 = sbr.rel (0) target = $region25
    $region24: #{tpu_custom_call.1} parent=1 // pred_region
      %74 = vsyncadd [#allocation9], 0
      %s76 = sshll.u32 %s5, 4
      %s77 = int_to_ptr.hbm [resolvable:$true] %s76
      %s78 = sshll.u32 [#allocation10], 4
      %s79 = int_to_ptr.vmem [resolvable:$true] %s78
      %81 = dma.hbm_to_vmem [thread:$0]  %s77, 512, %s79, [#allocation9]
    $region25: #{tpu_custom_call.1} parent=1 // pred_fallthru
      _
    // Predicated region
    $region26: #{tpu_custom_call.1} parent=1 // pred_check
      _
    $region27: #{tpu_custom_call.1} parent=1 // pred_check_branch
      %83 = sbr.rel (0) target = $region29
    $region28: #{tpu_custom_call.1} parent=1 // pred_region
      %85 = vsyncadd [#allocation12], 0
      %s86 = sshll.u32 %s6, 4
      %s87 = int_to_ptr.hbm [resolvable:$true] %s86
      %s88 = sshll.u32 [#allocation11], 4
      %s89 = int_to_ptr.vmem [resolvable:$true] %s88
      %94 = dma.hbm_to_vmem [thread:$0]  %s87, 2048, %s89, [#allocation12], 128, 128, 8
    $region29: #{tpu_custom_call.1} parent=1 // pred_fallthru
      _
    // Predicated region
    $region30: #{tpu_custom_call.1} parent=1 // pred_check
      _
    $region31: #{tpu_custom_call.1} parent=1 // pred_check_branch
      %96 = sbr.rel (0) target = $region33
    $region32: #{tpu_custom_call.1} parent=1 // pred_region
      %98 = dma.done [#allocation3], 16384
    $region33: #{tpu_custom_call.1} parent=1 // pred_fallthru
      _
    // Predicated region
    $region34: #{tpu_custom_call.1} parent=1 // pred_check
      _
    $region35: #{tpu_custom_call.1} parent=1 // pred_check_branch
      %100 = sbr.rel (0) target = $region37
    $region36: #{tpu_custom_call.1} parent=1 // pred_region
      %102 = dma.done [#allocation6], 8192
    $region37: #{tpu_custom_call.1} parent=1 // pred_fallthru
      _
    // Predicated region
    $region38: #{tpu_custom_call.1} parent=1 // pred_check
      _
    $region39: #{tpu_custom_call.1} parent=1 // pred_check_branch
      %104 = sbr.rel (0) target = $region41
    $region40: #{tpu_custom_call.1} parent=1 // pred_region
      %106 = dma.done [#allocation6], 6144
    $region41: #{tpu_custom_call.1} parent=1 // pred_fallthru
      _
    // Predicated region
    $region42: #{tpu_custom_call.1} parent=1 // pred_check
      _
    $region43: #{tpu_custom_call.1} parent=1 // pred_check_branch
      %108 = sbr.rel (0) target = $region45
    $region44: #{tpu_custom_call.1} parent=1 // pred_region
      %110 = dma.done [#allocation9], 6144
    $region45: #{tpu_custom_call.1} parent=1 // pred_fallthru
      _
    // Predicated region
    $region46: #{tpu_custom_call.1} parent=1 // pred_check
      _
    $region47: #{tpu_custom_call.1} parent=1 // pred_check_branch
      %112 = sbr.rel (0) target = $region49
    $region48: #{tpu_custom_call.1} parent=1 // pred_region
      %114 = dma.done [#allocation9], 512
    $region49: #{tpu_custom_call.1} parent=1 // pred_fallthru
      _
    // Predicated region
    $region50: #{tpu_custom_call.1} parent=1 // pred_check
      _
    $region51: #{tpu_custom_call.1} parent=1 // pred_check_branch
      %116 = sbr.rel (0) target = $region53
    $region52: #{tpu_custom_call.1} parent=1 // pred_region
      %118 = dma.done [#allocation12], 2048
    $region53: #{tpu_custom_call.1} parent=1 // pred_fallthru
      _
    %v119 = vld [vmem:[#allocation2] sm:$0xff]
    %v120 = vld [vmem:[#allocation2 + $0x8] sm:$0xff]
    %v121 = vld [vmem:[#allocation2 + $0x10] sm:$0xff]
    %v122 = vld [vmem:[#allocation2 + $0x18] sm:$0xff]
    %v123 = vld [vmem:[#allocation2 + $0x20] sm:$0xff]
    %v124 = vld [vmem:[#allocation2 + $0x28] sm:$0xff]
    %v125 = vld [vmem:[#allocation2 + $0x30] sm:$0xff]
    %v126 = vld [vmem:[#allocation2 + $0x38] sm:$0xff]
    %v127 = vld [vmem:[#allocation2 + $0x40] sm:$0xff]
    %v128 = vld [vmem:[#allocation2 + $0x48] sm:$0xff]
    %v129 = vld [vmem:[#allocation2 + $0x50] sm:$0xff]
    %v130 = vld [vmem:[#allocation2 + $0x58] sm:$0xff]
    %v131 = vld [vmem:[#allocation2 + $0x60] sm:$0xff]
    %v132 = vld [vmem:[#allocation2 + $0x68] sm:$0xff]
    %v133 = vld [vmem:[#allocation2 + $0x70] sm:$0xff]
    %v134 = vld [vmem:[#allocation2 + $0x78] sm:$0xff]
    %v135 = vld [vmem:[#allocation2 + $0x80] sm:$0xff]
    %v136 = vld [vmem:[#allocation2 + $0x88] sm:$0xff]
    %v137 = vld [vmem:[#allocation2 + $0x90] sm:$0xff]
    %v138 = vld [vmem:[#allocation2 + $0x98] sm:$0xff]
    %v139 = vld [vmem:[#allocation2 + $0xa0] sm:$0xff]
    %v140 = vld [vmem:[#allocation2 + $0xa8] sm:$0xff]
    %v141 = vld [vmem:[#allocation2 + $0xb0] sm:$0xff]
    %v142 = vld [vmem:[#allocation2 + $0xb8] sm:$0xff]
    %v143 = vld [vmem:[#allocation2 + $0xc0] sm:$0xff]
    %v144 = vld [vmem:[#allocation2 + $0xc8] sm:$0xff]
    %v145 = vld [vmem:[#allocation2 + $0xd0] sm:$0xff]
    %v146 = vld [vmem:[#allocation2 + $0xd8] sm:$0xff]
    %v147 = vld [vmem:[#allocation2 + $0xe0] sm:$0xff]
    %v148 = vld [vmem:[#allocation2 + $0xe8] sm:$0xff]
    %v149 = vld [vmem:[#allocation2 + $0xf0] sm:$0xff]
    %v150 = vld [vmem:[#allocation2 + $0xf8] sm:$0xff]
    %v151 = vld [vmem:[#allocation2 + $0x100] sm:$0xff]
    %v152 = vld [vmem:[#allocation2 + $0x108] sm:$0xff]
    %v153 = vld [vmem:[#allocation2 + $0x110] sm:$0xff]
    %v154 = vld [vmem:[#allocation2 + $0x118] sm:$0xff]
    %v155 = vld [vmem:[#allocation2 + $0x120] sm:$0xff]
    %v156 = vld [vmem:[#allocation2 + $0x128] sm:$0xff]
    %v157 = vld [vmem:[#allocation2 + $0x130] sm:$0xff]
    %v158 = vld [vmem:[#allocation2 + $0x138] sm:$0xff]
    %v159 = vld [vmem:[#allocation2 + $0x140] sm:$0xff]
    %v160 = vld [vmem:[#allocation2 + $0x148] sm:$0xff]
    %v161 = vld [vmem:[#allocation2 + $0x150] sm:$0xff]
    %v162 = vld [vmem:[#allocation2 + $0x158] sm:$0xff]
    %v163 = vld [vmem:[#allocation2 + $0x160] sm:$0xff]
    %v164 = vld [vmem:[#allocation2 + $0x168] sm:$0xff]
    %v165 = vld [vmem:[#allocation2 + $0x170] sm:$0xff]
    %v166 = vld [vmem:[#allocation2 + $0x178] sm:$0xff]
    %v167 = vld [vmem:[#allocation2 + $0x180] sm:$0xff]
    %v168 = vld [vmem:[#allocation2 + $0x188] sm:$0xff]
    %v169 = vld [vmem:[#allocation2 + $0x190] sm:$0xff]
    %v170 = vld [vmem:[#allocation2 + $0x198] sm:$0xff]
    %v171 = vld [vmem:[#allocation2 + $0x1a0] sm:$0xff]
    %v172 = vld [vmem:[#allocation2 + $0x1a8] sm:$0xff]
    %v173 = vld [vmem:[#allocation2 + $0x1b0] sm:$0xff]
    %v174 = vld [vmem:[#allocation2 + $0x1b8] sm:$0xff]
    %v175 = vld [vmem:[#allocation2 + $0x1c0] sm:$0xff]
    %v176 = vld [vmem:[#allocation2 + $0x1c8] sm:$0xff]
    %v177 = vld [vmem:[#allocation2 + $0x1d0] sm:$0xff]
    %v178 = vld [vmem:[#allocation2 + $0x1d8] sm:$0xff]
    %v179 = vld [vmem:[#allocation2 + $0x1e0] sm:$0xff]
    %v180 = vld [vmem:[#allocation2 + $0x1e8] sm:$0xff]
    %v181 = vld [vmem:[#allocation2 + $0x1f0] sm:$0xff]
    %v182 = vld [vmem:[#allocation2 + $0x1f8] sm:$0xff]
    %v183 = vld [vmem:[#allocation2 + $0x200] sm:$0xff]
    %v184 = vld [vmem:[#allocation2 + $0x208] sm:$0xff]
    %v185 = vld [vmem:[#allocation2 + $0x210] sm:$0xff]
    %v186 = vld [vmem:[#allocation2 + $0x218] sm:$0xff]
    %v187 = vld [vmem:[#allocation2 + $0x220] sm:$0xff]
    %v188 = vld [vmem:[#allocation2 + $0x228] sm:$0xff]
    %v189 = vld [vmem:[#allocation2 + $0x230] sm:$0xff]
    %v190 = vld [vmem:[#allocation2 + $0x238] sm:$0xff]
    %v191 = vld [vmem:[#allocation2 + $0x240] sm:$0xff]
    %v192 = vld [vmem:[#allocation2 + $0x248] sm:$0xff]
    %v193 = vld [vmem:[#allocation2 + $0x250] sm:$0xff]
    %v194 = vld [vmem:[#allocation2 + $0x258] sm:$0xff]
    %v195 = vld [vmem:[#allocation2 + $0x260] sm:$0xff]
    %v196 = vld [vmem:[#allocation2 + $0x268] sm:$0xff]
    %v197 = vld [vmem:[#allocation2 + $0x270] sm:$0xff]
    %v198 = vld [vmem:[#allocation2 + $0x278] sm:$0xff]
    %v199 = vld [vmem:[#allocation2 + $0x280] sm:$0xff]
    %v200 = vld [vmem:[#allocation2 + $0x288] sm:$0xff]
    %v201 = vld [vmem:[#allocation2 + $0x290] sm:$0xff]
    %v202 = vld [vmem:[#allocation2 + $0x298] sm:$0xff]
    %v203 = vld [vmem:[#allocation2 + $0x2a0] sm:$0xff]
    %v204 = vld [vmem:[#allocation2 + $0x2a8] sm:$0xff]
    %v205 = vld [vmem:[#allocation2 + $0x2b0] sm:$0xff]
    %v206 = vld [vmem:[#allocation2 + $0x2b8] sm:$0xff]
    %v207 = vld [vmem:[#allocation2 + $0x2c0] sm:$0xff]
    %v208 = vld [vmem:[#allocation2 + $0x2c8] sm:$0xff]
    %v209 = vld [vmem:[#allocation2 + $0x2d0] sm:$0xff]
    %v210 = vld [vmem:[#allocation2 + $0x2d8] sm:$0xff]
    %v211 = vld [vmem:[#allocation2 + $0x2e0] sm:$0xff]
    %v212 = vld [vmem:[#allocation2 + $0x2e8] sm:$0xff]
    %v213 = vld [vmem:[#allocation2 + $0x2f0] sm:$0xff]
    %v214 = vld [vmem:[#allocation2 + $0x2f8] sm:$0xff]
    %v215 = vld [vmem:[#allocation2 + $0x300] sm:$0xff]
    %v216 = vld [vmem:[#allocation2 + $0x308] sm:$0xff]
    %v217 = vld [vmem:[#allocation2 + $0x310] sm:$0xff]
    %v218 = vld [vmem:[#allocation2 + $0x318] sm:$0xff]
    %v219 = vld [vmem:[#allocation2 + $0x320] sm:$0xff]
    %v220 = vld [vmem:[#allocation2 + $0x328] sm:$0xff]
    %v221 = vld [vmem:[#allocation2 + $0x330] sm:$0xff]
    %v222 = vld [vmem:[#allocation2 + $0x338] sm:$0xff]
    %v223 = vld [vmem:[#allocation2 + $0x340] sm:$0xff]
    %v224 = vld [vmem:[#allocation2 + $0x348] sm:$0xff]
    %v225 = vld [vmem:[#allocation2 + $0x350] sm:$0xff]
    %v226 = vld [vmem:[#allocation2 + $0x358] sm:$0xff]
    %v227 = vld [vmem:[#allocation2 + $0x360] sm:$0xff]
    %v228 = vld [vmem:[#allocation2 + $0x368] sm:$0xff]
    %v229 = vld [vmem:[#allocation2 + $0x370] sm:$0xff]
    %v230 = vld [vmem:[#allocation2 + $0x378] sm:$0xff]
    %v231 = vld [vmem:[#allocation2 + $0x380] sm:$0xff]
    %v232 = vld [vmem:[#allocation2 + $0x388] sm:$0xff]
    %v233 = vld [vmem:[#allocation2 + $0x390] sm:$0xff]
    %v234 = vld [vmem:[#allocation2 + $0x398] sm:$0xff]
    %v235 = vld [vmem:[#allocation2 + $0x3a0] sm:$0xff]
    %v236 = vld [vmem:[#allocation2 + $0x3a8] sm:$0xff]
    %v237 = vld [vmem:[#allocation2 + $0x3b0] sm:$0xff]
    %v238 = vld [vmem:[#allocation2 + $0x3b8] sm:$0xff]
    %v239 = vld [vmem:[#allocation2 + $0x3c0] sm:$0xff]
    %v240 = vld [vmem:[#allocation2 + $0x3c8] sm:$0xff]
    %v241 = vld [vmem:[#allocation2 + $0x3d0] sm:$0xff]
    %v242 = vld [vmem:[#allocation2 + $0x3d8] sm:$0xff]
    %v243 = vld [vmem:[#allocation2 + $0x3e0] sm:$0xff]
    %v244 = vld [vmem:[#allocation2 + $0x3e8] sm:$0xff]
    %v245 = vld [vmem:[#allocation2 + $0x3f0] sm:$0xff]
    %v246 = vld [vmem:[#allocation2 + $0x3f8] sm:$0xff]
    %v247 = vld [vmem:[#allocation5] sm:$0xff]
    %v248 = vld [vmem:[#allocation5 + $0x8] sm:$0xff]
    %v249 = vld [vmem:[#allocation5 + $0x10] sm:$0xff]
    %v250 = vld [vmem:[#allocation5 + $0x18] sm:$0xff]
    %v251 = vld [vmem:[#allocation5 + $0x20] sm:$0xff]
    %v252 = vld [vmem:[#allocation5 + $0x28] sm:$0xff]
    %v253 = vld [vmem:[#allocation5 + $0x30] sm:$0xff]
    %v254 = vld [vmem:[#allocation5 + $0x38] sm:$0xff]
    %v255 = vld [vmem:[#allocation5 + $0x40] sm:$0xff]
    %v256 = vld [vmem:[#allocation5 + $0x48] sm:$0xff]
    %v257 = vld [vmem:[#allocation5 + $0x50] sm:$0xff]
    %v258 = vld [vmem:[#allocation5 + $0x58] sm:$0xff]
    %v259 = vld [vmem:[#allocation5 + $0x60] sm:$0xff]
    %v260 = vld [vmem:[#allocation5 + $0x68] sm:$0xff]
    %v261 = vld [vmem:[#allocation5 + $0x70] sm:$0xff]
    %v262 = vld [vmem:[#allocation5 + $0x78] sm:$0xff]
    %v263 = vld [vmem:[#allocation5 + $0x80] sm:$0xff]
    %v264 = vld [vmem:[#allocation5 + $0x88] sm:$0xff]
    %v265 = vld [vmem:[#allocation5 + $0x90] sm:$0xff]
    %v266 = vld [vmem:[#allocation5 + $0x98] sm:$0xff]
    %v267 = vld [vmem:[#allocation5 + $0xa0] sm:$0xff]
    %v268 = vld [vmem:[#allocation5 + $0xa8] sm:$0xff]
    %v269 = vld [vmem:[#allocation5 + $0xb0] sm:$0xff]
    %v270 = vld [vmem:[#allocation5 + $0xb8] sm:$0xff]
    %v271 = vld [vmem:[#allocation5 + $0xc0] sm:$0xff]
    %v272 = vld [vmem:[#allocation5 + $0xc8] sm:$0xff]
    %v273 = vld [vmem:[#allocation5 + $0xd0] sm:$0xff]
    %v274 = vld [vmem:[#allocation5 + $0xd8] sm:$0xff]
    %v275 = vld [vmem:[#allocation5 + $0xe0] sm:$0xff]
    %v276 = vld [vmem:[#allocation5 + $0xe8] sm:$0xff]
    %v277 = vld [vmem:[#allocation5 + $0xf0] sm:$0xff]
    %v278 = vld [vmem:[#allocation5 + $0xf8] sm:$0xff]
    %v279 = vld [vmem:[#allocation5 + $0x100] sm:$0xff]
    %v280 = vld [vmem:[#allocation5 + $0x108] sm:$0xff]
    %v281 = vld [vmem:[#allocation5 + $0x110] sm:$0xff]
    %v282 = vld [vmem:[#allocation5 + $0x118] sm:$0xff]
    %v283 = vld [vmem:[#allocation5 + $0x120] sm:$0xff]
    %v284 = vld [vmem:[#allocation5 + $0x128] sm:$0xff]
    %v285 = vld [vmem:[#allocation5 + $0x130] sm:$0xff]
    %v286 = vld [vmem:[#allocation5 + $0x138] sm:$0xff]
    %v287 = vld [vmem:[#allocation5 + $0x140] sm:$0xff]
    %v288 = vld [vmem:[#allocation5 + $0x148] sm:$0xff]
    %v289 = vld [vmem:[#allocation5 + $0x150] sm:$0xff]
    %v290 = vld [vmem:[#allocation5 + $0x158] sm:$0xff]
    %v291 = vld [vmem:[#allocation5 + $0x160] sm:$0xff]
    %v292 = vld [vmem:[#allocation5 + $0x168] sm:$0xff]
    %v293 = vld [vmem:[#allocation5 + $0x170] sm:$0xff]
    %v294 = vld [vmem:[#allocation5 + $0x178] sm:$0xff]
    %v295 = vld [vmem:[#allocation5 + $0x180] sm:$0xff]
    %v296 = vld [vmem:[#allocation5 + $0x188] sm:$0xff]
    %v297 = vld [vmem:[#allocation5 + $0x190] sm:$0xff]
    %v298 = vld [vmem:[#allocation5 + $0x198] sm:$0xff]
    %v299 = vld [vmem:[#allocation5 + $0x1a0] sm:$0xff]
    %v300 = vld [vmem:[#allocation5 + $0x1a8] sm:$0xff]
    %v301 = vld [vmem:[#allocation5 + $0x1b0] sm:$0xff]
    %v302 = vld [vmem:[#allocation5 + $0x1b8] sm:$0xff]
    %v303 = vld [vmem:[#allocation5 + $0x1c0] sm:$0xff]
    %v304 = vld [vmem:[#allocation5 + $0x1c8] sm:$0xff]
    %v305 = vld [vmem:[#allocation5 + $0x1d0] sm:$0xff]
    %v306 = vld [vmem:[#allocation5 + $0x1d8] sm:$0xff]
    %v307 = vld [vmem:[#allocation5 + $0x1e0] sm:$0xff]
    %v308 = vld [vmem:[#allocation5 + $0x1e8] sm:$0xff]
    %v309 = vld [vmem:[#allocation5 + $0x1f0] sm:$0xff]
    %v310 = vld [vmem:[#allocation5 + $0x1f8] sm:$0xff]
    %v311 = vpack.c.bf16 %v248, %v247
    %v312 = vpack.c.bf16 %v250, %v249
    %v313 = vpack.c.bf16 %v252, %v251
    %v314 = vpack.c.bf16 %v254, %v253
    %v315 = vpack.c.bf16 %v256, %v255
    %v316 = vpack.c.bf16 %v258, %v257
    %v317 = vpack.c.bf16 %v260, %v259
    %v318 = vpack.c.bf16 %v262, %v261
    %v319 = vpack.c.bf16 %v264, %v263
    %v320 = vpack.c.bf16 %v266, %v265
    %v321 = vpack.c.bf16 %v268, %v267
    %v322 = vpack.c.bf16 %v270, %v269
    %v323 = vpack.c.bf16 %v272, %v271
    %v324 = vpack.c.bf16 %v274, %v273
    %v325 = vpack.c.bf16 %v276, %v275
    %v326 = vpack.c.bf16 %v278, %v277
    %v327 = vpack.c.bf16 %v280, %v279
    %v328 = vpack.c.bf16 %v282, %v281
    %v329 = vpack.c.bf16 %v284, %v283
    %v330 = vpack.c.bf16 %v286, %v285
    %v331 = vpack.c.bf16 %v288, %v287
    %v332 = vpack.c.bf16 %v290, %v289
    %v333 = vpack.c.bf16 %v292, %v291
    %v334 = vpack.c.bf16 %v294, %v293
    %v335 = vpack.c.bf16 %v296, %v295
    %v336 = vpack.c.bf16 %v298, %v297
    %v337 = vpack.c.bf16 %v300, %v299
    %v338 = vpack.c.bf16 %v302, %v301
    %v339 = vpack.c.bf16 %v304, %v303
    %v340 = vpack.c.bf16 %v306, %v305
    %v341 = vpack.c.bf16 %v308, %v307
    %v342 = vpack.c.bf16 %v310, %v309
    %v343 = vld [vmem:[#allocation7] sm:$0xff]
    %v344 = vld [vmem:[#allocation7 + $0x8] sm:$0xff]
    %v345 = vld [vmem:[#allocation7 + $0x10] sm:$0xff]
    %v346 = vld [vmem:[#allocation7 + $0x18] sm:$0xff]
    %v347 = vld [vmem:[#allocation7 + $0x20] sm:$0xff]
    %v348 = vld [vmem:[#allocation7 + $0x28] sm:$0xff]
    %v349 = vld [vmem:[#allocation7 + $0x30] sm:$0xff]
    %v350 = vld [vmem:[#allocation7 + $0x38] sm:$0xff]
    %v351 = vld [vmem:[#allocation7 + $0x40] sm:$0xff]
    %v352 = vld [vmem:[#allocation7 + $0x48] sm:$0xff]
    %v353 = vld [vmem:[#allocation7 + $0x50] sm:$0xff]
    %v354 = vld [vmem:[#allocation7 + $0x58] sm:$0xff]
    %v355 = vld [vmem:[#allocation7 + $0x60] sm:$0xff]
    %v356 = vld [vmem:[#allocation7 + $0x68] sm:$0xff]
    %v357 = vld [vmem:[#allocation7 + $0x70] sm:$0xff]
    %v358 = vld [vmem:[#allocation7 + $0x78] sm:$0xff]
    %v359 = vpack.c.bf16 %v344, %v343
    %v360 = vpack.c.bf16 %v346, %v345
    %v361 = vpack.c.bf16 %v348, %v347
    %v362 = vpack.c.bf16 %v350, %v349
    %v363 = vpack.c.bf16 %v352, %v351
    %v364 = vpack.c.bf16 %v354, %v353
    %v365 = vpack.c.bf16 %v356, %v355
    %v366 = vpack.c.bf16 %v358, %v357
    %v367 = vld [vmem:[#allocation8] sm:$0xff]
    %v368 = vld [vmem:[#allocation8 + $0x8] sm:$0xff]
    %v369 = vld [vmem:[#allocation8 + $0x10] sm:$0xff]
    %v370 = vld [vmem:[#allocation8 + $0x18] sm:$0xff]
    %v371 = vld [vmem:[#allocation8 + $0x20] sm:$0xff]
    %v372 = vld [vmem:[#allocation8 + $0x28] sm:$0xff]
    %v373 = vld [vmem:[#allocation8 + $0x30] sm:$0xff]
    %v374 = vld [vmem:[#allocation8 + $0x38] sm:$0xff]
    %v375 = vld [vmem:[#allocation8 + $0x40] sm:$0xff]
    %v376 = vld [vmem:[#allocation8 + $0x48] sm:$0xff]
    %v377 = vld [vmem:[#allocation8 + $0x50] sm:$0xff]
    %v378 = vld [vmem:[#allocation8 + $0x58] sm:$0xff]
    %v379 = vld [vmem:[#allocation8 + $0x60] sm:$0xff]
    %v380 = vld [vmem:[#allocation8 + $0x68] sm:$0xff]
    %v381 = vld [vmem:[#allocation8 + $0x70] sm:$0xff]
    %v382 = vld [vmem:[#allocation8 + $0x78] sm:$0xff]
    %v383 = vpack.c.bf16 %v368, %v367
    %v384 = vpack.c.bf16 %v370, %v369
    %v385 = vpack.c.bf16 %v372, %v371
    %v386 = vpack.c.bf16 %v374, %v373
    %v387 = vpack.c.bf16 %v376, %v375
    %v388 = vpack.c.bf16 %v378, %v377
    %v389 = vpack.c.bf16 %v380, %v379
    %v390 = vpack.c.bf16 %v382, %v381
    %391 = vmatpush.bf16.msra.mxu0 %v366
    %392 = vmatpush.bf16.msra.mxu0 %v365
    %393 = vmatpush.bf16.msra.mxu0 %v364
    %394 = vmatpush.bf16.msra.mxu0 %v363
    %395 = vmatpush.bf16.msra.mxu0 %v362
    %396 = vmatpush.bf16.msra.mxu0 %v361
    %397 = vmatpush.bf16.msra.mxu0 %v360
    %398 = vmatpush.bf16.msra.mxu0 %v359
    %399 = vmatmul.bf16.gmra.mxu0 %v311
    %v400 = vpop.f32.mrf.mxu0
    %v401 = vadd.f32 0.0, %v400
    %v402 = vpop.f32.mrf.mxu0
    %v403 = vadd.f32 0.0, %v402
    %404 = vmatmul.bf16.gmra.mxu0 %v312
    %v405 = vpop.f32.mrf.mxu0
    %v406 = vadd.f32 0.0, %v405
    %v407 = vpop.f32.mrf.mxu0
    %v408 = vadd.f32 0.0, %v407
    %409 = vmatmul.bf16.gmra.mxu0 %v313
    %v410 = vpop.f32.mrf.mxu0
    %v411 = vadd.f32 0.0, %v410
    %v412 = vpop.f32.mrf.mxu0
    %v413 = vadd.f32 0.0, %v412
    %414 = vmatmul.bf16.gmra.mxu0 %v314
    %v415 = vpop.f32.mrf.mxu0
    %v416 = vadd.f32 0.0, %v415
    %v417 = vpop.f32.mrf.mxu0
    %v418 = vadd.f32 0.0, %v417
    %419 = vmatmul.bf16.gmra.mxu0 %v315
    %v420 = vpop.f32.mrf.mxu0
    %v421 = vadd.f32 0.0, %v420
    %v422 = vpop.f32.mrf.mxu0
    %v423 = vadd.f32 0.0, %v422
    %424 = vmatmul.bf16.gmra.mxu0 %v316
    %v425 = vpop.f32.mrf.mxu0
    %v426 = vadd.f32 0.0, %v425
    %v427 = vpop.f32.mrf.mxu0
    %v428 = vadd.f32 0.0, %v427
    %429 = vmatmul.bf16.gmra.mxu0 %v317
    %v430 = vpop.f32.mrf.mxu0
    %v431 = vadd.f32 0.0, %v430
    %v432 = vpop.f32.mrf.mxu0
    %v433 = vadd.f32 0.0, %v432
    %434 = vmatmul.bf16.gmra.mxu0 %v318
    %v435 = vpop.f32.mrf.mxu0
    %v436 = vadd.f32 0.0, %v435
    %v437 = vpop.f32.mrf.mxu0
    %v438 = vadd.f32 0.0, %v437
    %439 = vmatmul.bf16.gmra.mxu0 %v319
    %v440 = vpop.f32.mrf.mxu0
    %v441 = vadd.f32 0.0, %v440
    %v442 = vpop.f32.mrf.mxu0
    %v443 = vadd.f32 0.0, %v442
    %444 = vmatmul.bf16.gmra.mxu0 %v320
    %v445 = vpop.f32.mrf.mxu0
    %v446 = vadd.f32 0.0, %v445
    %v447 = vpop.f32.mrf.mxu0
    %v448 = vadd.f32 0.0, %v447
    %449 = vmatmul.bf16.gmra.mxu0 %v321
    %v450 = vpop.f32.mrf.mxu0
    %v451 = vadd.f32 0.0, %v450
    %v452 = vpop.f32.mrf.mxu0
    %v453 = vadd.f32 0.0, %v452
    %454 = vmatmul.bf16.gmra.mxu0 %v322
    %v455 = vpop.f32.mrf.mxu0
    %v456 = vadd.f32 0.0, %v455
    %v457 = vpop.f32.mrf.mxu0
    %v458 = vadd.f32 0.0, %v457
    %459 = vmatmul.bf16.gmra.mxu0 %v323
    %v460 = vpop.f32.mrf.mxu0
    %v461 = vadd.f32 0.0, %v460
    %v462 = vpop.f32.mrf.mxu0
    %v463 = vadd.f32 0.0, %v462
    %464 = vmatmul.bf16.gmra.mxu0 %v324
    %v465 = vpop.f32.mrf.mxu0
    %v466 = vadd.f32 0.0, %v465
    %v467 = vpop.f32.mrf.mxu0
    %v468 = vadd.f32 0.0, %v467
    %469 = vmatmul.bf16.gmra.mxu0 %v325
    %v470 = vpop.f32.mrf.mxu0
    %v471 = vadd.f32 0.0, %v470
    %v472 = vpop.f32.mrf.mxu0
    %v473 = vadd.f32 0.0, %v472
    %474 = vmatmul.bf16.gmra.mxu0 %v326
    %v475 = vpop.f32.mrf.mxu0
    %v476 = vadd.f32 0.0, %v475
    %v477 = vpop.f32.mrf.mxu0
    %v478 = vadd.f32 0.0, %v477
    %479 = vmatmul.bf16.gmra.mxu0 %v327
    %v480 = vpop.f32.mrf.mxu0
    %v481 = vadd.f32 0.0, %v480
    %v482 = vpop.f32.mrf.mxu0
    %v483 = vadd.f32 0.0, %v482
    %484 = vmatmul.bf16.gmra.mxu0 %v328
    %v485 = vpop.f32.mrf.mxu0
    %v486 = vadd.f32 0.0, %v485
    %v487 = vpop.f32.mrf.mxu0
    %v488 = vadd.f32 0.0, %v487
    %489 = vmatmul.bf16.gmra.mxu0 %v329
    %v490 = vpop.f32.mrf.mxu0
    %v491 = vadd.f32 0.0, %v490
    %v492 = vpop.f32.mrf.mxu0
    %v493 = vadd.f32 0.0, %v492
    %494 = vmatmul.bf16.gmra.mxu0 %v330
    %v495 = vpop.f32.mrf.mxu0
    %v496 = vadd.f32 0.0, %v495
    %v497 = vpop.f32.mrf.mxu0
    %v498 = vadd.f32 0.0, %v497
    %499 = vmatmul.bf16.gmra.mxu0 %v331
    %v500 = vpop.f32.mrf.mxu0
    %v501 = vadd.f32 0.0, %v500
    %v502 = vpop.f32.mrf.mxu0
    %v503 = vadd.f32 0.0, %v502
    %504 = vmatmul.bf16.gmra.mxu0 %v332
    %v505 = vpop.f32.mrf.mxu0
    %v506 = vadd.f32 0.0, %v505
    %v507 = vpop.f32.mrf.mxu0
    %v508 = vadd.f32 0.0, %v507
    %509 = vmatmul.bf16.gmra.mxu0 %v333
    %v510 = vpop.f32.mrf.mxu0
    %v511 = vadd.f32 0.0, %v510
    %v512 = vpop.f32.mrf.mxu0
    %v513 = vadd.f32 0.0, %v512
    %514 = vmatmul.bf16.gmra.mxu0 %v334
    %v515 = vpop.f32.mrf.mxu0
    %v516 = vadd.f32 0.0, %v515
    %v517 = vpop.f32.mrf.mxu0
    %v518 = vadd.f32 0.0, %v517
    %519 = vmatmul.bf16.gmra.mxu0 %v335
    %v520 = vpop.f32.mrf.mxu0
    %v521 = vadd.f32 0.0, %v520
    %v522 = vpop.f32.mrf.mxu0
    %v523 = vadd.f32 0.0, %v522
    %524 = vmatmul.bf16.gmra.mxu0 %v336
    %v525 = vpop.f32.mrf.mxu0
    %v526 = vadd.f32 0.0, %v525
    %v527 = vpop.f32.mrf.mxu0
    %v528 = vadd.f32 0.0, %v527
    %529 = vmatmul.bf16.gmra.mxu0 %v337
    %v530 = vpop.f32.mrf.mxu0
    %v531 = vadd.f32 0.0, %v530
    %v532 = vpop.f32.mrf.mxu0
    %v533 = vadd.f32 0.0, %v532
    %534 = vmatmul.bf16.gmra.mxu0 %v338
    %v535 = vpop.f32.mrf.mxu0
    %v536 = vadd.f32 0.0, %v535
    %v537 = vpop.f32.mrf.mxu0
    %v538 = vadd.f32 0.0, %v537
    %539 = vmatmul.bf16.gmra.mxu0 %v339
    %v540 = vpop.f32.mrf.mxu0
    %v541 = vadd.f32 0.0, %v540
    %v542 = vpop.f32.mrf.mxu0
    %v543 = vadd.f32 0.0, %v542
    %544 = vmatmul.bf16.gmra.mxu0 %v340
    %v545 = vpop.f32.mrf.mxu0
    %v546 = vadd.f32 0.0, %v545
    %v547 = vpop.f32.mrf.mxu0
    %v548 = vadd.f32 0.0, %v547
    %549 = vmatmul.bf16.gmra.mxu0 %v341
    %v550 = vpop.f32.mrf.mxu0
    %v551 = vadd.f32 0.0, %v550
    %v552 = vpop.f32.mrf.mxu0
    %v553 = vadd.f32 0.0, %v552
    %554 = vmatmul.bf16.gmra.mxu0 %v342
    %v555 = vpop.f32.mrf.mxu0
    %v556 = vadd.f32 0.0, %v555
    %v557 = vpop.f32.mrf.mxu0
    %v558 = vadd.f32 0.0, %v557
    %559 = vdwg.mxu0
    %v560 = vpack.c.bf16 %v403, %v401
    %v561 = vpack.c.bf16 %v408, %v406
    %v562 = vpack.c.bf16 %v413, %v411
    %v563 = vpack.c.bf16 %v418, %v416
    %v564 = vpack.c.bf16 %v423, %v421
    %v565 = vpack.c.bf16 %v428, %v426
    %v566 = vpack.c.bf16 %v433, %v431
    %v567 = vpack.c.bf16 %v438, %v436
    %v568 = vpack.c.bf16 %v443, %v441
    %v569 = vpack.c.bf16 %v448, %v446
    %v570 = vpack.c.bf16 %v453, %v451
    %v571 = vpack.c.bf16 %v458, %v456
    %v572 = vpack.c.bf16 %v463, %v461
    %v573 = vpack.c.bf16 %v468, %v466
    %v574 = vpack.c.bf16 %v473, %v471
    %v575 = vpack.c.bf16 %v478, %v476
    %v576 = vpack.c.bf16 %v483, %v481
    %v577 = vpack.c.bf16 %v488, %v486
    %v578 = vpack.c.bf16 %v493, %v491
    %v579 = vpack.c.bf16 %v498, %v496
    %v580 = vpack.c.bf16 %v503, %v501
    %v581 = vpack.c.bf16 %v508, %v506
    %v582 = vpack.c.bf16 %v513, %v511
    %v583 = vpack.c.bf16 %v518, %v516
    %v584 = vpack.c.bf16 %v523, %v521
    %v585 = vpack.c.bf16 %v528, %v526
    %v586 = vpack.c.bf16 %v533, %v531
    %v587 = vpack.c.bf16 %v538, %v536
    %v588 = vpack.c.bf16 %v543, %v541
    %v589 = vpack.c.bf16 %v548, %v546
    %v590 = vpack.c.bf16 %v553, %v551
    %v591 = vpack.c.bf16 %v558, %v556
    %v592 = vld [vmem:[%s4] sm:$0x1]
    %v594 = vperm.slane %v592, 0
    %596 = vmatpush.bf16.msra.mxu0 %v390
    %597 = vmatpush.bf16.msra.mxu0 %v389
    %598 = vmatpush.bf16.msra.mxu0 %v388
    %599 = vmatpush.bf16.msra.mxu0 %v387
    %600 = vmatpush.bf16.msra.mxu0 %v386
    %601 = vmatpush.bf16.msra.mxu0 %v385
    %602 = vmatpush.bf16.msra.mxu0 %v384
    %603 = vmatpush.bf16.msra.mxu0 %v383
    %604 = vmatmul.bf16.gmra.mxu0 %v311
    %v605 = vpop.f32.mrf.mxu0
    %v606 = vadd.f32 %v594, %v605
    %v607 = vpop.f32.mrf.mxu0
    %v608 = vadd.f32 %v594, %v607
    %609 = vmatmul.bf16.gmra.mxu0 %v312
    %v610 = vpop.f32.mrf.mxu0
    %v611 = vadd.f32 %v594, %v610
    %v612 = vpop.f32.mrf.mxu0
    %v613 = vadd.f32 %v594, %v612
    %614 = vmatmul.bf16.gmra.mxu0 %v313
    %v615 = vpop.f32.mrf.mxu0
    %v616 = vadd.f32 %v594, %v615
    %v617 = vpop.f32.mrf.mxu0
    %v618 = vadd.f32 %v594, %v617
    %619 = vmatmul.bf16.gmra.mxu0 %v314
    %v620 = vpop.f32.mrf.mxu0
    %v621 = vadd.f32 %v594, %v620
    %v622 = vpop.f32.mrf.mxu0
    %v623 = vadd.f32 %v594, %v622
    %624 = vmatmul.bf16.gmra.mxu0 %v315
    %v625 = vpop.f32.mrf.mxu0
    %v626 = vadd.f32 %v594, %v625
    %v627 = vpop.f32.mrf.mxu0
    %v628 = vadd.f32 %v594, %v627
    %629 = vmatmul.bf16.gmra.mxu0 %v316
    %v630 = vpop.f32.mrf.mxu0
    %v631 = vadd.f32 %v594, %v630
    %v632 = vpop.f32.mrf.mxu0
    %v633 = vadd.f32 %v594, %v632
    %634 = vmatmul.bf16.gmra.mxu0 %v317
    %v635 = vpop.f32.mrf.mxu0
    %v636 = vadd.f32 %v594, %v635
    %v637 = vpop.f32.mrf.mxu0
    %v638 = vadd.f32 %v594, %v637
    %639 = vmatmul.bf16.gmra.mxu0 %v318
    %v640 = vpop.f32.mrf.mxu0
    %v641 = vadd.f32 %v594, %v640
    %v642 = vpop.f32.mrf.mxu0
    %v643 = vadd.f32 %v594, %v642
    %644 = vmatmul.bf16.gmra.mxu0 %v319
    %v645 = vpop.f32.mrf.mxu0
    %v646 = vadd.f32 %v594, %v645
    %v647 = vpop.f32.mrf.mxu0
    %v648 = vadd.f32 %v594, %v647
    %649 = vmatmul.bf16.gmra.mxu0 %v320
    %v650 = vpop.f32.mrf.mxu0
    %v651 = vadd.f32 %v594, %v650
    %v652 = vpop.f32.mrf.mxu0
    %v653 = vadd.f32 %v594, %v652
    %654 = vmatmul.bf16.gmra.mxu0 %v321
    %v655 = vpop.f32.mrf.mxu0
    %v656 = vadd.f32 %v594, %v655
    %v657 = vpop.f32.mrf.mxu0
    %v658 = vadd.f32 %v594, %v657
    %659 = vmatmul.bf16.gmra.mxu0 %v322
    %v660 = vpop.f32.mrf.mxu0
    %v661 = vadd.f32 %v594, %v660
    %v662 = vpop.f32.mrf.mxu0
    %v663 = vadd.f32 %v594, %v662
    %664 = vmatmul.bf16.gmra.mxu0 %v323
    %v665 = vpop.f32.mrf.mxu0
    %v666 = vadd.f32 %v594, %v665
    %v667 = vpop.f32.mrf.mxu0
    %v668 = vadd.f32 %v594, %v667
    %669 = vmatmul.bf16.gmra.mxu0 %v324
    %v670 = vpop.f32.mrf.mxu0
    %v671 = vadd.f32 %v594, %v670
    %v672 = vpop.f32.mrf.mxu0
    %v673 = vadd.f32 %v594, %v672
    %674 = vmatmul.bf16.gmra.mxu0 %v325
    %v675 = vpop.f32.mrf.mxu0
    %v676 = vadd.f32 %v594, %v675
    %v677 = vpop.f32.mrf.mxu0
    %v678 = vadd.f32 %v594, %v677
    %679 = vmatmul.bf16.gmra.mxu0 %v326
    %v680 = vpop.f32.mrf.mxu0
    %v681 = vadd.f32 %v594, %v680
    %v682 = vpop.f32.mrf.mxu0
    %v683 = vadd.f32 %v594, %v682
    %684 = vmatmul.bf16.gmra.mxu0 %v327
    %v685 = vpop.f32.mrf.mxu0
    %v686 = vadd.f32 %v594, %v685
    %v687 = vpop.f32.mrf.mxu0
    %v688 = vadd.f32 %v594, %v687
    %689 = vmatmul.bf16.gmra.mxu0 %v328
    %v690 = vpop.f32.mrf.mxu0
    %v691 = vadd.f32 %v594, %v690
    %v692 = vpop.f32.mrf.mxu0
    %v693 = vadd.f32 %v594, %v692
    %694 = vmatmul.bf16.gmra.mxu0 %v329
    %v695 = vpop.f32.mrf.mxu0
    %v696 = vadd.f32 %v594, %v695
    %v697 = vpop.f32.mrf.mxu0
    %v698 = vadd.f32 %v594, %v697
    %699 = vmatmul.bf16.gmra.mxu0 %v330
    %v700 = vpop.f32.mrf.mxu0
    %v701 = vadd.f32 %v594, %v700
    %v702 = vpop.f32.mrf.mxu0
    %v703 = vadd.f32 %v594, %v702
    %704 = vmatmul.bf16.gmra.mxu0 %v331
    %v705 = vpop.f32.mrf.mxu0
    %v706 = vadd.f32 %v594, %v705
    %v707 = vpop.f32.mrf.mxu0
    %v708 = vadd.f32 %v594, %v707
    %709 = vmatmul.bf16.gmra.mxu0 %v332
    %v710 = vpop.f32.mrf.mxu0
    %v711 = vadd.f32 %v594, %v710
    %v712 = vpop.f32.mrf.mxu0
    %v713 = vadd.f32 %v594, %v712
    %714 = vmatmul.bf16.gmra.mxu0 %v333
    %v715 = vpop.f32.mrf.mxu0
    %v716 = vadd.f32 %v594, %v715
    %v717 = vpop.f32.mrf.mxu0
    %v718 = vadd.f32 %v594, %v717
    %719 = vmatmul.bf16.gmra.mxu0 %v334
    %v720 = vpop.f32.mrf.mxu0
    %v721 = vadd.f32 %v594, %v720
    %v722 = vpop.f32.mrf.mxu0
    %v723 = vadd.f32 %v594, %v722
    %724 = vmatmul.bf16.gmra.mxu0 %v335
    %v725 = vpop.f32.mrf.mxu0
    %v726 = vadd.f32 %v594, %v725
    %v727 = vpop.f32.mrf.mxu0
    %v728 = vadd.f32 %v594, %v727
    %729 = vmatmul.bf16.gmra.mxu0 %v336
    %v730 = vpop.f32.mrf.mxu0
    %v731 = vadd.f32 %v594, %v730
    %v732 = vpop.f32.mrf.mxu0
    %v733 = vadd.f32 %v594, %v732
    %734 = vmatmul.bf16.gmra.mxu0 %v337
    %v735 = vpop.f32.mrf.mxu0
    %v736 = vadd.f32 %v594, %v735
    %v737 = vpop.f32.mrf.mxu0
    %v738 = vadd.f32 %v594, %v737
    %739 = vmatmul.bf16.gmra.mxu0 %v338
    %v740 = vpop.f32.mrf.mxu0
    %v741 = vadd.f32 %v594, %v740
    %v742 = vpop.f32.mrf.mxu0
    %v743 = vadd.f32 %v594, %v742
    %744 = vmatmul.bf16.gmra.mxu0 %v339
    %v745 = vpop.f32.mrf.mxu0
    %v746 = vadd.f32 %v594, %v745
    %v747 = vpop.f32.mrf.mxu0
    %v748 = vadd.f32 %v594, %v747
    %749 = vmatmul.bf16.gmra.mxu0 %v340
    %v750 = vpop.f32.mrf.mxu0
    %v751 = vadd.f32 %v594, %v750
    %v752 = vpop.f32.mrf.mxu0
    %v753 = vadd.f32 %v594, %v752
    %754 = vmatmul.bf16.gmra.mxu0 %v341
    %v755 = vpop.f32.mrf.mxu0
    %v756 = vadd.f32 %v594, %v755
    %v757 = vpop.f32.mrf.mxu0
    %v758 = vadd.f32 %v594, %v757
    %759 = vmatmul.bf16.gmra.mxu0 %v342
    %v760 = vpop.f32.mrf.mxu0
    %v761 = vadd.f32 %v594, %v760
    %v762 = vpop.f32.mrf.mxu0
    %v763 = vadd.f32 %v594, %v762
    %764 = vdwg.mxu0
    %v893 = vunpack.c.l.b16 %v119
    %v894 = vunpack.c.h.b16 %v119
    %v895 = vunpack.c.l.b16 %v120
    %v896 = vunpack.c.h.b16 %v120
    %v897 = vunpack.c.l.b16 %v121
    %v898 = vunpack.c.h.b16 %v121
    %v899 = vunpack.c.l.b16 %v122
    %v900 = vunpack.c.h.b16 %v122
    %v901 = vunpack.c.l.b16 %v123
    %v902 = vunpack.c.h.b16 %v123
    %v903 = vunpack.c.l.b16 %v124
    %v904 = vunpack.c.h.b16 %v124
    %v905 = vunpack.c.l.b16 %v125
    %v906 = vunpack.c.h.b16 %v125
    %v907 = vunpack.c.l.b16 %v126
    %v908 = vunpack.c.h.b16 %v126
    %v909 = vunpack.c.l.b16 %v127
    %v910 = vunpack.c.h.b16 %v127
    %v911 = vunpack.c.l.b16 %v128
    %v912 = vunpack.c.h.b16 %v128
    %v913 = vunpack.c.l.b16 %v129
    %v914 = vunpack.c.h.b16 %v129
    %v915 = vunpack.c.l.b16 %v130
    %v916 = vunpack.c.h.b16 %v130
    %v917 = vunpack.c.l.b16 %v131
    %v918 = vunpack.c.h.b16 %v131
    %v919 = vunpack.c.l.b16 %v132
    %v920 = vunpack.c.h.b16 %v132
    %v921 = vunpack.c.l.b16 %v133
    %v922 = vunpack.c.h.b16 %v133
    %v923 = vunpack.c.l.b16 %v134
    %v924 = vunpack.c.h.b16 %v134
    %v925 = vunpack.c.l.b16 %v135
    %v926 = vunpack.c.h.b16 %v135
    %v927 = vunpack.c.l.b16 %v136
    %v928 = vunpack.c.h.b16 %v136
    %v929 = vunpack.c.l.b16 %v137
    %v930 = vunpack.c.h.b16 %v137
    %v931 = vunpack.c.l.b16 %v138
    %v932 = vunpack.c.h.b16 %v138
    %v933 = vunpack.c.l.b16 %v139
    %v934 = vunpack.c.h.b16 %v139
    %v935 = vunpack.c.l.b16 %v140
    %v936 = vunpack.c.h.b16 %v140
    %v937 = vunpack.c.l.b16 %v141
    %v938 = vunpack.c.h.b16 %v141
    %v939 = vunpack.c.l.b16 %v142
    %v940 = vunpack.c.h.b16 %v142
    %v941 = vunpack.c.l.b16 %v143
    %v942 = vunpack.c.h.b16 %v143
    %v943 = vunpack.c.l.b16 %v144
    %v944 = vunpack.c.h.b16 %v144
    %v945 = vunpack.c.l.b16 %v145
    %v946 = vunpack.c.h.b16 %v145
    %v947 = vunpack.c.l.b16 %v146
    %v948 = vunpack.c.h.b16 %v146
    %v949 = vunpack.c.l.b16 %v147
    %v950 = vunpack.c.h.b16 %v147
    %v951 = vunpack.c.l.b16 %v148
    %v952 = vunpack.c.h.b16 %v148
    %v953 = vunpack.c.l.b16 %v149
    %v954 = vunpack.c.h.b16 %v149
    %v955 = vunpack.c.l.b16 %v150
    %v956 = vunpack.c.h.b16 %v150
    %v957 = vunpack.c.l.b16 %v151
    %v958 = vunpack.c.h.b16 %v151
    %v959 = vunpack.c.l.b16 %v152
    %v960 = vunpack.c.h.b16 %v152
    %v961 = vunpack.c.l.b16 %v153
    %v962 = vunpack.c.h.b16 %v153
    %v963 = vunpack.c.l.b16 %v154
    %v964 = vunpack.c.h.b16 %v154
    %v965 = vunpack.c.l.b16 %v155
    %v966 = vunpack.c.h.b16 %v155
    %v967 = vunpack.c.l.b16 %v156
    %v968 = vunpack.c.h.b16 %v156
    %v969 = vunpack.c.l.b16 %v157
    %v970 = vunpack.c.h.b16 %v157
    %v971 = vunpack.c.l.b16 %v158
    %v972 = vunpack.c.h.b16 %v158
    %v973 = vunpack.c.l.b16 %v159
    %v974 = vunpack.c.h.b16 %v159
    %v975 = vunpack.c.l.b16 %v160
    %v976 = vunpack.c.h.b16 %v160
    %v977 = vunpack.c.l.b16 %v161
    %v978 = vunpack.c.h.b16 %v161
    %v979 = vunpack.c.l.b16 %v162
    %v980 = vunpack.c.h.b16 %v162
    %v981 = vunpack.c.l.b16 %v163
    %v982 = vunpack.c.h.b16 %v163
    %v983 = vunpack.c.l.b16 %v164
    %v984 = vunpack.c.h.b16 %v164
    %v985 = vunpack.c.l.b16 %v165
    %v986 = vunpack.c.h.b16 %v165
    %v987 = vunpack.c.l.b16 %v166
    %v988 = vunpack.c.h.b16 %v166
    %v989 = vunpack.c.l.b16 %v167
    %v990 = vunpack.c.h.b16 %v167
    %v991 = vunpack.c.l.b16 %v168
    %v992 = vunpack.c.h.b16 %v168
    %v993 = vunpack.c.l.b16 %v169
    %v994 = vunpack.c.h.b16 %v169
    %v995 = vunpack.c.l.b16 %v170
    %v996 = vunpack.c.h.b16 %v170
    %v997 = vunpack.c.l.b16 %v171
    %v998 = vunpack.c.h.b16 %v171
    %v999 = vunpack.c.l.b16 %v172
    %v1000 = vunpack.c.h.b16 %v172
    %v1001 = vunpack.c.l.b16 %v173
    %v1002 = vunpack.c.h.b16 %v173
    %v1003 = vunpack.c.l.b16 %v174
    %v1004 = vunpack.c.h.b16 %v174
    %v1005 = vunpack.c.l.b16 %v175
    %v1006 = vunpack.c.h.b16 %v175
    %v1007 = vunpack.c.l.b16 %v176
    %v1008 = vunpack.c.h.b16 %v176
    %v1009 = vunpack.c.l.b16 %v177
    %v1010 = vunpack.c.h.b16 %v177
    %v1011 = vunpack.c.l.b16 %v178
    %v1012 = vunpack.c.h.b16 %v178
    %v1013 = vunpack.c.l.b16 %v179
    %v1014 = vunpack.c.h.b16 %v179
    %v1015 = vunpack.c.l.b16 %v180
    %v1016 = vunpack.c.h.b16 %v180
    %v1017 = vunpack.c.l.b16 %v181
    %v1018 = vunpack.c.h.b16 %v181
    %v1019 = vunpack.c.l.b16 %v182
    %v1020 = vunpack.c.h.b16 %v182
    %v1021 = vunpack.c.l.b16 %v183
    %v1022 = vunpack.c.h.b16 %v183
    %v1023 = vunpack.c.l.b16 %v184
    %v1024 = vunpack.c.h.b16 %v184
    %v1025 = vunpack.c.l.b16 %v185
    %v1026 = vunpack.c.h.b16 %v185
    %v1027 = vunpack.c.l.b16 %v186
    %v1028 = vunpack.c.h.b16 %v186
    %v1029 = vunpack.c.l.b16 %v187
    %v1030 = vunpack.c.h.b16 %v187
    %v1031 = vunpack.c.l.b16 %v188
    %v1032 = vunpack.c.h.b16 %v188
    %v1033 = vunpack.c.l.b16 %v189
    %v1034 = vunpack.c.h.b16 %v189
    %v1035 = vunpack.c.l.b16 %v190
    %v1036 = vunpack.c.h.b16 %v190
    %v1037 = vunpack.c.l.b16 %v191
    %v1038 = vunpack.c.h.b16 %v191
    %v1039 = vunpack.c.l.b16 %v192
    %v1040 = vunpack.c.h.b16 %v192
    %v1041 = vunpack.c.l.b16 %v193
    %v1042 = vunpack.c.h.b16 %v193
    %v1043 = vunpack.c.l.b16 %v194
    %v1044 = vunpack.c.h.b16 %v194
    %v1045 = vunpack.c.l.b16 %v195
    %v1046 = vunpack.c.h.b16 %v195
    %v1047 = vunpack.c.l.b16 %v196
    %v1048 = vunpack.c.h.b16 %v196
    %v1049 = vunpack.c.l.b16 %v197
    %v1050 = vunpack.c.h.b16 %v197
    %v1051 = vunpack.c.l.b16 %v198
    %v1052 = vunpack.c.h.b16 %v198
    %v1053 = vunpack.c.l.b16 %v199
    %v1054 = vunpack.c.h.b16 %v199
    %v1055 = vunpack.c.l.b16 %v200
    %v1056 = vunpack.c.h.b16 %v200
    %v1057 = vunpack.c.l.b16 %v201
    %v1058 = vunpack.c.h.b16 %v201
    %v1059 = vunpack.c.l.b16 %v202
    %v1060 = vunpack.c.h.b16 %v202
    %v1061 = vunpack.c.l.b16 %v203
    %v1062 = vunpack.c.h.b16 %v203
    %v1063 = vunpack.c.l.b16 %v204
    %v1064 = vunpack.c.h.b16 %v204
    %v1065 = vunpack.c.l.b16 %v205
    %v1066 = vunpack.c.h.b16 %v205
    %v1067 = vunpack.c.l.b16 %v206
    %v1068 = vunpack.c.h.b16 %v206
    %v1069 = vunpack.c.l.b16 %v207
    %v1070 = vunpack.c.h.b16 %v207
    %v1071 = vunpack.c.l.b16 %v208
    %v1072 = vunpack.c.h.b16 %v208
    %v1073 = vunpack.c.l.b16 %v209
    %v1074 = vunpack.c.h.b16 %v209
    %v1075 = vunpack.c.l.b16 %v210
    %v1076 = vunpack.c.h.b16 %v210
    %v1077 = vunpack.c.l.b16 %v211
    %v1078 = vunpack.c.h.b16 %v211
    %v1079 = vunpack.c.l.b16 %v212
    %v1080 = vunpack.c.h.b16 %v212
    %v1081 = vunpack.c.l.b16 %v213
    %v1082 = vunpack.c.h.b16 %v213
    %v1083 = vunpack.c.l.b16 %v214
    %v1084 = vunpack.c.h.b16 %v214
    %v1085 = vunpack.c.l.b16 %v215
    %v1086 = vunpack.c.h.b16 %v215
    %v1087 = vunpack.c.l.b16 %v216
    %v1088 = vunpack.c.h.b16 %v216
    %v1089 = vunpack.c.l.b16 %v217
    %v1090 = vunpack.c.h.b16 %v217
    %v1091 = vunpack.c.l.b16 %v218
    %v1092 = vunpack.c.h.b16 %v218
    %v1093 = vunpack.c.l.b16 %v219
    %v1094 = vunpack.c.h.b16 %v219
    %v1095 = vunpack.c.l.b16 %v220
    %v1096 = vunpack.c.h.b16 %v220
    %v1097 = vunpack.c.l.b16 %v221
    %v1098 = vunpack.c.h.b16 %v221
    %v1099 = vunpack.c.l.b16 %v222
    %v1100 = vunpack.c.h.b16 %v222
    %v1101 = vunpack.c.l.b16 %v223
    %v1102 = vunpack.c.h.b16 %v223
    %v1103 = vunpack.c.l.b16 %v224
    %v1104 = vunpack.c.h.b16 %v224
    %v1105 = vunpack.c.l.b16 %v225
    %v1106 = vunpack.c.h.b16 %v225
    %v1107 = vunpack.c.l.b16 %v226
    %v1108 = vunpack.c.h.b16 %v226
    %v1109 = vunpack.c.l.b16 %v227
    %v1110 = vunpack.c.h.b16 %v227
    %v1111 = vunpack.c.l.b16 %v228
    %v1112 = vunpack.c.h.b16 %v228
    %v1113 = vunpack.c.l.b16 %v229
    %v1114 = vunpack.c.h.b16 %v229
    %v1115 = vunpack.c.l.b16 %v230
    %v1116 = vunpack.c.h.b16 %v230
    %v1117 = vunpack.c.l.b16 %v231
    %v1118 = vunpack.c.h.b16 %v231
    %v1119 = vunpack.c.l.b16 %v232
    %v1120 = vunpack.c.h.b16 %v232
    %v1121 = vunpack.c.l.b16 %v233
    %v1122 = vunpack.c.h.b16 %v233
    %v1123 = vunpack.c.l.b16 %v234
    %v1124 = vunpack.c.h.b16 %v234
    %v1125 = vunpack.c.l.b16 %v235
    %v1126 = vunpack.c.h.b16 %v235
    %v1127 = vunpack.c.l.b16 %v236
    %v1128 = vunpack.c.h.b16 %v236
    %v1129 = vunpack.c.l.b16 %v237
    %v1130 = vunpack.c.h.b16 %v237
    %v1131 = vunpack.c.l.b16 %v238
    %v1132 = vunpack.c.h.b16 %v238
    %v1133 = vunpack.c.l.b16 %v239
    %v1134 = vunpack.c.h.b16 %v239
    %v1135 = vunpack.c.l.b16 %v240
    %v1136 = vunpack.c.h.b16 %v240
    %v1137 = vunpack.c.l.b16 %v241
    %v1138 = vunpack.c.h.b16 %v241
    %v1139 = vunpack.c.l.b16 %v242
    %v1140 = vunpack.c.h.b16 %v242
    %v1141 = vunpack.c.l.b16 %v243
    %v1142 = vunpack.c.h.b16 %v243
    %v1143 = vunpack.c.l.b16 %v244
    %v1144 = vunpack.c.h.b16 %v244
    %v1145 = vunpack.c.l.b16 %v245
    %v1146 = vunpack.c.h.b16 %v245
    %v1147 = vunpack.c.l.b16 %v246
    %v1148 = vunpack.c.h.b16 %v246
    %v1149 = vpack.c.b16 %v897, %v893
    %v1150 = vpack.c.b16 %v898, %v894
    %v1151 = vpack.c.b16 %v899, %v895
    %v1152 = vpack.c.b16 %v900, %v896
    %v1153 = vpack.c.b16 %v905, %v901
    %v1154 = vpack.c.b16 %v906, %v902
    %v1155 = vpack.c.b16 %v907, %v903
    %v1156 = vpack.c.b16 %v908, %v904
    %v1157 = vpack.c.b16 %v913, %v909
    %v1158 = vpack.c.b16 %v914, %v910
    %v1159 = vpack.c.b16 %v915, %v911
    %v1160 = vpack.c.b16 %v916, %v912
    %v1161 = vpack.c.b16 %v921, %v917
    %v1162 = vpack.c.b16 %v922, %v918
    %v1163 = vpack.c.b16 %v923, %v919
    %v1164 = vpack.c.b16 %v924, %v920
    %v1165 = vpack.c.b16 %v929, %v925
    %v1166 = vpack.c.b16 %v930, %v926
    %v1167 = vpack.c.b16 %v931, %v927
    %v1168 = vpack.c.b16 %v932, %v928
    %v1169 = vpack.c.b16 %v937, %v933
    %v1170 = vpack.c.b16 %v938, %v934
    %v1171 = vpack.c.b16 %v939, %v935
    %v1172 = vpack.c.b16 %v940, %v936
    %v1173 = vpack.c.b16 %v945, %v941
    %v1174 = vpack.c.b16 %v946, %v942
    %v1175 = vpack.c.b16 %v947, %v943
    %v1176 = vpack.c.b16 %v948, %v944
    %v1177 = vpack.c.b16 %v953, %v949
    %v1178 = vpack.c.b16 %v954, %v950
    %v1179 = vpack.c.b16 %v955, %v951
    %v1180 = vpack.c.b16 %v956, %v952
    %v1181 = vpack.c.b16 %v961, %v957
    %v1182 = vpack.c.b16 %v962, %v958
    %v1183 = vpack.c.b16 %v963, %v959
    %v1184 = vpack.c.b16 %v964, %v960
    %v1185 = vpack.c.b16 %v969, %v965
    %v1186 = vpack.c.b16 %v970, %v966
    %v1187 = vpack.c.b16 %v971, %v967
    %v1188 = vpack.c.b16 %v972, %v968
    %v1189 = vpack.c.b16 %v977, %v973
    %v1190 = vpack.c.b16 %v978, %v974
    %v1191 = vpack.c.b16 %v979, %v975
    %v1192 = vpack.c.b16 %v980, %v976
    %v1193 = vpack.c.b16 %v985, %v981
    %v1194 = vpack.c.b16 %v986, %v982
    %v1195 = vpack.c.b16 %v987, %v983
    %v1196 = vpack.c.b16 %v988, %v984
    %v1197 = vpack.c.b16 %v993, %v989
    %v1198 = vpack.c.b16 %v994, %v990
    %v1199 = vpack.c.b16 %v995, %v991
    %v1200 = vpack.c.b16 %v996, %v992
    %v1201 = vpack.c.b16 %v1001, %v997
    %v1202 = vpack.c.b16 %v1002, %v998
    %v1203 = vpack.c.b16 %v1003, %v999
    %v1204 = vpack.c.b16 %v1004, %v1000
    %v1205 = vpack.c.b16 %v1009, %v1005
    %v1206 = vpack.c.b16 %v1010, %v1006
    %v1207 = vpack.c.b16 %v1011, %v1007
    %v1208 = vpack.c.b16 %v1012, %v1008
    %v1209 = vpack.c.b16 %v1017, %v1013
    %v1210 = vpack.c.b16 %v1018, %v1014
    %v1211 = vpack.c.b16 %v1019, %v1015
    %v1212 = vpack.c.b16 %v1020, %v1016
    %v1213 = vpack.c.b16 %v1025, %v1021
    %v1214 = vpack.c.b16 %v1026, %v1022
    %v1215 = vpack.c.b16 %v1027, %v1023
    %v1216 = vpack.c.b16 %v1028, %v1024
    %v1217 = vpack.c.b16 %v1033, %v1029
    %v1218 = vpack.c.b16 %v1034, %v1030
    %v1219 = vpack.c.b16 %v1035, %v1031
    %v1220 = vpack.c.b16 %v1036, %v1032
    %v1221 = vpack.c.b16 %v1041, %v1037
    %v1222 = vpack.c.b16 %v1042, %v1038
    %v1223 = vpack.c.b16 %v1043, %v1039
    %v1224 = vpack.c.b16 %v1044, %v1040
    %v1225 = vpack.c.b16 %v1049, %v1045
    %v1226 = vpack.c.b16 %v1050, %v1046
    %v1227 = vpack.c.b16 %v1051, %v1047
    %v1228 = vpack.c.b16 %v1052, %v1048
    %v1229 = vpack.c.b16 %v1057, %v1053
    %v1230 = vpack.c.b16 %v1058, %v1054
    %v1231 = vpack.c.b16 %v1059, %v1055
    %v1232 = vpack.c.b16 %v1060, %v1056
    %v1233 = vpack.c.b16 %v1065, %v1061
    %v1234 = vpack.c.b16 %v1066, %v1062
    %v1235 = vpack.c.b16 %v1067, %v1063
    %v1236 = vpack.c.b16 %v1068, %v1064
    %v1237 = vpack.c.b16 %v1073, %v1069
    %v1238 = vpack.c.b16 %v1074, %v1070
    %v1239 = vpack.c.b16 %v1075, %v1071
    %v1240 = vpack.c.b16 %v1076, %v1072
    %v1241 = vpack.c.b16 %v1081, %v1077
    %v1242 = vpack.c.b16 %v1082, %v1078
    %v1243 = vpack.c.b16 %v1083, %v1079
    %v1244 = vpack.c.b16 %v1084, %v1080
    %v1245 = vpack.c.b16 %v1089, %v1085
    %v1246 = vpack.c.b16 %v1090, %v1086
    %v1247 = vpack.c.b16 %v1091, %v1087
    %v1248 = vpack.c.b16 %v1092, %v1088
    %v1249 = vpack.c.b16 %v1097, %v1093
    %v1250 = vpack.c.b16 %v1098, %v1094
    %v1251 = vpack.c.b16 %v1099, %v1095
    %v1252 = vpack.c.b16 %v1100, %v1096
    %v1253 = vpack.c.b16 %v1105, %v1101
    %v1254 = vpack.c.b16 %v1106, %v1102
    %v1255 = vpack.c.b16 %v1107, %v1103
    %v1256 = vpack.c.b16 %v1108, %v1104
    %v1257 = vpack.c.b16 %v1113, %v1109
    %v1258 = vpack.c.b16 %v1114, %v1110
    %v1259 = vpack.c.b16 %v1115, %v1111
    %v1260 = vpack.c.b16 %v1116, %v1112
    %v1261 = vpack.c.b16 %v1121, %v1117
    %v1262 = vpack.c.b16 %v1122, %v1118
    %v1263 = vpack.c.b16 %v1123, %v1119
    %v1264 = vpack.c.b16 %v1124, %v1120
    %v1265 = vpack.c.b16 %v1129, %v1125
    %v1266 = vpack.c.b16 %v1130, %v1126
    %v1267 = vpack.c.b16 %v1131, %v1127
    %v1268 = vpack.c.b16 %v1132, %v1128
    %v1269 = vpack.c.b16 %v1137, %v1133
    %v1270 = vpack.c.b16 %v1138, %v1134
    %v1271 = vpack.c.b16 %v1139, %v1135
    %v1272 = vpack.c.b16 %v1140, %v1136
    %v1273 = vpack.c.b16 %v1145, %v1141
    %v1274 = vpack.c.b16 %v1146, %v1142
    %v1275 = vpack.c.b16 %v1147, %v1143
    %v1276 = vpack.c.b16 %v1148, %v1144
    %1405 = vmatpush.bf16.msra.mxu0 %v567
    %1406 = vmatpush.bf16.msra.mxu0 %v566
    %1407 = vmatpush.bf16.msra.mxu0 %v565
    %1408 = vmatpush.bf16.msra.mxu0 %v564
    %1409 = vmatpush.bf16.msra.mxu0 %v563
    %1410 = vmatpush.bf16.msra.mxu0 %v562
    %1411 = vmatpush.bf16.msra.mxu0 %v561
    %1412 = vmatpush.bf16.msra.mxu0 %v560
    %1413 = vmatmul.bf16.gmra.mxu0 %v1149
    %v1414 = vpop.f32.mrf.mxu0
    %v1415 = vadd.f32 %v606, %v1414
    %v1416 = vpop.f32.mrf.mxu0
    %v1417 = vadd.f32 %v608, %v1416
    %1418 = vmatmul.bf16.gmra.mxu0 %v1153
    %v1419 = vpop.f32.mrf.mxu0
    %v1420 = vadd.f32 %v611, %v1419
    %v1421 = vpop.f32.mrf.mxu0
    %v1422 = vadd.f32 %v613, %v1421
    %1423 = vmatmul.bf16.gmra.mxu0 %v1157
    %v1424 = vpop.f32.mrf.mxu0
    %v1425 = vadd.f32 %v616, %v1424
    %v1426 = vpop.f32.mrf.mxu0
    %v1427 = vadd.f32 %v618, %v1426
    %1428 = vmatmul.bf16.gmra.mxu0 %v1161
    %v1429 = vpop.f32.mrf.mxu0
    %v1430 = vadd.f32 %v621, %v1429
    %v1431 = vpop.f32.mrf.mxu0
    %v1432 = vadd.f32 %v623, %v1431
    %1433 = vmatmul.bf16.gmra.mxu0 %v1165
    %v1434 = vpop.f32.mrf.mxu0
    %v1435 = vadd.f32 %v626, %v1434
    %v1436 = vpop.f32.mrf.mxu0
    %v1437 = vadd.f32 %v628, %v1436
    %1438 = vmatmul.bf16.gmra.mxu0 %v1169
    %v1439 = vpop.f32.mrf.mxu0
    %v1440 = vadd.f32 %v631, %v1439
    %v1441 = vpop.f32.mrf.mxu0
    %v1442 = vadd.f32 %v633, %v1441
    %1443 = vmatmul.bf16.gmra.mxu0 %v1173
    %v1444 = vpop.f32.mrf.mxu0
    %v1445 = vadd.f32 %v636, %v1444
    %v1446 = vpop.f32.mrf.mxu0
    %v1447 = vadd.f32 %v638, %v1446
    %1448 = vmatmul.bf16.gmra.mxu0 %v1177
    %v1449 = vpop.f32.mrf.mxu0
    %v1450 = vadd.f32 %v641, %v1449
    %v1451 = vpop.f32.mrf.mxu0
    %v1452 = vadd.f32 %v643, %v1451
    %1453 = vmatmul.bf16.gmra.mxu0 %v1181
    %v1454 = vpop.f32.mrf.mxu0
    %v1455 = vadd.f32 %v646, %v1454
    %v1456 = vpop.f32.mrf.mxu0
    %v1457 = vadd.f32 %v648, %v1456
    %1458 = vmatmul.bf16.gmra.mxu0 %v1185
    %v1459 = vpop.f32.mrf.mxu0
    %v1460 = vadd.f32 %v651, %v1459
    %v1461 = vpop.f32.mrf.mxu0
    %v1462 = vadd.f32 %v653, %v1461
    %1463 = vmatmul.bf16.gmra.mxu0 %v1189
    %v1464 = vpop.f32.mrf.mxu0
    %v1465 = vadd.f32 %v656, %v1464
    %v1466 = vpop.f32.mrf.mxu0
    %v1467 = vadd.f32 %v658, %v1466
    %1468 = vmatmul.bf16.gmra.mxu0 %v1193
    %v1469 = vpop.f32.mrf.mxu0
    %v1470 = vadd.f32 %v661, %v1469
    %v1471 = vpop.f32.mrf.mxu0
    %v1472 = vadd.f32 %v663, %v1471
    %1473 = vmatmul.bf16.gmra.mxu0 %v1197
    %v1474 = vpop.f32.mrf.mxu0
    %v1475 = vadd.f32 %v666, %v1474
    %v1476 = vpop.f32.mrf.mxu0
    %v1477 = vadd.f32 %v668, %v1476
    %1478 = vmatmul.bf16.gmra.mxu0 %v1201
    %v1479 = vpop.f32.mrf.mxu0
    %v1480 = vadd.f32 %v671, %v1479
    %v1481 = vpop.f32.mrf.mxu0
    %v1482 = vadd.f32 %v673, %v1481
    %1483 = vmatmul.bf16.gmra.mxu0 %v1205
    %v1484 = vpop.f32.mrf.mxu0
    %v1485 = vadd.f32 %v676, %v1484
    %v1486 = vpop.f32.mrf.mxu0
    %v1487 = vadd.f32 %v678, %v1486
    %1488 = vmatmul.bf16.gmra.mxu0 %v1209
    %v1489 = vpop.f32.mrf.mxu0
    %v1490 = vadd.f32 %v681, %v1489
    %v1491 = vpop.f32.mrf.mxu0
    %v1492 = vadd.f32 %v683, %v1491
    %1493 = vmatmul.bf16.gmra.mxu0 %v1213
    %v1494 = vpop.f32.mrf.mxu0
    %v1495 = vadd.f32 %v686, %v1494
    %v1496 = vpop.f32.mrf.mxu0
    %v1497 = vadd.f32 %v688, %v1496
    %1498 = vmatmul.bf16.gmra.mxu0 %v1217
    %v1499 = vpop.f32.mrf.mxu0
    %v1500 = vadd.f32 %v691, %v1499
    %v1501 = vpop.f32.mrf.mxu0
    %v1502 = vadd.f32 %v693, %v1501
    %1503 = vmatmul.bf16.gmra.mxu0 %v1221
    %v1504 = vpop.f32.mrf.mxu0
    %v1505 = vadd.f32 %v696, %v1504
    %v1506 = vpop.f32.mrf.mxu0
    %v1507 = vadd.f32 %v698, %v1506
    %1508 = vmatmul.bf16.gmra.mxu0 %v1225
    %v1509 = vpop.f32.mrf.mxu0
    %v1510 = vadd.f32 %v701, %v1509
    %v1511 = vpop.f32.mrf.mxu0
    %v1512 = vadd.f32 %v703, %v1511
    %1513 = vmatmul.bf16.gmra.mxu0 %v1229
    %v1514 = vpop.f32.mrf.mxu0
    %v1515 = vadd.f32 %v706, %v1514
    %v1516 = vpop.f32.mrf.mxu0
    %v1517 = vadd.f32 %v708, %v1516
    %1518 = vmatmul.bf16.gmra.mxu0 %v1233
    %v1519 = vpop.f32.mrf.mxu0
    %v1520 = vadd.f32 %v711, %v1519
    %v1521 = vpop.f32.mrf.mxu0
    %v1522 = vadd.f32 %v713, %v1521
    %1523 = vmatmul.bf16.gmra.mxu0 %v1237
    %v1524 = vpop.f32.mrf.mxu0
    %v1525 = vadd.f32 %v716, %v1524
    %v1526 = vpop.f32.mrf.mxu0
    %v1527 = vadd.f32 %v718, %v1526
    %1528 = vmatmul.bf16.gmra.mxu0 %v1241
    %v1529 = vpop.f32.mrf.mxu0
    %v1530 = vadd.f32 %v721, %v1529
    %v1531 = vpop.f32.mrf.mxu0
    %v1532 = vadd.f32 %v723, %v1531
    %1533 = vmatmul.bf16.gmra.mxu0 %v1245
    %v1534 = vpop.f32.mrf.mxu0
    %v1535 = vadd.f32 %v726, %v1534
    %v1536 = vpop.f32.mrf.mxu0
    %v1537 = vadd.f32 %v728, %v1536
    %1538 = vmatmul.bf16.gmra.mxu0 %v1249
    %v1539 = vpop.f32.mrf.mxu0
    %v1540 = vadd.f32 %v731, %v1539
    %v1541 = vpop.f32.mrf.mxu0
    %v1542 = vadd.f32 %v733, %v1541
    %1543 = vmatmul.bf16.gmra.mxu0 %v1253
    %v1544 = vpop.f32.mrf.mxu0
    %v1545 = vadd.f32 %v736, %v1544
    %v1546 = vpop.f32.mrf.mxu0
    %v1547 = vadd.f32 %v738, %v1546
    %1548 = vmatmul.bf16.gmra.mxu0 %v1257
    %v1549 = vpop.f32.mrf.mxu0
    %v1550 = vadd.f32 %v741, %v1549
    %v1551 = vpop.f32.mrf.mxu0
    %v1552 = vadd.f32 %v743, %v1551
    %1553 = vmatmul.bf16.gmra.mxu0 %v1261
    %v1554 = vpop.f32.mrf.mxu0
    %v1555 = vadd.f32 %v746, %v1554
    %v1556 = vpop.f32.mrf.mxu0
    %v1557 = vadd.f32 %v748, %v1556
    %1558 = vmatmul.bf16.gmra.mxu0 %v1265
    %v1559 = vpop.f32.mrf.mxu0
    %v1560 = vadd.f32 %v751, %v1559
    %v1561 = vpop.f32.mrf.mxu0
    %v1562 = vadd.f32 %v753, %v1561
    %1563 = vmatmul.bf16.gmra.mxu0 %v1269
    %v1564 = vpop.f32.mrf.mxu0
    %v1565 = vadd.f32 %v756, %v1564
    %v1566 = vpop.f32.mrf.mxu0
    %v1567 = vadd.f32 %v758, %v1566
    %1568 = vmatmul.bf16.gmra.mxu0 %v1273
    %v1569 = vpop.f32.mrf.mxu0
    %v1570 = vadd.f32 %v761, %v1569
    %v1571 = vpop.f32.mrf.mxu0
    %v1572 = vadd.f32 %v763, %v1571
    %1573 = vdwg.mxu0
    %1574 = vmatpush.bf16.msra.mxu0 %v575
    %1575 = vmatpush.bf16.msra.mxu0 %v574
    %1576 = vmatpush.bf16.msra.mxu0 %v573
    %1577 = vmatpush.bf16.msra.mxu0 %v572
    %1578 = vmatpush.bf16.msra.mxu0 %v571
    %1579 = vmatpush.bf16.msra.mxu0 %v570
    %1580 = vmatpush.bf16.msra.mxu0 %v569
    %1581 = vmatpush.bf16.msra.mxu0 %v568
    %1582 = vmatmul.bf16.gmra.mxu0 %v1150
    %v1583 = vpop.f32.mrf.mxu0
    %v1584 = vadd.f32 %v1415, %v1583
    %v1585 = vpop.f32.mrf.mxu0
    %v1586 = vadd.f32 %v1417, %v1585
    %1587 = vmatmul.bf16.gmra.mxu0 %v1154
    %v1588 = vpop.f32.mrf.mxu0
    %v1589 = vadd.f32 %v1420, %v1588
    %v1590 = vpop.f32.mrf.mxu0
    %v1591 = vadd.f32 %v1422, %v1590
    %1592 = vmatmul.bf16.gmra.mxu0 %v1158
    %v1593 = vpop.f32.mrf.mxu0
    %v1594 = vadd.f32 %v1425, %v1593
    %v1595 = vpop.f32.mrf.mxu0
    %v1596 = vadd.f32 %v1427, %v1595
    %1597 = vmatmul.bf16.gmra.mxu0 %v1162
    %v1598 = vpop.f32.mrf.mxu0
    %v1599 = vadd.f32 %v1430, %v1598
    %v1600 = vpop.f32.mrf.mxu0
    %v1601 = vadd.f32 %v1432, %v1600
    %1602 = vmatmul.bf16.gmra.mxu0 %v1166
    %v1603 = vpop.f32.mrf.mxu0
    %v1604 = vadd.f32 %v1435, %v1603
    %v1605 = vpop.f32.mrf.mxu0
    %v1606 = vadd.f32 %v1437, %v1605
    %1607 = vmatmul.bf16.gmra.mxu0 %v1170
    %v1608 = vpop.f32.mrf.mxu0
    %v1609 = vadd.f32 %v1440, %v1608
    %v1610 = vpop.f32.mrf.mxu0
    %v1611 = vadd.f32 %v1442, %v1610
    %1612 = vmatmul.bf16.gmra.mxu0 %v1174
    %v1613 = vpop.f32.mrf.mxu0
    %v1614 = vadd.f32 %v1445, %v1613
    %v1615 = vpop.f32.mrf.mxu0
    %v1616 = vadd.f32 %v1447, %v1615
    %1617 = vmatmul.bf16.gmra.mxu0 %v1178
    %v1618 = vpop.f32.mrf.mxu0
    %v1619 = vadd.f32 %v1450, %v1618
    %v1620 = vpop.f32.mrf.mxu0
    %v1621 = vadd.f32 %v1452, %v1620
    %1622 = vmatmul.bf16.gmra.mxu0 %v1182
    %v1623 = vpop.f32.mrf.mxu0
    %v1624 = vadd.f32 %v1455, %v1623
    %v1625 = vpop.f32.mrf.mxu0
    %v1626 = vadd.f32 %v1457, %v1625
    %1627 = vmatmul.bf16.gmra.mxu0 %v1186
    %v1628 = vpop.f32.mrf.mxu0
    %v1629 = vadd.f32 %v1460, %v1628
    %v1630 = vpop.f32.mrf.mxu0
    %v1631 = vadd.f32 %v1462, %v1630
    %1632 = vmatmul.bf16.gmra.mxu0 %v1190
    %v1633 = vpop.f32.mrf.mxu0
    %v1634 = vadd.f32 %v1465, %v1633
    %v1635 = vpop.f32.mrf.mxu0
    %v1636 = vadd.f32 %v1467, %v1635
    %1637 = vmatmul.bf16.gmra.mxu0 %v1194
    %v1638 = vpop.f32.mrf.mxu0
    %v1639 = vadd.f32 %v1470, %v1638
    %v1640 = vpop.f32.mrf.mxu0
    %v1641 = vadd.f32 %v1472, %v1640
    %1642 = vmatmul.bf16.gmra.mxu0 %v1198
    %v1643 = vpop.f32.mrf.mxu0
    %v1644 = vadd.f32 %v1475, %v1643
    %v1645 = vpop.f32.mrf.mxu0
    %v1646 = vadd.f32 %v1477, %v1645
    %1647 = vmatmul.bf16.gmra.mxu0 %v1202
    %v1648 = vpop.f32.mrf.mxu0
    %v1649 = vadd.f32 %v1480, %v1648
    %v1650 = vpop.f32.mrf.mxu0
    %v1651 = vadd.f32 %v1482, %v1650
    %1652 = vmatmul.bf16.gmra.mxu0 %v1206
    %v1653 = vpop.f32.mrf.mxu0
    %v1654 = vadd.f32 %v1485, %v1653
    %v1655 = vpop.f32.mrf.mxu0
    %v1656 = vadd.f32 %v1487, %v1655
    %1657 = vmatmul.bf16.gmra.mxu0 %v1210
    %v1658 = vpop.f32.mrf.mxu0
    %v1659 = vadd.f32 %v1490, %v1658
    %v1660 = vpop.f32.mrf.mxu0
    %v1661 = vadd.f32 %v1492, %v1660
    %1662 = vmatmul.bf16.gmra.mxu0 %v1214
    %v1663 = vpop.f32.mrf.mxu0
    %v1664 = vadd.f32 %v1495, %v1663
    %v1665 = vpop.f32.mrf.mxu0
    %v1666 = vadd.f32 %v1497, %v1665
    %1667 = vmatmul.bf16.gmra.mxu0 %v1218
    %v1668 = vpop.f32.mrf.mxu0
    %v1669 = vadd.f32 %v1500, %v1668
    %v1670 = vpop.f32.mrf.mxu0
    %v1671 = vadd.f32 %v1502, %v1670
    %1672 = vmatmul.bf16.gmra.mxu0 %v1222
    %v1673 = vpop.f32.mrf.mxu0
    %v1674 = vadd.f32 %v1505, %v1673
    %v1675 = vpop.f32.mrf.mxu0
    %v1676 = vadd.f32 %v1507, %v1675
    %1677 = vmatmul.bf16.gmra.mxu0 %v1226
    %v1678 = vpop.f32.mrf.mxu0
    %v1679 = vadd.f32 %v1510, %v1678
    %v1680 = vpop.f32.mrf.mxu0
    %v1681 = vadd.f32 %v1512, %v1680
    %1682 = vmatmul.bf16.gmra.mxu0 %v1230
    %v1683 = vpop.f32.mrf.mxu0
    %v1684 = vadd.f32 %v1515, %v1683
    %v1685 = vpop.f32.mrf.mxu0
    %v1686 = vadd.f32 %v1517, %v1685
    %1687 = vmatmul.bf16.gmra.mxu0 %v1234
    %v1688 = vpop.f32.mrf.mxu0
    %v1689 = vadd.f32 %v1520, %v1688
    %v1690 = vpop.f32.mrf.mxu0
    %v1691 = vadd.f32 %v1522, %v1690
    %1692 = vmatmul.bf16.gmra.mxu0 %v1238
    %v1693 = vpop.f32.mrf.mxu0
    %v1694 = vadd.f32 %v1525, %v1693
    %v1695 = vpop.f32.mrf.mxu0
    %v1696 = vadd.f32 %v1527, %v1695
    %1697 = vmatmul.bf16.gmra.mxu0 %v1242
    %v1698 = vpop.f32.mrf.mxu0
    %v1699 = vadd.f32 %v1530, %v1698
    %v1700 = vpop.f32.mrf.mxu0
    %v1701 = vadd.f32 %v1532, %v1700
    %1702 = vmatmul.bf16.gmra.mxu0 %v1246
    %v1703 = vpop.f32.mrf.mxu0
    %v1704 = vadd.f32 %v1535, %v1703
    %v1705 = vpop.f32.mrf.mxu0
    %v1706 = vadd.f32 %v1537, %v1705
    %1707 = vmatmul.bf16.gmra.mxu0 %v1250
    %v1708 = vpop.f32.mrf.mxu0
    %v1709 = vadd.f32 %v1540, %v1708
    %v1710 = vpop.f32.mrf.mxu0
    %v1711 = vadd.f32 %v1542, %v1710
    %1712 = vmatmul.bf16.gmra.mxu0 %v1254
    %v1713 = vpop.f32.mrf.mxu0
    %v1714 = vadd.f32 %v1545, %v1713
    %v1715 = vpop.f32.mrf.mxu0
    %v1716 = vadd.f32 %v1547, %v1715
    %1717 = vmatmul.bf16.gmra.mxu0 %v1258
    %v1718 = vpop.f32.mrf.mxu0
    %v1719 = vadd.f32 %v1550, %v1718
    %v1720 = vpop.f32.mrf.mxu0
    %v1721 = vadd.f32 %v1552, %v1720
    %1722 = vmatmul.bf16.gmra.mxu0 %v1262
    %v1723 = vpop.f32.mrf.mxu0
    %v1724 = vadd.f32 %v1555, %v1723
    %v1725 = vpop.f32.mrf.mxu0
    %v1726 = vadd.f32 %v1557, %v1725
    %1727 = vmatmul.bf16.gmra.mxu0 %v1266
    %v1728 = vpop.f32.mrf.mxu0
    %v1729 = vadd.f32 %v1560, %v1728
    %v1730 = vpop.f32.mrf.mxu0
    %v1731 = vadd.f32 %v1562, %v1730
    %1732 = vmatmul.bf16.gmra.mxu0 %v1270
    %v1733 = vpop.f32.mrf.mxu0
    %v1734 = vadd.f32 %v1565, %v1733
    %v1735 = vpop.f32.mrf.mxu0
    %v1736 = vadd.f32 %v1567, %v1735
    %1737 = vmatmul.bf16.gmra.mxu0 %v1274
    %v1738 = vpop.f32.mrf.mxu0
    %v1739 = vadd.f32 %v1570, %v1738
    %v1740 = vpop.f32.mrf.mxu0
    %v1741 = vadd.f32 %v1572, %v1740
    %1742 = vdwg.mxu0
    %1743 = vmatpush.bf16.msra.mxu0 %v583
    %1744 = vmatpush.bf16.msra.mxu0 %v582
    %1745 = vmatpush.bf16.msra.mxu0 %v581
    %1746 = vmatpush.bf16.msra.mxu0 %v580
    %1747 = vmatpush.bf16.msra.mxu0 %v579
    %1748 = vmatpush.bf16.msra.mxu0 %v578
    %1749 = vmatpush.bf16.msra.mxu0 %v577
    %1750 = vmatpush.bf16.msra.mxu0 %v576
    %1751 = vmatmul.bf16.gmra.mxu0 %v1151
    %v1752 = vpop.f32.mrf.mxu0
    %v1753 = vadd.f32 %v1584, %v1752
    %v1754 = vpop.f32.mrf.mxu0
    %v1755 = vadd.f32 %v1586, %v1754
    %1756 = vmatmul.bf16.gmra.mxu0 %v1155
    %v1757 = vpop.f32.mrf.mxu0
    %v1758 = vadd.f32 %v1589, %v1757
    %v1759 = vpop.f32.mrf.mxu0
    %v1760 = vadd.f32 %v1591, %v1759
    %1761 = vmatmul.bf16.gmra.mxu0 %v1159
    %v1762 = vpop.f32.mrf.mxu0
    %v1763 = vadd.f32 %v1594, %v1762
    %v1764 = vpop.f32.mrf.mxu0
    %v1765 = vadd.f32 %v1596, %v1764
    %1766 = vmatmul.bf16.gmra.mxu0 %v1163
    %v1767 = vpop.f32.mrf.mxu0
    %v1768 = vadd.f32 %v1599, %v1767
    %v1769 = vpop.f32.mrf.mxu0
    %v1770 = vadd.f32 %v1601, %v1769
    %1771 = vmatmul.bf16.gmra.mxu0 %v1167
    %v1772 = vpop.f32.mrf.mxu0
    %v1773 = vadd.f32 %v1604, %v1772
    %v1774 = vpop.f32.mrf.mxu0
    %v1775 = vadd.f32 %v1606, %v1774
    %1776 = vmatmul.bf16.gmra.mxu0 %v1171
    %v1777 = vpop.f32.mrf.mxu0
    %v1778 = vadd.f32 %v1609, %v1777
    %v1779 = vpop.f32.mrf.mxu0
    %v1780 = vadd.f32 %v1611, %v1779
    %1781 = vmatmul.bf16.gmra.mxu0 %v1175
    %v1782 = vpop.f32.mrf.mxu0
    %v1783 = vadd.f32 %v1614, %v1782
    %v1784 = vpop.f32.mrf.mxu0
    %v1785 = vadd.f32 %v1616, %v1784
    %1786 = vmatmul.bf16.gmra.mxu0 %v1179
    %v1787 = vpop.f32.mrf.mxu0
    %v1788 = vadd.f32 %v1619, %v1787
    %v1789 = vpop.f32.mrf.mxu0
    %v1790 = vadd.f32 %v1621, %v1789
    %1791 = vmatmul.bf16.gmra.mxu0 %v1183
    %v1792 = vpop.f32.mrf.mxu0
    %v1793 = vadd.f32 %v1624, %v1792
    %v1794 = vpop.f32.mrf.mxu0
    %v1795 = vadd.f32 %v1626, %v1794
    %1796 = vmatmul.bf16.gmra.mxu0 %v1187
    %v1797 = vpop.f32.mrf.mxu0
    %v1798 = vadd.f32 %v1629, %v1797
    %v1799 = vpop.f32.mrf.mxu0
    %v1800 = vadd.f32 %v1631, %v1799
    %1801 = vmatmul.bf16.gmra.mxu0 %v1191
    %v1802 = vpop.f32.mrf.mxu0
    %v1803 = vadd.f32 %v1634, %v1802
    %v1804 = vpop.f32.mrf.mxu0
    %v1805 = vadd.f32 %v1636, %v1804
    %1806 = vmatmul.bf16.gmra.mxu0 %v1195
    %v1807 = vpop.f32.mrf.mxu0
    %v1808 = vadd.f32 %v1639, %v1807
    %v1809 = vpop.f32.mrf.mxu0
    %v1810 = vadd.f32 %v1641, %v1809
    %1811 = vmatmul.bf16.gmra.mxu0 %v1199
    %v1812 = vpop.f32.mrf.mxu0
    %v1813 = vadd.f32 %v1644, %v1812
    %v1814 = vpop.f32.mrf.mxu0
    %v1815 = vadd.f32 %v1646, %v1814
    %1816 = vmatmul.bf16.gmra.mxu0 %v1203
    %v1817 = vpop.f32.mrf.mxu0
    %v1818 = vadd.f32 %v1649, %v1817
    %v1819 = vpop.f32.mrf.mxu0
    %v1820 = vadd.f32 %v1651, %v1819
    %1821 = vmatmul.bf16.gmra.mxu0 %v1207
    %v1822 = vpop.f32.mrf.mxu0
    %v1823 = vadd.f32 %v1654, %v1822
    %v1824 = vpop.f32.mrf.mxu0
    %v1825 = vadd.f32 %v1656, %v1824
    %1826 = vmatmul.bf16.gmra.mxu0 %v1211
    %v1827 = vpop.f32.mrf.mxu0
    %v1828 = vadd.f32 %v1659, %v1827
    %v1829 = vpop.f32.mrf.mxu0
    %v1830 = vadd.f32 %v1661, %v1829
    %1831 = vmatmul.bf16.gmra.mxu0 %v1215
    %v1832 = vpop.f32.mrf.mxu0
    %v1833 = vadd.f32 %v1664, %v1832
    %v1834 = vpop.f32.mrf.mxu0
    %v1835 = vadd.f32 %v1666, %v1834
    %1836 = vmatmul.bf16.gmra.mxu0 %v1219
    %v1837 = vpop.f32.mrf.mxu0
    %v1838 = vadd.f32 %v1669, %v1837
    %v1839 = vpop.f32.mrf.mxu0
    %v1840 = vadd.f32 %v1671, %v1839
    %1841 = vmatmul.bf16.gmra.mxu0 %v1223
    %v1842 = vpop.f32.mrf.mxu0
    %v1843 = vadd.f32 %v1674, %v1842
    %v1844 = vpop.f32.mrf.mxu0
    %v1845 = vadd.f32 %v1676, %v1844
    %1846 = vmatmul.bf16.gmra.mxu0 %v1227
    %v1847 = vpop.f32.mrf.mxu0
    %v1848 = vadd.f32 %v1679, %v1847
    %v1849 = vpop.f32.mrf.mxu0
    %v1850 = vadd.f32 %v1681, %v1849
    %1851 = vmatmul.bf16.gmra.mxu0 %v1231
    %v1852 = vpop.f32.mrf.mxu0
    %v1853 = vadd.f32 %v1684, %v1852
    %v1854 = vpop.f32.mrf.mxu0
    %v1855 = vadd.f32 %v1686, %v1854
    %1856 = vmatmul.bf16.gmra.mxu0 %v1235
    %v1857 = vpop.f32.mrf.mxu0
    %v1858 = vadd.f32 %v1689, %v1857
    %v1859 = vpop.f32.mrf.mxu0
    %v1860 = vadd.f32 %v1691, %v1859
    %1861 = vmatmul.bf16.gmra.mxu0 %v1239
    %v1862 = vpop.f32.mrf.mxu0
    %v1863 = vadd.f32 %v1694, %v1862
    %v1864 = vpop.f32.mrf.mxu0
    %v1865 = vadd.f32 %v1696, %v1864
    %1866 = vmatmul.bf16.gmra.mxu0 %v1243
    %v1867 = vpop.f32.mrf.mxu0
    %v1868 = vadd.f32 %v1699, %v1867
    %v1869 = vpop.f32.mrf.mxu0
    %v1870 = vadd.f32 %v1701, %v1869
    %1871 = vmatmul.bf16.gmra.mxu0 %v1247
    %v1872 = vpop.f32.mrf.mxu0
    %v1873 = vadd.f32 %v1704, %v1872
    %v1874 = vpop.f32.mrf.mxu0
    %v1875 = vadd.f32 %v1706, %v1874
    %1876 = vmatmul.bf16.gmra.mxu0 %v1251
    %v1877 = vpop.f32.mrf.mxu0
    %v1878 = vadd.f32 %v1709, %v1877
    %v1879 = vpop.f32.mrf.mxu0
    %v1880 = vadd.f32 %v1711, %v1879
    %1881 = vmatmul.bf16.gmra.mxu0 %v1255
    %v1882 = vpop.f32.mrf.mxu0
    %v1883 = vadd.f32 %v1714, %v1882
    %v1884 = vpop.f32.mrf.mxu0
    %v1885 = vadd.f32 %v1716, %v1884
    %1886 = vmatmul.bf16.gmra.mxu0 %v1259
    %v1887 = vpop.f32.mrf.mxu0
    %v1888 = vadd.f32 %v1719, %v1887
    %v1889 = vpop.f32.mrf.mxu0
    %v1890 = vadd.f32 %v1721, %v1889
    %1891 = vmatmul.bf16.gmra.mxu0 %v1263
    %v1892 = vpop.f32.mrf.mxu0
    %v1893 = vadd.f32 %v1724, %v1892
    %v1894 = vpop.f32.mrf.mxu0
    %v1895 = vadd.f32 %v1726, %v1894
    %1896 = vmatmul.bf16.gmra.mxu0 %v1267
    %v1897 = vpop.f32.mrf.mxu0
    %v1898 = vadd.f32 %v1729, %v1897
    %v1899 = vpop.f32.mrf.mxu0
    %v1900 = vadd.f32 %v1731, %v1899
    %1901 = vmatmul.bf16.gmra.mxu0 %v1271
    %v1902 = vpop.f32.mrf.mxu0
    %v1903 = vadd.f32 %v1734, %v1902
    %v1904 = vpop.f32.mrf.mxu0
    %v1905 = vadd.f32 %v1736, %v1904
    %1906 = vmatmul.bf16.gmra.mxu0 %v1275
    %v1907 = vpop.f32.mrf.mxu0
    %v1908 = vadd.f32 %v1739, %v1907
    %v1909 = vpop.f32.mrf.mxu0
    %v1910 = vadd.f32 %v1741, %v1909
    %1911 = vdwg.mxu0
    %1912 = vmatpush.bf16.msra.mxu0 %v591
    %1913 = vmatpush.bf16.msra.mxu0 %v590
    %1914 = vmatpush.bf16.msra.mxu0 %v589
    %1915 = vmatpush.bf16.msra.mxu0 %v588
    %1916 = vmatpush.bf16.msra.mxu0 %v587
    %1917 = vmatpush.bf16.msra.mxu0 %v586
    %1918 = vmatpush.bf16.msra.mxu0 %v585
    %1919 = vmatpush.bf16.msra.mxu0 %v584
    %1920 = vmatmul.bf16.gmra.mxu0 %v1152
    %v1921 = vpop.f32.mrf.mxu0
    %v1922 = vadd.f32 %v1753, %v1921
    %v1923 = vpop.f32.mrf.mxu0
    %v1924 = vadd.f32 %v1755, %v1923
    %1925 = vmatmul.bf16.gmra.mxu0 %v1156
    %v1926 = vpop.f32.mrf.mxu0
    %v1927 = vadd.f32 %v1758, %v1926
    %v1928 = vpop.f32.mrf.mxu0
    %v1929 = vadd.f32 %v1760, %v1928
    %1930 = vmatmul.bf16.gmra.mxu0 %v1160
    %v1931 = vpop.f32.mrf.mxu0
    %v1932 = vadd.f32 %v1763, %v1931
    %v1933 = vpop.f32.mrf.mxu0
    %v1934 = vadd.f32 %v1765, %v1933
    %1935 = vmatmul.bf16.gmra.mxu0 %v1164
    %v1936 = vpop.f32.mrf.mxu0
    %v1937 = vadd.f32 %v1768, %v1936
    %v1938 = vpop.f32.mrf.mxu0
    %v1939 = vadd.f32 %v1770, %v1938
    %1940 = vmatmul.bf16.gmra.mxu0 %v1168
    %v1941 = vpop.f32.mrf.mxu0
    %v1942 = vadd.f32 %v1773, %v1941
    %v1943 = vpop.f32.mrf.mxu0
    %v1944 = vadd.f32 %v1775, %v1943
    %1945 = vmatmul.bf16.gmra.mxu0 %v1172
    %v1946 = vpop.f32.mrf.mxu0
    %v1947 = vadd.f32 %v1778, %v1946
    %v1948 = vpop.f32.mrf.mxu0
    %v1949 = vadd.f32 %v1780, %v1948
    %1950 = vmatmul.bf16.gmra.mxu0 %v1176
    %v1951 = vpop.f32.mrf.mxu0
    %v1952 = vadd.f32 %v1783, %v1951
    %v1953 = vpop.f32.mrf.mxu0
    %v1954 = vadd.f32 %v1785, %v1953
    %1955 = vmatmul.bf16.gmra.mxu0 %v1180
    %v1956 = vpop.f32.mrf.mxu0
    %v1957 = vadd.f32 %v1788, %v1956
    %v1958 = vpop.f32.mrf.mxu0
    %v1959 = vadd.f32 %v1790, %v1958
    %1960 = vmatmul.bf16.gmra.mxu0 %v1184
    %v1961 = vpop.f32.mrf.mxu0
    %v1962 = vadd.f32 %v1793, %v1961
    %v1963 = vpop.f32.mrf.mxu0
    %v1964 = vadd.f32 %v1795, %v1963
    %1965 = vmatmul.bf16.gmra.mxu0 %v1188
    %v1966 = vpop.f32.mrf.mxu0
    %v1967 = vadd.f32 %v1798, %v1966
    %v1968 = vpop.f32.mrf.mxu0
    %v1969 = vadd.f32 %v1800, %v1968
    %1970 = vmatmul.bf16.gmra.mxu0 %v1192
    %v1971 = vpop.f32.mrf.mxu0
    %v1972 = vadd.f32 %v1803, %v1971
    %v1973 = vpop.f32.mrf.mxu0
    %v1974 = vadd.f32 %v1805, %v1973
    %1975 = vmatmul.bf16.gmra.mxu0 %v1196
    %v1976 = vpop.f32.mrf.mxu0
    %v1977 = vadd.f32 %v1808, %v1976
    %v1978 = vpop.f32.mrf.mxu0
    %v1979 = vadd.f32 %v1810, %v1978
    %1980 = vmatmul.bf16.gmra.mxu0 %v1200
    %v1981 = vpop.f32.mrf.mxu0
    %v1982 = vadd.f32 %v1813, %v1981
    %v1983 = vpop.f32.mrf.mxu0
    %v1984 = vadd.f32 %v1815, %v1983
    %1985 = vmatmul.bf16.gmra.mxu0 %v1204
    %v1986 = vpop.f32.mrf.mxu0
    %v1987 = vadd.f32 %v1818, %v1986
    %v1988 = vpop.f32.mrf.mxu0
    %v1989 = vadd.f32 %v1820, %v1988
    %1990 = vmatmul.bf16.gmra.mxu0 %v1208
    %v1991 = vpop.f32.mrf.mxu0
    %v1992 = vadd.f32 %v1823, %v1991
    %v1993 = vpop.f32.mrf.mxu0
    %v1994 = vadd.f32 %v1825, %v1993
    %1995 = vmatmul.bf16.gmra.mxu0 %v1212
    %v1996 = vpop.f32.mrf.mxu0
    %v1997 = vadd.f32 %v1828, %v1996
    %v1998 = vpop.f32.mrf.mxu0
    %v1999 = vadd.f32 %v1830, %v1998
    %2000 = vmatmul.bf16.gmra.mxu0 %v1216
    %v2001 = vpop.f32.mrf.mxu0
    %v2002 = vadd.f32 %v1833, %v2001
    %v2003 = vpop.f32.mrf.mxu0
    %v2004 = vadd.f32 %v1835, %v2003
    %2005 = vmatmul.bf16.gmra.mxu0 %v1220
    %v2006 = vpop.f32.mrf.mxu0
    %v2007 = vadd.f32 %v1838, %v2006
    %v2008 = vpop.f32.mrf.mxu0
    %v2009 = vadd.f32 %v1840, %v2008
    %2010 = vmatmul.bf16.gmra.mxu0 %v1224
    %v2011 = vpop.f32.mrf.mxu0
    %v2012 = vadd.f32 %v1843, %v2011
    %v2013 = vpop.f32.mrf.mxu0
    %v2014 = vadd.f32 %v1845, %v2013
    %2015 = vmatmul.bf16.gmra.mxu0 %v1228
    %v2016 = vpop.f32.mrf.mxu0
    %v2017 = vadd.f32 %v1848, %v2016
    %v2018 = vpop.f32.mrf.mxu0
    %v2019 = vadd.f32 %v1850, %v2018
    %2020 = vmatmul.bf16.gmra.mxu0 %v1232
    %v2021 = vpop.f32.mrf.mxu0
    %v2022 = vadd.f32 %v1853, %v2021
    %v2023 = vpop.f32.mrf.mxu0
    %v2024 = vadd.f32 %v1855, %v2023
    %2025 = vmatmul.bf16.gmra.mxu0 %v1236
    %v2026 = vpop.f32.mrf.mxu0
    %v2027 = vadd.f32 %v1858, %v2026
    %v2028 = vpop.f32.mrf.mxu0
    %v2029 = vadd.f32 %v1860, %v2028
    %2030 = vmatmul.bf16.gmra.mxu0 %v1240
    %v2031 = vpop.f32.mrf.mxu0
    %v2032 = vadd.f32 %v1863, %v2031
    %v2033 = vpop.f32.mrf.mxu0
    %v2034 = vadd.f32 %v1865, %v2033
    %2035 = vmatmul.bf16.gmra.mxu0 %v1244
    %v2036 = vpop.f32.mrf.mxu0
    %v2037 = vadd.f32 %v1868, %v2036
    %v2038 = vpop.f32.mrf.mxu0
    %v2039 = vadd.f32 %v1870, %v2038
    %2040 = vmatmul.bf16.gmra.mxu0 %v1248
    %v2041 = vpop.f32.mrf.mxu0
    %v2042 = vadd.f32 %v1873, %v2041
    %v2043 = vpop.f32.mrf.mxu0
    %v2044 = vadd.f32 %v1875, %v2043
    %2045 = vmatmul.bf16.gmra.mxu0 %v1252
    %v2046 = vpop.f32.mrf.mxu0
    %v2047 = vadd.f32 %v1878, %v2046
    %v2048 = vpop.f32.mrf.mxu0
    %v2049 = vadd.f32 %v1880, %v2048
    %2050 = vmatmul.bf16.gmra.mxu0 %v1256
    %v2051 = vpop.f32.mrf.mxu0
    %v2052 = vadd.f32 %v1883, %v2051
    %v2053 = vpop.f32.mrf.mxu0
    %v2054 = vadd.f32 %v1885, %v2053
    %2055 = vmatmul.bf16.gmra.mxu0 %v1260
    %v2056 = vpop.f32.mrf.mxu0
    %v2057 = vadd.f32 %v1888, %v2056
    %v2058 = vpop.f32.mrf.mxu0
    %v2059 = vadd.f32 %v1890, %v2058
    %2060 = vmatmul.bf16.gmra.mxu0 %v1264
    %v2061 = vpop.f32.mrf.mxu0
    %v2062 = vadd.f32 %v1893, %v2061
    %v2063 = vpop.f32.mrf.mxu0
    %v2064 = vadd.f32 %v1895, %v2063
    %2065 = vmatmul.bf16.gmra.mxu0 %v1268
    %v2066 = vpop.f32.mrf.mxu0
    %v2067 = vadd.f32 %v1898, %v2066
    %v2068 = vpop.f32.mrf.mxu0
    %v2069 = vadd.f32 %v1900, %v2068
    %2070 = vmatmul.bf16.gmra.mxu0 %v1272
    %v2071 = vpop.f32.mrf.mxu0
    %v2072 = vadd.f32 %v1903, %v2071
    %v2073 = vpop.f32.mrf.mxu0
    %v2074 = vadd.f32 %v1905, %v2073
    %2075 = vmatmul.bf16.gmra.mxu0 %v1276
    %v2076 = vpop.f32.mrf.mxu0
    %v2077 = vadd.f32 %v1908, %v2076
    %v2078 = vpop.f32.mrf.mxu0
    %v2079 = vadd.f32 %v1910, %v2078
    %2080 = vdwg.mxu0
    %v2081 = vmul.f32 %v1922, %v1922
    %v2082 = vmul.f32 %v1924, %v1924
    %v2083 = vmul.f32 %v1927, %v1927
    %v2084 = vmul.f32 %v1929, %v1929
    %v2085 = vmul.f32 %v1932, %v1932
    %v2086 = vmul.f32 %v1934, %v1934
    %v2087 = vmul.f32 %v1937, %v1937
    %v2088 = vmul.f32 %v1939, %v1939
    %v2089 = vmul.f32 %v1942, %v1942
    %v2090 = vmul.f32 %v1944, %v1944
    %v2091 = vmul.f32 %v1947, %v1947
    %v2092 = vmul.f32 %v1949, %v1949
    %v2093 = vmul.f32 %v1952, %v1952
    %v2094 = vmul.f32 %v1954, %v1954
    %v2095 = vmul.f32 %v1957, %v1957
    %v2096 = vmul.f32 %v1959, %v1959
    %v2097 = vmul.f32 %v1962, %v1962
    %v2098 = vmul.f32 %v1964, %v1964
    %v2099 = vmul.f32 %v1967, %v1967
    %v2100 = vmul.f32 %v1969, %v1969
    %v2101 = vmul.f32 %v1972, %v1972
    %v2102 = vmul.f32 %v1974, %v1974
    %v2103 = vmul.f32 %v1977, %v1977
    %v2104 = vmul.f32 %v1979, %v1979
    %v2105 = vmul.f32 %v1982, %v1982
    %v2106 = vmul.f32 %v1984, %v1984
    %v2107 = vmul.f32 %v1987, %v1987
    %v2108 = vmul.f32 %v1989, %v1989
    %v2109 = vmul.f32 %v1992, %v1992
    %v2110 = vmul.f32 %v1994, %v1994
    %v2111 = vmul.f32 %v1997, %v1997
    %v2112 = vmul.f32 %v1999, %v1999
    %v2113 = vmul.f32 %v2002, %v2002
    %v2114 = vmul.f32 %v2004, %v2004
    %v2115 = vmul.f32 %v2007, %v2007
    %v2116 = vmul.f32 %v2009, %v2009
    %v2117 = vmul.f32 %v2012, %v2012
    %v2118 = vmul.f32 %v2014, %v2014
    %v2119 = vmul.f32 %v2017, %v2017
    %v2120 = vmul.f32 %v2019, %v2019
    %v2121 = vmul.f32 %v2022, %v2022
    %v2122 = vmul.f32 %v2024, %v2024
    %v2123 = vmul.f32 %v2027, %v2027
    %v2124 = vmul.f32 %v2029, %v2029
    %v2125 = vmul.f32 %v2032, %v2032
    %v2126 = vmul.f32 %v2034, %v2034
    %v2127 = vmul.f32 %v2037, %v2037
    %v2128 = vmul.f32 %v2039, %v2039
    %v2129 = vmul.f32 %v2042, %v2042
    %v2130 = vmul.f32 %v2044, %v2044
    %v2131 = vmul.f32 %v2047, %v2047
    %v2132 = vmul.f32 %v2049, %v2049
    %v2133 = vmul.f32 %v2052, %v2052
    %v2134 = vmul.f32 %v2054, %v2054
    %v2135 = vmul.f32 %v2057, %v2057
    %v2136 = vmul.f32 %v2059, %v2059
    %v2137 = vmul.f32 %v2062, %v2062
    %v2138 = vmul.f32 %v2064, %v2064
    %v2139 = vmul.f32 %v2067, %v2067
    %v2140 = vmul.f32 %v2069, %v2069
    %v2141 = vmul.f32 %v2072, %v2072
    %v2142 = vmul.f32 %v2074, %v2074
    %v2143 = vmul.f32 %v2077, %v2077
    %v2144 = vmul.f32 %v2079, %v2079
    %v2145 = vmul.f32 %v1922, %v2081
    %v2146 = vmul.f32 %v1924, %v2082
    %v2147 = vmul.f32 %v1927, %v2083
    %v2148 = vmul.f32 %v1929, %v2084
    %v2149 = vmul.f32 %v1932, %v2085
    %v2150 = vmul.f32 %v1934, %v2086
    %v2151 = vmul.f32 %v1937, %v2087
    %v2152 = vmul.f32 %v1939, %v2088
    %v2153 = vmul.f32 %v1942, %v2089
    %v2154 = vmul.f32 %v1944, %v2090
    %v2155 = vmul.f32 %v1947, %v2091
    %v2156 = vmul.f32 %v1949, %v2092
    %v2157 = vmul.f32 %v1952, %v2093
    %v2158 = vmul.f32 %v1954, %v2094
    %v2159 = vmul.f32 %v1957, %v2095
    %v2160 = vmul.f32 %v1959, %v2096
    %v2161 = vmul.f32 %v1962, %v2097
    %v2162 = vmul.f32 %v1964, %v2098
    %v2163 = vmul.f32 %v1967, %v2099
    %v2164 = vmul.f32 %v1969, %v2100
    %v2165 = vmul.f32 %v1972, %v2101
    %v2166 = vmul.f32 %v1974, %v2102
    %v2167 = vmul.f32 %v1977, %v2103
    %v2168 = vmul.f32 %v1979, %v2104
    %v2169 = vmul.f32 %v1982, %v2105
    %v2170 = vmul.f32 %v1984, %v2106
    %v2171 = vmul.f32 %v1987, %v2107
    %v2172 = vmul.f32 %v1989, %v2108
    %v2173 = vmul.f32 %v1992, %v2109
    %v2174 = vmul.f32 %v1994, %v2110
    %v2175 = vmul.f32 %v1997, %v2111
    %v2176 = vmul.f32 %v1999, %v2112
    %v2177 = vmul.f32 %v2002, %v2113
    %v2178 = vmul.f32 %v2004, %v2114
    %v2179 = vmul.f32 %v2007, %v2115
    %v2180 = vmul.f32 %v2009, %v2116
    %v2181 = vmul.f32 %v2012, %v2117
    %v2182 = vmul.f32 %v2014, %v2118
    %v2183 = vmul.f32 %v2017, %v2119
    %v2184 = vmul.f32 %v2019, %v2120
    %v2185 = vmul.f32 %v2022, %v2121
    %v2186 = vmul.f32 %v2024, %v2122
    %v2187 = vmul.f32 %v2027, %v2123
    %v2188 = vmul.f32 %v2029, %v2124
    %v2189 = vmul.f32 %v2032, %v2125
    %v2190 = vmul.f32 %v2034, %v2126
    %v2191 = vmul.f32 %v2037, %v2127
    %v2192 = vmul.f32 %v2039, %v2128
    %v2193 = vmul.f32 %v2042, %v2129
    %v2194 = vmul.f32 %v2044, %v2130
    %v2195 = vmul.f32 %v2047, %v2131
    %v2196 = vmul.f32 %v2049, %v2132
    %v2197 = vmul.f32 %v2052, %v2133
    %v2198 = vmul.f32 %v2054, %v2134
    %v2199 = vmul.f32 %v2057, %v2135
    %v2200 = vmul.f32 %v2059, %v2136
    %v2201 = vmul.f32 %v2062, %v2137
    %v2202 = vmul.f32 %v2064, %v2138
    %v2203 = vmul.f32 %v2067, %v2139
    %v2204 = vmul.f32 %v2069, %v2140
    %v2205 = vmul.f32 %v2072, %v2141
    %v2206 = vmul.f32 %v2074, %v2142
    %v2207 = vmul.f32 %v2077, %v2143
    %v2208 = vmul.f32 %v2079, %v2144
    %v2209 = vmul.f32 %v2145, 0.044715
    %v2210 = vmul.f32 %v2146, 0.044715
    %v2211 = vmul.f32 %v2147, 0.044715
    %v2212 = vmul.f32 %v2148, 0.044715
    %v2213 = vmul.f32 %v2149, 0.044715
    %v2214 = vmul.f32 %v2150, 0.044715
    %v2215 = vmul.f32 %v2151, 0.044715
    %v2216 = vmul.f32 %v2152, 0.044715
    %v2217 = vmul.f32 %v2153, 0.044715
    %v2218 = vmul.f32 %v2154, 0.044715
    %v2219 = vmul.f32 %v2155, 0.044715
    %v2220 = vmul.f32 %v2156, 0.044715
    %v2221 = vmul.f32 %v2157, 0.044715
    %v2222 = vmul.f32 %v2158, 0.044715
    %v2223 = vmul.f32 %v2159, 0.044715
    %v2224 = vmul.f32 %v2160, 0.044715
    %v2225 = vmul.f32 %v2161, 0.044715
    %v2226 = vmul.f32 %v2162, 0.044715
    %v2227 = vmul.f32 %v2163, 0.044715
    %v2228 = vmul.f32 %v2164, 0.044715
    %v2229 = vmul.f32 %v2165, 0.044715
    %v2230 = vmul.f32 %v2166, 0.044715
    %v2231 = vmul.f32 %v2167, 0.044715
    %v2232 = vmul.f32 %v2168, 0.044715
    %v2233 = vmul.f32 %v2169, 0.044715
    %v2234 = vmul.f32 %v2170, 0.044715
    %v2235 = vmul.f32 %v2171, 0.044715
    %v2236 = vmul.f32 %v2172, 0.044715
    %v2237 = vmul.f32 %v2173, 0.044715
    %v2238 = vmul.f32 %v2174, 0.044715
    %v2239 = vmul.f32 %v2175, 0.044715
    %v2240 = vmul.f32 %v2176, 0.044715
    %v2241 = vmul.f32 %v2177, 0.044715
    %v2242 = vmul.f32 %v2178, 0.044715
    %v2243 = vmul.f32 %v2179, 0.044715
    %v2244 = vmul.f32 %v2180, 0.044715
    %v2245 = vmul.f32 %v2181, 0.044715
    %v2246 = vmul.f32 %v2182, 0.044715
    %v2247 = vmul.f32 %v2183, 0.044715
    %v2248 = vmul.f32 %v2184, 0.044715
    %v2249 = vmul.f32 %v2185, 0.044715
    %v2250 = vmul.f32 %v2186, 0.044715
    %v2251 = vmul.f32 %v2187, 0.044715
    %v2252 = vmul.f32 %v2188, 0.044715
    %v2253 = vmul.f32 %v2189, 0.044715
    %v2254 = vmul.f32 %v2190, 0.044715
    %v2255 = vmul.f32 %v2191, 0.044715
    %v2256 = vmul.f32 %v2192, 0.044715
    %v2257 = vmul.f32 %v2193, 0.044715
    %v2258 = vmul.f32 %v2194, 0.044715
    %v2259 = vmul.f32 %v2195, 0.044715
    %v2260 = vmul.f32 %v2196, 0.044715
    %v2261 = vmul.f32 %v2197, 0.044715
    %v2262 = vmul.f32 %v2198, 0.044715
    %v2263 = vmul.f32 %v2199, 0.044715
    %v2264 = vmul.f32 %v2200, 0.044715
    %v2265 = vmul.f32 %v2201, 0.044715
    %v2266 = vmul.f32 %v2202, 0.044715
    %v2267 = vmul.f32 %v2203, 0.044715
    %v2268 = vmul.f32 %v2204, 0.044715
    %v2269 = vmul.f32 %v2205, 0.044715
    %v2270 = vmul.f32 %v2206, 0.044715
    %v2271 = vmul.f32 %v2207, 0.044715
    %v2272 = vmul.f32 %v2208, 0.044715
    %v2273 = vadd.f32 %v1922, %v2209
    %v2274 = vadd.f32 %v1924, %v2210
    %v2275 = vadd.f32 %v1927, %v2211
    %v2276 = vadd.f32 %v1929, %v2212
    %v2277 = vadd.f32 %v1932, %v2213
    %v2278 = vadd.f32 %v1934, %v2214
    %v2279 = vadd.f32 %v1937, %v2215
    %v2280 = vadd.f32 %v1939, %v2216
    %v2281 = vadd.f32 %v1942, %v2217
    %v2282 = vadd.f32 %v1944, %v2218
    %v2283 = vadd.f32 %v1947, %v2219
    %v2284 = vadd.f32 %v1949, %v2220
    %v2285 = vadd.f32 %v1952, %v2221
    %v2286 = vadd.f32 %v1954, %v2222
    %v2287 = vadd.f32 %v1957, %v2223
    %v2288 = vadd.f32 %v1959, %v2224
    %v2289 = vadd.f32 %v1962, %v2225
    %v2290 = vadd.f32 %v1964, %v2226
    %v2291 = vadd.f32 %v1967, %v2227
    %v2292 = vadd.f32 %v1969, %v2228
    %v2293 = vadd.f32 %v1972, %v2229
    %v2294 = vadd.f32 %v1974, %v2230
    %v2295 = vadd.f32 %v1977, %v2231
    %v2296 = vadd.f32 %v1979, %v2232
    %v2297 = vadd.f32 %v1982, %v2233
    %v2298 = vadd.f32 %v1984, %v2234
    %v2299 = vadd.f32 %v1987, %v2235
    %v2300 = vadd.f32 %v1989, %v2236
    %v2301 = vadd.f32 %v1992, %v2237
    %v2302 = vadd.f32 %v1994, %v2238
    %v2303 = vadd.f32 %v1997, %v2239
    %v2304 = vadd.f32 %v1999, %v2240
    %v2305 = vadd.f32 %v2002, %v2241
    %v2306 = vadd.f32 %v2004, %v2242
    %v2307 = vadd.f32 %v2007, %v2243
    %v2308 = vadd.f32 %v2009, %v2244
    %v2309 = vadd.f32 %v2012, %v2245
    %v2310 = vadd.f32 %v2014, %v2246
    %v2311 = vadd.f32 %v2017, %v2247
    %v2312 = vadd.f32 %v2019, %v2248
    %v2313 = vadd.f32 %v2022, %v2249
    %v2314 = vadd.f32 %v2024, %v2250
    %v2315 = vadd.f32 %v2027, %v2251
    %v2316 = vadd.f32 %v2029, %v2252
    %v2317 = vadd.f32 %v2032, %v2253
    %v2318 = vadd.f32 %v2034, %v2254
    %v2319 = vadd.f32 %v2037, %v2255
    %v2320 = vadd.f32 %v2039, %v2256
    %v2321 = vadd.f32 %v2042, %v2257
    %v2322 = vadd.f32 %v2044, %v2258
    %v2323 = vadd.f32 %v2047, %v2259
    %v2324 = vadd.f32 %v2049, %v2260
    %v2325 = vadd.f32 %v2052, %v2261
    %v2326 = vadd.f32 %v2054, %v2262
    %v2327 = vadd.f32 %v2057, %v2263
    %v2328 = vadd.f32 %v2059, %v2264
    %v2329 = vadd.f32 %v2062, %v2265
    %v2330 = vadd.f32 %v2064, %v2266
    %v2331 = vadd.f32 %v2067, %v2267
    %v2332 = vadd.f32 %v2069, %v2268
    %v2333 = vadd.f32 %v2072, %v2269
    %v2334 = vadd.f32 %v2074, %v2270
    %v2335 = vadd.f32 %v2077, %v2271
    %v2336 = vadd.f32 %v2079, %v2272
    %v2337 = vmul.f32 %v2273, 0.7978846
    %v2338 = vmul.f32 %v2274, 0.7978846
    %v2339 = vmul.f32 %v2275, 0.7978846
    %v2340 = vmul.f32 %v2276, 0.7978846
    %v2341 = vmul.f32 %v2277, 0.7978846
    %v2342 = vmul.f32 %v2278, 0.7978846
    %v2343 = vmul.f32 %v2279, 0.7978846
    %v2344 = vmul.f32 %v2280, 0.7978846
    %v2345 = vmul.f32 %v2281, 0.7978846
    %v2346 = vmul.f32 %v2282, 0.7978846
    %v2347 = vmul.f32 %v2283, 0.7978846
    %v2348 = vmul.f32 %v2284, 0.7978846
    %v2349 = vmul.f32 %v2285, 0.7978846
    %v2350 = vmul.f32 %v2286, 0.7978846
    %v2351 = vmul.f32 %v2287, 0.7978846
    %v2352 = vmul.f32 %v2288, 0.7978846
    %v2353 = vmul.f32 %v2289, 0.7978846
    %v2354 = vmul.f32 %v2290, 0.7978846
    %v2355 = vmul.f32 %v2291, 0.7978846
    %v2356 = vmul.f32 %v2292, 0.7978846
    %v2357 = vmul.f32 %v2293, 0.7978846
    %v2358 = vmul.f32 %v2294, 0.7978846
    %v2359 = vmul.f32 %v2295, 0.7978846
    %v2360 = vmul.f32 %v2296, 0.7978846
    %v2361 = vmul.f32 %v2297, 0.7978846
    %v2362 = vmul.f32 %v2298, 0.7978846
    %v2363 = vmul.f32 %v2299, 0.7978846
    %v2364 = vmul.f32 %v2300, 0.7978846
    %v2365 = vmul.f32 %v2301, 0.7978846
    %v2366 = vmul.f32 %v2302, 0.7978846
    %v2367 = vmul.f32 %v2303, 0.7978846
    %v2368 = vmul.f32 %v2304, 0.7978846
    %v2369 = vmul.f32 %v2305, 0.7978846
    %v2370 = vmul.f32 %v2306, 0.7978846
    %v2371 = vmul.f32 %v2307, 0.7978846
    %v2372 = vmul.f32 %v2308, 0.7978846
    %v2373 = vmul.f32 %v2309, 0.7978846
    %v2374 = vmul.f32 %v2310, 0.7978846
    %v2375 = vmul.f32 %v2311, 0.7978846
    %v2376 = vmul.f32 %v2312, 0.7978846
    %v2377 = vmul.f32 %v2313, 0.7978846
    %v2378 = vmul.f32 %v2314, 0.7978846
    %v2379 = vmul.f32 %v2315, 0.7978846
    %v2380 = vmul.f32 %v2316, 0.7978846
    %v2381 = vmul.f32 %v2317, 0.7978846
    %v2382 = vmul.f32 %v2318, 0.7978846
    %v2383 = vmul.f32 %v2319, 0.7978846
    %v2384 = vmul.f32 %v2320, 0.7978846
    %v2385 = vmul.f32 %v2321, 0.7978846
    %v2386 = vmul.f32 %v2322, 0.7978846
    %v2387 = vmul.f32 %v2323, 0.7978846
    %v2388 = vmul.f32 %v2324, 0.7978846
    %v2389 = vmul.f32 %v2325, 0.7978846
    %v2390 = vmul.f32 %v2326, 0.7978846
    %v2391 = vmul.f32 %v2327, 0.7978846
    %v2392 = vmul.f32 %v2328, 0.7978846
    %v2393 = vmul.f32 %v2329, 0.7978846
    %v2394 = vmul.f32 %v2330, 0.7978846
    %v2395 = vmul.f32 %v2331, 0.7978846
    %v2396 = vmul.f32 %v2332, 0.7978846
    %v2397 = vmul.f32 %v2333, 0.7978846
    %v2398 = vmul.f32 %v2334, 0.7978846
    %v2399 = vmul.f32 %v2335, 0.7978846
    %v2400 = vmul.f32 %v2336, 0.7978846
    %v2401 = vtanh.pop %v2337
    %v2402 = vtanh.pop %v2338
    %v2403 = vtanh.pop %v2339
    %v2404 = vtanh.pop %v2340
    %v2405 = vtanh.pop %v2341
    %v2406 = vtanh.pop %v2342
    %v2407 = vtanh.pop %v2343
    %v2408 = vtanh.pop %v2344
    %v2409 = vtanh.pop %v2345
    %v2410 = vtanh.pop %v2346
    %v2411 = vtanh.pop %v2347
    %v2412 = vtanh.pop %v2348
    %v2413 = vtanh.pop %v2349
    %v2414 = vtanh.pop %v2350
    %v2415 = vtanh.pop %v2351
    %v2416 = vtanh.pop %v2352
    %v2417 = vtanh.pop %v2353
    %v2418 = vtanh.pop %v2354
    %v2419 = vtanh.pop %v2355
    %v2420 = vtanh.pop %v2356
    %v2421 = vtanh.pop %v2357
    %v2422 = vtanh.pop %v2358
    %v2423 = vtanh.pop %v2359
    %v2424 = vtanh.pop %v2360
    %v2425 = vtanh.pop %v2361
    %v2426 = vtanh.pop %v2362
    %v2427 = vtanh.pop %v2363
    %v2428 = vtanh.pop %v2364
    %v2429 = vtanh.pop %v2365
    %v2430 = vtanh.pop %v2366
    %v2431 = vtanh.pop %v2367
    %v2432 = vtanh.pop %v2368
    %v2433 = vtanh.pop %v2369
    %v2434 = vtanh.pop %v2370
    %v2435 = vtanh.pop %v2371
    %v2436 = vtanh.pop %v2372
    %v2437 = vtanh.pop %v2373
    %v2438 = vtanh.pop %v2374
    %v2439 = vtanh.pop %v2375
    %v2440 = vtanh.pop %v2376
    %v2441 = vtanh.pop %v2377
    %v2442 = vtanh.pop %v2378
    %v2443 = vtanh.pop %v2379
    %v2444 = vtanh.pop %v2380
    %v2445 = vtanh.pop %v2381
    %v2446 = vtanh.pop %v2382
    %v2447 = vtanh.pop %v2383
    %v2448 = vtanh.pop %v2384
    %v2449 = vtanh.pop %v2385
    %v2450 = vtanh.pop %v2386
    %v2451 = vtanh.pop %v2387
    %v2452 = vtanh.pop %v2388
    %v2453 = vtanh.pop %v2389
    %v2454 = vtanh.pop %v2390
    %v2455 = vtanh.pop %v2391
    %v2456 = vtanh.pop %v2392
    %v2457 = vtanh.pop %v2393
    %v2458 = vtanh.pop %v2394
    %v2459 = vtanh.pop %v2395
    %v2460 = vtanh.pop %v2396
    %v2461 = vtanh.pop %v2397
    %v2462 = vtanh.pop %v2398
    %v2463 = vtanh.pop %v2399
    %v2464 = vtanh.pop %v2400
    %v2465 = vadd.f32 %v2401, 1.0
    %v2466 = vadd.f32 %v2402, 1.0
    %v2467 = vadd.f32 %v2403, 1.0
    %v2468 = vadd.f32 %v2404, 1.0
    %v2469 = vadd.f32 %v2405, 1.0
    %v2470 = vadd.f32 %v2406, 1.0
    %v2471 = vadd.f32 %v2407, 1.0
    %v2472 = vadd.f32 %v2408, 1.0
    %v2473 = vadd.f32 %v2409, 1.0
    %v2474 = vadd.f32 %v2410, 1.0
    %v2475 = vadd.f32 %v2411, 1.0
    %v2476 = vadd.f32 %v2412, 1.0
    %v2477 = vadd.f32 %v2413, 1.0
    %v2478 = vadd.f32 %v2414, 1.0
    %v2479 = vadd.f32 %v2415, 1.0
    %v2480 = vadd.f32 %v2416, 1.0
    %v2481 = vadd.f32 %v2417, 1.0
    %v2482 = vadd.f32 %v2418, 1.0
    %v2483 = vadd.f32 %v2419, 1.0
    %v2484 = vadd.f32 %v2420, 1.0
    %v2485 = vadd.f32 %v2421, 1.0
    %v2486 = vadd.f32 %v2422, 1.0
    %v2487 = vadd.f32 %v2423, 1.0
    %v2488 = vadd.f32 %v2424, 1.0
    %v2489 = vadd.f32 %v2425, 1.0
    %v2490 = vadd.f32 %v2426, 1.0
    %v2491 = vadd.f32 %v2427, 1.0
    %v2492 = vadd.f32 %v2428, 1.0
    %v2493 = vadd.f32 %v2429, 1.0
    %v2494 = vadd.f32 %v2430, 1.0
    %v2495 = vadd.f32 %v2431, 1.0
    %v2496 = vadd.f32 %v2432, 1.0
    %v2497 = vadd.f32 %v2433, 1.0
    %v2498 = vadd.f32 %v2434, 1.0
    %v2499 = vadd.f32 %v2435, 1.0
    %v2500 = vadd.f32 %v2436, 1.0
    %v2501 = vadd.f32 %v2437, 1.0
    %v2502 = vadd.f32 %v2438, 1.0
    %v2503 = vadd.f32 %v2439, 1.0
    %v2504 = vadd.f32 %v2440, 1.0
    %v2505 = vadd.f32 %v2441, 1.0
    %v2506 = vadd.f32 %v2442, 1.0
    %v2507 = vadd.f32 %v2443, 1.0
    %v2508 = vadd.f32 %v2444, 1.0
    %v2509 = vadd.f32 %v2445, 1.0
    %v2510 = vadd.f32 %v2446, 1.0
    %v2511 = vadd.f32 %v2447, 1.0
    %v2512 = vadd.f32 %v2448, 1.0
    %v2513 = vadd.f32 %v2449, 1.0
    %v2514 = vadd.f32 %v2450, 1.0
    %v2515 = vadd.f32 %v2451, 1.0
    %v2516 = vadd.f32 %v2452, 1.0
    %v2517 = vadd.f32 %v2453, 1.0
    %v2518 = vadd.f32 %v2454, 1.0
    %v2519 = vadd.f32 %v2455, 1.0
    %v2520 = vadd.f32 %v2456, 1.0
    %v2521 = vadd.f32 %v2457, 1.0
    %v2522 = vadd.f32 %v2458, 1.0
    %v2523 = vadd.f32 %v2459, 1.0
    %v2524 = vadd.f32 %v2460, 1.0
    %v2525 = vadd.f32 %v2461, 1.0
    %v2526 = vadd.f32 %v2462, 1.0
    %v2527 = vadd.f32 %v2463, 1.0
    %v2528 = vadd.f32 %v2464, 1.0
    %v2529 = vmul.f32 %v2465, 0.5
    %v2530 = vmul.f32 %v2466, 0.5
    %v2531 = vmul.f32 %v2467, 0.5
    %v2532 = vmul.f32 %v2468, 0.5
    %v2533 = vmul.f32 %v2469, 0.5
    %v2534 = vmul.f32 %v2470, 0.5
    %v2535 = vmul.f32 %v2471, 0.5
    %v2536 = vmul.f32 %v2472, 0.5
    %v2537 = vmul.f32 %v2473, 0.5
    %v2538 = vmul.f32 %v2474, 0.5
    %v2539 = vmul.f32 %v2475, 0.5
    %v2540 = vmul.f32 %v2476, 0.5
    %v2541 = vmul.f32 %v2477, 0.5
    %v2542 = vmul.f32 %v2478, 0.5
    %v2543 = vmul.f32 %v2479, 0.5
    %v2544 = vmul.f32 %v2480, 0.5
    %v2545 = vmul.f32 %v2481, 0.5
    %v2546 = vmul.f32 %v2482, 0.5
    %v2547 = vmul.f32 %v2483, 0.5
    %v2548 = vmul.f32 %v2484, 0.5
    %v2549 = vmul.f32 %v2485, 0.5
    %v2550 = vmul.f32 %v2486, 0.5
    %v2551 = vmul.f32 %v2487, 0.5
    %v2552 = vmul.f32 %v2488, 0.5
    %v2553 = vmul.f32 %v2489, 0.5
    %v2554 = vmul.f32 %v2490, 0.5
    %v2555 = vmul.f32 %v2491, 0.5
    %v2556 = vmul.f32 %v2492, 0.5
    %v2557 = vmul.f32 %v2493, 0.5
    %v2558 = vmul.f32 %v2494, 0.5
    %v2559 = vmul.f32 %v2495, 0.5
    %v2560 = vmul.f32 %v2496, 0.5
    %v2561 = vmul.f32 %v2497, 0.5
    %v2562 = vmul.f32 %v2498, 0.5
    %v2563 = vmul.f32 %v2499, 0.5
    %v2564 = vmul.f32 %v2500, 0.5
    %v2565 = vmul.f32 %v2501, 0.5
    %v2566 = vmul.f32 %v2502, 0.5
    %v2567 = vmul.f32 %v2503, 0.5
    %v2568 = vmul.f32 %v2504, 0.5
    %v2569 = vmul.f32 %v2505, 0.5
    %v2570 = vmul.f32 %v2506, 0.5
    %v2571 = vmul.f32 %v2507, 0.5
    %v2572 = vmul.f32 %v2508, 0.5
    %v2573 = vmul.f32 %v2509, 0.5
    %v2574 = vmul.f32 %v2510, 0.5
    %v2575 = vmul.f32 %v2511, 0.5
    %v2576 = vmul.f32 %v2512, 0.5
    %v2577 = vmul.f32 %v2513, 0.5
    %v2578 = vmul.f32 %v2514, 0.5
    %v2579 = vmul.f32 %v2515, 0.5
    %v2580 = vmul.f32 %v2516, 0.5
    %v2581 = vmul.f32 %v2517, 0.5
    %v2582 = vmul.f32 %v2518, 0.5
    %v2583 = vmul.f32 %v2519, 0.5
    %v2584 = vmul.f32 %v2520, 0.5
    %v2585 = vmul.f32 %v2521, 0.5
    %v2586 = vmul.f32 %v2522, 0.5
    %v2587 = vmul.f32 %v2523, 0.5
    %v2588 = vmul.f32 %v2524, 0.5
    %v2589 = vmul.f32 %v2525, 0.5
    %v2590 = vmul.f32 %v2526, 0.5
    %v2591 = vmul.f32 %v2527, 0.5
    %v2592 = vmul.f32 %v2528, 0.5
    %v2593 = vmul.f32 %v1922, %v2529
    %v2594 = vmul.f32 %v1924, %v2530
    %v2595 = vmul.f32 %v1927, %v2531
    %v2596 = vmul.f32 %v1929, %v2532
    %v2597 = vmul.f32 %v1932, %v2533
    %v2598 = vmul.f32 %v1934, %v2534
    %v2599 = vmul.f32 %v1937, %v2535
    %v2600 = vmul.f32 %v1939, %v2536
    %v2601 = vmul.f32 %v1942, %v2537
    %v2602 = vmul.f32 %v1944, %v2538
    %v2603 = vmul.f32 %v1947, %v2539
    %v2604 = vmul.f32 %v1949, %v2540
    %v2605 = vmul.f32 %v1952, %v2541
    %v2606 = vmul.f32 %v1954, %v2542
    %v2607 = vmul.f32 %v1957, %v2543
    %v2608 = vmul.f32 %v1959, %v2544
    %v2609 = vmul.f32 %v1962, %v2545
    %v2610 = vmul.f32 %v1964, %v2546
    %v2611 = vmul.f32 %v1967, %v2547
    %v2612 = vmul.f32 %v1969, %v2548
    %v2613 = vmul.f32 %v1972, %v2549
    %v2614 = vmul.f32 %v1974, %v2550
    %v2615 = vmul.f32 %v1977, %v2551
    %v2616 = vmul.f32 %v1979, %v2552
    %v2617 = vmul.f32 %v1982, %v2553
    %v2618 = vmul.f32 %v1984, %v2554
    %v2619 = vmul.f32 %v1987, %v2555
    %v2620 = vmul.f32 %v1989, %v2556
    %v2621 = vmul.f32 %v1992, %v2557
    %v2622 = vmul.f32 %v1994, %v2558
    %v2623 = vmul.f32 %v1997, %v2559
    %v2624 = vmul.f32 %v1999, %v2560
    %v2625 = vmul.f32 %v2002, %v2561
    %v2626 = vmul.f32 %v2004, %v2562
    %v2627 = vmul.f32 %v2007, %v2563
    %v2628 = vmul.f32 %v2009, %v2564
    %v2629 = vmul.f32 %v2012, %v2565
    %v2630 = vmul.f32 %v2014, %v2566
    %v2631 = vmul.f32 %v2017, %v2567
    %v2632 = vmul.f32 %v2019, %v2568
    %v2633 = vmul.f32 %v2022, %v2569
    %v2634 = vmul.f32 %v2024, %v2570
    %v2635 = vmul.f32 %v2027, %v2571
    %v2636 = vmul.f32 %v2029, %v2572
    %v2637 = vmul.f32 %v2032, %v2573
    %v2638 = vmul.f32 %v2034, %v2574
    %v2639 = vmul.f32 %v2037, %v2575
    %v2640 = vmul.f32 %v2039, %v2576
    %v2641 = vmul.f32 %v2042, %v2577
    %v2642 = vmul.f32 %v2044, %v2578
    %v2643 = vmul.f32 %v2047, %v2579
    %v2644 = vmul.f32 %v2049, %v2580
    %v2645 = vmul.f32 %v2052, %v2581
    %v2646 = vmul.f32 %v2054, %v2582
    %v2647 = vmul.f32 %v2057, %v2583
    %v2648 = vmul.f32 %v2059, %v2584
    %v2649 = vmul.f32 %v2062, %v2585
    %v2650 = vmul.f32 %v2064, %v2586
    %v2651 = vmul.f32 %v2067, %v2587
    %v2652 = vmul.f32 %v2069, %v2588
    %v2653 = vmul.f32 %v2072, %v2589
    %v2654 = vmul.f32 %v2074, %v2590
    %v2655 = vmul.f32 %v2077, %v2591
    %v2656 = vmul.f32 %v2079, %v2592
    %v2657 = vpack.c.bf16 %v2594, %v2593
    %v2658 = vpack.c.bf16 %v2596, %v2595
    %v2659 = vpack.c.bf16 %v2598, %v2597
    %v2660 = vpack.c.bf16 %v2600, %v2599
    %v2661 = vpack.c.bf16 %v2602, %v2601
    %v2662 = vpack.c.bf16 %v2604, %v2603
    %v2663 = vpack.c.bf16 %v2606, %v2605
    %v2664 = vpack.c.bf16 %v2608, %v2607
    %v2665 = vpack.c.bf16 %v2610, %v2609
    %v2666 = vpack.c.bf16 %v2612, %v2611
    %v2667 = vpack.c.bf16 %v2614, %v2613
    %v2668 = vpack.c.bf16 %v2616, %v2615
    %v2669 = vpack.c.bf16 %v2618, %v2617
    %v2670 = vpack.c.bf16 %v2620, %v2619
    %v2671 = vpack.c.bf16 %v2622, %v2621
    %v2672 = vpack.c.bf16 %v2624, %v2623
    %v2673 = vpack.c.bf16 %v2626, %v2625
    %v2674 = vpack.c.bf16 %v2628, %v2627
    %v2675 = vpack.c.bf16 %v2630, %v2629
    %v2676 = vpack.c.bf16 %v2632, %v2631
    %v2677 = vpack.c.bf16 %v2634, %v2633
    %v2678 = vpack.c.bf16 %v2636, %v2635
    %v2679 = vpack.c.bf16 %v2638, %v2637
    %v2680 = vpack.c.bf16 %v2640, %v2639
    %v2681 = vpack.c.bf16 %v2642, %v2641
    %v2682 = vpack.c.bf16 %v2644, %v2643
    %v2683 = vpack.c.bf16 %v2646, %v2645
    %v2684 = vpack.c.bf16 %v2648, %v2647
    %v2685 = vpack.c.bf16 %v2650, %v2649
    %v2686 = vpack.c.bf16 %v2652, %v2651
    %v2687 = vpack.c.bf16 %v2654, %v2653
    %v2688 = vpack.c.bf16 %v2656, %v2655
    %s2689 = scalar_lea.vmem [#allocation7], 128
    %v2690 = vld [vmem:[%s2689] sm:$0xff]
    %v2691 = vld [vmem:[%s2689 + $0x8] sm:$0xff]
    %v2692 = vld [vmem:[%s2689 + $0x10] sm:$0xff]
    %v2693 = vld [vmem:[%s2689 + $0x18] sm:$0xff]
    %v2694 = vld [vmem:[%s2689 + $0x20] sm:$0xff]
    %v2695 = vld [vmem:[%s2689 + $0x28] sm:$0xff]
    %v2696 = vld [vmem:[%s2689 + $0x30] sm:$0xff]
    %v2697 = vld [vmem:[%s2689 + $0x38] sm:$0xff]
    %v2698 = vld [vmem:[%s2689 + $0x40] sm:$0xff]
    %v2699 = vld [vmem:[%s2689 + $0x48] sm:$0xff]
    %v2700 = vld [vmem:[%s2689 + $0x50] sm:$0xff]
    %v2701 = vld [vmem:[%s2689 + $0x58] sm:$0xff]
    %v2702 = vld [vmem:[%s2689 + $0x60] sm:$0xff]
    %v2703 = vld [vmem:[%s2689 + $0x68] sm:$0xff]
    %v2704 = vld [vmem:[%s2689 + $0x70] sm:$0xff]
    %v2705 = vld [vmem:[%s2689 + $0x78] sm:$0xff]
    %v2706 = vpack.c.bf16 %v2691, %v2690
    %v2707 = vpack.c.bf16 %v2693, %v2692
    %v2708 = vpack.c.bf16 %v2695, %v2694
    %v2709 = vpack.c.bf16 %v2697, %v2696
    %v2710 = vpack.c.bf16 %v2699, %v2698
    %v2711 = vpack.c.bf16 %v2701, %v2700
    %v2712 = vpack.c.bf16 %v2703, %v2702
    %v2713 = vpack.c.bf16 %v2705, %v2704
    %s2714 = scalar_lea.vmem [#allocation8], 128
    %v2715 = vld [vmem:[%s2714] sm:$0xff]
    %v2716 = vld [vmem:[%s2714 + $0x8] sm:$0xff]
    %v2717 = vld [vmem:[%s2714 + $0x10] sm:$0xff]
    %v2718 = vld [vmem:[%s2714 + $0x18] sm:$0xff]
    %v2719 = vld [vmem:[%s2714 + $0x20] sm:$0xff]
    %v2720 = vld [vmem:[%s2714 + $0x28] sm:$0xff]
    %v2721 = vld [vmem:[%s2714 + $0x30] sm:$0xff]
    %v2722 = vld [vmem:[%s2714 + $0x38] sm:$0xff]
    %v2723 = vld [vmem:[%s2714 + $0x40] sm:$0xff]
    %v2724 = vld [vmem:[%s2714 + $0x48] sm:$0xff]
    %v2725 = vld [vmem:[%s2714 + $0x50] sm:$0xff]
    %v2726 = vld [vmem:[%s2714 + $0x58] sm:$0xff]
    %v2727 = vld [vmem:[%s2714 + $0x60] sm:$0xff]
    %v2728 = vld [vmem:[%s2714 + $0x68] sm:$0xff]
    %v2729 = vld [vmem:[%s2714 + $0x70] sm:$0xff]
    %v2730 = vld [vmem:[%s2714 + $0x78] sm:$0xff]
    %v2731 = vpack.c.bf16 %v2716, %v2715
    %v2732 = vpack.c.bf16 %v2718, %v2717
    %v2733 = vpack.c.bf16 %v2720, %v2719
    %v2734 = vpack.c.bf16 %v2722, %v2721
    %v2735 = vpack.c.bf16 %v2724, %v2723
    %v2736 = vpack.c.bf16 %v2726, %v2725
    %v2737 = vpack.c.bf16 %v2728, %v2727
    %v2738 = vpack.c.bf16 %v2730, %v2729
    %2739 = vmatpush.bf16.msra.mxu0 %v2713
    %2740 = vmatpush.bf16.msra.mxu0 %v2712
    %2741 = vmatpush.bf16.msra.mxu0 %v2711
    %2742 = vmatpush.bf16.msra.mxu0 %v2710
    %2743 = vmatpush.bf16.msra.mxu0 %v2709
    %2744 = vmatpush.bf16.msra.mxu0 %v2708
    %2745 = vmatpush.bf16.msra.mxu0 %v2707
    %2746 = vmatpush.bf16.msra.mxu0 %v2706
    %2747 = vmatmul.bf16.gmra.mxu0 %v2657
    %v2748 = vpop.f32.mrf.mxu0
    %v2749 = vadd.f32 0.0, %v2748
    %v2750 = vpop.f32.mrf.mxu0
    %v2751 = vadd.f32 0.0, %v2750
    %2752 = vmatmul.bf16.gmra.mxu0 %v2658
    %v2753 = vpop.f32.mrf.mxu0
    %v2754 = vadd.f32 0.0, %v2753
    %v2755 = vpop.f32.mrf.mxu0
    %v2756 = vadd.f32 0.0, %v2755
    %2757 = vmatmul.bf16.gmra.mxu0 %v2659
    %v2758 = vpop.f32.mrf.mxu0
    %v2759 = vadd.f32 0.0, %v2758
    %v2760 = vpop.f32.mrf.mxu0
    %v2761 = vadd.f32 0.0, %v2760
    %2762 = vmatmul.bf16.gmra.mxu0 %v2660
    %v2763 = vpop.f32.mrf.mxu0
    %v2764 = vadd.f32 0.0, %v2763
    %v2765 = vpop.f32.mrf.mxu0
    %v2766 = vadd.f32 0.0, %v2765
    %2767 = vmatmul.bf16.gmra.mxu0 %v2661
    %v2768 = vpop.f32.mrf.mxu0
    %v2769 = vadd.f32 0.0, %v2768
    %v2770 = vpop.f32.mrf.mxu0
    %v2771 = vadd.f32 0.0, %v2770
    %2772 = vmatmul.bf16.gmra.mxu0 %v2662
    %v2773 = vpop.f32.mrf.mxu0
    %v2774 = vadd.f32 0.0, %v2773
    %v2775 = vpop.f32.mrf.mxu0
    %v2776 = vadd.f32 0.0, %v2775
    %2777 = vmatmul.bf16.gmra.mxu0 %v2663
    %v2778 = vpop.f32.mrf.mxu0
    %v2779 = vadd.f32 0.0, %v2778
    %v2780 = vpop.f32.mrf.mxu0
    %v2781 = vadd.f32 0.0, %v2780
    %2782 = vmatmul.bf16.gmra.mxu0 %v2664
    %v2783 = vpop.f32.mrf.mxu0
    %v2784 = vadd.f32 0.0, %v2783
    %v2785 = vpop.f32.mrf.mxu0
    %v2786 = vadd.f32 0.0, %v2785
    %2787 = vmatmul.bf16.gmra.mxu0 %v2665
    %v2788 = vpop.f32.mrf.mxu0
    %v2789 = vadd.f32 0.0, %v2788
    %v2790 = vpop.f32.mrf.mxu0
    %v2791 = vadd.f32 0.0, %v2790
    %2792 = vmatmul.bf16.gmra.mxu0 %v2666
    %v2793 = vpop.f32.mrf.mxu0
    %v2794 = vadd.f32 0.0, %v2793
    %v2795 = vpop.f32.mrf.mxu0
    %v2796 = vadd.f32 0.0, %v2795
    %2797 = vmatmul.bf16.gmra.mxu0 %v2667
    %v2798 = vpop.f32.mrf.mxu0
    %v2799 = vadd.f32 0.0, %v2798
    %v2800 = vpop.f32.mrf.mxu0
    %v2801 = vadd.f32 0.0, %v2800
    %2802 = vmatmul.bf16.gmra.mxu0 %v2668
    %v2803 = vpop.f32.mrf.mxu0
    %v2804 = vadd.f32 0.0, %v2803
    %v2805 = vpop.f32.mrf.mxu0
    %v2806 = vadd.f32 0.0, %v2805
    %2807 = vmatmul.bf16.gmra.mxu0 %v2669
    %v2808 = vpop.f32.mrf.mxu0
    %v2809 = vadd.f32 0.0, %v2808
    %v2810 = vpop.f32.mrf.mxu0
    %v2811 = vadd.f32 0.0, %v2810
    %2812 = vmatmul.bf16.gmra.mxu0 %v2670
    %v2813 = vpop.f32.mrf.mxu0
    %v2814 = vadd.f32 0.0, %v2813
    %v2815 = vpop.f32.mrf.mxu0
    %v2816 = vadd.f32 0.0, %v2815
    %2817 = vmatmul.bf16.gmra.mxu0 %v2671
    %v2818 = vpop.f32.mrf.mxu0
    %v2819 = vadd.f32 0.0, %v2818
    %v2820 = vpop.f32.mrf.mxu0
    %v2821 = vadd.f32 0.0, %v2820
    %2822 = vmatmul.bf16.gmra.mxu0 %v2672
    %v2823 = vpop.f32.mrf.mxu0
    %v2824 = vadd.f32 0.0, %v2823
    %v2825 = vpop.f32.mrf.mxu0
    %v2826 = vadd.f32 0.0, %v2825
    %2827 = vmatmul.bf16.gmra.mxu0 %v2673
    %v2828 = vpop.f32.mrf.mxu0
    %v2829 = vadd.f32 0.0, %v2828
    %v2830 = vpop.f32.mrf.mxu0
    %v2831 = vadd.f32 0.0, %v2830
    %2832 = vmatmul.bf16.gmra.mxu0 %v2674
    %v2833 = vpop.f32.mrf.mxu0
    %v2834 = vadd.f32 0.0, %v2833
    %v2835 = vpop.f32.mrf.mxu0
    %v2836 = vadd.f32 0.0, %v2835
    %2837 = vmatmul.bf16.gmra.mxu0 %v2675
    %v2838 = vpop.f32.mrf.mxu0
    %v2839 = vadd.f32 0.0, %v2838
    %v2840 = vpop.f32.mrf.mxu0
    %v2841 = vadd.f32 0.0, %v2840
    %2842 = vmatmul.bf16.gmra.mxu0 %v2676
    %v2843 = vpop.f32.mrf.mxu0
    %v2844 = vadd.f32 0.0, %v2843
    %v2845 = vpop.f32.mrf.mxu0
    %v2846 = vadd.f32 0.0, %v2845
    %2847 = vmatmul.bf16.gmra.mxu0 %v2677
    %v2848 = vpop.f32.mrf.mxu0
    %v2849 = vadd.f32 0.0, %v2848
    %v2850 = vpop.f32.mrf.mxu0
    %v2851 = vadd.f32 0.0, %v2850
    %2852 = vmatmul.bf16.gmra.mxu0 %v2678
    %v2853 = vpop.f32.mrf.mxu0
    %v2854 = vadd.f32 0.0, %v2853
    %v2855 = vpop.f32.mrf.mxu0
    %v2856 = vadd.f32 0.0, %v2855
    %2857 = vmatmul.bf16.gmra.mxu0 %v2679
    %v2858 = vpop.f32.mrf.mxu0
    %v2859 = vadd.f32 0.0, %v2858
    %v2860 = vpop.f32.mrf.mxu0
    %v2861 = vadd.f32 0.0, %v2860
    %2862 = vmatmul.bf16.gmra.mxu0 %v2680
    %v2863 = vpop.f32.mrf.mxu0
    %v2864 = vadd.f32 0.0, %v2863
    %v2865 = vpop.f32.mrf.mxu0
    %v2866 = vadd.f32 0.0, %v2865
    %2867 = vmatmul.bf16.gmra.mxu0 %v2681
    %v2868 = vpop.f32.mrf.mxu0
    %v2869 = vadd.f32 0.0, %v2868
    %v2870 = vpop.f32.mrf.mxu0
    %v2871 = vadd.f32 0.0, %v2870
    %2872 = vmatmul.bf16.gmra.mxu0 %v2682
    %v2873 = vpop.f32.mrf.mxu0
    %v2874 = vadd.f32 0.0, %v2873
    %v2875 = vpop.f32.mrf.mxu0
    %v2876 = vadd.f32 0.0, %v2875
    %2877 = vmatmul.bf16.gmra.mxu0 %v2683
    %v2878 = vpop.f32.mrf.mxu0
    %v2879 = vadd.f32 0.0, %v2878
    %v2880 = vpop.f32.mrf.mxu0
    %v2881 = vadd.f32 0.0, %v2880
    %2882 = vmatmul.bf16.gmra.mxu0 %v2684
    %v2883 = vpop.f32.mrf.mxu0
    %v2884 = vadd.f32 0.0, %v2883
    %v2885 = vpop.f32.mrf.mxu0
    %v2886 = vadd.f32 0.0, %v2885
    %2887 = vmatmul.bf16.gmra.mxu0 %v2685
    %v2888 = vpop.f32.mrf.mxu0
    %v2889 = vadd.f32 0.0, %v2888
    %v2890 = vpop.f32.mrf.mxu0
    %v2891 = vadd.f32 0.0, %v2890
    %2892 = vmatmul.bf16.gmra.mxu0 %v2686
    %v2893 = vpop.f32.mrf.mxu0
    %v2894 = vadd.f32 0.0, %v2893
    %v2895 = vpop.f32.mrf.mxu0
    %v2896 = vadd.f32 0.0, %v2895
    %2897 = vmatmul.bf16.gmra.mxu0 %v2687
    %v2898 = vpop.f32.mrf.mxu0
    %v2899 = vadd.f32 0.0, %v2898
    %v2900 = vpop.f32.mrf.mxu0
    %v2901 = vadd.f32 0.0, %v2900
    %2902 = vmatmul.bf16.gmra.mxu0 %v2688
    %v2903 = vpop.f32.mrf.mxu0
    %v2904 = vadd.f32 0.0, %v2903
    %v2905 = vpop.f32.mrf.mxu0
    %v2906 = vadd.f32 0.0, %v2905
    %2907 = vdwg.mxu0
    %v2908 = vpack.c.bf16 %v2751, %v2749
    %v2909 = vpack.c.bf16 %v2756, %v2754
    %v2910 = vpack.c.bf16 %v2761, %v2759
    %v2911 = vpack.c.bf16 %v2766, %v2764
    %v2912 = vpack.c.bf16 %v2771, %v2769
    %v2913 = vpack.c.bf16 %v2776, %v2774
    %v2914 = vpack.c.bf16 %v2781, %v2779
    %v2915 = vpack.c.bf16 %v2786, %v2784
    %v2916 = vpack.c.bf16 %v2791, %v2789
    %v2917 = vpack.c.bf16 %v2796, %v2794
    %v2918 = vpack.c.bf16 %v2801, %v2799
    %v2919 = vpack.c.bf16 %v2806, %v2804
    %v2920 = vpack.c.bf16 %v2811, %v2809
    %v2921 = vpack.c.bf16 %v2816, %v2814
    %v2922 = vpack.c.bf16 %v2821, %v2819
    %v2923 = vpack.c.bf16 %v2826, %v2824
    %v2924 = vpack.c.bf16 %v2831, %v2829
    %v2925 = vpack.c.bf16 %v2836, %v2834
    %v2926 = vpack.c.bf16 %v2841, %v2839
    %v2927 = vpack.c.bf16 %v2846, %v2844
    %v2928 = vpack.c.bf16 %v2851, %v2849
    %v2929 = vpack.c.bf16 %v2856, %v2854
    %v2930 = vpack.c.bf16 %v2861, %v2859
    %v2931 = vpack.c.bf16 %v2866, %v2864
    %v2932 = vpack.c.bf16 %v2871, %v2869
    %v2933 = vpack.c.bf16 %v2876, %v2874
    %v2934 = vpack.c.bf16 %v2881, %v2879
    %v2935 = vpack.c.bf16 %v2886, %v2884
    %v2936 = vpack.c.bf16 %v2891, %v2889
    %v2937 = vpack.c.bf16 %v2896, %v2894
    %v2938 = vpack.c.bf16 %v2901, %v2899
    %v2939 = vpack.c.bf16 %v2906, %v2904
    %s2940 = scalar_lea.vmem %s4, 1
    %v2941 = vld [vmem:[%s2940] sm:$0x1]
    %v2943 = vperm.slane %v2941, 0
    %2945 = vmatpush.bf16.msra.mxu0 %v2738
    %2946 = vmatpush.bf16.msra.mxu0 %v2737
    %2947 = vmatpush.bf16.msra.mxu0 %v2736
    %2948 = vmatpush.bf16.msra.mxu0 %v2735
    %2949 = vmatpush.bf16.msra.mxu0 %v2734
    %2950 = vmatpush.bf16.msra.mxu0 %v2733
    %2951 = vmatpush.bf16.msra.mxu0 %v2732
    %2952 = vmatpush.bf16.msra.mxu0 %v2731
    %2953 = vmatmul.bf16.gmra.mxu0 %v2657
    %v2954 = vpop.f32.mrf.mxu0
    %v2955 = vadd.f32 %v2943, %v2954
    %v2956 = vpop.f32.mrf.mxu0
    %v2957 = vadd.f32 %v2943, %v2956
    %2958 = vmatmul.bf16.gmra.mxu0 %v2658
    %v2959 = vpop.f32.mrf.mxu0
    %v2960 = vadd.f32 %v2943, %v2959
    %v2961 = vpop.f32.mrf.mxu0
    %v2962 = vadd.f32 %v2943, %v2961
    %2963 = vmatmul.bf16.gmra.mxu0 %v2659
    %v2964 = vpop.f32.mrf.mxu0
    %v2965 = vadd.f32 %v2943, %v2964
    %v2966 = vpop.f32.mrf.mxu0
    %v2967 = vadd.f32 %v2943, %v2966
    %2968 = vmatmul.bf16.gmra.mxu0 %v2660
    %v2969 = vpop.f32.mrf.mxu0
    %v2970 = vadd.f32 %v2943, %v2969
    %v2971 = vpop.f32.mrf.mxu0
    %v2972 = vadd.f32 %v2943, %v2971
    %2973 = vmatmul.bf16.gmra.mxu0 %v2661
    %v2974 = vpop.f32.mrf.mxu0
    %v2975 = vadd.f32 %v2943, %v2974
    %v2976 = vpop.f32.mrf.mxu0
    %v2977 = vadd.f32 %v2943, %v2976
    %2978 = vmatmul.bf16.gmra.mxu0 %v2662
    %v2979 = vpop.f32.mrf.mxu0
    %v2980 = vadd.f32 %v2943, %v2979
    %v2981 = vpop.f32.mrf.mxu0
    %v2982 = vadd.f32 %v2943, %v2981
    %2983 = vmatmul.bf16.gmra.mxu0 %v2663
    %v2984 = vpop.f32.mrf.mxu0
    %v2985 = vadd.f32 %v2943, %v2984
    %v2986 = vpop.f32.mrf.mxu0
    %v2987 = vadd.f32 %v2943, %v2986
    %2988 = vmatmul.bf16.gmra.mxu0 %v2664
    %v2989 = vpop.f32.mrf.mxu0
    %v2990 = vadd.f32 %v2943, %v2989
    %v2991 = vpop.f32.mrf.mxu0
    %v2992 = vadd.f32 %v2943, %v2991
    %2993 = vmatmul.bf16.gmra.mxu0 %v2665
    %v2994 = vpop.f32.mrf.mxu0
    %v2995 = vadd.f32 %v2943, %v2994
    %v2996 = vpop.f32.mrf.mxu0
    %v2997 = vadd.f32 %v2943, %v2996
    %2998 = vmatmul.bf16.gmra.mxu0 %v2666
    %v2999 = vpop.f32.mrf.mxu0
    %v3000 = vadd.f32 %v2943, %v2999
    %v3001 = vpop.f32.mrf.mxu0
    %v3002 = vadd.f32 %v2943, %v3001
    %3003 = vmatmul.bf16.gmra.mxu0 %v2667
    %v3004 = vpop.f32.mrf.mxu0
    %v3005 = vadd.f32 %v2943, %v3004
    %v3006 = vpop.f32.mrf.mxu0
    %v3007 = vadd.f32 %v2943, %v3006
    %3008 = vmatmul.bf16.gmra.mxu0 %v2668
    %v3009 = vpop.f32.mrf.mxu0
    %v3010 = vadd.f32 %v2943, %v3009
    %v3011 = vpop.f32.mrf.mxu0
    %v3012 = vadd.f32 %v2943, %v3011
    %3013 = vmatmul.bf16.gmra.mxu0 %v2669
    %v3014 = vpop.f32.mrf.mxu0
    %v3015 = vadd.f32 %v2943, %v3014
    %v3016 = vpop.f32.mrf.mxu0
    %v3017 = vadd.f32 %v2943, %v3016
    %3018 = vmatmul.bf16.gmra.mxu0 %v2670
    %v3019 = vpop.f32.mrf.mxu0
    %v3020 = vadd.f32 %v2943, %v3019
    %v3021 = vpop.f32.mrf.mxu0
    %v3022 = vadd.f32 %v2943, %v3021
    %3023 = vmatmul.bf16.gmra.mxu0 %v2671
    %v3024 = vpop.f32.mrf.mxu0
    %v3025 = vadd.f32 %v2943, %v3024
    %v3026 = vpop.f32.mrf.mxu0
    %v3027 = vadd.f32 %v2943, %v3026
    %3028 = vmatmul.bf16.gmra.mxu0 %v2672
    %v3029 = vpop.f32.mrf.mxu0
    %v3030 = vadd.f32 %v2943, %v3029
    %v3031 = vpop.f32.mrf.mxu0
    %v3032 = vadd.f32 %v2943, %v3031
    %3033 = vmatmul.bf16.gmra.mxu0 %v2673
    %v3034 = vpop.f32.mrf.mxu0
    %v3035 = vadd.f32 %v2943, %v3034
    %v3036 = vpop.f32.mrf.mxu0
    %v3037 = vadd.f32 %v2943, %v3036
    %3038 = vmatmul.bf16.gmra.mxu0 %v2674
    %v3039 = vpop.f32.mrf.mxu0
    %v3040 = vadd.f32 %v2943, %v3039
    %v3041 = vpop.f32.mrf.mxu0
    %v3042 = vadd.f32 %v2943, %v3041
    %3043 = vmatmul.bf16.gmra.mxu0 %v2675
    %v3044 = vpop.f32.mrf.mxu0
    %v3045 = vadd.f32 %v2943, %v3044
    %v3046 = vpop.f32.mrf.mxu0
    %v3047 = vadd.f32 %v2943, %v3046
    %3048 = vmatmul.bf16.gmra.mxu0 %v2676
    %v3049 = vpop.f32.mrf.mxu0
    %v3050 = vadd.f32 %v2943, %v3049
    %v3051 = vpop.f32.mrf.mxu0
    %v3052 = vadd.f32 %v2943, %v3051
    %3053 = vmatmul.bf16.gmra.mxu0 %v2677
    %v3054 = vpop.f32.mrf.mxu0
    %v3055 = vadd.f32 %v2943, %v3054
    %v3056 = vpop.f32.mrf.mxu0
    %v3057 = vadd.f32 %v2943, %v3056
    %3058 = vmatmul.bf16.gmra.mxu0 %v2678
    %v3059 = vpop.f32.mrf.mxu0
    %v3060 = vadd.f32 %v2943, %v3059
    %v3061 = vpop.f32.mrf.mxu0
    %v3062 = vadd.f32 %v2943, %v3061
    %3063 = vmatmul.bf16.gmra.mxu0 %v2679
    %v3064 = vpop.f32.mrf.mxu0
    %v3065 = vadd.f32 %v2943, %v3064
    %v3066 = vpop.f32.mrf.mxu0
    %v3067 = vadd.f32 %v2943, %v3066
    %3068 = vmatmul.bf16.gmra.mxu0 %v2680
    %v3069 = vpop.f32.mrf.mxu0
    %v3070 = vadd.f32 %v2943, %v3069
    %v3071 = vpop.f32.mrf.mxu0
    %v3072 = vadd.f32 %v2943, %v3071
    %3073 = vmatmul.bf16.gmra.mxu0 %v2681
    %v3074 = vpop.f32.mrf.mxu0
    %v3075 = vadd.f32 %v2943, %v3074
    %v3076 = vpop.f32.mrf.mxu0
    %v3077 = vadd.f32 %v2943, %v3076
    %3078 = vmatmul.bf16.gmra.mxu0 %v2682
    %v3079 = vpop.f32.mrf.mxu0
    %v3080 = vadd.f32 %v2943, %v3079
    %v3081 = vpop.f32.mrf.mxu0
    %v3082 = vadd.f32 %v2943, %v3081
    %3083 = vmatmul.bf16.gmra.mxu0 %v2683
    %v3084 = vpop.f32.mrf.mxu0
    %v3085 = vadd.f32 %v2943, %v3084
    %v3086 = vpop.f32.mrf.mxu0
    %v3087 = vadd.f32 %v2943, %v3086
    %3088 = vmatmul.bf16.gmra.mxu0 %v2684
    %v3089 = vpop.f32.mrf.mxu0
    %v3090 = vadd.f32 %v2943, %v3089
    %v3091 = vpop.f32.mrf.mxu0
    %v3092 = vadd.f32 %v2943, %v3091
    %3093 = vmatmul.bf16.gmra.mxu0 %v2685
    %v3094 = vpop.f32.mrf.mxu0
    %v3095 = vadd.f32 %v2943, %v3094
    %v3096 = vpop.f32.mrf.mxu0
    %v3097 = vadd.f32 %v2943, %v3096
    %3098 = vmatmul.bf16.gmra.mxu0 %v2686
    %v3099 = vpop.f32.mrf.mxu0
    %v3100 = vadd.f32 %v2943, %v3099
    %v3101 = vpop.f32.mrf.mxu0
    %v3102 = vadd.f32 %v2943, %v3101
    %3103 = vmatmul.bf16.gmra.mxu0 %v2687
    %v3104 = vpop.f32.mrf.mxu0
    %v3105 = vadd.f32 %v2943, %v3104
    %v3106 = vpop.f32.mrf.mxu0
    %v3107 = vadd.f32 %v2943, %v3106
    %3108 = vmatmul.bf16.gmra.mxu0 %v2688
    %v3109 = vpop.f32.mrf.mxu0
    %v3110 = vadd.f32 %v2943, %v3109
    %v3111 = vpop.f32.mrf.mxu0
    %v3112 = vadd.f32 %v2943, %v3111
    %3113 = vdwg.mxu0
    %3114 = vmatpush.bf16.msra.mxu0 %v2915
    %3115 = vmatpush.bf16.msra.mxu0 %v2914
    %3116 = vmatpush.bf16.msra.mxu0 %v2913
    %3117 = vmatpush.bf16.msra.mxu0 %v2912
    %3118 = vmatpush.bf16.msra.mxu0 %v2911
    %3119 = vmatpush.bf16.msra.mxu0 %v2910
    %3120 = vmatpush.bf16.msra.mxu0 %v2909
    %3121 = vmatpush.bf16.msra.mxu0 %v2908
    %3122 = vmatmul.bf16.gmra.mxu0 %v1149
    %v3123 = vpop.f32.mrf.mxu0
    %v3124 = vadd.f32 %v2955, %v3123
    %v3125 = vpop.f32.mrf.mxu0
    %v3126 = vadd.f32 %v2957, %v3125
    %3127 = vmatmul.bf16.gmra.mxu0 %v1153
    %v3128 = vpop.f32.mrf.mxu0
    %v3129 = vadd.f32 %v2960, %v3128
    %v3130 = vpop.f32.mrf.mxu0
    %v3131 = vadd.f32 %v2962, %v3130
    %3132 = vmatmul.bf16.gmra.mxu0 %v1157
    %v3133 = vpop.f32.mrf.mxu0
    %v3134 = vadd.f32 %v2965, %v3133
    %v3135 = vpop.f32.mrf.mxu0
    %v3136 = vadd.f32 %v2967, %v3135
    %3137 = vmatmul.bf16.gmra.mxu0 %v1161
    %v3138 = vpop.f32.mrf.mxu0
    %v3139 = vadd.f32 %v2970, %v3138
    %v3140 = vpop.f32.mrf.mxu0
    %v3141 = vadd.f32 %v2972, %v3140
    %3142 = vmatmul.bf16.gmra.mxu0 %v1165
    %v3143 = vpop.f32.mrf.mxu0
    %v3144 = vadd.f32 %v2975, %v3143
    %v3145 = vpop.f32.mrf.mxu0
    %v3146 = vadd.f32 %v2977, %v3145
    %3147 = vmatmul.bf16.gmra.mxu0 %v1169
    %v3148 = vpop.f32.mrf.mxu0
    %v3149 = vadd.f32 %v2980, %v3148
    %v3150 = vpop.f32.mrf.mxu0
    %v3151 = vadd.f32 %v2982, %v3150
    %3152 = vmatmul.bf16.gmra.mxu0 %v1173
    %v3153 = vpop.f32.mrf.mxu0
    %v3154 = vadd.f32 %v2985, %v3153
    %v3155 = vpop.f32.mrf.mxu0
    %v3156 = vadd.f32 %v2987, %v3155
    %3157 = vmatmul.bf16.gmra.mxu0 %v1177
    %v3158 = vpop.f32.mrf.mxu0
    %v3159 = vadd.f32 %v2990, %v3158
    %v3160 = vpop.f32.mrf.mxu0
    %v3161 = vadd.f32 %v2992, %v3160
    %3162 = vmatmul.bf16.gmra.mxu0 %v1181
    %v3163 = vpop.f32.mrf.mxu0
    %v3164 = vadd.f32 %v2995, %v3163
    %v3165 = vpop.f32.mrf.mxu0
    %v3166 = vadd.f32 %v2997, %v3165
    %3167 = vmatmul.bf16.gmra.mxu0 %v1185
    %v3168 = vpop.f32.mrf.mxu0
    %v3169 = vadd.f32 %v3000, %v3168
    %v3170 = vpop.f32.mrf.mxu0
    %v3171 = vadd.f32 %v3002, %v3170
    %3172 = vmatmul.bf16.gmra.mxu0 %v1189
    %v3173 = vpop.f32.mrf.mxu0
    %v3174 = vadd.f32 %v3005, %v3173
    %v3175 = vpop.f32.mrf.mxu0
    %v3176 = vadd.f32 %v3007, %v3175
    %3177 = vmatmul.bf16.gmra.mxu0 %v1193
    %v3178 = vpop.f32.mrf.mxu0
    %v3179 = vadd.f32 %v3010, %v3178
    %v3180 = vpop.f32.mrf.mxu0
    %v3181 = vadd.f32 %v3012, %v3180
    %3182 = vmatmul.bf16.gmra.mxu0 %v1197
    %v3183 = vpop.f32.mrf.mxu0
    %v3184 = vadd.f32 %v3015, %v3183
    %v3185 = vpop.f32.mrf.mxu0
    %v3186 = vadd.f32 %v3017, %v3185
    %3187 = vmatmul.bf16.gmra.mxu0 %v1201
    %v3188 = vpop.f32.mrf.mxu0
    %v3189 = vadd.f32 %v3020, %v3188
    %v3190 = vpop.f32.mrf.mxu0
    %v3191 = vadd.f32 %v3022, %v3190
    %3192 = vmatmul.bf16.gmra.mxu0 %v1205
    %v3193 = vpop.f32.mrf.mxu0
    %v3194 = vadd.f32 %v3025, %v3193
    %v3195 = vpop.f32.mrf.mxu0
    %v3196 = vadd.f32 %v3027, %v3195
    %3197 = vmatmul.bf16.gmra.mxu0 %v1209
    %v3198 = vpop.f32.mrf.mxu0
    %v3199 = vadd.f32 %v3030, %v3198
    %v3200 = vpop.f32.mrf.mxu0
    %v3201 = vadd.f32 %v3032, %v3200
    %3202 = vmatmul.bf16.gmra.mxu0 %v1213
    %v3203 = vpop.f32.mrf.mxu0
    %v3204 = vadd.f32 %v3035, %v3203
    %v3205 = vpop.f32.mrf.mxu0
    %v3206 = vadd.f32 %v3037, %v3205
    %3207 = vmatmul.bf16.gmra.mxu0 %v1217
    %v3208 = vpop.f32.mrf.mxu0
    %v3209 = vadd.f32 %v3040, %v3208
    %v3210 = vpop.f32.mrf.mxu0
    %v3211 = vadd.f32 %v3042, %v3210
    %3212 = vmatmul.bf16.gmra.mxu0 %v1221
    %v3213 = vpop.f32.mrf.mxu0
    %v3214 = vadd.f32 %v3045, %v3213
    %v3215 = vpop.f32.mrf.mxu0
    %v3216 = vadd.f32 %v3047, %v3215
    %3217 = vmatmul.bf16.gmra.mxu0 %v1225
    %v3218 = vpop.f32.mrf.mxu0
    %v3219 = vadd.f32 %v3050, %v3218
    %v3220 = vpop.f32.mrf.mxu0
    %v3221 = vadd.f32 %v3052, %v3220
    %3222 = vmatmul.bf16.gmra.mxu0 %v1229
    %v3223 = vpop.f32.mrf.mxu0
    %v3224 = vadd.f32 %v3055, %v3223
    %v3225 = vpop.f32.mrf.mxu0
    %v3226 = vadd.f32 %v3057, %v3225
    %3227 = vmatmul.bf16.gmra.mxu0 %v1233
    %v3228 = vpop.f32.mrf.mxu0
    %v3229 = vadd.f32 %v3060, %v3228
    %v3230 = vpop.f32.mrf.mxu0
    %v3231 = vadd.f32 %v3062, %v3230
    %3232 = vmatmul.bf16.gmra.mxu0 %v1237
    %v3233 = vpop.f32.mrf.mxu0
    %v3234 = vadd.f32 %v3065, %v3233
    %v3235 = vpop.f32.mrf.mxu0
    %v3236 = vadd.f32 %v3067, %v3235
    %3237 = vmatmul.bf16.gmra.mxu0 %v1241
    %v3238 = vpop.f32.mrf.mxu0
    %v3239 = vadd.f32 %v3070, %v3238
    %v3240 = vpop.f32.mrf.mxu0
    %v3241 = vadd.f32 %v3072, %v3240
    %3242 = vmatmul.bf16.gmra.mxu0 %v1245
    %v3243 = vpop.f32.mrf.mxu0
    %v3244 = vadd.f32 %v3075, %v3243
    %v3245 = vpop.f32.mrf.mxu0
    %v3246 = vadd.f32 %v3077, %v3245
    %3247 = vmatmul.bf16.gmra.mxu0 %v1249
    %v3248 = vpop.f32.mrf.mxu0
    %v3249 = vadd.f32 %v3080, %v3248
    %v3250 = vpop.f32.mrf.mxu0
    %v3251 = vadd.f32 %v3082, %v3250
    %3252 = vmatmul.bf16.gmra.mxu0 %v1253
    %v3253 = vpop.f32.mrf.mxu0
    %v3254 = vadd.f32 %v3085, %v3253
    %v3255 = vpop.f32.mrf.mxu0
    %v3256 = vadd.f32 %v3087, %v3255
    %3257 = vmatmul.bf16.gmra.mxu0 %v1257
    %v3258 = vpop.f32.mrf.mxu0
    %v3259 = vadd.f32 %v3090, %v3258
    %v3260 = vpop.f32.mrf.mxu0
    %v3261 = vadd.f32 %v3092, %v3260
    %3262 = vmatmul.bf16.gmra.mxu0 %v1261
    %v3263 = vpop.f32.mrf.mxu0
    %v3264 = vadd.f32 %v3095, %v3263
    %v3265 = vpop.f32.mrf.mxu0
    %v3266 = vadd.f32 %v3097, %v3265
    %3267 = vmatmul.bf16.gmra.mxu0 %v1265
    %v3268 = vpop.f32.mrf.mxu0
    %v3269 = vadd.f32 %v3100, %v3268
    %v3270 = vpop.f32.mrf.mxu0
    %v3271 = vadd.f32 %v3102, %v3270
    %3272 = vmatmul.bf16.gmra.mxu0 %v1269
    %v3273 = vpop.f32.mrf.mxu0
    %v3274 = vadd.f32 %v3105, %v3273
    %v3275 = vpop.f32.mrf.mxu0
    %v3276 = vadd.f32 %v3107, %v3275
    %3277 = vmatmul.bf16.gmra.mxu0 %v1273
    %v3278 = vpop.f32.mrf.mxu0
    %v3279 = vadd.f32 %v3110, %v3278
    %v3280 = vpop.f32.mrf.mxu0
    %v3281 = vadd.f32 %v3112, %v3280
    %3282 = vdwg.mxu0
    %3283 = vmatpush.bf16.msra.mxu0 %v2923
    %3284 = vmatpush.bf16.msra.mxu0 %v2922
    %3285 = vmatpush.bf16.msra.mxu0 %v2921
    %3286 = vmatpush.bf16.msra.mxu0 %v2920
    %3287 = vmatpush.bf16.msra.mxu0 %v2919
    %3288 = vmatpush.bf16.msra.mxu0 %v2918
    %3289 = vmatpush.bf16.msra.mxu0 %v2917
    %3290 = vmatpush.bf16.msra.mxu0 %v2916
    %3291 = vmatmul.bf16.gmra.mxu0 %v1150
    %v3292 = vpop.f32.mrf.mxu0
    %v3293 = vadd.f32 %v3124, %v3292
    %v3294 = vpop.f32.mrf.mxu0
    %v3295 = vadd.f32 %v3126, %v3294
    %3296 = vmatmul.bf16.gmra.mxu0 %v1154
    %v3297 = vpop.f32.mrf.mxu0
    %v3298 = vadd.f32 %v3129, %v3297
    %v3299 = vpop.f32.mrf.mxu0
    %v3300 = vadd.f32 %v3131, %v3299
    %3301 = vmatmul.bf16.gmra.mxu0 %v1158
    %v3302 = vpop.f32.mrf.mxu0
    %v3303 = vadd.f32 %v3134, %v3302
    %v3304 = vpop.f32.mrf.mxu0
    %v3305 = vadd.f32 %v3136, %v3304
    %3306 = vmatmul.bf16.gmra.mxu0 %v1162
    %v3307 = vpop.f32.mrf.mxu0
    %v3308 = vadd.f32 %v3139, %v3307
    %v3309 = vpop.f32.mrf.mxu0
    %v3310 = vadd.f32 %v3141, %v3309
    %3311 = vmatmul.bf16.gmra.mxu0 %v1166
    %v3312 = vpop.f32.mrf.mxu0
    %v3313 = vadd.f32 %v3144, %v3312
    %v3314 = vpop.f32.mrf.mxu0
    %v3315 = vadd.f32 %v3146, %v3314
    %3316 = vmatmul.bf16.gmra.mxu0 %v1170
    %v3317 = vpop.f32.mrf.mxu0
    %v3318 = vadd.f32 %v3149, %v3317
    %v3319 = vpop.f32.mrf.mxu0
    %v3320 = vadd.f32 %v3151, %v3319
    %3321 = vmatmul.bf16.gmra.mxu0 %v1174
    %v3322 = vpop.f32.mrf.mxu0
    %v3323 = vadd.f32 %v3154, %v3322
    %v3324 = vpop.f32.mrf.mxu0
    %v3325 = vadd.f32 %v3156, %v3324
    %3326 = vmatmul.bf16.gmra.mxu0 %v1178
    %v3327 = vpop.f32.mrf.mxu0
    %v3328 = vadd.f32 %v3159, %v3327
    %v3329 = vpop.f32.mrf.mxu0
    %v3330 = vadd.f32 %v3161, %v3329
    %3331 = vmatmul.bf16.gmra.mxu0 %v1182
    %v3332 = vpop.f32.mrf.mxu0
    %v3333 = vadd.f32 %v3164, %v3332
    %v3334 = vpop.f32.mrf.mxu0
    %v3335 = vadd.f32 %v3166, %v3334
    %3336 = vmatmul.bf16.gmra.mxu0 %v1186
    %v3337 = vpop.f32.mrf.mxu0
    %v3338 = vadd.f32 %v3169, %v3337
    %v3339 = vpop.f32.mrf.mxu0
    %v3340 = vadd.f32 %v3171, %v3339
    %3341 = vmatmul.bf16.gmra.mxu0 %v1190
    %v3342 = vpop.f32.mrf.mxu0
    %v3343 = vadd.f32 %v3174, %v3342
    %v3344 = vpop.f32.mrf.mxu0
    %v3345 = vadd.f32 %v3176, %v3344
    %3346 = vmatmul.bf16.gmra.mxu0 %v1194
    %v3347 = vpop.f32.mrf.mxu0
    %v3348 = vadd.f32 %v3179, %v3347
    %v3349 = vpop.f32.mrf.mxu0
    %v3350 = vadd.f32 %v3181, %v3349
    %3351 = vmatmul.bf16.gmra.mxu0 %v1198
    %v3352 = vpop.f32.mrf.mxu0
    %v3353 = vadd.f32 %v3184, %v3352
    %v3354 = vpop.f32.mrf.mxu0
    %v3355 = vadd.f32 %v3186, %v3354
    %3356 = vmatmul.bf16.gmra.mxu0 %v1202
    %v3357 = vpop.f32.mrf.mxu0
    %v3358 = vadd.f32 %v3189, %v3357
    %v3359 = vpop.f32.mrf.mxu0
    %v3360 = vadd.f32 %v3191, %v3359
    %3361 = vmatmul.bf16.gmra.mxu0 %v1206
    %v3362 = vpop.f32.mrf.mxu0
    %v3363 = vadd.f32 %v3194, %v3362
    %v3364 = vpop.f32.mrf.mxu0
    %v3365 = vadd.f32 %v3196, %v3364
    %3366 = vmatmul.bf16.gmra.mxu0 %v1210
    %v3367 = vpop.f32.mrf.mxu0
    %v3368 = vadd.f32 %v3199, %v3367
    %v3369 = vpop.f32.mrf.mxu0
    %v3370 = vadd.f32 %v3201, %v3369
    %3371 = vmatmul.bf16.gmra.mxu0 %v1214
    %v3372 = vpop.f32.mrf.mxu0
    %v3373 = vadd.f32 %v3204, %v3372
    %v3374 = vpop.f32.mrf.mxu0
    %v3375 = vadd.f32 %v3206, %v3374
    %3376 = vmatmul.bf16.gmra.mxu0 %v1218
    %v3377 = vpop.f32.mrf.mxu0
    %v3378 = vadd.f32 %v3209, %v3377
    %v3379 = vpop.f32.mrf.mxu0
    %v3380 = vadd.f32 %v3211, %v3379
    %3381 = vmatmul.bf16.gmra.mxu0 %v1222
    %v3382 = vpop.f32.mrf.mxu0
    %v3383 = vadd.f32 %v3214, %v3382
    %v3384 = vpop.f32.mrf.mxu0
    %v3385 = vadd.f32 %v3216, %v3384
    %3386 = vmatmul.bf16.gmra.mxu0 %v1226
    %v3387 = vpop.f32.mrf.mxu0
    %v3388 = vadd.f32 %v3219, %v3387
    %v3389 = vpop.f32.mrf.mxu0
    %v3390 = vadd.f32 %v3221, %v3389
    %3391 = vmatmul.bf16.gmra.mxu0 %v1230
    %v3392 = vpop.f32.mrf.mxu0
    %v3393 = vadd.f32 %v3224, %v3392
    %v3394 = vpop.f32.mrf.mxu0
    %v3395 = vadd.f32 %v3226, %v3394
    %3396 = vmatmul.bf16.gmra.mxu0 %v1234
    %v3397 = vpop.f32.mrf.mxu0
    %v3398 = vadd.f32 %v3229, %v3397
    %v3399 = vpop.f32.mrf.mxu0
    %v3400 = vadd.f32 %v3231, %v3399
    %3401 = vmatmul.bf16.gmra.mxu0 %v1238
    %v3402 = vpop.f32.mrf.mxu0
    %v3403 = vadd.f32 %v3234, %v3402
    %v3404 = vpop.f32.mrf.mxu0
    %v3405 = vadd.f32 %v3236, %v3404
    %3406 = vmatmul.bf16.gmra.mxu0 %v1242
    %v3407 = vpop.f32.mrf.mxu0
    %v3408 = vadd.f32 %v3239, %v3407
    %v3409 = vpop.f32.mrf.mxu0
    %v3410 = vadd.f32 %v3241, %v3409
    %3411 = vmatmul.bf16.gmra.mxu0 %v1246
    %v3412 = vpop.f32.mrf.mxu0
    %v3413 = vadd.f32 %v3244, %v3412
    %v3414 = vpop.f32.mrf.mxu0
    %v3415 = vadd.f32 %v3246, %v3414
    %3416 = vmatmul.bf16.gmra.mxu0 %v1250
    %v3417 = vpop.f32.mrf.mxu0
    %v3418 = vadd.f32 %v3249, %v3417
    %v3419 = vpop.f32.mrf.mxu0
    %v3420 = vadd.f32 %v3251, %v3419
    %3421 = vmatmul.bf16.gmra.mxu0 %v1254
    %v3422 = vpop.f32.mrf.mxu0
    %v3423 = vadd.f32 %v3254, %v3422
    %v3424 = vpop.f32.mrf.mxu0
    %v3425 = vadd.f32 %v3256, %v3424
    %3426 = vmatmul.bf16.gmra.mxu0 %v1258
    %v3427 = vpop.f32.mrf.mxu0
    %v3428 = vadd.f32 %v3259, %v3427
    %v3429 = vpop.f32.mrf.mxu0
    %v3430 = vadd.f32 %v3261, %v3429
    %3431 = vmatmul.bf16.gmra.mxu0 %v1262
    %v3432 = vpop.f32.mrf.mxu0
    %v3433 = vadd.f32 %v3264, %v3432
    %v3434 = vpop.f32.mrf.mxu0
    %v3435 = vadd.f32 %v3266, %v3434
    %3436 = vmatmul.bf16.gmra.mxu0 %v1266
    %v3437 = vpop.f32.mrf.mxu0
    %v3438 = vadd.f32 %v3269, %v3437
    %v3439 = vpop.f32.mrf.mxu0
    %v3440 = vadd.f32 %v3271, %v3439
    %3441 = vmatmul.bf16.gmra.mxu0 %v1270
    %v3442 = vpop.f32.mrf.mxu0
    %v3443 = vadd.f32 %v3274, %v3442
    %v3444 = vpop.f32.mrf.mxu0
    %v3445 = vadd.f32 %v3276, %v3444
    %3446 = vmatmul.bf16.gmra.mxu0 %v1274
    %v3447 = vpop.f32.mrf.mxu0
    %v3448 = vadd.f32 %v3279, %v3447
    %v3449 = vpop.f32.mrf.mxu0
    %v3450 = vadd.f32 %v3281, %v3449
    %3451 = vdwg.mxu0
    %3452 = vmatpush.bf16.msra.mxu0 %v2931
    %3453 = vmatpush.bf16.msra.mxu0 %v2930
    %3454 = vmatpush.bf16.msra.mxu0 %v2929
    %3455 = vmatpush.bf16.msra.mxu0 %v2928
    %3456 = vmatpush.bf16.msra.mxu0 %v2927
    %3457 = vmatpush.bf16.msra.mxu0 %v2926
    %3458 = vmatpush.bf16.msra.mxu0 %v2925
    %3459 = vmatpush.bf16.msra.mxu0 %v2924
    %3460 = vmatmul.bf16.gmra.mxu0 %v1151
    %v3461 = vpop.f32.mrf.mxu0
    %v3462 = vadd.f32 %v3293, %v3461
    %v3463 = vpop.f32.mrf.mxu0
    %v3464 = vadd.f32 %v3295, %v3463
    %3465 = vmatmul.bf16.gmra.mxu0 %v1155
    %v3466 = vpop.f32.mrf.mxu0
    %v3467 = vadd.f32 %v3298, %v3466
    %v3468 = vpop.f32.mrf.mxu0
    %v3469 = vadd.f32 %v3300, %v3468
    %3470 = vmatmul.bf16.gmra.mxu0 %v1159
    %v3471 = vpop.f32.mrf.mxu0
    %v3472 = vadd.f32 %v3303, %v3471
    %v3473 = vpop.f32.mrf.mxu0
    %v3474 = vadd.f32 %v3305, %v3473
    %3475 = vmatmul.bf16.gmra.mxu0 %v1163
    %v3476 = vpop.f32.mrf.mxu0
    %v3477 = vadd.f32 %v3308, %v3476
    %v3478 = vpop.f32.mrf.mxu0
    %v3479 = vadd.f32 %v3310, %v3478
    %3480 = vmatmul.bf16.gmra.mxu0 %v1167
    %v3481 = vpop.f32.mrf.mxu0
    %v3482 = vadd.f32 %v3313, %v3481
    %v3483 = vpop.f32.mrf.mxu0
    %v3484 = vadd.f32 %v3315, %v3483
    %3485 = vmatmul.bf16.gmra.mxu0 %v1171
    %v3486 = vpop.f32.mrf.mxu0
    %v3487 = vadd.f32 %v3318, %v3486
    %v3488 = vpop.f32.mrf.mxu0
    %v3489 = vadd.f32 %v3320, %v3488
    %3490 = vmatmul.bf16.gmra.mxu0 %v1175
    %v3491 = vpop.f32.mrf.mxu0
    %v3492 = vadd.f32 %v3323, %v3491
    %v3493 = vpop.f32.mrf.mxu0
    %v3494 = vadd.f32 %v3325, %v3493
    %3495 = vmatmul.bf16.gmra.mxu0 %v1179
    %v3496 = vpop.f32.mrf.mxu0
    %v3497 = vadd.f32 %v3328, %v3496
    %v3498 = vpop.f32.mrf.mxu0
    %v3499 = vadd.f32 %v3330, %v3498
    %3500 = vmatmul.bf16.gmra.mxu0 %v1183
    %v3501 = vpop.f32.mrf.mxu0
    %v3502 = vadd.f32 %v3333, %v3501
    %v3503 = vpop.f32.mrf.mxu0
    %v3504 = vadd.f32 %v3335, %v3503
    %3505 = vmatmul.bf16.gmra.mxu0 %v1187
    %v3506 = vpop.f32.mrf.mxu0
    %v3507 = vadd.f32 %v3338, %v3506
    %v3508 = vpop.f32.mrf.mxu0
    %v3509 = vadd.f32 %v3340, %v3508
    %3510 = vmatmul.bf16.gmra.mxu0 %v1191
    %v3511 = vpop.f32.mrf.mxu0
    %v3512 = vadd.f32 %v3343, %v3511
    %v3513 = vpop.f32.mrf.mxu0
    %v3514 = vadd.f32 %v3345, %v3513
    %3515 = vmatmul.bf16.gmra.mxu0 %v1195
    %v3516 = vpop.f32.mrf.mxu0
    %v3517 = vadd.f32 %v3348, %v3516
    %v3518 = vpop.f32.mrf.mxu0
    %v3519 = vadd.f32 %v3350, %v3518
    %3520 = vmatmul.bf16.gmra.mxu0 %v1199
    %v3521 = vpop.f32.mrf.mxu0
    %v3522 = vadd.f32 %v3353, %v3521
    %v3523 = vpop.f32.mrf.mxu0
    %v3524 = vadd.f32 %v3355, %v3523
    %3525 = vmatmul.bf16.gmra.mxu0 %v1203
    %v3526 = vpop.f32.mrf.mxu0
    %v3527 = vadd.f32 %v3358, %v3526
    %v3528 = vpop.f32.mrf.mxu0
    %v3529 = vadd.f32 %v3360, %v3528
    %3530 = vmatmul.bf16.gmra.mxu0 %v1207
    %v3531 = vpop.f32.mrf.mxu0
    %v3532 = vadd.f32 %v3363, %v3531
    %v3533 = vpop.f32.mrf.mxu0
    %v3534 = vadd.f32 %v3365, %v3533
    %3535 = vmatmul.bf16.gmra.mxu0 %v1211
    %v3536 = vpop.f32.mrf.mxu0
    %v3537 = vadd.f32 %v3368, %v3536
    %v3538 = vpop.f32.mrf.mxu0
    %v3539 = vadd.f32 %v3370, %v3538
    %3540 = vmatmul.bf16.gmra.mxu0 %v1215
    %v3541 = vpop.f32.mrf.mxu0
    %v3542 = vadd.f32 %v3373, %v3541
    %v3543 = vpop.f32.mrf.mxu0
    %v3544 = vadd.f32 %v3375, %v3543
    %3545 = vmatmul.bf16.gmra.mxu0 %v1219
    %v3546 = vpop.f32.mrf.mxu0
    %v3547 = vadd.f32 %v3378, %v3546
    %v3548 = vpop.f32.mrf.mxu0
    %v3549 = vadd.f32 %v3380, %v3548
    %3550 = vmatmul.bf16.gmra.mxu0 %v1223
    %v3551 = vpop.f32.mrf.mxu0
    %v3552 = vadd.f32 %v3383, %v3551
    %v3553 = vpop.f32.mrf.mxu0
    %v3554 = vadd.f32 %v3385, %v3553
    %3555 = vmatmul.bf16.gmra.mxu0 %v1227
    %v3556 = vpop.f32.mrf.mxu0
    %v3557 = vadd.f32 %v3388, %v3556
    %v3558 = vpop.f32.mrf.mxu0
    %v3559 = vadd.f32 %v3390, %v3558
    %3560 = vmatmul.bf16.gmra.mxu0 %v1231
    %v3561 = vpop.f32.mrf.mxu0
    %v3562 = vadd.f32 %v3393, %v3561
    %v3563 = vpop.f32.mrf.mxu0
    %v3564 = vadd.f32 %v3395, %v3563
    %3565 = vmatmul.bf16.gmra.mxu0 %v1235
    %v3566 = vpop.f32.mrf.mxu0
    %v3567 = vadd.f32 %v3398, %v3566
    %v3568 = vpop.f32.mrf.mxu0
    %v3569 = vadd.f32 %v3400, %v3568
    %3570 = vmatmul.bf16.gmra.mxu0 %v1239
    %v3571 = vpop.f32.mrf.mxu0
    %v3572 = vadd.f32 %v3403, %v3571
    %v3573 = vpop.f32.mrf.mxu0
    %v3574 = vadd.f32 %v3405, %v3573
    %3575 = vmatmul.bf16.gmra.mxu0 %v1243
    %v3576 = vpop.f32.mrf.mxu0
    %v3577 = vadd.f32 %v3408, %v3576
    %v3578 = vpop.f32.mrf.mxu0
    %v3579 = vadd.f32 %v3410, %v3578
    %3580 = vmatmul.bf16.gmra.mxu0 %v1247
    %v3581 = vpop.f32.mrf.mxu0
    %v3582 = vadd.f32 %v3413, %v3581
    %v3583 = vpop.f32.mrf.mxu0
    %v3584 = vadd.f32 %v3415, %v3583
    %3585 = vmatmul.bf16.gmra.mxu0 %v1251
    %v3586 = vpop.f32.mrf.mxu0
    %v3587 = vadd.f32 %v3418, %v3586
    %v3588 = vpop.f32.mrf.mxu0
    %v3589 = vadd.f32 %v3420, %v3588
    %3590 = vmatmul.bf16.gmra.mxu0 %v1255
    %v3591 = vpop.f32.mrf.mxu0
    %v3592 = vadd.f32 %v3423, %v3591
    %v3593 = vpop.f32.mrf.mxu0
    %v3594 = vadd.f32 %v3425, %v3593
    %3595 = vmatmul.bf16.gmra.mxu0 %v1259
    %v3596 = vpop.f32.mrf.mxu0
    %v3597 = vadd.f32 %v3428, %v3596
    %v3598 = vpop.f32.mrf.mxu0
    %v3599 = vadd.f32 %v3430, %v3598
    %3600 = vmatmul.bf16.gmra.mxu0 %v1263
    %v3601 = vpop.f32.mrf.mxu0
    %v3602 = vadd.f32 %v3433, %v3601
    %v3603 = vpop.f32.mrf.mxu0
    %v3604 = vadd.f32 %v3435, %v3603
    %3605 = vmatmul.bf16.gmra.mxu0 %v1267
    %v3606 = vpop.f32.mrf.mxu0
    %v3607 = vadd.f32 %v3438, %v3606
    %v3608 = vpop.f32.mrf.mxu0
    %v3609 = vadd.f32 %v3440, %v3608
    %3610 = vmatmul.bf16.gmra.mxu0 %v1271
    %v3611 = vpop.f32.mrf.mxu0
    %v3612 = vadd.f32 %v3443, %v3611
    %v3613 = vpop.f32.mrf.mxu0
    %v3614 = vadd.f32 %v3445, %v3613
    %3615 = vmatmul.bf16.gmra.mxu0 %v1275
    %v3616 = vpop.f32.mrf.mxu0
    %v3617 = vadd.f32 %v3448, %v3616
    %v3618 = vpop.f32.mrf.mxu0
    %v3619 = vadd.f32 %v3450, %v3618
    %3620 = vdwg.mxu0
    %3621 = vmatpush.bf16.msra.mxu0 %v2939
    %3622 = vmatpush.bf16.msra.mxu0 %v2938
    %3623 = vmatpush.bf16.msra.mxu0 %v2937
    %3624 = vmatpush.bf16.msra.mxu0 %v2936
    %3625 = vmatpush.bf16.msra.mxu0 %v2935
    %3626 = vmatpush.bf16.msra.mxu0 %v2934
    %3627 = vmatpush.bf16.msra.mxu0 %v2933
    %3628 = vmatpush.bf16.msra.mxu0 %v2932
    %3629 = vmatmul.bf16.gmra.mxu0 %v1152
    %v3630 = vpop.f32.mrf.mxu0
    %v3631 = vadd.f32 %v3462, %v3630
    %v3632 = vpop.f32.mrf.mxu0
    %v3633 = vadd.f32 %v3464, %v3632
    %3634 = vmatmul.bf16.gmra.mxu0 %v1156
    %v3635 = vpop.f32.mrf.mxu0
    %v3636 = vadd.f32 %v3467, %v3635
    %v3637 = vpop.f32.mrf.mxu0
    %v3638 = vadd.f32 %v3469, %v3637
    %3639 = vmatmul.bf16.gmra.mxu0 %v1160
    %v3640 = vpop.f32.mrf.mxu0
    %v3641 = vadd.f32 %v3472, %v3640
    %v3642 = vpop.f32.mrf.mxu0
    %v3643 = vadd.f32 %v3474, %v3642
    %3644 = vmatmul.bf16.gmra.mxu0 %v1164
    %v3645 = vpop.f32.mrf.mxu0
    %v3646 = vadd.f32 %v3477, %v3645
    %v3647 = vpop.f32.mrf.mxu0
    %v3648 = vadd.f32 %v3479, %v3647
    %3649 = vmatmul.bf16.gmra.mxu0 %v1168
    %v3650 = vpop.f32.mrf.mxu0
    %v3651 = vadd.f32 %v3482, %v3650
    %v3652 = vpop.f32.mrf.mxu0
    %v3653 = vadd.f32 %v3484, %v3652
    %3654 = vmatmul.bf16.gmra.mxu0 %v1172
    %v3655 = vpop.f32.mrf.mxu0
    %v3656 = vadd.f32 %v3487, %v3655
    %v3657 = vpop.f32.mrf.mxu0
    %v3658 = vadd.f32 %v3489, %v3657
    %3659 = vmatmul.bf16.gmra.mxu0 %v1176
    %v3660 = vpop.f32.mrf.mxu0
    %v3661 = vadd.f32 %v3492, %v3660
    %v3662 = vpop.f32.mrf.mxu0
    %v3663 = vadd.f32 %v3494, %v3662
    %3664 = vmatmul.bf16.gmra.mxu0 %v1180
    %v3665 = vpop.f32.mrf.mxu0
    %v3666 = vadd.f32 %v3497, %v3665
    %v3667 = vpop.f32.mrf.mxu0
    %v3668 = vadd.f32 %v3499, %v3667
    %3669 = vmatmul.bf16.gmra.mxu0 %v1184
    %v3670 = vpop.f32.mrf.mxu0
    %v3671 = vadd.f32 %v3502, %v3670
    %v3672 = vpop.f32.mrf.mxu0
    %v3673 = vadd.f32 %v3504, %v3672
    %3674 = vmatmul.bf16.gmra.mxu0 %v1188
    %v3675 = vpop.f32.mrf.mxu0
    %v3676 = vadd.f32 %v3507, %v3675
    %v3677 = vpop.f32.mrf.mxu0
    %v3678 = vadd.f32 %v3509, %v3677
    %3679 = vmatmul.bf16.gmra.mxu0 %v1192
    %v3680 = vpop.f32.mrf.mxu0
    %v3681 = vadd.f32 %v3512, %v3680
    %v3682 = vpop.f32.mrf.mxu0
    %v3683 = vadd.f32 %v3514, %v3682
    %3684 = vmatmul.bf16.gmra.mxu0 %v1196
    %v3685 = vpop.f32.mrf.mxu0
    %v3686 = vadd.f32 %v3517, %v3685
    %v3687 = vpop.f32.mrf.mxu0
    %v3688 = vadd.f32 %v3519, %v3687
    %3689 = vmatmul.bf16.gmra.mxu0 %v1200
    %v3690 = vpop.f32.mrf.mxu0
    %v3691 = vadd.f32 %v3522, %v3690
    %v3692 = vpop.f32.mrf.mxu0
    %v3693 = vadd.f32 %v3524, %v3692
    %3694 = vmatmul.bf16.gmra.mxu0 %v1204
    %v3695 = vpop.f32.mrf.mxu0
    %v3696 = vadd.f32 %v3527, %v3695
    %v3697 = vpop.f32.mrf.mxu0
    %v3698 = vadd.f32 %v3529, %v3697
    %3699 = vmatmul.bf16.gmra.mxu0 %v1208
    %v3700 = vpop.f32.mrf.mxu0
    %v3701 = vadd.f32 %v3532, %v3700
    %v3702 = vpop.f32.mrf.mxu0
    %v3703 = vadd.f32 %v3534, %v3702
    %3704 = vmatmul.bf16.gmra.mxu0 %v1212
    %v3705 = vpop.f32.mrf.mxu0
    %v3706 = vadd.f32 %v3537, %v3705
    %v3707 = vpop.f32.mrf.mxu0
    %v3708 = vadd.f32 %v3539, %v3707
    %3709 = vmatmul.bf16.gmra.mxu0 %v1216
    %v3710 = vpop.f32.mrf.mxu0
    %v3711 = vadd.f32 %v3542, %v3710
    %v3712 = vpop.f32.mrf.mxu0
    %v3713 = vadd.f32 %v3544, %v3712
    %3714 = vmatmul.bf16.gmra.mxu0 %v1220
    %v3715 = vpop.f32.mrf.mxu0
    %v3716 = vadd.f32 %v3547, %v3715
    %v3717 = vpop.f32.mrf.mxu0
    %v3718 = vadd.f32 %v3549, %v3717
    %3719 = vmatmul.bf16.gmra.mxu0 %v1224
    %v3720 = vpop.f32.mrf.mxu0
    %v3721 = vadd.f32 %v3552, %v3720
    %v3722 = vpop.f32.mrf.mxu0
    %v3723 = vadd.f32 %v3554, %v3722
    %3724 = vmatmul.bf16.gmra.mxu0 %v1228
    %v3725 = vpop.f32.mrf.mxu0
    %v3726 = vadd.f32 %v3557, %v3725
    %v3727 = vpop.f32.mrf.mxu0
    %v3728 = vadd.f32 %v3559, %v3727
    %3729 = vmatmul.bf16.gmra.mxu0 %v1232
    %v3730 = vpop.f32.mrf.mxu0
    %v3731 = vadd.f32 %v3562, %v3730
    %v3732 = vpop.f32.mrf.mxu0
    %v3733 = vadd.f32 %v3564, %v3732
    %3734 = vmatmul.bf16.gmra.mxu0 %v1236
    %v3735 = vpop.f32.mrf.mxu0
    %v3736 = vadd.f32 %v3567, %v3735
    %v3737 = vpop.f32.mrf.mxu0
    %v3738 = vadd.f32 %v3569, %v3737
    %3739 = vmatmul.bf16.gmra.mxu0 %v1240
    %v3740 = vpop.f32.mrf.mxu0
    %v3741 = vadd.f32 %v3572, %v3740
    %v3742 = vpop.f32.mrf.mxu0
    %v3743 = vadd.f32 %v3574, %v3742
    %3744 = vmatmul.bf16.gmra.mxu0 %v1244
    %v3745 = vpop.f32.mrf.mxu0
    %v3746 = vadd.f32 %v3577, %v3745
    %v3747 = vpop.f32.mrf.mxu0
    %v3748 = vadd.f32 %v3579, %v3747
    %3749 = vmatmul.bf16.gmra.mxu0 %v1248
    %v3750 = vpop.f32.mrf.mxu0
    %v3751 = vadd.f32 %v3582, %v3750
    %v3752 = vpop.f32.mrf.mxu0
    %v3753 = vadd.f32 %v3584, %v3752
    %3754 = vmatmul.bf16.gmra.mxu0 %v1252
    %v3755 = vpop.f32.mrf.mxu0
    %v3756 = vadd.f32 %v3587, %v3755
    %v3757 = vpop.f32.mrf.mxu0
    %v3758 = vadd.f32 %v3589, %v3757
    %3759 = vmatmul.bf16.gmra.mxu0 %v1256
    %v3760 = vpop.f32.mrf.mxu0
    %v3761 = vadd.f32 %v3592, %v3760
    %v3762 = vpop.f32.mrf.mxu0
    %v3763 = vadd.f32 %v3594, %v3762
    %3764 = vmatmul.bf16.gmra.mxu0 %v1260
    %v3765 = vpop.f32.mrf.mxu0
    %v3766 = vadd.f32 %v3597, %v3765
    %v3767 = vpop.f32.mrf.mxu0
    %v3768 = vadd.f32 %v3599, %v3767
    %3769 = vmatmul.bf16.gmra.mxu0 %v1264
    %v3770 = vpop.f32.mrf.mxu0
    %v3771 = vadd.f32 %v3602, %v3770
    %v3772 = vpop.f32.mrf.mxu0
    %v3773 = vadd.f32 %v3604, %v3772
    %3774 = vmatmul.bf16.gmra.mxu0 %v1268
    %v3775 = vpop.f32.mrf.mxu0
    %v3776 = vadd.f32 %v3607, %v3775
    %v3777 = vpop.f32.mrf.mxu0
    %v3778 = vadd.f32 %v3609, %v3777
    %3779 = vmatmul.bf16.gmra.mxu0 %v1272
    %v3780 = vpop.f32.mrf.mxu0
    %v3781 = vadd.f32 %v3612, %v3780
    %v3782 = vpop.f32.mrf.mxu0
    %v3783 = vadd.f32 %v3614, %v3782
    %3784 = vmatmul.bf16.gmra.mxu0 %v1276
    %v3785 = vpop.f32.mrf.mxu0
    %v3786 = vadd.f32 %v3617, %v3785
    %v3787 = vpop.f32.mrf.mxu0
    %v3788 = vadd.f32 %v3619, %v3787
    %3789 = vdwg.mxu0
    %v3790 = vmul.f32 %v3631, %v3631
    %v3791 = vmul.f32 %v3633, %v3633
    %v3792 = vmul.f32 %v3636, %v3636
    %v3793 = vmul.f32 %v3638, %v3638
    %v3794 = vmul.f32 %v3641, %v3641
    %v3795 = vmul.f32 %v3643, %v3643
    %v3796 = vmul.f32 %v3646, %v3646
    %v3797 = vmul.f32 %v3648, %v3648
    %v3798 = vmul.f32 %v3651, %v3651
    %v3799 = vmul.f32 %v3653, %v3653
    %v3800 = vmul.f32 %v3656, %v3656
    %v3801 = vmul.f32 %v3658, %v3658
    %v3802 = vmul.f32 %v3661, %v3661
    %v3803 = vmul.f32 %v3663, %v3663
    %v3804 = vmul.f32 %v3666, %v3666
    %v3805 = vmul.f32 %v3668, %v3668
    %v3806 = vmul.f32 %v3671, %v3671
    %v3807 = vmul.f32 %v3673, %v3673
    %v3808 = vmul.f32 %v3676, %v3676
    %v3809 = vmul.f32 %v3678, %v3678
    %v3810 = vmul.f32 %v3681, %v3681
    %v3811 = vmul.f32 %v3683, %v3683
    %v3812 = vmul.f32 %v3686, %v3686
    %v3813 = vmul.f32 %v3688, %v3688
    %v3814 = vmul.f32 %v3691, %v3691
    %v3815 = vmul.f32 %v3693, %v3693
    %v3816 = vmul.f32 %v3696, %v3696
    %v3817 = vmul.f32 %v3698, %v3698
    %v3818 = vmul.f32 %v3701, %v3701
    %v3819 = vmul.f32 %v3703, %v3703
    %v3820 = vmul.f32 %v3706, %v3706
    %v3821 = vmul.f32 %v3708, %v3708
    %v3822 = vmul.f32 %v3711, %v3711
    %v3823 = vmul.f32 %v3713, %v3713
    %v3824 = vmul.f32 %v3716, %v3716
    %v3825 = vmul.f32 %v3718, %v3718
    %v3826 = vmul.f32 %v3721, %v3721
    %v3827 = vmul.f32 %v3723, %v3723
    %v3828 = vmul.f32 %v3726, %v3726
    %v3829 = vmul.f32 %v3728, %v3728
    %v3830 = vmul.f32 %v3731, %v3731
    %v3831 = vmul.f32 %v3733, %v3733
    %v3832 = vmul.f32 %v3736, %v3736
    %v3833 = vmul.f32 %v3738, %v3738
    %v3834 = vmul.f32 %v3741, %v3741
    %v3835 = vmul.f32 %v3743, %v3743
    %v3836 = vmul.f32 %v3746, %v3746
    %v3837 = vmul.f32 %v3748, %v3748
    %v3838 = vmul.f32 %v3751, %v3751
    %v3839 = vmul.f32 %v3753, %v3753
    %v3840 = vmul.f32 %v3756, %v3756
    %v3841 = vmul.f32 %v3758, %v3758
    %v3842 = vmul.f32 %v3761, %v3761
    %v3843 = vmul.f32 %v3763, %v3763
    %v3844 = vmul.f32 %v3766, %v3766
    %v3845 = vmul.f32 %v3768, %v3768
    %v3846 = vmul.f32 %v3771, %v3771
    %v3847 = vmul.f32 %v3773, %v3773
    %v3848 = vmul.f32 %v3776, %v3776
    %v3849 = vmul.f32 %v3778, %v3778
    %v3850 = vmul.f32 %v3781, %v3781
    %v3851 = vmul.f32 %v3783, %v3783
    %v3852 = vmul.f32 %v3786, %v3786
    %v3853 = vmul.f32 %v3788, %v3788
    %v3854 = vmul.f32 %v3631, %v3790
    %v3855 = vmul.f32 %v3633, %v3791
    %v3856 = vmul.f32 %v3636, %v3792
    %v3857 = vmul.f32 %v3638, %v3793
    %v3858 = vmul.f32 %v3641, %v3794
    %v3859 = vmul.f32 %v3643, %v3795
    %v3860 = vmul.f32 %v3646, %v3796
    %v3861 = vmul.f32 %v3648, %v3797
    %v3862 = vmul.f32 %v3651, %v3798
    %v3863 = vmul.f32 %v3653, %v3799
    %v3864 = vmul.f32 %v3656, %v3800
    %v3865 = vmul.f32 %v3658, %v3801
    %v3866 = vmul.f32 %v3661, %v3802
    %v3867 = vmul.f32 %v3663, %v3803
    %v3868 = vmul.f32 %v3666, %v3804
    %v3869 = vmul.f32 %v3668, %v3805
    %v3870 = vmul.f32 %v3671, %v3806
    %v3871 = vmul.f32 %v3673, %v3807
    %v3872 = vmul.f32 %v3676, %v3808
    %v3873 = vmul.f32 %v3678, %v3809
    %v3874 = vmul.f32 %v3681, %v3810
    %v3875 = vmul.f32 %v3683, %v3811
    %v3876 = vmul.f32 %v3686, %v3812
    %v3877 = vmul.f32 %v3688, %v3813
    %v3878 = vmul.f32 %v3691, %v3814
    %v3879 = vmul.f32 %v3693, %v3815
    %v3880 = vmul.f32 %v3696, %v3816
    %v3881 = vmul.f32 %v3698, %v3817
    %v3882 = vmul.f32 %v3701, %v3818
    %v3883 = vmul.f32 %v3703, %v3819
    %v3884 = vmul.f32 %v3706, %v3820
    %v3885 = vmul.f32 %v3708, %v3821
    %v3886 = vmul.f32 %v3711, %v3822
    %v3887 = vmul.f32 %v3713, %v3823
    %v3888 = vmul.f32 %v3716, %v3824
    %v3889 = vmul.f32 %v3718, %v3825
    %v3890 = vmul.f32 %v3721, %v3826
    %v3891 = vmul.f32 %v3723, %v3827
    %v3892 = vmul.f32 %v3726, %v3828
    %v3893 = vmul.f32 %v3728, %v3829
    %v3894 = vmul.f32 %v3731, %v3830
    %v3895 = vmul.f32 %v3733, %v3831
    %v3896 = vmul.f32 %v3736, %v3832
    %v3897 = vmul.f32 %v3738, %v3833
    %v3898 = vmul.f32 %v3741, %v3834
    %v3899 = vmul.f32 %v3743, %v3835
    %v3900 = vmul.f32 %v3746, %v3836
    %v3901 = vmul.f32 %v3748, %v3837
    %v3902 = vmul.f32 %v3751, %v3838
    %v3903 = vmul.f32 %v3753, %v3839
    %v3904 = vmul.f32 %v3756, %v3840
    %v3905 = vmul.f32 %v3758, %v3841
    %v3906 = vmul.f32 %v3761, %v3842
    %v3907 = vmul.f32 %v3763, %v3843
    %v3908 = vmul.f32 %v3766, %v3844
    %v3909 = vmul.f32 %v3768, %v3845
    %v3910 = vmul.f32 %v3771, %v3846
    %v3911 = vmul.f32 %v3773, %v3847
    %v3912 = vmul.f32 %v3776, %v3848
    %v3913 = vmul.f32 %v3778, %v3849
    %v3914 = vmul.f32 %v3781, %v3850
    %v3915 = vmul.f32 %v3783, %v3851
    %v3916 = vmul.f32 %v3786, %v3852
    %v3917 = vmul.f32 %v3788, %v3853
    %v3918 = vmul.f32 %v3854, 0.044715
    %v3919 = vmul.f32 %v3855, 0.044715
    %v3920 = vmul.f32 %v3856, 0.044715
    %v3921 = vmul.f32 %v3857, 0.044715
    %v3922 = vmul.f32 %v3858, 0.044715
    %v3923 = vmul.f32 %v3859, 0.044715
    %v3924 = vmul.f32 %v3860, 0.044715
    %v3925 = vmul.f32 %v3861, 0.044715
    %v3926 = vmul.f32 %v3862, 0.044715
    %v3927 = vmul.f32 %v3863, 0.044715
    %v3928 = vmul.f32 %v3864, 0.044715
    %v3929 = vmul.f32 %v3865, 0.044715
    %v3930 = vmul.f32 %v3866, 0.044715
    %v3931 = vmul.f32 %v3867, 0.044715
    %v3932 = vmul.f32 %v3868, 0.044715
    %v3933 = vmul.f32 %v3869, 0.044715
    %v3934 = vmul.f32 %v3870, 0.044715
    %v3935 = vmul.f32 %v3871, 0.044715
    %v3936 = vmul.f32 %v3872, 0.044715
    %v3937 = vmul.f32 %v3873, 0.044715
    %v3938 = vmul.f32 %v3874, 0.044715
    %v3939 = vmul.f32 %v3875, 0.044715
    %v3940 = vmul.f32 %v3876, 0.044715
    %v3941 = vmul.f32 %v3877, 0.044715
    %v3942 = vmul.f32 %v3878, 0.044715
    %v3943 = vmul.f32 %v3879, 0.044715
    %v3944 = vmul.f32 %v3880, 0.044715
    %v3945 = vmul.f32 %v3881, 0.044715
    %v3946 = vmul.f32 %v3882, 0.044715
    %v3947 = vmul.f32 %v3883, 0.044715
    %v3948 = vmul.f32 %v3884, 0.044715
    %v3949 = vmul.f32 %v3885, 0.044715
    %v3950 = vmul.f32 %v3886, 0.044715
    %v3951 = vmul.f32 %v3887, 0.044715
    %v3952 = vmul.f32 %v3888, 0.044715
    %v3953 = vmul.f32 %v3889, 0.044715
    %v3954 = vmul.f32 %v3890, 0.044715
    %v3955 = vmul.f32 %v3891, 0.044715
    %v3956 = vmul.f32 %v3892, 0.044715
    %v3957 = vmul.f32 %v3893, 0.044715
    %v3958 = vmul.f32 %v3894, 0.044715
    %v3959 = vmul.f32 %v3895, 0.044715
    %v3960 = vmul.f32 %v3896, 0.044715
    %v3961 = vmul.f32 %v3897, 0.044715
    %v3962 = vmul.f32 %v3898, 0.044715
    %v3963 = vmul.f32 %v3899, 0.044715
    %v3964 = vmul.f32 %v3900, 0.044715
    %v3965 = vmul.f32 %v3901, 0.044715
    %v3966 = vmul.f32 %v3902, 0.044715
    %v3967 = vmul.f32 %v3903, 0.044715
    %v3968 = vmul.f32 %v3904, 0.044715
    %v3969 = vmul.f32 %v3905, 0.044715
    %v3970 = vmul.f32 %v3906, 0.044715
    %v3971 = vmul.f32 %v3907, 0.044715
    %v3972 = vmul.f32 %v3908, 0.044715
    %v3973 = vmul.f32 %v3909, 0.044715
    %v3974 = vmul.f32 %v3910, 0.044715
    %v3975 = vmul.f32 %v3911, 0.044715
    %v3976 = vmul.f32 %v3912, 0.044715
    %v3977 = vmul.f32 %v3913, 0.044715
    %v3978 = vmul.f32 %v3914, 0.044715
    %v3979 = vmul.f32 %v3915, 0.044715
    %v3980 = vmul.f32 %v3916, 0.044715
    %v3981 = vmul.f32 %v3917, 0.044715
    %v3982 = vadd.f32 %v3631, %v3918
    %v3983 = vadd.f32 %v3633, %v3919
    %v3984 = vadd.f32 %v3636, %v3920
    %v3985 = vadd.f32 %v3638, %v3921
    %v3986 = vadd.f32 %v3641, %v3922
    %v3987 = vadd.f32 %v3643, %v3923
    %v3988 = vadd.f32 %v3646, %v3924
    %v3989 = vadd.f32 %v3648, %v3925
    %v3990 = vadd.f32 %v3651, %v3926
    %v3991 = vadd.f32 %v3653, %v3927
    %v3992 = vadd.f32 %v3656, %v3928
    %v3993 = vadd.f32 %v3658, %v3929
    %v3994 = vadd.f32 %v3661, %v3930
    %v3995 = vadd.f32 %v3663, %v3931
    %v3996 = vadd.f32 %v3666, %v3932
    %v3997 = vadd.f32 %v3668, %v3933
    %v3998 = vadd.f32 %v3671, %v3934
    %v3999 = vadd.f32 %v3673, %v3935
    %v4000 = vadd.f32 %v3676, %v3936
    %v4001 = vadd.f32 %v3678, %v3937
    %v4002 = vadd.f32 %v3681, %v3938
    %v4003 = vadd.f32 %v3683, %v3939
    %v4004 = vadd.f32 %v3686, %v3940
    %v4005 = vadd.f32 %v3688, %v3941
    %v4006 = vadd.f32 %v3691, %v3942
    %v4007 = vadd.f32 %v3693, %v3943
    %v4008 = vadd.f32 %v3696, %v3944
    %v4009 = vadd.f32 %v3698, %v3945
    %v4010 = vadd.f32 %v3701, %v3946
    %v4011 = vadd.f32 %v3703, %v3947
    %v4012 = vadd.f32 %v3706, %v3948
    %v4013 = vadd.f32 %v3708, %v3949
    %v4014 = vadd.f32 %v3711, %v3950
    %v4015 = vadd.f32 %v3713, %v3951
    %v4016 = vadd.f32 %v3716, %v3952
    %v4017 = vadd.f32 %v3718, %v3953
    %v4018 = vadd.f32 %v3721, %v3954
    %v4019 = vadd.f32 %v3723, %v3955
    %v4020 = vadd.f32 %v3726, %v3956
    %v4021 = vadd.f32 %v3728, %v3957
    %v4022 = vadd.f32 %v3731, %v3958
    %v4023 = vadd.f32 %v3733, %v3959
    %v4024 = vadd.f32 %v3736, %v3960
    %v4025 = vadd.f32 %v3738, %v3961
    %v4026 = vadd.f32 %v3741, %v3962
    %v4027 = vadd.f32 %v3743, %v3963
    %v4028 = vadd.f32 %v3746, %v3964
    %v4029 = vadd.f32 %v3748, %v3965
    %v4030 = vadd.f32 %v3751, %v3966
    %v4031 = vadd.f32 %v3753, %v3967
    %v4032 = vadd.f32 %v3756, %v3968
    %v4033 = vadd.f32 %v3758, %v3969
    %v4034 = vadd.f32 %v3761, %v3970
    %v4035 = vadd.f32 %v3763, %v3971
    %v4036 = vadd.f32 %v3766, %v3972
    %v4037 = vadd.f32 %v3768, %v3973
    %v4038 = vadd.f32 %v3771, %v3974
    %v4039 = vadd.f32 %v3773, %v3975
    %v4040 = vadd.f32 %v3776, %v3976
    %v4041 = vadd.f32 %v3778, %v3977
    %v4042 = vadd.f32 %v3781, %v3978
    %v4043 = vadd.f32 %v3783, %v3979
    %v4044 = vadd.f32 %v3786, %v3980
    %v4045 = vadd.f32 %v3788, %v3981
    %v4046 = vmul.f32 %v3982, 0.7978846
    %v4047 = vmul.f32 %v3983, 0.7978846
    %v4048 = vmul.f32 %v3984, 0.7978846
    %v4049 = vmul.f32 %v3985, 0.7978846
    %v4050 = vmul.f32 %v3986, 0.7978846
    %v4051 = vmul.f32 %v3987, 0.7978846
    %v4052 = vmul.f32 %v3988, 0.7978846
    %v4053 = vmul.f32 %v3989, 0.7978846
    %v4054 = vmul.f32 %v3990, 0.7978846
    %v4055 = vmul.f32 %v3991, 0.7978846
    %v4056 = vmul.f32 %v3992, 0.7978846
    %v4057 = vmul.f32 %v3993, 0.7978846
    %v4058 = vmul.f32 %v3994, 0.7978846
    %v4059 = vmul.f32 %v3995, 0.7978846
    %v4060 = vmul.f32 %v3996, 0.7978846
    %v4061 = vmul.f32 %v3997, 0.7978846
    %v4062 = vmul.f32 %v3998, 0.7978846
    %v4063 = vmul.f32 %v3999, 0.7978846
    %v4064 = vmul.f32 %v4000, 0.7978846
    %v4065 = vmul.f32 %v4001, 0.7978846
    %v4066 = vmul.f32 %v4002, 0.7978846
    %v4067 = vmul.f32 %v4003, 0.7978846
    %v4068 = vmul.f32 %v4004, 0.7978846
    %v4069 = vmul.f32 %v4005, 0.7978846
    %v4070 = vmul.f32 %v4006, 0.7978846
    %v4071 = vmul.f32 %v4007, 0.7978846
    %v4072 = vmul.f32 %v4008, 0.7978846
    %v4073 = vmul.f32 %v4009, 0.7978846
    %v4074 = vmul.f32 %v4010, 0.7978846
    %v4075 = vmul.f32 %v4011, 0.7978846
    %v4076 = vmul.f32 %v4012, 0.7978846
    %v4077 = vmul.f32 %v4013, 0.7978846
    %v4078 = vmul.f32 %v4014, 0.7978846
    %v4079 = vmul.f32 %v4015, 0.7978846
    %v4080 = vmul.f32 %v4016, 0.7978846
    %v4081 = vmul.f32 %v4017, 0.7978846
    %v4082 = vmul.f32 %v4018, 0.7978846
    %v4083 = vmul.f32 %v4019, 0.7978846
    %v4084 = vmul.f32 %v4020, 0.7978846
    %v4085 = vmul.f32 %v4021, 0.7978846
    %v4086 = vmul.f32 %v4022, 0.7978846
    %v4087 = vmul.f32 %v4023, 0.7978846
    %v4088 = vmul.f32 %v4024, 0.7978846
    %v4089 = vmul.f32 %v4025, 0.7978846
    %v4090 = vmul.f32 %v4026, 0.7978846
    %v4091 = vmul.f32 %v4027, 0.7978846
    %v4092 = vmul.f32 %v4028, 0.7978846
    %v4093 = vmul.f32 %v4029, 0.7978846
    %v4094 = vmul.f32 %v4030, 0.7978846
    %v4095 = vmul.f32 %v4031, 0.7978846
    %v4096 = vmul.f32 %v4032, 0.7978846
    %v4097 = vmul.f32 %v4033, 0.7978846
    %v4098 = vmul.f32 %v4034, 0.7978846
    %v4099 = vmul.f32 %v4035, 0.7978846
    %v4100 = vmul.f32 %v4036, 0.7978846
    %v4101 = vmul.f32 %v4037, 0.7978846
    %v4102 = vmul.f32 %v4038, 0.7978846
    %v4103 = vmul.f32 %v4039, 0.7978846
    %v4104 = vmul.f32 %v4040, 0.7978846
    %v4105 = vmul.f32 %v4041, 0.7978846
    %v4106 = vmul.f32 %v4042, 0.7978846
    %v4107 = vmul.f32 %v4043, 0.7978846
    %v4108 = vmul.f32 %v4044, 0.7978846
    %v4109 = vmul.f32 %v4045, 0.7978846
    %v4110 = vtanh.pop %v4046
    %v4111 = vtanh.pop %v4047
    %v4112 = vtanh.pop %v4048
    %v4113 = vtanh.pop %v4049
    %v4114 = vtanh.pop %v4050
    %v4115 = vtanh.pop %v4051
    %v4116 = vtanh.pop %v4052
    %v4117 = vtanh.pop %v4053
    %v4118 = vtanh.pop %v4054
    %v4119 = vtanh.pop %v4055
    %v4120 = vtanh.pop %v4056
    %v4121 = vtanh.pop %v4057
    %v4122 = vtanh.pop %v4058
    %v4123 = vtanh.pop %v4059
    %v4124 = vtanh.pop %v4060
    %v4125 = vtanh.pop %v4061
    %v4126 = vtanh.pop %v4062
    %v4127 = vtanh.pop %v4063
    %v4128 = vtanh.pop %v4064
    %v4129 = vtanh.pop %v4065
    %v4130 = vtanh.pop %v4066
    %v4131 = vtanh.pop %v4067
    %v4132 = vtanh.pop %v4068
    %v4133 = vtanh.pop %v4069
    %v4134 = vtanh.pop %v4070
    %v4135 = vtanh.pop %v4071
    %v4136 = vtanh.pop %v4072
    %v4137 = vtanh.pop %v4073
    %v4138 = vtanh.pop %v4074
    %v4139 = vtanh.pop %v4075
    %v4140 = vtanh.pop %v4076
    %v4141 = vtanh.pop %v4077
    %v4142 = vtanh.pop %v4078
    %v4143 = vtanh.pop %v4079
    %v4144 = vtanh.pop %v4080
    %v4145 = vtanh.pop %v4081
    %v4146 = vtanh.pop %v4082
    %v4147 = vtanh.pop %v4083
    %v4148 = vtanh.pop %v4084
    %v4149 = vtanh.pop %v4085
    %v4150 = vtanh.pop %v4086
    %v4151 = vtanh.pop %v4087
    %v4152 = vtanh.pop %v4088
    %v4153 = vtanh.pop %v4089
    %v4154 = vtanh.pop %v4090
    %v4155 = vtanh.pop %v4091
    %v4156 = vtanh.pop %v4092
    %v4157 = vtanh.pop %v4093
    %v4158 = vtanh.pop %v4094
    %v4159 = vtanh.pop %v4095
    %v4160 = vtanh.pop %v4096
    %v4161 = vtanh.pop %v4097
    %v4162 = vtanh.pop %v4098
    %v4163 = vtanh.pop %v4099
    %v4164 = vtanh.pop %v4100
    %v4165 = vtanh.pop %v4101
    %v4166 = vtanh.pop %v4102
    %v4167 = vtanh.pop %v4103
    %v4168 = vtanh.pop %v4104
    %v4169 = vtanh.pop %v4105
    %v4170 = vtanh.pop %v4106
    %v4171 = vtanh.pop %v4107
    %v4172 = vtanh.pop %v4108
    %v4173 = vtanh.pop %v4109
    %v4174 = vadd.f32 %v4110, 1.0
    %v4175 = vadd.f32 %v4111, 1.0
    %v4176 = vadd.f32 %v4112, 1.0
    %v4177 = vadd.f32 %v4113, 1.0
    %v4178 = vadd.f32 %v4114, 1.0
    %v4179 = vadd.f32 %v4115, 1.0
    %v4180 = vadd.f32 %v4116, 1.0
    %v4181 = vadd.f32 %v4117, 1.0
    %v4182 = vadd.f32 %v4118, 1.0
    %v4183 = vadd.f32 %v4119, 1.0
    %v4184 = vadd.f32 %v4120, 1.0
    %v4185 = vadd.f32 %v4121, 1.0
    %v4186 = vadd.f32 %v4122, 1.0
    %v4187 = vadd.f32 %v4123, 1.0
    %v4188 = vadd.f32 %v4124, 1.0
    %v4189 = vadd.f32 %v4125, 1.0
    %v4190 = vadd.f32 %v4126, 1.0
    %v4191 = vadd.f32 %v4127, 1.0
    %v4192 = vadd.f32 %v4128, 1.0
    %v4193 = vadd.f32 %v4129, 1.0
    %v4194 = vadd.f32 %v4130, 1.0
    %v4195 = vadd.f32 %v4131, 1.0
    %v4196 = vadd.f32 %v4132, 1.0
    %v4197 = vadd.f32 %v4133, 1.0
    %v4198 = vadd.f32 %v4134, 1.0
    %v4199 = vadd.f32 %v4135, 1.0
    %v4200 = vadd.f32 %v4136, 1.0
    %v4201 = vadd.f32 %v4137, 1.0
    %v4202 = vadd.f32 %v4138, 1.0
    %v4203 = vadd.f32 %v4139, 1.0
    %v4204 = vadd.f32 %v4140, 1.0
    %v4205 = vadd.f32 %v4141, 1.0
    %v4206 = vadd.f32 %v4142, 1.0
    %v4207 = vadd.f32 %v4143, 1.0
    %v4208 = vadd.f32 %v4144, 1.0
    %v4209 = vadd.f32 %v4145, 1.0
    %v4210 = vadd.f32 %v4146, 1.0
    %v4211 = vadd.f32 %v4147, 1.0
    %v4212 = vadd.f32 %v4148, 1.0
    %v4213 = vadd.f32 %v4149, 1.0
    %v4214 = vadd.f32 %v4150, 1.0
    %v4215 = vadd.f32 %v4151, 1.0
    %v4216 = vadd.f32 %v4152, 1.0
    %v4217 = vadd.f32 %v4153, 1.0
    %v4218 = vadd.f32 %v4154, 1.0
    %v4219 = vadd.f32 %v4155, 1.0
    %v4220 = vadd.f32 %v4156, 1.0
    %v4221 = vadd.f32 %v4157, 1.0
    %v4222 = vadd.f32 %v4158, 1.0
    %v4223 = vadd.f32 %v4159, 1.0
    %v4224 = vadd.f32 %v4160, 1.0
    %v4225 = vadd.f32 %v4161, 1.0
    %v4226 = vadd.f32 %v4162, 1.0
    %v4227 = vadd.f32 %v4163, 1.0
    %v4228 = vadd.f32 %v4164, 1.0
    %v4229 = vadd.f32 %v4165, 1.0
    %v4230 = vadd.f32 %v4166, 1.0
    %v4231 = vadd.f32 %v4167, 1.0
    %v4232 = vadd.f32 %v4168, 1.0
    %v4233 = vadd.f32 %v4169, 1.0
    %v4234 = vadd.f32 %v4170, 1.0
    %v4235 = vadd.f32 %v4171, 1.0
    %v4236 = vadd.f32 %v4172, 1.0
    %v4237 = vadd.f32 %v4173, 1.0
    %v4238 = vmul.f32 %v4174, 0.5
    %v4239 = vmul.f32 %v4175, 0.5
    %v4240 = vmul.f32 %v4176, 0.5
    %v4241 = vmul.f32 %v4177, 0.5
    %v4242 = vmul.f32 %v4178, 0.5
    %v4243 = vmul.f32 %v4179, 0.5
    %v4244 = vmul.f32 %v4180, 0.5
    %v4245 = vmul.f32 %v4181, 0.5
    %v4246 = vmul.f32 %v4182, 0.5
    %v4247 = vmul.f32 %v4183, 0.5
    %v4248 = vmul.f32 %v4184, 0.5
    %v4249 = vmul.f32 %v4185, 0.5
    %v4250 = vmul.f32 %v4186, 0.5
    %v4251 = vmul.f32 %v4187, 0.5
    %v4252 = vmul.f32 %v4188, 0.5
    %v4253 = vmul.f32 %v4189, 0.5
    %v4254 = vmul.f32 %v4190, 0.5
    %v4255 = vmul.f32 %v4191, 0.5
    %v4256 = vmul.f32 %v4192, 0.5
    %v4257 = vmul.f32 %v4193, 0.5
    %v4258 = vmul.f32 %v4194, 0.5
    %v4259 = vmul.f32 %v4195, 0.5
    %v4260 = vmul.f32 %v4196, 0.5
    %v4261 = vmul.f32 %v4197, 0.5
    %v4262 = vmul.f32 %v4198, 0.5
    %v4263 = vmul.f32 %v4199, 0.5
    %v4264 = vmul.f32 %v4200, 0.5
    %v4265 = vmul.f32 %v4201, 0.5
    %v4266 = vmul.f32 %v4202, 0.5
    %v4267 = vmul.f32 %v4203, 0.5
    %v4268 = vmul.f32 %v4204, 0.5
    %v4269 = vmul.f32 %v4205, 0.5
    %v4270 = vmul.f32 %v4206, 0.5
    %v4271 = vmul.f32 %v4207, 0.5
    %v4272 = vmul.f32 %v4208, 0.5
    %v4273 = vmul.f32 %v4209, 0.5
    %v4274 = vmul.f32 %v4210, 0.5
    %v4275 = vmul.f32 %v4211, 0.5
    %v4276 = vmul.f32 %v4212, 0.5
    %v4277 = vmul.f32 %v4213, 0.5
    %v4278 = vmul.f32 %v4214, 0.5
    %v4279 = vmul.f32 %v4215, 0.5
    %v4280 = vmul.f32 %v4216, 0.5
    %v4281 = vmul.f32 %v4217, 0.5
    %v4282 = vmul.f32 %v4218, 0.5
    %v4283 = vmul.f32 %v4219, 0.5
    %v4284 = vmul.f32 %v4220, 0.5
    %v4285 = vmul.f32 %v4221, 0.5
    %v4286 = vmul.f32 %v4222, 0.5
    %v4287 = vmul.f32 %v4223, 0.5
    %v4288 = vmul.f32 %v4224, 0.5
    %v4289 = vmul.f32 %v4225, 0.5
    %v4290 = vmul.f32 %v4226, 0.5
    %v4291 = vmul.f32 %v4227, 0.5
    %v4292 = vmul.f32 %v4228, 0.5
    %v4293 = vmul.f32 %v4229, 0.5
    %v4294 = vmul.f32 %v4230, 0.5
    %v4295 = vmul.f32 %v4231, 0.5
    %v4296 = vmul.f32 %v4232, 0.5
    %v4297 = vmul.f32 %v4233, 0.5
    %v4298 = vmul.f32 %v4234, 0.5
    %v4299 = vmul.f32 %v4235, 0.5
    %v4300 = vmul.f32 %v4236, 0.5
    %v4301 = vmul.f32 %v4237, 0.5
    %v4302 = vmul.f32 %v3631, %v4238
    %v4303 = vmul.f32 %v3633, %v4239
    %v4304 = vmul.f32 %v3636, %v4240
    %v4305 = vmul.f32 %v3638, %v4241
    %v4306 = vmul.f32 %v3641, %v4242
    %v4307 = vmul.f32 %v3643, %v4243
    %v4308 = vmul.f32 %v3646, %v4244
    %v4309 = vmul.f32 %v3648, %v4245
    %v4310 = vmul.f32 %v3651, %v4246
    %v4311 = vmul.f32 %v3653, %v4247
    %v4312 = vmul.f32 %v3656, %v4248
    %v4313 = vmul.f32 %v3658, %v4249
    %v4314 = vmul.f32 %v3661, %v4250
    %v4315 = vmul.f32 %v3663, %v4251
    %v4316 = vmul.f32 %v3666, %v4252
    %v4317 = vmul.f32 %v3668, %v4253
    %v4318 = vmul.f32 %v3671, %v4254
    %v4319 = vmul.f32 %v3673, %v4255
    %v4320 = vmul.f32 %v3676, %v4256
    %v4321 = vmul.f32 %v3678, %v4257
    %v4322 = vmul.f32 %v3681, %v4258
    %v4323 = vmul.f32 %v3683, %v4259
    %v4324 = vmul.f32 %v3686, %v4260
    %v4325 = vmul.f32 %v3688, %v4261
    %v4326 = vmul.f32 %v3691, %v4262
    %v4327 = vmul.f32 %v3693, %v4263
    %v4328 = vmul.f32 %v3696, %v4264
    %v4329 = vmul.f32 %v3698, %v4265
    %v4330 = vmul.f32 %v3701, %v4266
    %v4331 = vmul.f32 %v3703, %v4267
    %v4332 = vmul.f32 %v3706, %v4268
    %v4333 = vmul.f32 %v3708, %v4269
    %v4334 = vmul.f32 %v3711, %v4270
    %v4335 = vmul.f32 %v3713, %v4271
    %v4336 = vmul.f32 %v3716, %v4272
    %v4337 = vmul.f32 %v3718, %v4273
    %v4338 = vmul.f32 %v3721, %v4274
    %v4339 = vmul.f32 %v3723, %v4275
    %v4340 = vmul.f32 %v3726, %v4276
    %v4341 = vmul.f32 %v3728, %v4277
    %v4342 = vmul.f32 %v3731, %v4278
    %v4343 = vmul.f32 %v3733, %v4279
    %v4344 = vmul.f32 %v3736, %v4280
    %v4345 = vmul.f32 %v3738, %v4281
    %v4346 = vmul.f32 %v3741, %v4282
    %v4347 = vmul.f32 %v3743, %v4283
    %v4348 = vmul.f32 %v3746, %v4284
    %v4349 = vmul.f32 %v3748, %v4285
    %v4350 = vmul.f32 %v3751, %v4286
    %v4351 = vmul.f32 %v3753, %v4287
    %v4352 = vmul.f32 %v3756, %v4288
    %v4353 = vmul.f32 %v3758, %v4289
    %v4354 = vmul.f32 %v3761, %v4290
    %v4355 = vmul.f32 %v3763, %v4291
    %v4356 = vmul.f32 %v3766, %v4292
    %v4357 = vmul.f32 %v3768, %v4293
    %v4358 = vmul.f32 %v3771, %v4294
    %v4359 = vmul.f32 %v3773, %v4295
    %v4360 = vmul.f32 %v3776, %v4296
    %v4361 = vmul.f32 %v3778, %v4297
    %v4362 = vmul.f32 %v3781, %v4298
    %v4363 = vmul.f32 %v3783, %v4299
    %v4364 = vmul.f32 %v3786, %v4300
    %v4365 = vmul.f32 %v3788, %v4301
    %v4366 = vpack.c.bf16 %v4303, %v4302
    %v4367 = vpack.c.bf16 %v4305, %v4304
    %v4368 = vpack.c.bf16 %v4307, %v4306
    %v4369 = vpack.c.bf16 %v4309, %v4308
    %v4370 = vpack.c.bf16 %v4311, %v4310
    %v4371 = vpack.c.bf16 %v4313, %v4312
    %v4372 = vpack.c.bf16 %v4315, %v4314
    %v4373 = vpack.c.bf16 %v4317, %v4316
    %v4374 = vpack.c.bf16 %v4319, %v4318
    %v4375 = vpack.c.bf16 %v4321, %v4320
    %v4376 = vpack.c.bf16 %v4323, %v4322
    %v4377 = vpack.c.bf16 %v4325, %v4324
    %v4378 = vpack.c.bf16 %v4327, %v4326
    %v4379 = vpack.c.bf16 %v4329, %v4328
    %v4380 = vpack.c.bf16 %v4331, %v4330
    %v4381 = vpack.c.bf16 %v4333, %v4332
    %v4382 = vpack.c.bf16 %v4335, %v4334
    %v4383 = vpack.c.bf16 %v4337, %v4336
    %v4384 = vpack.c.bf16 %v4339, %v4338
    %v4385 = vpack.c.bf16 %v4341, %v4340
    %v4386 = vpack.c.bf16 %v4343, %v4342
    %v4387 = vpack.c.bf16 %v4345, %v4344
    %v4388 = vpack.c.bf16 %v4347, %v4346
    %v4389 = vpack.c.bf16 %v4349, %v4348
    %v4390 = vpack.c.bf16 %v4351, %v4350
    %v4391 = vpack.c.bf16 %v4353, %v4352
    %v4392 = vpack.c.bf16 %v4355, %v4354
    %v4393 = vpack.c.bf16 %v4357, %v4356
    %v4394 = vpack.c.bf16 %v4359, %v4358
    %v4395 = vpack.c.bf16 %v4361, %v4360
    %v4396 = vpack.c.bf16 %v4363, %v4362
    %v4397 = vpack.c.bf16 %v4365, %v4364
    %s4398 = scalar_lea.vmem [#allocation7], 256
    %v4399 = vld [vmem:[%s4398] sm:$0xff]
    %v4400 = vld [vmem:[%s4398 + $0x8] sm:$0xff]
    %v4401 = vld [vmem:[%s4398 + $0x10] sm:$0xff]
    %v4402 = vld [vmem:[%s4398 + $0x18] sm:$0xff]
    %v4403 = vld [vmem:[%s4398 + $0x20] sm:$0xff]
    %v4404 = vld [vmem:[%s4398 + $0x28] sm:$0xff]
    %v4405 = vld [vmem:[%s4398 + $0x30] sm:$0xff]
    %v4406 = vld [vmem:[%s4398 + $0x38] sm:$0xff]
    %v4407 = vld [vmem:[%s4398 + $0x40] sm:$0xff]
    %v4408 = vld [vmem:[%s4398 + $0x48] sm:$0xff]
    %v4409 = vld [vmem:[%s4398 + $0x50] sm:$0xff]
    %v4410 = vld [vmem:[%s4398 + $0x58] sm:$0xff]
    %v4411 = vld [vmem:[%s4398 + $0x60] sm:$0xff]
    %v4412 = vld [vmem:[%s4398 + $0x68] sm:$0xff]
    %v4413 = vld [vmem:[%s4398 + $0x70] sm:$0xff]
    %v4414 = vld [vmem:[%s4398 + $0x78] sm:$0xff]
    %v4415 = vpack.c.bf16 %v4400, %v4399
    %v4416 = vpack.c.bf16 %v4402, %v4401
    %v4417 = vpack.c.bf16 %v4404, %v4403
    %v4418 = vpack.c.bf16 %v4406, %v4405
    %v4419 = vpack.c.bf16 %v4408, %v4407
    %v4420 = vpack.c.bf16 %v4410, %v4409
    %v4421 = vpack.c.bf16 %v4412, %v4411
    %v4422 = vpack.c.bf16 %v4414, %v4413
    %s4423 = scalar_lea.vmem [#allocation8], 256
    %v4424 = vld [vmem:[%s4423] sm:$0xff]
    %v4425 = vld [vmem:[%s4423 + $0x8] sm:$0xff]
    %v4426 = vld [vmem:[%s4423 + $0x10] sm:$0xff]
    %v4427 = vld [vmem:[%s4423 + $0x18] sm:$0xff]
    %v4428 = vld [vmem:[%s4423 + $0x20] sm:$0xff]
    %v4429 = vld [vmem:[%s4423 + $0x28] sm:$0xff]
    %v4430 = vld [vmem:[%s4423 + $0x30] sm:$0xff]
    %v4431 = vld [vmem:[%s4423 + $0x38] sm:$0xff]
    %v4432 = vld [vmem:[%s4423 + $0x40] sm:$0xff]
    %v4433 = vld [vmem:[%s4423 + $0x48] sm:$0xff]
    %v4434 = vld [vmem:[%s4423 + $0x50] sm:$0xff]
    %v4435 = vld [vmem:[%s4423 + $0x58] sm:$0xff]
    %v4436 = vld [vmem:[%s4423 + $0x60] sm:$0xff]
    %v4437 = vld [vmem:[%s4423 + $0x68] sm:$0xff]
    %v4438 = vld [vmem:[%s4423 + $0x70] sm:$0xff]
    %v4439 = vld [vmem:[%s4423 + $0x78] sm:$0xff]
    %v4440 = vpack.c.bf16 %v4425, %v4424
    %v4441 = vpack.c.bf16 %v4427, %v4426
    %v4442 = vpack.c.bf16 %v4429, %v4428
    %v4443 = vpack.c.bf16 %v4431, %v4430
    %v4444 = vpack.c.bf16 %v4433, %v4432
    %v4445 = vpack.c.bf16 %v4435, %v4434
    %v4446 = vpack.c.bf16 %v4437, %v4436
    %v4447 = vpack.c.bf16 %v4439, %v4438
    %4448 = vmatpush.bf16.msra.mxu0 %v4422
    %4449 = vmatpush.bf16.msra.mxu0 %v4421
    %4450 = vmatpush.bf16.msra.mxu0 %v4420
    %4451 = vmatpush.bf16.msra.mxu0 %v4419
    %4452 = vmatpush.bf16.msra.mxu0 %v4418
    %4453 = vmatpush.bf16.msra.mxu0 %v4417
    %4454 = vmatpush.bf16.msra.mxu0 %v4416
    %4455 = vmatpush.bf16.msra.mxu0 %v4415
    %4456 = vmatmul.bf16.gmra.mxu0 %v4366
    %v4457 = vpop.f32.mrf.mxu0
    %v4458 = vadd.f32 0.0, %v4457
    %v4459 = vpop.f32.mrf.mxu0
    %v4460 = vadd.f32 0.0, %v4459
    %4461 = vmatmul.bf16.gmra.mxu0 %v4367
    %v4462 = vpop.f32.mrf.mxu0
    %v4463 = vadd.f32 0.0, %v4462
    %v4464 = vpop.f32.mrf.mxu0
    %v4465 = vadd.f32 0.0, %v4464
    %4466 = vmatmul.bf16.gmra.mxu0 %v4368
    %v4467 = vpop.f32.mrf.mxu0
    %v4468 = vadd.f32 0.0, %v4467
    %v4469 = vpop.f32.mrf.mxu0
    %v4470 = vadd.f32 0.0, %v4469
    %4471 = vmatmul.bf16.gmra.mxu0 %v4369
    %v4472 = vpop.f32.mrf.mxu0
    %v4473 = vadd.f32 0.0, %v4472
    %v4474 = vpop.f32.mrf.mxu0
    %v4475 = vadd.f32 0.0, %v4474
    %4476 = vmatmul.bf16.gmra.mxu0 %v4370
    %v4477 = vpop.f32.mrf.mxu0
    %v4478 = vadd.f32 0.0, %v4477
    %v4479 = vpop.f32.mrf.mxu0
    %v4480 = vadd.f32 0.0, %v4479
    %4481 = vmatmul.bf16.gmra.mxu0 %v4371
    %v4482 = vpop.f32.mrf.mxu0
    %v4483 = vadd.f32 0.0, %v4482
    %v4484 = vpop.f32.mrf.mxu0
    %v4485 = vadd.f32 0.0, %v4484
    %4486 = vmatmul.bf16.gmra.mxu0 %v4372
    %v4487 = vpop.f32.mrf.mxu0
    %v4488 = vadd.f32 0.0, %v4487
    %v4489 = vpop.f32.mrf.mxu0
    %v4490 = vadd.f32 0.0, %v4489
    %4491 = vmatmul.bf16.gmra.mxu0 %v4373
    %v4492 = vpop.f32.mrf.mxu0
    %v4493 = vadd.f32 0.0, %v4492
    %v4494 = vpop.f32.mrf.mxu0
    %v4495 = vadd.f32 0.0, %v4494
    %4496 = vmatmul.bf16.gmra.mxu0 %v4374
    %v4497 = vpop.f32.mrf.mxu0
    %v4498 = vadd.f32 0.0, %v4497
    %v4499 = vpop.f32.mrf.mxu0
    %v4500 = vadd.f32 0.0, %v4499
    %4501 = vmatmul.bf16.gmra.mxu0 %v4375
    %v4502 = vpop.f32.mrf.mxu0
    %v4503 = vadd.f32 0.0, %v4502
    %v4504 = vpop.f32.mrf.mxu0
    %v4505 = vadd.f32 0.0, %v4504
    %4506 = vmatmul.bf16.gmra.mxu0 %v4376
    %v4507 = vpop.f32.mrf.mxu0
    %v4508 = vadd.f32 0.0, %v4507
    %v4509 = vpop.f32.mrf.mxu0
    %v4510 = vadd.f32 0.0, %v4509
    %4511 = vmatmul.bf16.gmra.mxu0 %v4377
    %v4512 = vpop.f32.mrf.mxu0
    %v4513 = vadd.f32 0.0, %v4512
    %v4514 = vpop.f32.mrf.mxu0
    %v4515 = vadd.f32 0.0, %v4514
    %4516 = vmatmul.bf16.gmra.mxu0 %v4378
    %v4517 = vpop.f32.mrf.mxu0
    %v4518 = vadd.f32 0.0, %v4517
    %v4519 = vpop.f32.mrf.mxu0
    %v4520 = vadd.f32 0.0, %v4519
    %4521 = vmatmul.bf16.gmra.mxu0 %v4379
    %v4522 = vpop.f32.mrf.mxu0
    %v4523 = vadd.f32 0.0, %v4522
    %v4524 = vpop.f32.mrf.mxu0
    %v4525 = vadd.f32 0.0, %v4524
    %4526 = vmatmul.bf16.gmra.mxu0 %v4380
    %v4527 = vpop.f32.mrf.mxu0
    %v4528 = vadd.f32 0.0, %v4527
    %v4529 = vpop.f32.mrf.mxu0
    %v4530 = vadd.f32 0.0, %v4529
    %4531 = vmatmul.bf16.gmra.mxu0 %v4381
    %v4532 = vpop.f32.mrf.mxu0
    %v4533 = vadd.f32 0.0, %v4532
    %v4534 = vpop.f32.mrf.mxu0
    %v4535 = vadd.f32 0.0, %v4534
    %4536 = vmatmul.bf16.gmra.mxu0 %v4382
    %v4537 = vpop.f32.mrf.mxu0
    %v4538 = vadd.f32 0.0, %v4537
    %v4539 = vpop.f32.mrf.mxu0
    %v4540 = vadd.f32 0.0, %v4539
    %4541 = vmatmul.bf16.gmra.mxu0 %v4383
    %v4542 = vpop.f32.mrf.mxu0
    %v4543 = vadd.f32 0.0, %v4542
    %v4544 = vpop.f32.mrf.mxu0
    %v4545 = vadd.f32 0.0, %v4544
    %4546 = vmatmul.bf16.gmra.mxu0 %v4384
    %v4547 = vpop.f32.mrf.mxu0
    %v4548 = vadd.f32 0.0, %v4547
    %v4549 = vpop.f32.mrf.mxu0
    %v4550 = vadd.f32 0.0, %v4549
    %4551 = vmatmul.bf16.gmra.mxu0 %v4385
    %v4552 = vpop.f32.mrf.mxu0
    %v4553 = vadd.f32 0.0, %v4552
    %v4554 = vpop.f32.mrf.mxu0
    %v4555 = vadd.f32 0.0, %v4554
    %4556 = vmatmul.bf16.gmra.mxu0 %v4386
    %v4557 = vpop.f32.mrf.mxu0
    %v4558 = vadd.f32 0.0, %v4557
    %v4559 = vpop.f32.mrf.mxu0
    %v4560 = vadd.f32 0.0, %v4559
    %4561 = vmatmul.bf16.gmra.mxu0 %v4387
    %v4562 = vpop.f32.mrf.mxu0
    %v4563 = vadd.f32 0.0, %v4562
    %v4564 = vpop.f32.mrf.mxu0
    %v4565 = vadd.f32 0.0, %v4564
    %4566 = vmatmul.bf16.gmra.mxu0 %v4388
    %v4567 = vpop.f32.mrf.mxu0
    %v4568 = vadd.f32 0.0, %v4567
    %v4569 = vpop.f32.mrf.mxu0
    %v4570 = vadd.f32 0.0, %v4569
    %4571 = vmatmul.bf16.gmra.mxu0 %v4389
    %v4572 = vpop.f32.mrf.mxu0
    %v4573 = vadd.f32 0.0, %v4572
    %v4574 = vpop.f32.mrf.mxu0
    %v4575 = vadd.f32 0.0, %v4574
    %4576 = vmatmul.bf16.gmra.mxu0 %v4390
    %v4577 = vpop.f32.mrf.mxu0
    %v4578 = vadd.f32 0.0, %v4577
    %v4579 = vpop.f32.mrf.mxu0
    %v4580 = vadd.f32 0.0, %v4579
    %4581 = vmatmul.bf16.gmra.mxu0 %v4391
    %v4582 = vpop.f32.mrf.mxu0
    %v4583 = vadd.f32 0.0, %v4582
    %v4584 = vpop.f32.mrf.mxu0
    %v4585 = vadd.f32 0.0, %v4584
    %4586 = vmatmul.bf16.gmra.mxu0 %v4392
    %v4587 = vpop.f32.mrf.mxu0
    %v4588 = vadd.f32 0.0, %v4587
    %v4589 = vpop.f32.mrf.mxu0
    %v4590 = vadd.f32 0.0, %v4589
    %4591 = vmatmul.bf16.gmra.mxu0 %v4393
    %v4592 = vpop.f32.mrf.mxu0
    %v4593 = vadd.f32 0.0, %v4592
    %v4594 = vpop.f32.mrf.mxu0
    %v4595 = vadd.f32 0.0, %v4594
    %4596 = vmatmul.bf16.gmra.mxu0 %v4394
    %v4597 = vpop.f32.mrf.mxu0
    %v4598 = vadd.f32 0.0, %v4597
    %v4599 = vpop.f32.mrf.mxu0
    %v4600 = vadd.f32 0.0, %v4599
    %4601 = vmatmul.bf16.gmra.mxu0 %v4395
    %v4602 = vpop.f32.mrf.mxu0
    %v4603 = vadd.f32 0.0, %v4602
    %v4604 = vpop.f32.mrf.mxu0
    %v4605 = vadd.f32 0.0, %v4604
    %4606 = vmatmul.bf16.gmra.mxu0 %v4396
    %v4607 = vpop.f32.mrf.mxu0
    %v4608 = vadd.f32 0.0, %v4607
    %v4609 = vpop.f32.mrf.mxu0
    %v4610 = vadd.f32 0.0, %v4609
    %4611 = vmatmul.bf16.gmra.mxu0 %v4397
    %v4612 = vpop.f32.mrf.mxu0
    %v4613 = vadd.f32 0.0, %v4612
    %v4614 = vpop.f32.mrf.mxu0
    %v4615 = vadd.f32 0.0, %v4614
    %4616 = vdwg.mxu0
    %v4617 = vpack.c.bf16 %v4460, %v4458
    %v4618 = vpack.c.bf16 %v4465, %v4463
    %v4619 = vpack.c.bf16 %v4470, %v4468
    %v4620 = vpack.c.bf16 %v4475, %v4473
    %v4621 = vpack.c.bf16 %v4480, %v4478
    %v4622 = vpack.c.bf16 %v4485, %v4483
    %v4623 = vpack.c.bf16 %v4490, %v4488
    %v4624 = vpack.c.bf16 %v4495, %v4493
    %v4625 = vpack.c.bf16 %v4500, %v4498
    %v4626 = vpack.c.bf16 %v4505, %v4503
    %v4627 = vpack.c.bf16 %v4510, %v4508
    %v4628 = vpack.c.bf16 %v4515, %v4513
    %v4629 = vpack.c.bf16 %v4520, %v4518
    %v4630 = vpack.c.bf16 %v4525, %v4523
    %v4631 = vpack.c.bf16 %v4530, %v4528
    %v4632 = vpack.c.bf16 %v4535, %v4533
    %v4633 = vpack.c.bf16 %v4540, %v4538
    %v4634 = vpack.c.bf16 %v4545, %v4543
    %v4635 = vpack.c.bf16 %v4550, %v4548
    %v4636 = vpack.c.bf16 %v4555, %v4553
    %v4637 = vpack.c.bf16 %v4560, %v4558
    %v4638 = vpack.c.bf16 %v4565, %v4563
    %v4639 = vpack.c.bf16 %v4570, %v4568
    %v4640 = vpack.c.bf16 %v4575, %v4573
    %v4641 = vpack.c.bf16 %v4580, %v4578
    %v4642 = vpack.c.bf16 %v4585, %v4583
    %v4643 = vpack.c.bf16 %v4590, %v4588
    %v4644 = vpack.c.bf16 %v4595, %v4593
    %v4645 = vpack.c.bf16 %v4600, %v4598
    %v4646 = vpack.c.bf16 %v4605, %v4603
    %v4647 = vpack.c.bf16 %v4610, %v4608
    %v4648 = vpack.c.bf16 %v4615, %v4613
    %s4649 = scalar_lea.vmem %s4, 2
    %v4650 = vld [vmem:[%s4649] sm:$0x1]
    %v4652 = vperm.slane %v4650, 0
    %4654 = vmatpush.bf16.msra.mxu0 %v4447
    %4655 = vmatpush.bf16.msra.mxu0 %v4446
    %4656 = vmatpush.bf16.msra.mxu0 %v4445
    %4657 = vmatpush.bf16.msra.mxu0 %v4444
    %4658 = vmatpush.bf16.msra.mxu0 %v4443
    %4659 = vmatpush.bf16.msra.mxu0 %v4442
    %4660 = vmatpush.bf16.msra.mxu0 %v4441
    %4661 = vmatpush.bf16.msra.mxu0 %v4440
    %4662 = vmatmul.bf16.gmra.mxu0 %v4366
    %v4663 = vpop.f32.mrf.mxu0
    %v4664 = vadd.f32 %v4652, %v4663
    %v4665 = vpop.f32.mrf.mxu0
    %v4666 = vadd.f32 %v4652, %v4665
    %4667 = vmatmul.bf16.gmra.mxu0 %v4367
    %v4668 = vpop.f32.mrf.mxu0
    %v4669 = vadd.f32 %v4652, %v4668
    %v4670 = vpop.f32.mrf.mxu0
    %v4671 = vadd.f32 %v4652, %v4670
    %4672 = vmatmul.bf16.gmra.mxu0 %v4368
    %v4673 = vpop.f32.mrf.mxu0
    %v4674 = vadd.f32 %v4652, %v4673
    %v4675 = vpop.f32.mrf.mxu0
    %v4676 = vadd.f32 %v4652, %v4675
    %4677 = vmatmul.bf16.gmra.mxu0 %v4369
    %v4678 = vpop.f32.mrf.mxu0
    %v4679 = vadd.f32 %v4652, %v4678
    %v4680 = vpop.f32.mrf.mxu0
    %v4681 = vadd.f32 %v4652, %v4680
    %4682 = vmatmul.bf16.gmra.mxu0 %v4370
    %v4683 = vpop.f32.mrf.mxu0
    %v4684 = vadd.f32 %v4652, %v4683
    %v4685 = vpop.f32.mrf.mxu0
    %v4686 = vadd.f32 %v4652, %v4685
    %4687 = vmatmul.bf16.gmra.mxu0 %v4371
    %v4688 = vpop.f32.mrf.mxu0
    %v4689 = vadd.f32 %v4652, %v4688
    %v4690 = vpop.f32.mrf.mxu0
    %v4691 = vadd.f32 %v4652, %v4690
    %4692 = vmatmul.bf16.gmra.mxu0 %v4372
    %v4693 = vpop.f32.mrf.mxu0
    %v4694 = vadd.f32 %v4652, %v4693
    %v4695 = vpop.f32.mrf.mxu0
    %v4696 = vadd.f32 %v4652, %v4695
    %4697 = vmatmul.bf16.gmra.mxu0 %v4373
    %v4698 = vpop.f32.mrf.mxu0
    %v4699 = vadd.f32 %v4652, %v4698
    %v4700 = vpop.f32.mrf.mxu0
    %v4701 = vadd.f32 %v4652, %v4700
    %4702 = vmatmul.bf16.gmra.mxu0 %v4374
    %v4703 = vpop.f32.mrf.mxu0
    %v4704 = vadd.f32 %v4652, %v4703
    %v4705 = vpop.f32.mrf.mxu0
    %v4706 = vadd.f32 %v4652, %v4705
    %4707 = vmatmul.bf16.gmra.mxu0 %v4375
    %v4708 = vpop.f32.mrf.mxu0
    %v4709 = vadd.f32 %v4652, %v4708
    %v4710 = vpop.f32.mrf.mxu0
    %v4711 = vadd.f32 %v4652, %v4710
    %4712 = vmatmul.bf16.gmra.mxu0 %v4376
    %v4713 = vpop.f32.mrf.mxu0
    %v4714 = vadd.f32 %v4652, %v4713
    %v4715 = vpop.f32.mrf.mxu0
    %v4716 = vadd.f32 %v4652, %v4715
    %4717 = vmatmul.bf16.gmra.mxu0 %v4377
    %v4718 = vpop.f32.mrf.mxu0
    %v4719 = vadd.f32 %v4652, %v4718
    %v4720 = vpop.f32.mrf.mxu0
    %v4721 = vadd.f32 %v4652, %v4720
    %4722 = vmatmul.bf16.gmra.mxu0 %v4378
    %v4723 = vpop.f32.mrf.mxu0
    %v4724 = vadd.f32 %v4652, %v4723
    %v4725 = vpop.f32.mrf.mxu0
    %v4726 = vadd.f32 %v4652, %v4725
    %4727 = vmatmul.bf16.gmra.mxu0 %v4379
    %v4728 = vpop.f32.mrf.mxu0
    %v4729 = vadd.f32 %v4652, %v4728
    %v4730 = vpop.f32.mrf.mxu0
    %v4731 = vadd.f32 %v4652, %v4730
    %4732 = vmatmul.bf16.gmra.mxu0 %v4380
    %v4733 = vpop.f32.mrf.mxu0
    %v4734 = vadd.f32 %v4652, %v4733
    %v4735 = vpop.f32.mrf.mxu0
    %v4736 = vadd.f32 %v4652, %v4735
    %4737 = vmatmul.bf16.gmra.mxu0 %v4381
    %v4738 = vpop.f32.mrf.mxu0
    %v4739 = vadd.f32 %v4652, %v4738
    %v4740 = vpop.f32.mrf.mxu0
    %v4741 = vadd.f32 %v4652, %v4740
    %4742 = vmatmul.bf16.gmra.mxu0 %v4382
    %v4743 = vpop.f32.mrf.mxu0
    %v4744 = vadd.f32 %v4652, %v4743
    %v4745 = vpop.f32.mrf.mxu0
    %v4746 = vadd.f32 %v4652, %v4745
    %4747 = vmatmul.bf16.gmra.mxu0 %v4383
    %v4748 = vpop.f32.mrf.mxu0
    %v4749 = vadd.f32 %v4652, %v4748
    %v4750 = vpop.f32.mrf.mxu0
    %v4751 = vadd.f32 %v4652, %v4750
    %4752 = vmatmul.bf16.gmra.mxu0 %v4384
    %v4753 = vpop.f32.mrf.mxu0
    %v4754 = vadd.f32 %v4652, %v4753
    %v4755 = vpop.f32.mrf.mxu0
    %v4756 = vadd.f32 %v4652, %v4755
    %4757 = vmatmul.bf16.gmra.mxu0 %v4385
    %v4758 = vpop.f32.mrf.mxu0
    %v4759 = vadd.f32 %v4652, %v4758
    %v4760 = vpop.f32.mrf.mxu0
    %v4761 = vadd.f32 %v4652, %v4760
    %4762 = vmatmul.bf16.gmra.mxu0 %v4386
    %v4763 = vpop.f32.mrf.mxu0
    %v4764 = vadd.f32 %v4652, %v4763
    %v4765 = vpop.f32.mrf.mxu0
    %v4766 = vadd.f32 %v4652, %v4765
    %4767 = vmatmul.bf16.gmra.mxu0 %v4387
    %v4768 = vpop.f32.mrf.mxu0
    %v4769 = vadd.f32 %v4652, %v4768
    %v4770 = vpop.f32.mrf.mxu0
    %v4771 = vadd.f32 %v4652, %v4770
    %4772 = vmatmul.bf16.gmra.mxu0 %v4388
    %v4773 = vpop.f32.mrf.mxu0
    %v4774 = vadd.f32 %v4652, %v4773
    %v4775 = vpop.f32.mrf.mxu0
    %v4776 = vadd.f32 %v4652, %v4775
    %4777 = vmatmul.bf16.gmra.mxu0 %v4389
    %v4778 = vpop.f32.mrf.mxu0
    %v4779 = vadd.f32 %v4652, %v4778
    %v4780 = vpop.f32.mrf.mxu0
    %v4781 = vadd.f32 %v4652, %v4780
    %4782 = vmatmul.bf16.gmra.mxu0 %v4390
    %v4783 = vpop.f32.mrf.mxu0
    %v4784 = vadd.f32 %v4652, %v4783
    %v4785 = vpop.f32.mrf.mxu0
    %v4786 = vadd.f32 %v4652, %v4785
    %4787 = vmatmul.bf16.gmra.mxu0 %v4391
    %v4788 = vpop.f32.mrf.mxu0
    %v4789 = vadd.f32 %v4652, %v4788
    %v4790 = vpop.f32.mrf.mxu0
    %v4791 = vadd.f32 %v4652, %v4790
    %4792 = vmatmul.bf16.gmra.mxu0 %v4392
    %v4793 = vpop.f32.mrf.mxu0
    %v4794 = vadd.f32 %v4652, %v4793
    %v4795 = vpop.f32.mrf.mxu0
    %v4796 = vadd.f32 %v4652, %v4795
    %4797 = vmatmul.bf16.gmra.mxu0 %v4393
    %v4798 = vpop.f32.mrf.mxu0
    %v4799 = vadd.f32 %v4652, %v4798
    %v4800 = vpop.f32.mrf.mxu0
    %v4801 = vadd.f32 %v4652, %v4800
    %4802 = vmatmul.bf16.gmra.mxu0 %v4394
    %v4803 = vpop.f32.mrf.mxu0
    %v4804 = vadd.f32 %v4652, %v4803
    %v4805 = vpop.f32.mrf.mxu0
    %v4806 = vadd.f32 %v4652, %v4805
    %4807 = vmatmul.bf16.gmra.mxu0 %v4395
    %v4808 = vpop.f32.mrf.mxu0
    %v4809 = vadd.f32 %v4652, %v4808
    %v4810 = vpop.f32.mrf.mxu0
    %v4811 = vadd.f32 %v4652, %v4810
    %4812 = vmatmul.bf16.gmra.mxu0 %v4396
    %v4813 = vpop.f32.mrf.mxu0
    %v4814 = vadd.f32 %v4652, %v4813
    %v4815 = vpop.f32.mrf.mxu0
    %v4816 = vadd.f32 %v4652, %v4815
    %4817 = vmatmul.bf16.gmra.mxu0 %v4397
    %v4818 = vpop.f32.mrf.mxu0
    %v4819 = vadd.f32 %v4652, %v4818
    %v4820 = vpop.f32.mrf.mxu0
    %v4821 = vadd.f32 %v4652, %v4820
    %4822 = vdwg.mxu0
    %4823 = vmatpush.bf16.msra.mxu0 %v4624
    %4824 = vmatpush.bf16.msra.mxu0 %v4623
    %4825 = vmatpush.bf16.msra.mxu0 %v4622
    %4826 = vmatpush.bf16.msra.mxu0 %v4621
    %4827 = vmatpush.bf16.msra.mxu0 %v4620
    %4828 = vmatpush.bf16.msra.mxu0 %v4619
    %4829 = vmatpush.bf16.msra.mxu0 %v4618
    %4830 = vmatpush.bf16.msra.mxu0 %v4617
    %4831 = vmatmul.bf16.gmra.mxu0 %v1149
    %v4832 = vpop.f32.mrf.mxu0
    %v4833 = vadd.f32 %v4664, %v4832
    %v4834 = vpop.f32.mrf.mxu0
    %v4835 = vadd.f32 %v4666, %v4834
    %4836 = vmatmul.bf16.gmra.mxu0 %v1153
    %v4837 = vpop.f32.mrf.mxu0
    %v4838 = vadd.f32 %v4669, %v4837
    %v4839 = vpop.f32.mrf.mxu0
    %v4840 = vadd.f32 %v4671, %v4839
    %4841 = vmatmul.bf16.gmra.mxu0 %v1157
    %v4842 = vpop.f32.mrf.mxu0
    %v4843 = vadd.f32 %v4674, %v4842
    %v4844 = vpop.f32.mrf.mxu0
    %v4845 = vadd.f32 %v4676, %v4844
    %4846 = vmatmul.bf16.gmra.mxu0 %v1161
    %v4847 = vpop.f32.mrf.mxu0
    %v4848 = vadd.f32 %v4679, %v4847
    %v4849 = vpop.f32.mrf.mxu0
    %v4850 = vadd.f32 %v4681, %v4849
    %4851 = vmatmul.bf16.gmra.mxu0 %v1165
    %v4852 = vpop.f32.mrf.mxu0
    %v4853 = vadd.f32 %v4684, %v4852
    %v4854 = vpop.f32.mrf.mxu0
    %v4855 = vadd.f32 %v4686, %v4854
    %4856 = vmatmul.bf16.gmra.mxu0 %v1169
    %v4857 = vpop.f32.mrf.mxu0
    %v4858 = vadd.f32 %v4689, %v4857
    %v4859 = vpop.f32.mrf.mxu0
    %v4860 = vadd.f32 %v4691, %v4859
    %4861 = vmatmul.bf16.gmra.mxu0 %v1173
    %v4862 = vpop.f32.mrf.mxu0
    %v4863 = vadd.f32 %v4694, %v4862
    %v4864 = vpop.f32.mrf.mxu0
    %v4865 = vadd.f32 %v4696, %v4864
    %4866 = vmatmul.bf16.gmra.mxu0 %v1177
    %v4867 = vpop.f32.mrf.mxu0
    %v4868 = vadd.f32 %v4699, %v4867
    %v4869 = vpop.f32.mrf.mxu0
    %v4870 = vadd.f32 %v4701, %v4869
    %4871 = vmatmul.bf16.gmra.mxu0 %v1181
    %v4872 = vpop.f32.mrf.mxu0
    %v4873 = vadd.f32 %v4704, %v4872
    %v4874 = vpop.f32.mrf.mxu0
    %v4875 = vadd.f32 %v4706, %v4874
    %4876 = vmatmul.bf16.gmra.mxu0 %v1185
    %v4877 = vpop.f32.mrf.mxu0
    %v4878 = vadd.f32 %v4709, %v4877
    %v4879 = vpop.f32.mrf.mxu0
    %v4880 = vadd.f32 %v4711, %v4879
    %4881 = vmatmul.bf16.gmra.mxu0 %v1189
    %v4882 = vpop.f32.mrf.mxu0
    %v4883 = vadd.f32 %v4714, %v4882
    %v4884 = vpop.f32.mrf.mxu0
    %v4885 = vadd.f32 %v4716, %v4884
    %4886 = vmatmul.bf16.gmra.mxu0 %v1193
    %v4887 = vpop.f32.mrf.mxu0
    %v4888 = vadd.f32 %v4719, %v4887
    %v4889 = vpop.f32.mrf.mxu0
    %v4890 = vadd.f32 %v4721, %v4889
    %4891 = vmatmul.bf16.gmra.mxu0 %v1197
    %v4892 = vpop.f32.mrf.mxu0
    %v4893 = vadd.f32 %v4724, %v4892
    %v4894 = vpop.f32.mrf.mxu0
    %v4895 = vadd.f32 %v4726, %v4894
    %4896 = vmatmul.bf16.gmra.mxu0 %v1201
    %v4897 = vpop.f32.mrf.mxu0
    %v4898 = vadd.f32 %v4729, %v4897
    %v4899 = vpop.f32.mrf.mxu0
    %v4900 = vadd.f32 %v4731, %v4899
    %4901 = vmatmul.bf16.gmra.mxu0 %v1205
    %v4902 = vpop.f32.mrf.mxu0
    %v4903 = vadd.f32 %v4734, %v4902
    %v4904 = vpop.f32.mrf.mxu0
    %v4905 = vadd.f32 %v4736, %v4904
    %4906 = vmatmul.bf16.gmra.mxu0 %v1209
    %v4907 = vpop.f32.mrf.mxu0
    %v4908 = vadd.f32 %v4739, %v4907
    %v4909 = vpop.f32.mrf.mxu0
    %v4910 = vadd.f32 %v4741, %v4909
    %4911 = vmatmul.bf16.gmra.mxu0 %v1213
    %v4912 = vpop.f32.mrf.mxu0
    %v4913 = vadd.f32 %v4744, %v4912
    %v4914 = vpop.f32.mrf.mxu0
    %v4915 = vadd.f32 %v4746, %v4914
    %4916 = vmatmul.bf16.gmra.mxu0 %v1217
    %v4917 = vpop.f32.mrf.mxu0
    %v4918 = vadd.f32 %v4749, %v4917
    %v4919 = vpop.f32.mrf.mxu0
    %v4920 = vadd.f32 %v4751, %v4919
    %4921 = vmatmul.bf16.gmra.mxu0 %v1221
    %v4922 = vpop.f32.mrf.mxu0
    %v4923 = vadd.f32 %v4754, %v4922
    %v4924 = vpop.f32.mrf.mxu0
    %v4925 = vadd.f32 %v4756, %v4924
    %4926 = vmatmul.bf16.gmra.mxu0 %v1225
    %v4927 = vpop.f32.mrf.mxu0
    %v4928 = vadd.f32 %v4759, %v4927
    %v4929 = vpop.f32.mrf.mxu0
    %v4930 = vadd.f32 %v4761, %v4929
    %4931 = vmatmul.bf16.gmra.mxu0 %v1229
    %v4932 = vpop.f32.mrf.mxu0
    %v4933 = vadd.f32 %v4764, %v4932
    %v4934 = vpop.f32.mrf.mxu0
    %v4935 = vadd.f32 %v4766, %v4934
    %4936 = vmatmul.bf16.gmra.mxu0 %v1233
    %v4937 = vpop.f32.mrf.mxu0
    %v4938 = vadd.f32 %v4769, %v4937
    %v4939 = vpop.f32.mrf.mxu0
    %v4940 = vadd.f32 %v4771, %v4939
    %4941 = vmatmul.bf16.gmra.mxu0 %v1237
    %v4942 = vpop.f32.mrf.mxu0
    %v4943 = vadd.f32 %v4774, %v4942
    %v4944 = vpop.f32.mrf.mxu0
    %v4945 = vadd.f32 %v4776, %v4944
    %4946 = vmatmul.bf16.gmra.mxu0 %v1241
    %v4947 = vpop.f32.mrf.mxu0
    %v4948 = vadd.f32 %v4779, %v4947
    %v4949 = vpop.f32.mrf.mxu0
    %v4950 = vadd.f32 %v4781, %v4949
    %4951 = vmatmul.bf16.gmra.mxu0 %v1245
    %v4952 = vpop.f32.mrf.mxu0
    %v4953 = vadd.f32 %v4784, %v4952
    %v4954 = vpop.f32.mrf.mxu0
    %v4955 = vadd.f32 %v4786, %v4954
    %4956 = vmatmul.bf16.gmra.mxu0 %v1249
    %v4957 = vpop.f32.mrf.mxu0
    %v4958 = vadd.f32 %v4789, %v4957
    %v4959 = vpop.f32.mrf.mxu0
    %v4960 = vadd.f32 %v4791, %v4959
    %4961 = vmatmul.bf16.gmra.mxu0 %v1253
    %v4962 = vpop.f32.mrf.mxu0
    %v4963 = vadd.f32 %v4794, %v4962
    %v4964 = vpop.f32.mrf.mxu0
    %v4965 = vadd.f32 %v4796, %v4964
    %4966 = vmatmul.bf16.gmra.mxu0 %v1257
    %v4967 = vpop.f32.mrf.mxu0
    %v4968 = vadd.f32 %v4799, %v4967
    %v4969 = vpop.f32.mrf.mxu0
    %v4970 = vadd.f32 %v4801, %v4969
    %4971 = vmatmul.bf16.gmra.mxu0 %v1261
    %v4972 = vpop.f32.mrf.mxu0
    %v4973 = vadd.f32 %v4804, %v4972
    %v4974 = vpop.f32.mrf.mxu0
    %v4975 = vadd.f32 %v4806, %v4974
    %4976 = vmatmul.bf16.gmra.mxu0 %v1265
    %v4977 = vpop.f32.mrf.mxu0
    %v4978 = vadd.f32 %v4809, %v4977
    %v4979 = vpop.f32.mrf.mxu0
    %v4980 = vadd.f32 %v4811, %v4979
    %4981 = vmatmul.bf16.gmra.mxu0 %v1269
    %v4982 = vpop.f32.mrf.mxu0
    %v4983 = vadd.f32 %v4814, %v4982
    %v4984 = vpop.f32.mrf.mxu0
    %v4985 = vadd.f32 %v4816, %v4984
    %4986 = vmatmul.bf16.gmra.mxu0 %v1273
    %v4987 = vpop.f32.mrf.mxu0
    %v4988 = vadd.f32 %v4819, %v4987
    %v4989 = vpop.f32.mrf.mxu0
    %v4990 = vadd.f32 %v4821, %v4989
    %4991 = vdwg.mxu0
    %4992 = vmatpush.bf16.msra.mxu0 %v4632
    %4993 = vmatpush.bf16.msra.mxu0 %v4631
    %4994 = vmatpush.bf16.msra.mxu0 %v4630
    %4995 = vmatpush.bf16.msra.mxu0 %v4629
    %4996 = vmatpush.bf16.msra.mxu0 %v4628
    %4997 = vmatpush.bf16.msra.mxu0 %v4627
    %4998 = vmatpush.bf16.msra.mxu0 %v4626
    %4999 = vmatpush.bf16.msra.mxu0 %v4625
    %5000 = vmatmul.bf16.gmra.mxu0 %v1150
    %v5001 = vpop.f32.mrf.mxu0
    %v5002 = vadd.f32 %v4833, %v5001
    %v5003 = vpop.f32.mrf.mxu0
    %v5004 = vadd.f32 %v4835, %v5003
    %5005 = vmatmul.bf16.gmra.mxu0 %v1154
    %v5006 = vpop.f32.mrf.mxu0
    %v5007 = vadd.f32 %v4838, %v5006
    %v5008 = vpop.f32.mrf.mxu0
    %v5009 = vadd.f32 %v4840, %v5008
    %5010 = vmatmul.bf16.gmra.mxu0 %v1158
    %v5011 = vpop.f32.mrf.mxu0
    %v5012 = vadd.f32 %v4843, %v5011
    %v5013 = vpop.f32.mrf.mxu0
    %v5014 = vadd.f32 %v4845, %v5013
    %5015 = vmatmul.bf16.gmra.mxu0 %v1162
    %v5016 = vpop.f32.mrf.mxu0
    %v5017 = vadd.f32 %v4848, %v5016
    %v5018 = vpop.f32.mrf.mxu0
    %v5019 = vadd.f32 %v4850, %v5018
    %5020 = vmatmul.bf16.gmra.mxu0 %v1166
    %v5021 = vpop.f32.mrf.mxu0
    %v5022 = vadd.f32 %v4853, %v5021
    %v5023 = vpop.f32.mrf.mxu0
    %v5024 = vadd.f32 %v4855, %v5023
    %5025 = vmatmul.bf16.gmra.mxu0 %v1170
    %v5026 = vpop.f32.mrf.mxu0
    %v5027 = vadd.f32 %v4858, %v5026
    %v5028 = vpop.f32.mrf.mxu0
    %v5029 = vadd.f32 %v4860, %v5028
    %5030 = vmatmul.bf16.gmra.mxu0 %v1174
    %v5031 = vpop.f32.mrf.mxu0
    %v5032 = vadd.f32 %v4863, %v5031
    %v5033 = vpop.f32.mrf.mxu0
    %v5034 = vadd.f32 %v4865, %v5033
    %5035 = vmatmul.bf16.gmra.mxu0 %v1178
    %v5036 = vpop.f32.mrf.mxu0
    %v5037 = vadd.f32 %v4868, %v5036
    %v5038 = vpop.f32.mrf.mxu0
    %v5039 = vadd.f32 %v4870, %v5038
    %5040 = vmatmul.bf16.gmra.mxu0 %v1182
    %v5041 = vpop.f32.mrf.mxu0
    %v5042 = vadd.f32 %v4873, %v5041
    %v5043 = vpop.f32.mrf.mxu0
    %v5044 = vadd.f32 %v4875, %v5043
    %5045 = vmatmul.bf16.gmra.mxu0 %v1186
    %v5046 = vpop.f32.mrf.mxu0
    %v5047 = vadd.f32 %v4878, %v5046
    %v5048 = vpop.f32.mrf.mxu0
    %v5049 = vadd.f32 %v4880, %v5048
    %5050 = vmatmul.bf16.gmra.mxu0 %v1190
    %v5051 = vpop.f32.mrf.mxu0
    %v5052 = vadd.f32 %v4883, %v5051
    %v5053 = vpop.f32.mrf.mxu0
    %v5054 = vadd.f32 %v4885, %v5053
    %5055 = vmatmul.bf16.gmra.mxu0 %v1194
    %v5056 = vpop.f32.mrf.mxu0
    %v5057 = vadd.f32 %v4888, %v5056
    %v5058 = vpop.f32.mrf.mxu0
    %v5059 = vadd.f32 %v4890, %v5058
    %5060 = vmatmul.bf16.gmra.mxu0 %v1198
    %v5061 = vpop.f32.mrf.mxu0
    %v5062 = vadd.f32 %v4893, %v5061
    %v5063 = vpop.f32.mrf.mxu0
    %v5064 = vadd.f32 %v4895, %v5063
    %5065 = vmatmul.bf16.gmra.mxu0 %v1202
    %v5066 = vpop.f32.mrf.mxu0
    %v5067 = vadd.f32 %v4898, %v5066
    %v5068 = vpop.f32.mrf.mxu0
    %v5069 = vadd.f32 %v4900, %v5068
    %5070 = vmatmul.bf16.gmra.mxu0 %v1206
    %v5071 = vpop.f32.mrf.mxu0
    %v5072 = vadd.f32 %v4903, %v5071
    %v5073 = vpop.f32.mrf.mxu0
    %v5074 = vadd.f32 %v4905, %v5073
    %5075 = vmatmul.bf16.gmra.mxu0 %v1210
    %v5076 = vpop.f32.mrf.mxu0
    %v5077 = vadd.f32 %v4908, %v5076
    %v5078 = vpop.f32.mrf.mxu0
    %v5079 = vadd.f32 %v4910, %v5078
    %5080 = vmatmul.bf16.gmra.mxu0 %v1214
    %v5081 = vpop.f32.mrf.mxu0
    %v5082 = vadd.f32 %v4913, %v5081
    %v5083 = vpop.f32.mrf.mxu0
    %v5084 = vadd.f32 %v4915, %v5083
    %5085 = vmatmul.bf16.gmra.mxu0 %v1218
    %v5086 = vpop.f32.mrf.mxu0
    %v5087 = vadd.f32 %v4918, %v5086
    %v5088 = vpop.f32.mrf.mxu0
    %v5089 = vadd.f32 %v4920, %v5088
    %5090 = vmatmul.bf16.gmra.mxu0 %v1222
    %v5091 = vpop.f32.mrf.mxu0
    %v5092 = vadd.f32 %v4923, %v5091
    %v5093 = vpop.f32.mrf.mxu0
    %v5094 = vadd.f32 %v4925, %v5093
    %5095 = vmatmul.bf16.gmra.mxu0 %v1226
    %v5096 = vpop.f32.mrf.mxu0
    %v5097 = vadd.f32 %v4928, %v5096
    %v5098 = vpop.f32.mrf.mxu0
    %v5099 = vadd.f32 %v4930, %v5098
    %5100 = vmatmul.bf16.gmra.mxu0 %v1230
    %v5101 = vpop.f32.mrf.mxu0
    %v5102 = vadd.f32 %v4933, %v5101
    %v5103 = vpop.f32.mrf.mxu0
    %v5104 = vadd.f32 %v4935, %v5103
    %5105 = vmatmul.bf16.gmra.mxu0 %v1234
    %v5106 = vpop.f32.mrf.mxu0
    %v5107 = vadd.f32 %v4938, %v5106
    %v5108 = vpop.f32.mrf.mxu0
    %v5109 = vadd.f32 %v4940, %v5108
    %5110 = vmatmul.bf16.gmra.mxu0 %v1238
    %v5111 = vpop.f32.mrf.mxu0
    %v5112 = vadd.f32 %v4943, %v5111
    %v5113 = vpop.f32.mrf.mxu0
    %v5114 = vadd.f32 %v4945, %v5113
    %5115 = vmatmul.bf16.gmra.mxu0 %v1242
    %v5116 = vpop.f32.mrf.mxu0
    %v5117 = vadd.f32 %v4948, %v5116
    %v5118 = vpop.f32.mrf.mxu0
    %v5119 = vadd.f32 %v4950, %v5118
    %5120 = vmatmul.bf16.gmra.mxu0 %v1246
    %v5121 = vpop.f32.mrf.mxu0
    %v5122 = vadd.f32 %v4953, %v5121
    %v5123 = vpop.f32.mrf.mxu0
    %v5124 = vadd.f32 %v4955, %v5123
    %5125 = vmatmul.bf16.gmra.mxu0 %v1250
    %v5126 = vpop.f32.mrf.mxu0
    %v5127 = vadd.f32 %v4958, %v5126
    %v5128 = vpop.f32.mrf.mxu0
    %v5129 = vadd.f32 %v4960, %v5128
    %5130 = vmatmul.bf16.gmra.mxu0 %v1254
    %v5131 = vpop.f32.mrf.mxu0
    %v5132 = vadd.f32 %v4963, %v5131
    %v5133 = vpop.f32.mrf.mxu0
    %v5134 = vadd.f32 %v4965, %v5133
    %5135 = vmatmul.bf16.gmra.mxu0 %v1258
    %v5136 = vpop.f32.mrf.mxu0
    %v5137 = vadd.f32 %v4968, %v5136
    %v5138 = vpop.f32.mrf.mxu0
    %v5139 = vadd.f32 %v4970, %v5138
    %5140 = vmatmul.bf16.gmra.mxu0 %v1262
    %v5141 = vpop.f32.mrf.mxu0
    %v5142 = vadd.f32 %v4973, %v5141
    %v5143 = vpop.f32.mrf.mxu0
    %v5144 = vadd.f32 %v4975, %v5143
    %5145 = vmatmul.bf16.gmra.mxu0 %v1266
    %v5146 = vpop.f32.mrf.mxu0
    %v5147 = vadd.f32 %v4978, %v5146
    %v5148 = vpop.f32.mrf.mxu0
    %v5149 = vadd.f32 %v4980, %v5148
    %5150 = vmatmul.bf16.gmra.mxu0 %v1270
    %v5151 = vpop.f32.mrf.mxu0
    %v5152 = vadd.f32 %v4983, %v5151
    %v5153 = vpop.f32.mrf.mxu0
    %v5154 = vadd.f32 %v4985, %v5153
    %5155 = vmatmul.bf16.gmra.mxu0 %v1274
    %v5156 = vpop.f32.mrf.mxu0
    %v5157 = vadd.f32 %v4988, %v5156
    %v5158 = vpop.f32.mrf.mxu0
    %v5159 = vadd.f32 %v4990, %v5158
    %5160 = vdwg.mxu0
    %5161 = vmatpush.bf16.msra.mxu0 %v4640
    %5162 = vmatpush.bf16.msra.mxu0 %v4639
    %5163 = vmatpush.bf16.msra.mxu0 %v4638
    %5164 = vmatpush.bf16.msra.mxu0 %v4637
    %5165 = vmatpush.bf16.msra.mxu0 %v4636
    %5166 = vmatpush.bf16.msra.mxu0 %v4635
    %5167 = vmatpush.bf16.msra.mxu0 %v4634
    %5168 = vmatpush.bf16.msra.mxu0 %v4633
    %5169 = vmatmul.bf16.gmra.mxu0 %v1151
    %v5170 = vpop.f32.mrf.mxu0
    %v5171 = vadd.f32 %v5002, %v5170
    %v5172 = vpop.f32.mrf.mxu0
    %v5173 = vadd.f32 %v5004, %v5172
    %5174 = vmatmul.bf16.gmra.mxu0 %v1155
    %v5175 = vpop.f32.mrf.mxu0
    %v5176 = vadd.f32 %v5007, %v5175
    %v5177 = vpop.f32.mrf.mxu0
    %v5178 = vadd.f32 %v5009, %v5177
    %5179 = vmatmul.bf16.gmra.mxu0 %v1159
    %v5180 = vpop.f32.mrf.mxu0
    %v5181 = vadd.f32 %v5012, %v5180
    %v5182 = vpop.f32.mrf.mxu0
    %v5183 = vadd.f32 %v5014, %v5182
    %5184 = vmatmul.bf16.gmra.mxu0 %v1163
    %v5185 = vpop.f32.mrf.mxu0
    %v5186 = vadd.f32 %v5017, %v5185
    %v5187 = vpop.f32.mrf.mxu0
    %v5188 = vadd.f32 %v5019, %v5187
    %5189 = vmatmul.bf16.gmra.mxu0 %v1167
    %v5190 = vpop.f32.mrf.mxu0
    %v5191 = vadd.f32 %v5022, %v5190
    %v5192 = vpop.f32.mrf.mxu0
    %v5193 = vadd.f32 %v5024, %v5192
    %5194 = vmatmul.bf16.gmra.mxu0 %v1171
    %v5195 = vpop.f32.mrf.mxu0
    %v5196 = vadd.f32 %v5027, %v5195
    %v5197 = vpop.f32.mrf.mxu0
    %v5198 = vadd.f32 %v5029, %v5197
    %5199 = vmatmul.bf16.gmra.mxu0 %v1175
    %v5200 = vpop.f32.mrf.mxu0
    %v5201 = vadd.f32 %v5032, %v5200
    %v5202 = vpop.f32.mrf.mxu0
    %v5203 = vadd.f32 %v5034, %v5202
    %5204 = vmatmul.bf16.gmra.mxu0 %v1179
    %v5205 = vpop.f32.mrf.mxu0
    %v5206 = vadd.f32 %v5037, %v5205
    %v5207 = vpop.f32.mrf.mxu0
    %v5208 = vadd.f32 %v5039, %v5207
    %5209 = vmatmul.bf16.gmra.mxu0 %v1183
    %v5210 = vpop.f32.mrf.mxu0
    %v5211 = vadd.f32 %v5042, %v5210
    %v5212 = vpop.f32.mrf.mxu0
    %v5213 = vadd.f32 %v5044, %v5212
    %5214 = vmatmul.bf16.gmra.mxu0 %v1187
    %v5215 = vpop.f32.mrf.mxu0
    %v5216 = vadd.f32 %v5047, %v5215
    %v5217 = vpop.f32.mrf.mxu0
    %v5218 = vadd.f32 %v5049, %v5217
    %5219 = vmatmul.bf16.gmra.mxu0 %v1191
    %v5220 = vpop.f32.mrf.mxu0
    %v5221 = vadd.f32 %v5052, %v5220
    %v5222 = vpop.f32.mrf.mxu0
    %v5223 = vadd.f32 %v5054, %v5222
    %5224 = vmatmul.bf16.gmra.mxu0 %v1195
    %v5225 = vpop.f32.mrf.mxu0
    %v5226 = vadd.f32 %v5057, %v5225
    %v5227 = vpop.f32.mrf.mxu0
    %v5228 = vadd.f32 %v5059, %v5227
    %5229 = vmatmul.bf16.gmra.mxu0 %v1199
    %v5230 = vpop.f32.mrf.mxu0
    %v5231 = vadd.f32 %v5062, %v5230
    %v5232 = vpop.f32.mrf.mxu0
    %v5233 = vadd.f32 %v5064, %v5232
    %5234 = vmatmul.bf16.gmra.mxu0 %v1203
    %v5235 = vpop.f32.mrf.mxu0
    %v5236 = vadd.f32 %v5067, %v5235
    %v5237 = vpop.f32.mrf.mxu0
    %v5238 = vadd.f32 %v5069, %v5237
    %5239 = vmatmul.bf16.gmra.mxu0 %v1207
    %v5240 = vpop.f32.mrf.mxu0
    %v5241 = vadd.f32 %v5072, %v5240
    %v5242 = vpop.f32.mrf.mxu0
    %v5243 = vadd.f32 %v5074, %v5242
    %5244 = vmatmul.bf16.gmra.mxu0 %v1211
    %v5245 = vpop.f32.mrf.mxu0
    %v5246 = vadd.f32 %v5077, %v5245
    %v5247 = vpop.f32.mrf.mxu0
    %v5248 = vadd.f32 %v5079, %v5247
    %5249 = vmatmul.bf16.gmra.mxu0 %v1215
    %v5250 = vpop.f32.mrf.mxu0
    %v5251 = vadd.f32 %v5082, %v5250
    %v5252 = vpop.f32.mrf.mxu0
    %v5253 = vadd.f32 %v5084, %v5252
    %5254 = vmatmul.bf16.gmra.mxu0 %v1219
    %v5255 = vpop.f32.mrf.mxu0
    %v5256 = vadd.f32 %v5087, %v5255
    %v5257 = vpop.f32.mrf.mxu0
    %v5258 = vadd.f32 %v5089, %v5257
    %5259 = vmatmul.bf16.gmra.mxu0 %v1223
    %v5260 = vpop.f32.mrf.mxu0
    %v5261 = vadd.f32 %v5092, %v5260
    %v5262 = vpop.f32.mrf.mxu0
    %v5263 = vadd.f32 %v5094, %v5262
    %5264 = vmatmul.bf16.gmra.mxu0 %v1227
    %v5265 = vpop.f32.mrf.mxu0
    %v5266 = vadd.f32 %v5097, %v5265
    %v5267 = vpop.f32.mrf.mxu0
    %v5268 = vadd.f32 %v5099, %v5267
    %5269 = vmatmul.bf16.gmra.mxu0 %v1231
    %v5270 = vpop.f32.mrf.mxu0
    %v5271 = vadd.f32 %v5102, %v5270
    %v5272 = vpop.f32.mrf.mxu0
    %v5273 = vadd.f32 %v5104, %v5272
    %5274 = vmatmul.bf16.gmra.mxu0 %v1235
    %v5275 = vpop.f32.mrf.mxu0
    %v5276 = vadd.f32 %v5107, %v5275
    %v5277 = vpop.f32.mrf.mxu0
    %v5278 = vadd.f32 %v5109, %v5277
    %5279 = vmatmul.bf16.gmra.mxu0 %v1239
    %v5280 = vpop.f32.mrf.mxu0
    %v5281 = vadd.f32 %v5112, %v5280
    %v5282 = vpop.f32.mrf.mxu0
    %v5283 = vadd.f32 %v5114, %v5282
    %5284 = vmatmul.bf16.gmra.mxu0 %v1243
    %v5285 = vpop.f32.mrf.mxu0
    %v5286 = vadd.f32 %v5117, %v5285
    %v5287 = vpop.f32.mrf.mxu0
    %v5288 = vadd.f32 %v5119, %v5287
    %5289 = vmatmul.bf16.gmra.mxu0 %v1247
    %v5290 = vpop.f32.mrf.mxu0
    %v5291 = vadd.f32 %v5122, %v5290
    %v5292 = vpop.f32.mrf.mxu0
    %v5293 = vadd.f32 %v5124, %v5292
    %5294 = vmatmul.bf16.gmra.mxu0 %v1251
    %v5295 = vpop.f32.mrf.mxu0
    %v5296 = vadd.f32 %v5127, %v5295
    %v5297 = vpop.f32.mrf.mxu0
    %v5298 = vadd.f32 %v5129, %v5297
    %5299 = vmatmul.bf16.gmra.mxu0 %v1255
    %v5300 = vpop.f32.mrf.mxu0
    %v5301 = vadd.f32 %v5132, %v5300
    %v5302 = vpop.f32.mrf.mxu0
    %v5303 = vadd.f32 %v5134, %v5302
    %5304 = vmatmul.bf16.gmra.mxu0 %v1259
    %v5305 = vpop.f32.mrf.mxu0
    %v5306 = vadd.f32 %v5137, %v5305
    %v5307 = vpop.f32.mrf.mxu0
    %v5308 = vadd.f32 %v5139, %v5307
    %5309 = vmatmul.bf16.gmra.mxu0 %v1263
    %v5310 = vpop.f32.mrf.mxu0
    %v5311 = vadd.f32 %v5142, %v5310
    %v5312 = vpop.f32.mrf.mxu0
    %v5313 = vadd.f32 %v5144, %v5312
    %5314 = vmatmul.bf16.gmra.mxu0 %v1267
    %v5315 = vpop.f32.mrf.mxu0
    %v5316 = vadd.f32 %v5147, %v5315
    %v5317 = vpop.f32.mrf.mxu0
    %v5318 = vadd.f32 %v5149, %v5317
    %5319 = vmatmul.bf16.gmra.mxu0 %v1271
    %v5320 = vpop.f32.mrf.mxu0
    %v5321 = vadd.f32 %v5152, %v5320
    %v5322 = vpop.f32.mrf.mxu0
    %v5323 = vadd.f32 %v5154, %v5322
    %5324 = vmatmul.bf16.gmra.mxu0 %v1275
    %v5325 = vpop.f32.mrf.mxu0
    %v5326 = vadd.f32 %v5157, %v5325
    %v5327 = vpop.f32.mrf.mxu0
    %v5328 = vadd.f32 %v5159, %v5327
    %5329 = vdwg.mxu0
    %5330 = vmatpush.bf16.msra.mxu0 %v4648
    %5331 = vmatpush.bf16.msra.mxu0 %v4647
    %5332 = vmatpush.bf16.msra.mxu0 %v4646
    %5333 = vmatpush.bf16.msra.mxu0 %v4645
    %5334 = vmatpush.bf16.msra.mxu0 %v4644
    %5335 = vmatpush.bf16.msra.mxu0 %v4643
    %5336 = vmatpush.bf16.msra.mxu0 %v4642
    %5337 = vmatpush.bf16.msra.mxu0 %v4641
    %5338 = vmatmul.bf16.gmra.mxu0 %v1152
    %v5339 = vpop.f32.mrf.mxu0
    %v5340 = vadd.f32 %v5171, %v5339
    %v5341 = vpop.f32.mrf.mxu0
    %v5342 = vadd.f32 %v5173, %v5341
    %5343 = vmatmul.bf16.gmra.mxu0 %v1156
    %v5344 = vpop.f32.mrf.mxu0
    %v5345 = vadd.f32 %v5176, %v5344
    %v5346 = vpop.f32.mrf.mxu0
    %v5347 = vadd.f32 %v5178, %v5346
    %5348 = vmatmul.bf16.gmra.mxu0 %v1160
    %v5349 = vpop.f32.mrf.mxu0
    %v5350 = vadd.f32 %v5181, %v5349
    %v5351 = vpop.f32.mrf.mxu0
    %v5352 = vadd.f32 %v5183, %v5351
    %5353 = vmatmul.bf16.gmra.mxu0 %v1164
    %v5354 = vpop.f32.mrf.mxu0
    %v5355 = vadd.f32 %v5186, %v5354
    %v5356 = vpop.f32.mrf.mxu0
    %v5357 = vadd.f32 %v5188, %v5356
    %5358 = vmatmul.bf16.gmra.mxu0 %v1168
    %v5359 = vpop.f32.mrf.mxu0
    %v5360 = vadd.f32 %v5191, %v5359
    %v5361 = vpop.f32.mrf.mxu0
    %v5362 = vadd.f32 %v5193, %v5361
    %5363 = vmatmul.bf16.gmra.mxu0 %v1172
    %v5364 = vpop.f32.mrf.mxu0
    %v5365 = vadd.f32 %v5196, %v5364
    %v5366 = vpop.f32.mrf.mxu0
    %v5367 = vadd.f32 %v5198, %v5366
    %5368 = vmatmul.bf16.gmra.mxu0 %v1176
    %v5369 = vpop.f32.mrf.mxu0
    %v5370 = vadd.f32 %v5201, %v5369
    %v5371 = vpop.f32.mrf.mxu0
    %v5372 = vadd.f32 %v5203, %v5371
    %5373 = vmatmul.bf16.gmra.mxu0 %v1180
    %v5374 = vpop.f32.mrf.mxu0
    %v5375 = vadd.f32 %v5206, %v5374
    %v5376 = vpop.f32.mrf.mxu0
    %v5377 = vadd.f32 %v5208, %v5376
    %5378 = vmatmul.bf16.gmra.mxu0 %v1184
    %v5379 = vpop.f32.mrf.mxu0
    %v5380 = vadd.f32 %v5211, %v5379
    %v5381 = vpop.f32.mrf.mxu0
    %v5382 = vadd.f32 %v5213, %v5381
    %5383 = vmatmul.bf16.gmra.mxu0 %v1188
    %v5384 = vpop.f32.mrf.mxu0
    %v5385 = vadd.f32 %v5216, %v5384
    %v5386 = vpop.f32.mrf.mxu0
    %v5387 = vadd.f32 %v5218, %v5386
    %5388 = vmatmul.bf16.gmra.mxu0 %v1192
    %v5389 = vpop.f32.mrf.mxu0
    %v5390 = vadd.f32 %v5221, %v5389
    %v5391 = vpop.f32.mrf.mxu0
    %v5392 = vadd.f32 %v5223, %v5391
    %5393 = vmatmul.bf16.gmra.mxu0 %v1196
    %v5394 = vpop.f32.mrf.mxu0
    %v5395 = vadd.f32 %v5226, %v5394
    %v5396 = vpop.f32.mrf.mxu0
    %v5397 = vadd.f32 %v5228, %v5396
    %5398 = vmatmul.bf16.gmra.mxu0 %v1200
    %v5399 = vpop.f32.mrf.mxu0
    %v5400 = vadd.f32 %v5231, %v5399
    %v5401 = vpop.f32.mrf.mxu0
    %v5402 = vadd.f32 %v5233, %v5401
    %5403 = vmatmul.bf16.gmra.mxu0 %v1204
    %v5404 = vpop.f32.mrf.mxu0
    %v5405 = vadd.f32 %v5236, %v5404
    %v5406 = vpop.f32.mrf.mxu0
    %v5407 = vadd.f32 %v5238, %v5406
    %5408 = vmatmul.bf16.gmra.mxu0 %v1208
    %v5409 = vpop.f32.mrf.mxu0
    %v5410 = vadd.f32 %v5241, %v5409
    %v5411 = vpop.f32.mrf.mxu0
    %v5412 = vadd.f32 %v5243, %v5411
    %5413 = vmatmul.bf16.gmra.mxu0 %v1212
    %v5414 = vpop.f32.mrf.mxu0
    %v5415 = vadd.f32 %v5246, %v5414
    %v5416 = vpop.f32.mrf.mxu0
    %v5417 = vadd.f32 %v5248, %v5416
    %5418 = vmatmul.bf16.gmra.mxu0 %v1216
    %v5419 = vpop.f32.mrf.mxu0
    %v5420 = vadd.f32 %v5251, %v5419
    %v5421 = vpop.f32.mrf.mxu0
    %v5422 = vadd.f32 %v5253, %v5421
    %5423 = vmatmul.bf16.gmra.mxu0 %v1220
    %v5424 = vpop.f32.mrf.mxu0
    %v5425 = vadd.f32 %v5256, %v5424
    %v5426 = vpop.f32.mrf.mxu0
    %v5427 = vadd.f32 %v5258, %v5426
    %5428 = vmatmul.bf16.gmra.mxu0 %v1224
    %v5429 = vpop.f32.mrf.mxu0
    %v5430 = vadd.f32 %v5261, %v5429
    %v5431 = vpop.f32.mrf.mxu0
    %v5432 = vadd.f32 %v5263, %v5431
    %5433 = vmatmul.bf16.gmra.mxu0 %v1228
    %v5434 = vpop.f32.mrf.mxu0
    %v5435 = vadd.f32 %v5266, %v5434
    %v5436 = vpop.f32.mrf.mxu0
    %v5437 = vadd.f32 %v5268, %v5436
    %5438 = vmatmul.bf16.gmra.mxu0 %v1232
    %v5439 = vpop.f32.mrf.mxu0
    %v5440 = vadd.f32 %v5271, %v5439
    %v5441 = vpop.f32.mrf.mxu0
    %v5442 = vadd.f32 %v5273, %v5441
    %5443 = vmatmul.bf16.gmra.mxu0 %v1236
    %v5444 = vpop.f32.mrf.mxu0
    %v5445 = vadd.f32 %v5276, %v5444
    %v5446 = vpop.f32.mrf.mxu0
    %v5447 = vadd.f32 %v5278, %v5446
    %5448 = vmatmul.bf16.gmra.mxu0 %v1240
    %v5449 = vpop.f32.mrf.mxu0
    %v5450 = vadd.f32 %v5281, %v5449
    %v5451 = vpop.f32.mrf.mxu0
    %v5452 = vadd.f32 %v5283, %v5451
    %5453 = vmatmul.bf16.gmra.mxu0 %v1244
    %v5454 = vpop.f32.mrf.mxu0
    %v5455 = vadd.f32 %v5286, %v5454
    %v5456 = vpop.f32.mrf.mxu0
    %v5457 = vadd.f32 %v5288, %v5456
    %5458 = vmatmul.bf16.gmra.mxu0 %v1248
    %v5459 = vpop.f32.mrf.mxu0
    %v5460 = vadd.f32 %v5291, %v5459
    %v5461 = vpop.f32.mrf.mxu0
    %v5462 = vadd.f32 %v5293, %v5461
    %5463 = vmatmul.bf16.gmra.mxu0 %v1252
    %v5464 = vpop.f32.mrf.mxu0
    %v5465 = vadd.f32 %v5296, %v5464
    %v5466 = vpop.f32.mrf.mxu0
    %v5467 = vadd.f32 %v5298, %v5466
    %5468 = vmatmul.bf16.gmra.mxu0 %v1256
    %v5469 = vpop.f32.mrf.mxu0
    %v5470 = vadd.f32 %v5301, %v5469
    %v5471 = vpop.f32.mrf.mxu0
    %v5472 = vadd.f32 %v5303, %v5471
    %5473 = vmatmul.bf16.gmra.mxu0 %v1260
    %v5474 = vpop.f32.mrf.mxu0
    %v5475 = vadd.f32 %v5306, %v5474
    %v5476 = vpop.f32.mrf.mxu0
    %v5477 = vadd.f32 %v5308, %v5476
    %5478 = vmatmul.bf16.gmra.mxu0 %v1264
    %v5479 = vpop.f32.mrf.mxu0
    %v5480 = vadd.f32 %v5311, %v5479
    %v5481 = vpop.f32.mrf.mxu0
    %v5482 = vadd.f32 %v5313, %v5481
    %5483 = vmatmul.bf16.gmra.mxu0 %v1268
    %v5484 = vpop.f32.mrf.mxu0
    %v5485 = vadd.f32 %v5316, %v5484
    %v5486 = vpop.f32.mrf.mxu0
    %v5487 = vadd.f32 %v5318, %v5486
    %5488 = vmatmul.bf16.gmra.mxu0 %v1272
    %v5489 = vpop.f32.mrf.mxu0
    %v5490 = vadd.f32 %v5321, %v5489
    %v5491 = vpop.f32.mrf.mxu0
    %v5492 = vadd.f32 %v5323, %v5491
    %5493 = vmatmul.bf16.gmra.mxu0 %v1276
    %v5494 = vpop.f32.mrf.mxu0
    %v5495 = vadd.f32 %v5326, %v5494
    %v5496 = vpop.f32.mrf.mxu0
    %v5497 = vadd.f32 %v5328, %v5496
    %5498 = vdwg.mxu0
    %v5499 = vlaneseq
    %v5500 = vand.u32 %v5499, 127
    %vm5501 = vcmp.lt.s32.totalorder %v5500, 10
    %v5502 = vsel %vm5501, %v5340, -1e+30
    %v5503 = vsel %vm5501, %v5342, -1e+30
    %v5504 = vsel %vm5501, %v5345, -1e+30
    %v5505 = vsel %vm5501, %v5347, -1e+30
    %v5506 = vsel %vm5501, %v5350, -1e+30
    %v5507 = vsel %vm5501, %v5352, -1e+30
    %v5508 = vsel %vm5501, %v5355, -1e+30
    %v5509 = vsel %vm5501, %v5357, -1e+30
    %v5510 = vsel %vm5501, %v5360, -1e+30
    %v5511 = vsel %vm5501, %v5362, -1e+30
    %v5512 = vsel %vm5501, %v5365, -1e+30
    %v5513 = vsel %vm5501, %v5367, -1e+30
    %v5514 = vsel %vm5501, %v5370, -1e+30
    %v5515 = vsel %vm5501, %v5372, -1e+30
    %v5516 = vsel %vm5501, %v5375, -1e+30
    %v5517 = vsel %vm5501, %v5377, -1e+30
    %v5518 = vsel %vm5501, %v5380, -1e+30
    %v5519 = vsel %vm5501, %v5382, -1e+30
    %v5520 = vsel %vm5501, %v5385, -1e+30
    %v5521 = vsel %vm5501, %v5387, -1e+30
    %v5522 = vsel %vm5501, %v5390, -1e+30
    %v5523 = vsel %vm5501, %v5392, -1e+30
    %v5524 = vsel %vm5501, %v5395, -1e+30
    %v5525 = vsel %vm5501, %v5397, -1e+30
    %v5526 = vsel %vm5501, %v5400, -1e+30
    %v5527 = vsel %vm5501, %v5402, -1e+30
    %v5528 = vsel %vm5501, %v5405, -1e+30
    %v5529 = vsel %vm5501, %v5407, -1e+30
    %v5530 = vsel %vm5501, %v5410, -1e+30
    %v5531 = vsel %vm5501, %v5412, -1e+30
    %v5532 = vsel %vm5501, %v5415, -1e+30
    %v5533 = vsel %vm5501, %v5417, -1e+30
    %v5534 = vsel %vm5501, %v5420, -1e+30
    %v5535 = vsel %vm5501, %v5422, -1e+30
    %v5536 = vsel %vm5501, %v5425, -1e+30
    %v5537 = vsel %vm5501, %v5427, -1e+30
    %v5538 = vsel %vm5501, %v5430, -1e+30
    %v5539 = vsel %vm5501, %v5432, -1e+30
    %v5540 = vsel %vm5501, %v5435, -1e+30
    %v5541 = vsel %vm5501, %v5437, -1e+30
    %v5542 = vsel %vm5501, %v5440, -1e+30
    %v5543 = vsel %vm5501, %v5442, -1e+30
    %v5544 = vsel %vm5501, %v5445, -1e+30
    %v5545 = vsel %vm5501, %v5447, -1e+30
    %v5546 = vsel %vm5501, %v5450, -1e+30
    %v5547 = vsel %vm5501, %v5452, -1e+30
    %v5548 = vsel %vm5501, %v5455, -1e+30
    %v5549 = vsel %vm5501, %v5457, -1e+30
    %v5550 = vsel %vm5501, %v5460, -1e+30
    %v5551 = vsel %vm5501, %v5462, -1e+30
    %v5552 = vsel %vm5501, %v5465, -1e+30
    %v5553 = vsel %vm5501, %v5467, -1e+30
    %v5554 = vsel %vm5501, %v5470, -1e+30
    %v5555 = vsel %vm5501, %v5472, -1e+30
    %v5556 = vsel %vm5501, %v5475, -1e+30
    %v5557 = vsel %vm5501, %v5477, -1e+30
    %v5558 = vsel %vm5501, %v5480, -1e+30
    %v5559 = vsel %vm5501, %v5482, -1e+30
    %v5560 = vsel %vm5501, %v5485, -1e+30
    %v5561 = vsel %vm5501, %v5487, -1e+30
    %v5562 = vsel %vm5501, %v5490, -1e+30
    %v5563 = vsel %vm5501, %v5492, -1e+30
    %v5564 = vsel %vm5501, %v5495, -1e+30
    %v5565 = vsel %vm5501, %v5497, -1e+30
    %5566 = vmax.xlane.f32.xlu0 %v5502
    %v5567 = vpop.xlane.xlu0 %5566
    %5568 = vmax.xlane.f32.xlu0 %v5503
    %v5569 = vpop.xlane.xlu0 %5568
    %5570 = vmax.xlane.f32.xlu0 %v5504
    %v5571 = vpop.xlane.xlu0 %5570
    %5572 = vmax.xlane.f32.xlu0 %v5505
    %v5573 = vpop.xlane.xlu0 %5572
    %5574 = vmax.xlane.f32.xlu0 %v5506
    %v5575 = vpop.xlane.xlu0 %5574
    %5576 = vmax.xlane.f32.xlu0 %v5507
    %v5577 = vpop.xlane.xlu0 %5576
    %5578 = vmax.xlane.f32.xlu0 %v5508
    %v5579 = vpop.xlane.xlu0 %5578
    %5580 = vmax.xlane.f32.xlu0 %v5509
    %v5581 = vpop.xlane.xlu0 %5580
    %5582 = vmax.xlane.f32.xlu0 %v5510
    %v5583 = vpop.xlane.xlu0 %5582
    %5584 = vmax.xlane.f32.xlu0 %v5511
    %v5585 = vpop.xlane.xlu0 %5584
    %5586 = vmax.xlane.f32.xlu0 %v5512
    %v5587 = vpop.xlane.xlu0 %5586
    %5588 = vmax.xlane.f32.xlu0 %v5513
    %v5589 = vpop.xlane.xlu0 %5588
    %5590 = vmax.xlane.f32.xlu0 %v5514
    %v5591 = vpop.xlane.xlu0 %5590
    %5592 = vmax.xlane.f32.xlu0 %v5515
    %v5593 = vpop.xlane.xlu0 %5592
    %5594 = vmax.xlane.f32.xlu0 %v5516
    %v5595 = vpop.xlane.xlu0 %5594
    %5596 = vmax.xlane.f32.xlu0 %v5517
    %v5597 = vpop.xlane.xlu0 %5596
    %5598 = vmax.xlane.f32.xlu0 %v5518
    %v5599 = vpop.xlane.xlu0 %5598
    %5600 = vmax.xlane.f32.xlu0 %v5519
    %v5601 = vpop.xlane.xlu0 %5600
    %5602 = vmax.xlane.f32.xlu0 %v5520
    %v5603 = vpop.xlane.xlu0 %5602
    %5604 = vmax.xlane.f32.xlu0 %v5521
    %v5605 = vpop.xlane.xlu0 %5604
    %5606 = vmax.xlane.f32.xlu0 %v5522
    %v5607 = vpop.xlane.xlu0 %5606
    %5608 = vmax.xlane.f32.xlu0 %v5523
    %v5609 = vpop.xlane.xlu0 %5608
    %5610 = vmax.xlane.f32.xlu0 %v5524
    %v5611 = vpop.xlane.xlu0 %5610
    %5612 = vmax.xlane.f32.xlu0 %v5525
    %v5613 = vpop.xlane.xlu0 %5612
    %5614 = vmax.xlane.f32.xlu0 %v5526
    %v5615 = vpop.xlane.xlu0 %5614
    %5616 = vmax.xlane.f32.xlu0 %v5527
    %v5617 = vpop.xlane.xlu0 %5616
    %5618 = vmax.xlane.f32.xlu0 %v5528
    %v5619 = vpop.xlane.xlu0 %5618
    %5620 = vmax.xlane.f32.xlu0 %v5529
    %v5621 = vpop.xlane.xlu0 %5620
    %5622 = vmax.xlane.f32.xlu0 %v5530
    %v5623 = vpop.xlane.xlu0 %5622
    %5624 = vmax.xlane.f32.xlu0 %v5531
    %v5625 = vpop.xlane.xlu0 %5624
    %5626 = vmax.xlane.f32.xlu0 %v5532
    %v5627 = vpop.xlane.xlu0 %5626
    %5628 = vmax.xlane.f32.xlu0 %v5533
    %v5629 = vpop.xlane.xlu0 %5628
    %5630 = vmax.xlane.f32.xlu0 %v5534
    %v5631 = vpop.xlane.xlu0 %5630
    %5632 = vmax.xlane.f32.xlu0 %v5535
    %v5633 = vpop.xlane.xlu0 %5632
    %5634 = vmax.xlane.f32.xlu0 %v5536
    %v5635 = vpop.xlane.xlu0 %5634
    %5636 = vmax.xlane.f32.xlu0 %v5537
    %v5637 = vpop.xlane.xlu0 %5636
    %5638 = vmax.xlane.f32.xlu0 %v5538
    %v5639 = vpop.xlane.xlu0 %5638
    %5640 = vmax.xlane.f32.xlu0 %v5539
    %v5641 = vpop.xlane.xlu0 %5640
    %5642 = vmax.xlane.f32.xlu0 %v5540
    %v5643 = vpop.xlane.xlu0 %5642
    %5644 = vmax.xlane.f32.xlu0 %v5541
    %v5645 = vpop.xlane.xlu0 %5644
    %5646 = vmax.xlane.f32.xlu0 %v5542
    %v5647 = vpop.xlane.xlu0 %5646
    %5648 = vmax.xlane.f32.xlu0 %v5543
    %v5649 = vpop.xlane.xlu0 %5648
    %5650 = vmax.xlane.f32.xlu0 %v5544
    %v5651 = vpop.xlane.xlu0 %5650
    %5652 = vmax.xlane.f32.xlu0 %v5545
    %v5653 = vpop.xlane.xlu0 %5652
    %5654 = vmax.xlane.f32.xlu0 %v5546
    %v5655 = vpop.xlane.xlu0 %5654
    %5656 = vmax.xlane.f32.xlu0 %v5547
    %v5657 = vpop.xlane.xlu0 %5656
    %5658 = vmax.xlane.f32.xlu0 %v5548
    %v5659 = vpop.xlane.xlu0 %5658
    %5660 = vmax.xlane.f32.xlu0 %v5549
    %v5661 = vpop.xlane.xlu0 %5660
    %5662 = vmax.xlane.f32.xlu0 %v5550
    %v5663 = vpop.xlane.xlu0 %5662
    %5664 = vmax.xlane.f32.xlu0 %v5551
    %v5665 = vpop.xlane.xlu0 %5664
    %5666 = vmax.xlane.f32.xlu0 %v5552
    %v5667 = vpop.xlane.xlu0 %5666
    %5668 = vmax.xlane.f32.xlu0 %v5553
    %v5669 = vpop.xlane.xlu0 %5668
    %5670 = vmax.xlane.f32.xlu0 %v5554
    %v5671 = vpop.xlane.xlu0 %5670
    %5672 = vmax.xlane.f32.xlu0 %v5555
    %v5673 = vpop.xlane.xlu0 %5672
    %5674 = vmax.xlane.f32.xlu0 %v5556
    %v5675 = vpop.xlane.xlu0 %5674
    %5676 = vmax.xlane.f32.xlu0 %v5557
    %v5677 = vpop.xlane.xlu0 %5676
    %5678 = vmax.xlane.f32.xlu0 %v5558
    %v5679 = vpop.xlane.xlu0 %5678
    %5680 = vmax.xlane.f32.xlu0 %v5559
    %v5681 = vpop.xlane.xlu0 %5680
    %5682 = vmax.xlane.f32.xlu0 %v5560
    %v5683 = vpop.xlane.xlu0 %5682
    %5684 = vmax.xlane.f32.xlu0 %v5561
    %v5685 = vpop.xlane.xlu0 %5684
    %5686 = vmax.xlane.f32.xlu0 %v5562
    %v5687 = vpop.xlane.xlu0 %5686
    %5688 = vmax.xlane.f32.xlu0 %v5563
    %v5689 = vpop.xlane.xlu0 %5688
    %5690 = vmax.xlane.f32.xlu0 %v5564
    %v5691 = vpop.xlane.xlu0 %5690
    %5692 = vmax.xlane.f32.xlu0 %v5565
    %v5693 = vpop.xlane.xlu0 %5692
    %v5694 = vsub.f32 %v5502, %v5567
    %v5695 = vsub.f32 %v5503, %v5569
    %v5696 = vsub.f32 %v5504, %v5571
    %v5697 = vsub.f32 %v5505, %v5573
    %v5698 = vsub.f32 %v5506, %v5575
    %v5699 = vsub.f32 %v5507, %v5577
    %v5700 = vsub.f32 %v5508, %v5579
    %v5701 = vsub.f32 %v5509, %v5581
    %v5702 = vsub.f32 %v5510, %v5583
    %v5703 = vsub.f32 %v5511, %v5585
    %v5704 = vsub.f32 %v5512, %v5587
    %v5705 = vsub.f32 %v5513, %v5589
    %v5706 = vsub.f32 %v5514, %v5591
    %v5707 = vsub.f32 %v5515, %v5593
    %v5708 = vsub.f32 %v5516, %v5595
    %v5709 = vsub.f32 %v5517, %v5597
    %v5710 = vsub.f32 %v5518, %v5599
    %v5711 = vsub.f32 %v5519, %v5601
    %v5712 = vsub.f32 %v5520, %v5603
    %v5713 = vsub.f32 %v5521, %v5605
    %v5714 = vsub.f32 %v5522, %v5607
    %v5715 = vsub.f32 %v5523, %v5609
    %v5716 = vsub.f32 %v5524, %v5611
    %v5717 = vsub.f32 %v5525, %v5613
    %v5718 = vsub.f32 %v5526, %v5615
    %v5719 = vsub.f32 %v5527, %v5617
    %v5720 = vsub.f32 %v5528, %v5619
    %v5721 = vsub.f32 %v5529, %v5621
    %v5722 = vsub.f32 %v5530, %v5623
    %v5723 = vsub.f32 %v5531, %v5625
    %v5724 = vsub.f32 %v5532, %v5627
    %v5725 = vsub.f32 %v5533, %v5629
    %v5726 = vsub.f32 %v5534, %v5631
    %v5727 = vsub.f32 %v5535, %v5633
    %v5728 = vsub.f32 %v5536, %v5635
    %v5729 = vsub.f32 %v5537, %v5637
    %v5730 = vsub.f32 %v5538, %v5639
    %v5731 = vsub.f32 %v5539, %v5641
    %v5732 = vsub.f32 %v5540, %v5643
    %v5733 = vsub.f32 %v5541, %v5645
    %v5734 = vsub.f32 %v5542, %v5647
    %v5735 = vsub.f32 %v5543, %v5649
    %v5736 = vsub.f32 %v5544, %v5651
    %v5737 = vsub.f32 %v5545, %v5653
    %v5738 = vsub.f32 %v5546, %v5655
    %v5739 = vsub.f32 %v5547, %v5657
    %v5740 = vsub.f32 %v5548, %v5659
    %v5741 = vsub.f32 %v5549, %v5661
    %v5742 = vsub.f32 %v5550, %v5663
    %v5743 = vsub.f32 %v5551, %v5665
    %v5744 = vsub.f32 %v5552, %v5667
    %v5745 = vsub.f32 %v5553, %v5669
    %v5746 = vsub.f32 %v5554, %v5671
    %v5747 = vsub.f32 %v5555, %v5673
    %v5748 = vsub.f32 %v5556, %v5675
    %v5749 = vsub.f32 %v5557, %v5677
    %v5750 = vsub.f32 %v5558, %v5679
    %v5751 = vsub.f32 %v5559, %v5681
    %v5752 = vsub.f32 %v5560, %v5683
    %v5753 = vsub.f32 %v5561, %v5685
    %v5754 = vsub.f32 %v5562, %v5687
    %v5755 = vsub.f32 %v5563, %v5689
    %v5756 = vsub.f32 %v5564, %v5691
    %v5757 = vsub.f32 %v5565, %v5693
    %v5758 = vmul.f32 %v5694, 1.442695
    %v5759 = vpow.pop %v5758
    %v5760 = vmul.f32 %v5695, 1.442695
    %v5761 = vpow.pop %v5760
    %v5762 = vmul.f32 %v5696, 1.442695
    %v5763 = vpow.pop %v5762
    %v5764 = vmul.f32 %v5697, 1.442695
    %v5765 = vpow.pop %v5764
    %v5766 = vmul.f32 %v5698, 1.442695
    %v5767 = vpow.pop %v5766
    %v5768 = vmul.f32 %v5699, 1.442695
    %v5769 = vpow.pop %v5768
    %v5770 = vmul.f32 %v5700, 1.442695
    %v5771 = vpow.pop %v5770
    %v5772 = vmul.f32 %v5701, 1.442695
    %v5773 = vpow.pop %v5772
    %v5774 = vmul.f32 %v5702, 1.442695
    %v5775 = vpow.pop %v5774
    %v5776 = vmul.f32 %v5703, 1.442695
    %v5777 = vpow.pop %v5776
    %v5778 = vmul.f32 %v5704, 1.442695
    %v5779 = vpow.pop %v5778
    %v5780 = vmul.f32 %v5705, 1.442695
    %v5781 = vpow.pop %v5780
    %v5782 = vmul.f32 %v5706, 1.442695
    %v5783 = vpow.pop %v5782
    %v5784 = vmul.f32 %v5707, 1.442695
    %v5785 = vpow.pop %v5784
    %v5786 = vmul.f32 %v5708, 1.442695
    %v5787 = vpow.pop %v5786
    %v5788 = vmul.f32 %v5709, 1.442695
    %v5789 = vpow.pop %v5788
    %v5790 = vmul.f32 %v5710, 1.442695
    %v5791 = vpow.pop %v5790
    %v5792 = vmul.f32 %v5711, 1.442695
    %v5793 = vpow.pop %v5792
    %v5794 = vmul.f32 %v5712, 1.442695
    %v5795 = vpow.pop %v5794
    %v5796 = vmul.f32 %v5713, 1.442695
    %v5797 = vpow.pop %v5796
    %v5798 = vmul.f32 %v5714, 1.442695
    %v5799 = vpow.pop %v5798
    %v5800 = vmul.f32 %v5715, 1.442695
    %v5801 = vpow.pop %v5800
    %v5802 = vmul.f32 %v5716, 1.442695
    %v5803 = vpow.pop %v5802
    %v5804 = vmul.f32 %v5717, 1.442695
    %v5805 = vpow.pop %v5804
    %v5806 = vmul.f32 %v5718, 1.442695
    %v5807 = vpow.pop %v5806
    %v5808 = vmul.f32 %v5719, 1.442695
    %v5809 = vpow.pop %v5808
    %v5810 = vmul.f32 %v5720, 1.442695
    %v5811 = vpow.pop %v5810
    %v5812 = vmul.f32 %v5721, 1.442695
    %v5813 = vpow.pop %v5812
    %v5814 = vmul.f32 %v5722, 1.442695
    %v5815 = vpow.pop %v5814
    %v5816 = vmul.f32 %v5723, 1.442695
    %v5817 = vpow.pop %v5816
    %v5818 = vmul.f32 %v5724, 1.442695
    %v5819 = vpow.pop %v5818
    %v5820 = vmul.f32 %v5725, 1.442695
    %v5821 = vpow.pop %v5820
    %v5822 = vmul.f32 %v5726, 1.442695
    %v5823 = vpow.pop %v5822
    %v5824 = vmul.f32 %v5727, 1.442695
    %v5825 = vpow.pop %v5824
    %v5826 = vmul.f32 %v5728, 1.442695
    %v5827 = vpow.pop %v5826
    %v5828 = vmul.f32 %v5729, 1.442695
    %v5829 = vpow.pop %v5828
    %v5830 = vmul.f32 %v5730, 1.442695
    %v5831 = vpow.pop %v5830
    %v5832 = vmul.f32 %v5731, 1.442695
    %v5833 = vpow.pop %v5832
    %v5834 = vmul.f32 %v5732, 1.442695
    %v5835 = vpow.pop %v5834
    %v5836 = vmul.f32 %v5733, 1.442695
    %v5837 = vpow.pop %v5836
    %v5838 = vmul.f32 %v5734, 1.442695
    %v5839 = vpow.pop %v5838
    %v5840 = vmul.f32 %v5735, 1.442695
    %v5841 = vpow.pop %v5840
    %v5842 = vmul.f32 %v5736, 1.442695
    %v5843 = vpow.pop %v5842
    %v5844 = vmul.f32 %v5737, 1.442695
    %v5845 = vpow.pop %v5844
    %v5846 = vmul.f32 %v5738, 1.442695
    %v5847 = vpow.pop %v5846
    %v5848 = vmul.f32 %v5739, 1.442695
    %v5849 = vpow.pop %v5848
    %v5850 = vmul.f32 %v5740, 1.442695
    %v5851 = vpow.pop %v5850
    %v5852 = vmul.f32 %v5741, 1.442695
    %v5853 = vpow.pop %v5852
    %v5854 = vmul.f32 %v5742, 1.442695
    %v5855 = vpow.pop %v5854
    %v5856 = vmul.f32 %v5743, 1.442695
    %v5857 = vpow.pop %v5856
    %v5858 = vmul.f32 %v5744, 1.442695
    %v5859 = vpow.pop %v5858
    %v5860 = vmul.f32 %v5745, 1.442695
    %v5861 = vpow.pop %v5860
    %v5862 = vmul.f32 %v5746, 1.442695
    %v5863 = vpow.pop %v5862
    %v5864 = vmul.f32 %v5747, 1.442695
    %v5865 = vpow.pop %v5864
    %v5866 = vmul.f32 %v5748, 1.442695
    %v5867 = vpow.pop %v5866
    %v5868 = vmul.f32 %v5749, 1.442695
    %v5869 = vpow.pop %v5868
    %v5870 = vmul.f32 %v5750, 1.442695
    %v5871 = vpow.pop %v5870
    %v5872 = vmul.f32 %v5751, 1.442695
    %v5873 = vpow.pop %v5872
    %v5874 = vmul.f32 %v5752, 1.442695
    %v5875 = vpow.pop %v5874
    %v5876 = vmul.f32 %v5753, 1.442695
    %v5877 = vpow.pop %v5876
    %v5878 = vmul.f32 %v5754, 1.442695
    %v5879 = vpow.pop %v5878
    %v5880 = vmul.f32 %v5755, 1.442695
    %v5881 = vpow.pop %v5880
    %v5882 = vmul.f32 %v5756, 1.442695
    %v5883 = vpow.pop %v5882
    %v5884 = vmul.f32 %v5757, 1.442695
    %v5885 = vpow.pop %v5884
    %5886 = vadd.xlane.f32.xlu0 %v5759
    %v5887 = vpop.xlane.xlu0 %5886
    %5888 = vadd.xlane.f32.xlu0 %v5761
    %v5889 = vpop.xlane.xlu0 %5888
    %5890 = vadd.xlane.f32.xlu0 %v5763
    %v5891 = vpop.xlane.xlu0 %5890
    %5892 = vadd.xlane.f32.xlu0 %v5765
    %v5893 = vpop.xlane.xlu0 %5892
    %5894 = vadd.xlane.f32.xlu0 %v5767
    %v5895 = vpop.xlane.xlu0 %5894
    %5896 = vadd.xlane.f32.xlu0 %v5769
    %v5897 = vpop.xlane.xlu0 %5896
    %5898 = vadd.xlane.f32.xlu0 %v5771
    %v5899 = vpop.xlane.xlu0 %5898
    %5900 = vadd.xlane.f32.xlu0 %v5773
    %v5901 = vpop.xlane.xlu0 %5900
    %5902 = vadd.xlane.f32.xlu0 %v5775
    %v5903 = vpop.xlane.xlu0 %5902
    %5904 = vadd.xlane.f32.xlu0 %v5777
    %v5905 = vpop.xlane.xlu0 %5904
    %5906 = vadd.xlane.f32.xlu0 %v5779
    %v5907 = vpop.xlane.xlu0 %5906
    %5908 = vadd.xlane.f32.xlu0 %v5781
    %v5909 = vpop.xlane.xlu0 %5908
    %5910 = vadd.xlane.f32.xlu0 %v5783
    %v5911 = vpop.xlane.xlu0 %5910
    %5912 = vadd.xlane.f32.xlu0 %v5785
    %v5913 = vpop.xlane.xlu0 %5912
    %5914 = vadd.xlane.f32.xlu0 %v5787
    %v5915 = vpop.xlane.xlu0 %5914
    %5916 = vadd.xlane.f32.xlu0 %v5789
    %v5917 = vpop.xlane.xlu0 %5916
    %5918 = vadd.xlane.f32.xlu0 %v5791
    %v5919 = vpop.xlane.xlu0 %5918
    %5920 = vadd.xlane.f32.xlu0 %v5793
    %v5921 = vpop.xlane.xlu0 %5920
    %5922 = vadd.xlane.f32.xlu0 %v5795
    %v5923 = vpop.xlane.xlu0 %5922
    %5924 = vadd.xlane.f32.xlu0 %v5797
    %v5925 = vpop.xlane.xlu0 %5924
    %5926 = vadd.xlane.f32.xlu0 %v5799
    %v5927 = vpop.xlane.xlu0 %5926
    %5928 = vadd.xlane.f32.xlu0 %v5801
    %v5929 = vpop.xlane.xlu0 %5928
    %5930 = vadd.xlane.f32.xlu0 %v5803
    %v5931 = vpop.xlane.xlu0 %5930
    %5932 = vadd.xlane.f32.xlu0 %v5805
    %v5933 = vpop.xlane.xlu0 %5932
    %5934 = vadd.xlane.f32.xlu0 %v5807
    %v5935 = vpop.xlane.xlu0 %5934
    %5936 = vadd.xlane.f32.xlu0 %v5809
    %v5937 = vpop.xlane.xlu0 %5936
    %5938 = vadd.xlane.f32.xlu0 %v5811
    %v5939 = vpop.xlane.xlu0 %5938
    %5940 = vadd.xlane.f32.xlu0 %v5813
    %v5941 = vpop.xlane.xlu0 %5940
    %5942 = vadd.xlane.f32.xlu0 %v5815
    %v5943 = vpop.xlane.xlu0 %5942
    %5944 = vadd.xlane.f32.xlu0 %v5817
    %v5945 = vpop.xlane.xlu0 %5944
    %5946 = vadd.xlane.f32.xlu0 %v5819
    %v5947 = vpop.xlane.xlu0 %5946
    %5948 = vadd.xlane.f32.xlu0 %v5821
    %v5949 = vpop.xlane.xlu0 %5948
    %5950 = vadd.xlane.f32.xlu0 %v5823
    %v5951 = vpop.xlane.xlu0 %5950
    %5952 = vadd.xlane.f32.xlu0 %v5825
    %v5953 = vpop.xlane.xlu0 %5952
    %5954 = vadd.xlane.f32.xlu0 %v5827
    %v5955 = vpop.xlane.xlu0 %5954
    %5956 = vadd.xlane.f32.xlu0 %v5829
    %v5957 = vpop.xlane.xlu0 %5956
    %5958 = vadd.xlane.f32.xlu0 %v5831
    %v5959 = vpop.xlane.xlu0 %5958
    %5960 = vadd.xlane.f32.xlu0 %v5833
    %v5961 = vpop.xlane.xlu0 %5960
    %5962 = vadd.xlane.f32.xlu0 %v5835
    %v5963 = vpop.xlane.xlu0 %5962
    %5964 = vadd.xlane.f32.xlu0 %v5837
    %v5965 = vpop.xlane.xlu0 %5964
    %5966 = vadd.xlane.f32.xlu0 %v5839
    %v5967 = vpop.xlane.xlu0 %5966
    %5968 = vadd.xlane.f32.xlu0 %v5841
    %v5969 = vpop.xlane.xlu0 %5968
    %5970 = vadd.xlane.f32.xlu0 %v5843
    %v5971 = vpop.xlane.xlu0 %5970
    %5972 = vadd.xlane.f32.xlu0 %v5845
    %v5973 = vpop.xlane.xlu0 %5972
    %5974 = vadd.xlane.f32.xlu0 %v5847
    %v5975 = vpop.xlane.xlu0 %5974
    %5976 = vadd.xlane.f32.xlu0 %v5849
    %v5977 = vpop.xlane.xlu0 %5976
    %5978 = vadd.xlane.f32.xlu0 %v5851
    %v5979 = vpop.xlane.xlu0 %5978
    %5980 = vadd.xlane.f32.xlu0 %v5853
    %v5981 = vpop.xlane.xlu0 %5980
    %5982 = vadd.xlane.f32.xlu0 %v5855
    %v5983 = vpop.xlane.xlu0 %5982
    %5984 = vadd.xlane.f32.xlu0 %v5857
    %v5985 = vpop.xlane.xlu0 %5984
    %5986 = vadd.xlane.f32.xlu0 %v5859
    %v5987 = vpop.xlane.xlu0 %5986
    %5988 = vadd.xlane.f32.xlu0 %v5861
    %v5989 = vpop.xlane.xlu0 %5988
    %5990 = vadd.xlane.f32.xlu0 %v5863
    %v5991 = vpop.xlane.xlu0 %5990
    %5992 = vadd.xlane.f32.xlu0 %v5865
    %v5993 = vpop.xlane.xlu0 %5992
    %5994 = vadd.xlane.f32.xlu0 %v5867
    %v5995 = vpop.xlane.xlu0 %5994
    %5996 = vadd.xlane.f32.xlu0 %v5869
    %v5997 = vpop.xlane.xlu0 %5996
    %5998 = vadd.xlane.f32.xlu0 %v5871
    %v5999 = vpop.xlane.xlu0 %5998
    %6000 = vadd.xlane.f32.xlu0 %v5873
    %v6001 = vpop.xlane.xlu0 %6000
    %6002 = vadd.xlane.f32.xlu0 %v5875
    %v6003 = vpop.xlane.xlu0 %6002
    %6004 = vadd.xlane.f32.xlu0 %v5877
    %v6005 = vpop.xlane.xlu0 %6004
    %6006 = vadd.xlane.f32.xlu0 %v5879
    %v6007 = vpop.xlane.xlu0 %6006
    %6008 = vadd.xlane.f32.xlu0 %v5881
    %v6009 = vpop.xlane.xlu0 %6008
    %6010 = vadd.xlane.f32.xlu0 %v5883
    %v6011 = vpop.xlane.xlu0 %6010
    %6012 = vadd.xlane.f32.xlu0 %v5885
    %v6013 = vpop.xlane.xlu0 %6012
    %v6014 = vlog2.pop %v5887
    %v6015 = vmul.f32 %v6014, 0.6931472
    %v6016 = vlog2.pop %v5889
    %v6017 = vmul.f32 %v6016, 0.6931472
    %v6018 = vlog2.pop %v5891
    %v6019 = vmul.f32 %v6018, 0.6931472
    %v6020 = vlog2.pop %v5893
    %v6021 = vmul.f32 %v6020, 0.6931472
    %v6022 = vlog2.pop %v5895
    %v6023 = vmul.f32 %v6022, 0.6931472
    %v6024 = vlog2.pop %v5897
    %v6025 = vmul.f32 %v6024, 0.6931472
    %v6026 = vlog2.pop %v5899
    %v6027 = vmul.f32 %v6026, 0.6931472
    %v6028 = vlog2.pop %v5901
    %v6029 = vmul.f32 %v6028, 0.6931472
    %v6030 = vlog2.pop %v5903
    %v6031 = vmul.f32 %v6030, 0.6931472
    %v6032 = vlog2.pop %v5905
    %v6033 = vmul.f32 %v6032, 0.6931472
    %v6034 = vlog2.pop %v5907
    %v6035 = vmul.f32 %v6034, 0.6931472
    %v6036 = vlog2.pop %v5909
    %v6037 = vmul.f32 %v6036, 0.6931472
    %v6038 = vlog2.pop %v5911
    %v6039 = vmul.f32 %v6038, 0.6931472
    %v6040 = vlog2.pop %v5913
    %v6041 = vmul.f32 %v6040, 0.6931472
    %v6042 = vlog2.pop %v5915
    %v6043 = vmul.f32 %v6042, 0.6931472
    %v6044 = vlog2.pop %v5917
    %v6045 = vmul.f32 %v6044, 0.6931472
    %v6046 = vlog2.pop %v5919
    %v6047 = vmul.f32 %v6046, 0.6931472
    %v6048 = vlog2.pop %v5921
    %v6049 = vmul.f32 %v6048, 0.6931472
    %v6050 = vlog2.pop %v5923
    %v6051 = vmul.f32 %v6050, 0.6931472
    %v6052 = vlog2.pop %v5925
    %v6053 = vmul.f32 %v6052, 0.6931472
    %v6054 = vlog2.pop %v5927
    %v6055 = vmul.f32 %v6054, 0.6931472
    %v6056 = vlog2.pop %v5929
    %v6057 = vmul.f32 %v6056, 0.6931472
    %v6058 = vlog2.pop %v5931
    %v6059 = vmul.f32 %v6058, 0.6931472
    %v6060 = vlog2.pop %v5933
    %v6061 = vmul.f32 %v6060, 0.6931472
    %v6062 = vlog2.pop %v5935
    %v6063 = vmul.f32 %v6062, 0.6931472
    %v6064 = vlog2.pop %v5937
    %v6065 = vmul.f32 %v6064, 0.6931472
    %v6066 = vlog2.pop %v5939
    %v6067 = vmul.f32 %v6066, 0.6931472
    %v6068 = vlog2.pop %v5941
    %v6069 = vmul.f32 %v6068, 0.6931472
    %v6070 = vlog2.pop %v5943
    %v6071 = vmul.f32 %v6070, 0.6931472
    %v6072 = vlog2.pop %v5945
    %v6073 = vmul.f32 %v6072, 0.6931472
    %v6074 = vlog2.pop %v5947
    %v6075 = vmul.f32 %v6074, 0.6931472
    %v6076 = vlog2.pop %v5949
    %v6077 = vmul.f32 %v6076, 0.6931472
    %v6078 = vlog2.pop %v5951
    %v6079 = vmul.f32 %v6078, 0.6931472
    %v6080 = vlog2.pop %v5953
    %v6081 = vmul.f32 %v6080, 0.6931472
    %v6082 = vlog2.pop %v5955
    %v6083 = vmul.f32 %v6082, 0.6931472
    %v6084 = vlog2.pop %v5957
    %v6085 = vmul.f32 %v6084, 0.6931472
    %v6086 = vlog2.pop %v5959
    %v6087 = vmul.f32 %v6086, 0.6931472
    %v6088 = vlog2.pop %v5961
    %v6089 = vmul.f32 %v6088, 0.6931472
    %v6090 = vlog2.pop %v5963
    %v6091 = vmul.f32 %v6090, 0.6931472
    %v6092 = vlog2.pop %v5965
    %v6093 = vmul.f32 %v6092, 0.6931472
    %v6094 = vlog2.pop %v5967
    %v6095 = vmul.f32 %v6094, 0.6931472
    %v6096 = vlog2.pop %v5969
    %v6097 = vmul.f32 %v6096, 0.6931472
    %v6098 = vlog2.pop %v5971
    %v6099 = vmul.f32 %v6098, 0.6931472
    %v6100 = vlog2.pop %v5973
    %v6101 = vmul.f32 %v6100, 0.6931472
    %v6102 = vlog2.pop %v5975
    %v6103 = vmul.f32 %v6102, 0.6931472
    %v6104 = vlog2.pop %v5977
    %v6105 = vmul.f32 %v6104, 0.6931472
    %v6106 = vlog2.pop %v5979
    %v6107 = vmul.f32 %v6106, 0.6931472
    %v6108 = vlog2.pop %v5981
    %v6109 = vmul.f32 %v6108, 0.6931472
    %v6110 = vlog2.pop %v5983
    %v6111 = vmul.f32 %v6110, 0.6931472
    %v6112 = vlog2.pop %v5985
    %v6113 = vmul.f32 %v6112, 0.6931472
    %v6114 = vlog2.pop %v5987
    %v6115 = vmul.f32 %v6114, 0.6931472
    %v6116 = vlog2.pop %v5989
    %v6117 = vmul.f32 %v6116, 0.6931472
    %v6118 = vlog2.pop %v5991
    %v6119 = vmul.f32 %v6118, 0.6931472
    %v6120 = vlog2.pop %v5993
    %v6121 = vmul.f32 %v6120, 0.6931472
    %v6122 = vlog2.pop %v5995
    %v6123 = vmul.f32 %v6122, 0.6931472
    %v6124 = vlog2.pop %v5997
    %v6125 = vmul.f32 %v6124, 0.6931472
    %v6126 = vlog2.pop %v5999
    %v6127 = vmul.f32 %v6126, 0.6931472
    %v6128 = vlog2.pop %v6001
    %v6129 = vmul.f32 %v6128, 0.6931472
    %v6130 = vlog2.pop %v6003
    %v6131 = vmul.f32 %v6130, 0.6931472
    %v6132 = vlog2.pop %v6005
    %v6133 = vmul.f32 %v6132, 0.6931472
    %v6134 = vlog2.pop %v6007
    %v6135 = vmul.f32 %v6134, 0.6931472
    %v6136 = vlog2.pop %v6009
    %v6137 = vmul.f32 %v6136, 0.6931472
    %v6138 = vlog2.pop %v6011
    %v6139 = vmul.f32 %v6138, 0.6931472
    %v6140 = vlog2.pop %v6013
    %v6141 = vmul.f32 %v6140, 0.6931472
    %v6142 = vadd.f32 %v6015, %v5567
    %v6143 = vadd.f32 %v6017, %v5569
    %v6144 = vadd.f32 %v6019, %v5571
    %v6145 = vadd.f32 %v6021, %v5573
    %v6146 = vadd.f32 %v6023, %v5575
    %v6147 = vadd.f32 %v6025, %v5577
    %v6148 = vadd.f32 %v6027, %v5579
    %v6149 = vadd.f32 %v6029, %v5581
    %v6150 = vadd.f32 %v6031, %v5583
    %v6151 = vadd.f32 %v6033, %v5585
    %v6152 = vadd.f32 %v6035, %v5587
    %v6153 = vadd.f32 %v6037, %v5589
    %v6154 = vadd.f32 %v6039, %v5591
    %v6155 = vadd.f32 %v6041, %v5593
    %v6156 = vadd.f32 %v6043, %v5595
    %v6157 = vadd.f32 %v6045, %v5597
    %v6158 = vadd.f32 %v6047, %v5599
    %v6159 = vadd.f32 %v6049, %v5601
    %v6160 = vadd.f32 %v6051, %v5603
    %v6161 = vadd.f32 %v6053, %v5605
    %v6162 = vadd.f32 %v6055, %v5607
    %v6163 = vadd.f32 %v6057, %v5609
    %v6164 = vadd.f32 %v6059, %v5611
    %v6165 = vadd.f32 %v6061, %v5613
    %v6166 = vadd.f32 %v6063, %v5615
    %v6167 = vadd.f32 %v6065, %v5617
    %v6168 = vadd.f32 %v6067, %v5619
    %v6169 = vadd.f32 %v6069, %v5621
    %v6170 = vadd.f32 %v6071, %v5623
    %v6171 = vadd.f32 %v6073, %v5625
    %v6172 = vadd.f32 %v6075, %v5627
    %v6173 = vadd.f32 %v6077, %v5629
    %v6174 = vadd.f32 %v6079, %v5631
    %v6175 = vadd.f32 %v6081, %v5633
    %v6176 = vadd.f32 %v6083, %v5635
    %v6177 = vadd.f32 %v6085, %v5637
    %v6178 = vadd.f32 %v6087, %v5639
    %v6179 = vadd.f32 %v6089, %v5641
    %v6180 = vadd.f32 %v6091, %v5643
    %v6181 = vadd.f32 %v6093, %v5645
    %v6182 = vadd.f32 %v6095, %v5647
    %v6183 = vadd.f32 %v6097, %v5649
    %v6184 = vadd.f32 %v6099, %v5651
    %v6185 = vadd.f32 %v6101, %v5653
    %v6186 = vadd.f32 %v6103, %v5655
    %v6187 = vadd.f32 %v6105, %v5657
    %v6188 = vadd.f32 %v6107, %v5659
    %v6189 = vadd.f32 %v6109, %v5661
    %v6190 = vadd.f32 %v6111, %v5663
    %v6191 = vadd.f32 %v6113, %v5665
    %v6192 = vadd.f32 %v6115, %v5667
    %v6193 = vadd.f32 %v6117, %v5669
    %v6194 = vadd.f32 %v6119, %v5671
    %v6195 = vadd.f32 %v6121, %v5673
    %v6196 = vadd.f32 %v6123, %v5675
    %v6197 = vadd.f32 %v6125, %v5677
    %v6198 = vadd.f32 %v6127, %v5679
    %v6199 = vadd.f32 %v6129, %v5681
    %v6200 = vadd.f32 %v6131, %v5683
    %v6201 = vadd.f32 %v6133, %v5685
    %v6202 = vadd.f32 %v6135, %v5687
    %v6203 = vadd.f32 %v6137, %v5689
    %v6204 = vadd.f32 %v6139, %v5691
    %v6205 = vadd.f32 %v6141, %v5693
    %v6206 = vsub.f32 %v5502, %v6142
    %v6207 = vsub.f32 %v5503, %v6143
    %v6208 = vsub.f32 %v5504, %v6144
    %v6209 = vsub.f32 %v5505, %v6145
    %v6210 = vsub.f32 %v5506, %v6146
    %v6211 = vsub.f32 %v5507, %v6147
    %v6212 = vsub.f32 %v5508, %v6148
    %v6213 = vsub.f32 %v5509, %v6149
    %v6214 = vsub.f32 %v5510, %v6150
    %v6215 = vsub.f32 %v5511, %v6151
    %v6216 = vsub.f32 %v5512, %v6152
    %v6217 = vsub.f32 %v5513, %v6153
    %v6218 = vsub.f32 %v5514, %v6154
    %v6219 = vsub.f32 %v5515, %v6155
    %v6220 = vsub.f32 %v5516, %v6156
    %v6221 = vsub.f32 %v5517, %v6157
    %v6222 = vsub.f32 %v5518, %v6158
    %v6223 = vsub.f32 %v5519, %v6159
    %v6224 = vsub.f32 %v5520, %v6160
    %v6225 = vsub.f32 %v5521, %v6161
    %v6226 = vsub.f32 %v5522, %v6162
    %v6227 = vsub.f32 %v5523, %v6163
    %v6228 = vsub.f32 %v5524, %v6164
    %v6229 = vsub.f32 %v5525, %v6165
    %v6230 = vsub.f32 %v5526, %v6166
    %v6231 = vsub.f32 %v5527, %v6167
    %v6232 = vsub.f32 %v5528, %v6168
    %v6233 = vsub.f32 %v5529, %v6169
    %v6234 = vsub.f32 %v5530, %v6170
    %v6235 = vsub.f32 %v5531, %v6171
    %v6236 = vsub.f32 %v5532, %v6172
    %v6237 = vsub.f32 %v5533, %v6173
    %v6238 = vsub.f32 %v5534, %v6174
    %v6239 = vsub.f32 %v5535, %v6175
    %v6240 = vsub.f32 %v5536, %v6176
    %v6241 = vsub.f32 %v5537, %v6177
    %v6242 = vsub.f32 %v5538, %v6178
    %v6243 = vsub.f32 %v5539, %v6179
    %v6244 = vsub.f32 %v5540, %v6180
    %v6245 = vsub.f32 %v5541, %v6181
    %v6246 = vsub.f32 %v5542, %v6182
    %v6247 = vsub.f32 %v5543, %v6183
    %v6248 = vsub.f32 %v5544, %v6184
    %v6249 = vsub.f32 %v5545, %v6185
    %v6250 = vsub.f32 %v5546, %v6186
    %v6251 = vsub.f32 %v5547, %v6187
    %v6252 = vsub.f32 %v5548, %v6188
    %v6253 = vsub.f32 %v5549, %v6189
    %v6254 = vsub.f32 %v5550, %v6190
    %v6255 = vsub.f32 %v5551, %v6191
    %v6256 = vsub.f32 %v5552, %v6192
    %v6257 = vsub.f32 %v5553, %v6193
    %v6258 = vsub.f32 %v5554, %v6194
    %v6259 = vsub.f32 %v5555, %v6195
    %v6260 = vsub.f32 %v5556, %v6196
    %v6261 = vsub.f32 %v5557, %v6197
    %v6262 = vsub.f32 %v5558, %v6198
    %v6263 = vsub.f32 %v5559, %v6199
    %v6264 = vsub.f32 %v5560, %v6200
    %v6265 = vsub.f32 %v5561, %v6201
    %v6266 = vsub.f32 %v5562, %v6202
    %v6267 = vsub.f32 %v5563, %v6203
    %v6268 = vsub.f32 %v5564, %v6204
    %v6269 = vsub.f32 %v5565, %v6205
    %v6270 = vsel %vm5501, %v6206, 0.0
    %v6271 = vsel %vm5501, %v6207, 0.0
    %v6272 = vsel %vm5501, %v6208, 0.0
    %v6273 = vsel %vm5501, %v6209, 0.0
    %v6274 = vsel %vm5501, %v6210, 0.0
    %v6275 = vsel %vm5501, %v6211, 0.0
    %v6276 = vsel %vm5501, %v6212, 0.0
    %v6277 = vsel %vm5501, %v6213, 0.0
    %v6278 = vsel %vm5501, %v6214, 0.0
    %v6279 = vsel %vm5501, %v6215, 0.0
    %v6280 = vsel %vm5501, %v6216, 0.0
    %v6281 = vsel %vm5501, %v6217, 0.0
    %v6282 = vsel %vm5501, %v6218, 0.0
    %v6283 = vsel %vm5501, %v6219, 0.0
    %v6284 = vsel %vm5501, %v6220, 0.0
    %v6285 = vsel %vm5501, %v6221, 0.0
    %v6286 = vsel %vm5501, %v6222, 0.0
    %v6287 = vsel %vm5501, %v6223, 0.0
    %v6288 = vsel %vm5501, %v6224, 0.0
    %v6289 = vsel %vm5501, %v6225, 0.0
    %v6290 = vsel %vm5501, %v6226, 0.0
    %v6291 = vsel %vm5501, %v6227, 0.0
    %v6292 = vsel %vm5501, %v6228, 0.0
    %v6293 = vsel %vm5501, %v6229, 0.0
    %v6294 = vsel %vm5501, %v6230, 0.0
    %v6295 = vsel %vm5501, %v6231, 0.0
    %v6296 = vsel %vm5501, %v6232, 0.0
    %v6297 = vsel %vm5501, %v6233, 0.0
    %v6298 = vsel %vm5501, %v6234, 0.0
    %v6299 = vsel %vm5501, %v6235, 0.0
    %v6300 = vsel %vm5501, %v6236, 0.0
    %v6301 = vsel %vm5501, %v6237, 0.0
    %v6302 = vsel %vm5501, %v6238, 0.0
    %v6303 = vsel %vm5501, %v6239, 0.0
    %v6304 = vsel %vm5501, %v6240, 0.0
    %v6305 = vsel %vm5501, %v6241, 0.0
    %v6306 = vsel %vm5501, %v6242, 0.0
    %v6307 = vsel %vm5501, %v6243, 0.0
    %v6308 = vsel %vm5501, %v6244, 0.0
    %v6309 = vsel %vm5501, %v6245, 0.0
    %v6310 = vsel %vm5501, %v6246, 0.0
    %v6311 = vsel %vm5501, %v6247, 0.0
    %v6312 = vsel %vm5501, %v6248, 0.0
    %v6313 = vsel %vm5501, %v6249, 0.0
    %v6314 = vsel %vm5501, %v6250, 0.0
    %v6315 = vsel %vm5501, %v6251, 0.0
    %v6316 = vsel %vm5501, %v6252, 0.0
    %v6317 = vsel %vm5501, %v6253, 0.0
    %v6318 = vsel %vm5501, %v6254, 0.0
    %v6319 = vsel %vm5501, %v6255, 0.0
    %v6320 = vsel %vm5501, %v6256, 0.0
    %v6321 = vsel %vm5501, %v6257, 0.0
    %v6322 = vsel %vm5501, %v6258, 0.0
    %v6323 = vsel %vm5501, %v6259, 0.0
    %v6324 = vsel %vm5501, %v6260, 0.0
    %v6325 = vsel %vm5501, %v6261, 0.0
    %v6326 = vsel %vm5501, %v6262, 0.0
    %v6327 = vsel %vm5501, %v6263, 0.0
    %v6328 = vsel %vm5501, %v6264, 0.0
    %v6329 = vsel %vm5501, %v6265, 0.0
    %v6330 = vsel %vm5501, %v6266, 0.0
    %v6331 = vsel %vm5501, %v6267, 0.0
    %v6332 = vsel %vm5501, %v6268, 0.0
    %v6333 = vsel %vm5501, %v6269, 0.0
    %v6334 = vld [vmem:[#allocation10] sm:$0xff]
    %v6335 = vld [vmem:[#allocation10 + $0x8] sm:$0xff]
    %v6336 = vld [vmem:[#allocation10 + $0x10] sm:$0xff]
    %v6337 = vld [vmem:[#allocation10 + $0x18] sm:$0xff]
    %6338 = vmatpush.msra.mxu0 %v6285
    %6339 = vmatpush.msra.mxu0 %v6284
    %6340 = vmatpush.msra.mxu0 %v6283
    %6341 = vmatpush.msra.mxu0 %v6282
    %6342 = vmatpush.msra.mxu0 %v6281
    %6343 = vmatpush.msra.mxu0 %v6280
    %6344 = vmatpush.msra.mxu0 %v6279
    %6345 = vmatpush.msra.mxu0 %v6278
    %6346 = vmatpush.msra.mxu0 %v6277
    %6347 = vmatpush.msra.mxu0 %v6276
    %6348 = vmatpush.msra.mxu0 %v6275
    %6349 = vmatpush.msra.mxu0 %v6274
    %6350 = vmatpush.msra.mxu0 %v6273
    %6351 = vmatpush.msra.mxu0 %v6272
    %6352 = vmatpush.msra.mxu0 %v6271
    %6353 = vmatpush.msra.mxu0 %v6270
    %6354 = vmatmul.f32.gmra.mxu0 %v6334
    %v6355 = vpop.f32.mrf.mxu0
    %v6356 = vadd.f32 0.0, %v6355
    %6357 = vdwg.mxu0
    %6358 = vmatpush.msra.mxu0 %v6301
    %6359 = vmatpush.msra.mxu0 %v6300
    %6360 = vmatpush.msra.mxu0 %v6299
    %6361 = vmatpush.msra.mxu0 %v6298
    %6362 = vmatpush.msra.mxu0 %v6297
    %6363 = vmatpush.msra.mxu0 %v6296
    %6364 = vmatpush.msra.mxu0 %v6295
    %6365 = vmatpush.msra.mxu0 %v6294
    %6366 = vmatpush.msra.mxu0 %v6293
    %6367 = vmatpush.msra.mxu0 %v6292
    %6368 = vmatpush.msra.mxu0 %v6291
    %6369 = vmatpush.msra.mxu0 %v6290
    %6370 = vmatpush.msra.mxu0 %v6289
    %6371 = vmatpush.msra.mxu0 %v6288
    %6372 = vmatpush.msra.mxu0 %v6287
    %6373 = vmatpush.msra.mxu0 %v6286
    %6374 = vmatmul.f32.gmra.mxu0 %v6335
    %v6375 = vpop.f32.mrf.mxu0
    %v6376 = vadd.f32 %v6356, %v6375
    %6377 = vdwg.mxu0
    %6378 = vmatpush.msra.mxu0 %v6317
    %6379 = vmatpush.msra.mxu0 %v6316
    %6380 = vmatpush.msra.mxu0 %v6315
    %6381 = vmatpush.msra.mxu0 %v6314
    %6382 = vmatpush.msra.mxu0 %v6313
    %6383 = vmatpush.msra.mxu0 %v6312
    %6384 = vmatpush.msra.mxu0 %v6311
    %6385 = vmatpush.msra.mxu0 %v6310
    %6386 = vmatpush.msra.mxu0 %v6309
    %6387 = vmatpush.msra.mxu0 %v6308
    %6388 = vmatpush.msra.mxu0 %v6307
    %6389 = vmatpush.msra.mxu0 %v6306
    %6390 = vmatpush.msra.mxu0 %v6305
    %6391 = vmatpush.msra.mxu0 %v6304
    %6392 = vmatpush.msra.mxu0 %v6303
    %6393 = vmatpush.msra.mxu0 %v6302
    %6394 = vmatmul.f32.gmra.mxu0 %v6336
    %v6395 = vpop.f32.mrf.mxu0
    %v6396 = vadd.f32 %v6376, %v6395
    %6397 = vdwg.mxu0
    %6398 = vmatpush.msra.mxu0 %v6333
    %6399 = vmatpush.msra.mxu0 %v6332
    %6400 = vmatpush.msra.mxu0 %v6331
    %6401 = vmatpush.msra.mxu0 %v6330
    %6402 = vmatpush.msra.mxu0 %v6329
    %6403 = vmatpush.msra.mxu0 %v6328
    %6404 = vmatpush.msra.mxu0 %v6327
    %6405 = vmatpush.msra.mxu0 %v6326
    %6406 = vmatpush.msra.mxu0 %v6325
    %6407 = vmatpush.msra.mxu0 %v6324
    %6408 = vmatpush.msra.mxu0 %v6323
    %6409 = vmatpush.msra.mxu0 %v6322
    %6410 = vmatpush.msra.mxu0 %v6321
    %6411 = vmatpush.msra.mxu0 %v6320
    %6412 = vmatpush.msra.mxu0 %v6319
    %6413 = vmatpush.msra.mxu0 %v6318
    %6414 = vmatmul.f32.gmra.mxu0 %v6337
    %v6415 = vpop.f32.mrf.mxu0
    %v6416 = vadd.f32 %v6396, %v6415
    %6417 = vdwg.mxu0
    %v6418 = vld [vmem:[#allocation11] sm:$0xff]
    %v6419 = vld [vmem:[#allocation11 + $0x8] sm:$0xff]
    %v6420 = vld [vmem:[#allocation11 + $0x10] sm:$0xff]
    %v6421 = vld [vmem:[#allocation11 + $0x18] sm:$0xff]
    %v6422 = vld [vmem:[#allocation11 + $0x20] sm:$0xff]
    %v6423 = vld [vmem:[#allocation11 + $0x28] sm:$0xff]
    %v6424 = vld [vmem:[#allocation11 + $0x30] sm:$0xff]
    %v6425 = vld [vmem:[#allocation11 + $0x38] sm:$0xff]
    %v6426 = vld [vmem:[#allocation11 + $0x40] sm:$0xff]
    %v6427 = vld [vmem:[#allocation11 + $0x48] sm:$0xff]
    %v6428 = vld [vmem:[#allocation11 + $0x50] sm:$0xff]
    %v6429 = vld [vmem:[#allocation11 + $0x58] sm:$0xff]
    %v6430 = vld [vmem:[#allocation11 + $0x60] sm:$0xff]
    %v6431 = vld [vmem:[#allocation11 + $0x68] sm:$0xff]
    %v6432 = vld [vmem:[#allocation11 + $0x70] sm:$0xff]
    %v6433 = vld [vmem:[#allocation11 + $0x78] sm:$0xff]
    %6434 = vmatpush.msra.mxu0 %v6433
    %6435 = vmatpush.msra.mxu0 %v6432
    %6436 = vmatpush.msra.mxu0 %v6431
    %6437 = vmatpush.msra.mxu0 %v6430
    %6438 = vmatpush.msra.mxu0 %v6429
    %6439 = vmatpush.msra.mxu0 %v6428
    %6440 = vmatpush.msra.mxu0 %v6427
    %6441 = vmatpush.msra.mxu0 %v6426
    %6442 = vmatpush.msra.mxu0 %v6425
    %6443 = vmatpush.msra.mxu0 %v6424
    %6444 = vmatpush.msra.mxu0 %v6423
    %6445 = vmatpush.msra.mxu0 %v6422
    %6446 = vmatpush.msra.mxu0 %v6421
    %6447 = vmatpush.msra.mxu0 %v6420
    %6448 = vmatpush.msra.mxu0 %v6419
    %6449 = vmatpush.msra.mxu0 %v6418
    %6450 = vmatmul.f32.gmra.mxu0 %v6416
    %v6451 = vpop.f32.mrf.mxu0
    %v6452 = vadd.f32 0.0, %v6451
    %6453 = vdwg.mxu0
    %6454 = vst [vmem:[#allocation13] sm:$0xff] %v6452
    // Predicated region
    $region54: #{tpu_custom_call.1} parent=1 // pred_check
      _
    $region55: #{tpu_custom_call.1} parent=1 // pred_check_branch
      %6456 = sbr.rel (0) target = $region57
    $region56: #{tpu_custom_call.1} parent=1 // pred_region
      %6458 = vsyncadd [#allocation4], 0
      %s6460 = sshll.u32 [#allocation13], 4
      %s6461 = int_to_ptr.vmem [resolvable:$true] %s6460
      %s6462 = sshll.u32 %s7, 4
      %s6463 = int_to_ptr.hbm [resolvable:$true] %s6462
      %6465 = dma.vmem_to_hbm [thread:$0]  %s6461, 128, %s6463, [#allocation4]
    $region57: #{tpu_custom_call.1} parent=1 // pred_fallthru
      _
    // Predicated region
    $region58: #{tpu_custom_call.1} parent=1 // pred_check
      _
    $region59: #{tpu_custom_call.1} parent=1 // pred_check_branch
      %6467 = sbr.rel (0) target = $region61
    $region60: #{tpu_custom_call.1} parent=1 // pred_region
      %6469 = dma.done [#allocation4], 128
    $region61: #{tpu_custom_call.1} parent=1 // pred_fallthru
      _
    %6470 = vsyncpa [#allocation3], 1
    %6471 = vsyncpa [#allocation6], 1
    %6472 = vsyncpa [#allocation9], 1
    %6473 = vsyncpa [#allocation12], 1
    %6474 = vsyncpa [#allocation4], 1

</llo_original>
